<compile_context>
chip_gen: v7x
topology: tpu7x:2x2x1
jax: 0.10.0
libtpu: 0.0.40
codegen_flags: <defaults>
</compile_context>

<pallas_src>
import functools

import jax
import jax.numpy as jnp
from jax.experimental import pallas as pl
from jax.experimental.pallas import tpu as pltpu

CPAD = 128  # lane-dense channel padding


# ----------------------------------------------------------------------------
# small helpers
# ----------------------------------------------------------------------------
def _pad_last(x, target):
    pad = target - x.shape[-1]
    if pad == 0:
        return x
    return jnp.pad(x, [(0, 0)] * (x.ndim - 1) + [(0, pad)])


def _pick_tile(h, pref):
    """Largest even divisor of h that is <= pref (falls back to h)."""
    if h <= pref:
        return h
    for d in range(pref, 1, -1):
        if h % d == 0 and d % 2 == 0:
            return d
    return h


def _halo_tiles(xp, th):
    """xp: (BN, h+2, w+2, C) spatially padded -> (BN, h//th, th+2, w+2, C).

    Overlapping (+2 halo) row tiles are materialized by XLA so the Pallas
    BlockSpecs stay plain Blocked.
    TODO(synk): switch to an element-offset index_map to avoid the ~2/th
    duplicated halo rows in HBM.
    """
    bn, hp, wp, c = xp.shape
    h = hp - 2
    nt = h // th
    if nt == 1:
        return xp[:, None]
    tiles = [xp[:, j * th:j * th + th + 2] for j in range(nt)]
    return jnp.stack(tiles, axis=1)


def _upsample_w(x):
    """Nearest 2x upsample along W only (XLA side)."""
    bn, h, w, c = x.shape
    return jnp.broadcast_to(x[:, :, :, None, :], (bn, h, w, 2, c)).reshape(
        bn, h, 2 * w, c)


def _upsample2(x):
    """Nearest 2x upsample along H and W (XLA side)."""
    bn, h, w, c = x.shape
    x = jnp.broadcast_to(x[:, :, None, :, None, :], (bn, h, 2, w, 2, c))
    return x.reshape(bn, 2 * h, 2 * w, c)


def _stem_im2col(x):
    """x: (BN, H, W, Cin) f32 -> (BN, H, W, 128) bf16, channel order (dh,dw,c)."""
    bn, h, w, cin = x.shape
    xp = jnp.pad(x, ((0, 0), (1, 1), (1, 1), (0, 0)))
    cols = [xp[:, dh:dh + h, dw:dw + w, :] for dh in range(3) for dw in range(3)]
    xi = jnp.concatenate(cols, axis=-1)                 # (BN, H, W, 9*Cin)
    return _pad_last(xi, CPAD).astype(jnp.bfloat16)


# ----------------------------------------------------------------------------
# in-kernel building blocks
# ----------------------------------------------------------------------------
def _conv3x3_acc(x, w_ref, th, W):
    """3x3 'same' conv on a halo'd tile via 3 dw-grouped K=3*C matmuls.

    x: (th+2, W+2, C) bf16; w_ref: (3, 3*C, C) (dw-major, K ordered (dh, c)).
    Returns f32 accumulator of shape (th*W, C).
    """
    acc = None
    for dw in range(3):
        xdw = x[:, dw:dw + W, :]                                  # (th+2, W, C)
        patches = jnp.concatenate(
            [xdw[0:th], xdw[1:th + 1], xdw[2:th + 2]], axis=-1
        ).reshape(th * W, 3 * CPAD)
        part = jnp.dot(patches, w_ref[dw], preferred_element_type=jnp.float32)
        acc = part if acc is None else acc + part
    return acc


def _pool2_store(acc, o_slot, rbuf, th, W, out_dtype):
    """Fused 2x2 average-pool epilogue (f32), stored via `o_slot` setter."""
    a = acc.reshape(th // 2, 2, W, CPAD)
    rbuf[...] = a[:, 0] + a[:, 1]                                 # row pairs
    even = rbuf[:, pl.ds(0, W // 2, stride=2), :]                 # strided cols
    odd = rbuf[:, pl.ds(1, W // 2, stride=2), :]
    o_slot(((even + odd) * 0.25).astype(out_dtype))


# ----------------------------------------------------------------------------
# Kernel A: stem = (pre-im2col'd) K=128 matmul + bias + ReLU + fused 2x2 pool
# ----------------------------------------------------------------------------
def _stem_pool_kernel(x_ref, w_ref, b_ref, o_ref, rbuf, *, th, W, relu):
    x = x_ref[0]                                                  # (th, W, 128)
    acc = jnp.dot(x.reshape(th * W, CPAD), w_ref[...],
                  preferred_element_type=jnp.float32)
    acc = acc + b_ref[...]
    if relu:
        acc = jnp.maximum(acc, 0.0)
    acc = acc.reshape(th, W, CPAD)

    def store(v):
        o_ref[0] = v

    _pool2_store(acc, store, rbuf, th, W, o_ref.dtype)


def stem_matmul_pool(xi, w, b, *, tile_h=16):
    bn, h, wd, _ = xi.shape
    th = _pick_tile(h, tile_h)
    kern = functools.partial(_stem_pool_kernel, th=th, W=wd, relu=True)
    return pl.pallas_call(
        kern,
        out_shape=jax.ShapeDtypeStruct((bn, h // 2, wd // 2, CPAD), jnp.bfloat16),
        grid_spec=pltpu.PrefetchScalarGridSpec(
            num_scalar_prefetch=0,
            grid=(bn, h // th),
            in_specs=[
                pl.BlockSpec((1, th, wd, CPAD), lambda i, j: (i, j, 0, 0)),
                pl.BlockSpec((CPAD, CPAD), lambda i, j: (0, 0)),
                pl.BlockSpec((1, CPAD), lambda i, j: (0, 0)),
            ],
            out_specs=pl.BlockSpec((1, th // 2, wd // 2, CPAD),
                                   lambda i, j: (i, j, 0, 0)),
            scratch_shapes=[pltpu.VMEM((th // 2, wd, CPAD), jnp.float32)],
        ),
        compiler_params=pltpu.CompilerParams(
            dimension_semantics=("parallel", "parallel")),
    )(xi, w, b)


# ----------------------------------------------------------------------------
# Kernel B: 3x3 conv + bias + ReLU + fused 2x2 pool, halo'd H tiles
# ----------------------------------------------------------------------------
def _conv_pool_kernel(x_ref, w_ref, b_ref, o_ref, rbuf, *, th, W, relu):
    x = x_ref[0, 0]                                               # (th+2, W+2, C)
    acc = _conv3x3_acc(x, w_ref, th, W) + b_ref[...]
    if relu:
        acc = jnp.maximum(acc, 0.0)
    acc = acc.reshape(th, W, CPAD)

    def store(v):
        o_ref[0, 0] = v

    _pool2_store(acc, store, rbuf, th, W, o_ref.dtype)


def conv3x3_relu_pool(x, w, b, *, tile_h=16):
    bn, h, wd, _ = x.shape
    th = _pick_tile(h, tile_h)
    nt = h // th
    xp = jnp.pad(x, ((0, 0), (1, 1), (1, 1), (0, 0)))
    tiles = _halo_tiles(xp, th)                     # (bn, nt, th+2, wd+2, C)
    kern = functools.partial(_conv_pool_kernel, th=th, W=wd, relu=True)
    out = pl.pallas_call(
        kern,
        out_shape=jax.ShapeDtypeStruct((bn, nt, th // 2, wd // 2, CPAD),
                                       jnp.bfloat16),
        grid_spec=pltpu.PrefetchScalarGridSpec(
            num_scalar_prefetch=0,
            grid=(bn, nt),
            in_specs=[
                pl.BlockSpec((1, 1, th + 2, wd + 2, CPAD),
                             lambda i, j: (i, j, 0, 0, 0)),
                pl.BlockSpec((3, 3 * CPAD, CPAD), lambda i, j: (0, 0, 0)),
                pl.BlockSpec((1, CPAD), lambda i, j: (0, 0)),
            ],
            out_specs=pl.BlockSpec((1, 1, th // 2, wd // 2, CPAD),
                                   lambda i, j: (i, j, 0, 0, 0)),
            scratch_shapes=[pltpu.VMEM((th // 2, wd, CPAD), jnp.float32)],
        ),
        compiler_params=pltpu.CompilerParams(
            dimension_semantics=("parallel", "parallel")),
    )(tiles, w, b)
    return out.reshape(bn, h // 2, wd // 2, CPAD)


# ----------------------------------------------------------------------------
# Kernel C: fused FPN top level:
#   in-kernel lat1/lat2 1x1 pre-matmuls, in-kernel nearest-2x row-upsample of
#   the coarse lateral (+XLA W-pre-double), add, 3x3 fpn1 conv + bias.
# ----------------------------------------------------------------------------
def _fpn_top_kernel(c1_ref, c2_ref, lat1_ref, lat2_ref, w_ref, b_ref, o_ref,
                    *, th, W):
    xf = c1_ref[0, 0]                                             # (th+2, W+2, C)
    l1 = jnp.dot(xf.reshape((th + 2) * (W + 2), CPAD), lat1_ref[...],
                 preferred_element_type=jnp.float32
                 ).reshape(th + 2, W + 2, CPAD)

    xc = c2_ref[0, 0]                                             # (th//2+2, W+2, C)
    l2 = jnp.dot(xc.reshape((th // 2 + 2) * (W + 2), CPAD), lat2_ref[...],
                 preferred_element_type=jnp.float32
                 ).reshape(th // 2 + 2, W + 2, CPAD)

    # nearest 2x row-upsample of the halo'd coarse lateral: row pattern
    # [1, 2, 2, ..., 2, 1] (halo rows map to a single coarse row each).
    mid = l2[1:th // 2 + 1]
    mid2 = jnp.broadcast_to(mid[:, None],
                            (th // 2, 2, W + 2, CPAD)).reshape(th, W + 2, CPAD)
    up = jnp.concatenate([l2[0:1], mid2, l2[th // 2 + 1:th // 2 + 2]], axis=0)

    p = (l1 + up).astype(jnp.bfloat16)                            # (th+2, W+2, C)
    acc = _conv3x3_acc(p, w_ref, th, W) + b_ref[...]
    o_ref[0, 0] = acc.reshape(th, W, CPAD).astype(o_ref.dtype)


def fpn_top_fused(c1, c2, lat1_w, lat2_w, fpn_w, fpn_b, *, tile_h=16):
    bn, h2, w2, _ = c1.shape
    th = _pick_tile(h2, tile_h)
    nt = h2 // th

    c1p = jnp.pad(c1, ((0, 0), (1, 1), (1, 1), (0, 0)))
    fine_tiles = _halo_tiles(c1p, th)               # (bn, nt, th+2, w2+2, C)

    # Coarse level: pre-double W in XLA (cheap), pad, then halo-tile aligned
    # with the fine tiles; the kernel only needs (free) row-doubling.
    c2w = _upsample_w(c2)                           # (bn, h4, w2, C)
    c2wp = jnp.pad(c2w, ((0, 0), (1, 1), (1, 1), (0, 0)))
    coarse_tiles = _halo_tiles(c2wp, th // 2)       # (bn, nt, th//2+2, w2+2, C)

    kern = functools.partial(_fpn_top_kernel, th=th, W=w2)
    out = pl.pallas_call(
        kern,
        out_shape=jax.ShapeDtypeStruct((bn, nt, th, w2, CPAD), jnp.bfloat16),
        grid_spec=pltpu.PrefetchScalarGridSpec(
            num_scalar_prefetch=0,
            grid=(bn, nt),
            in_specs=[
                pl.BlockSpec((1, 1, th + 2, w2 + 2, CPAD),
                             lambda i, j: (i, j, 0, 0, 0)),
                pl.BlockSpec((1, 1, th // 2 + 2, w2 + 2, CPAD),
                             lambda i, j: (i, j, 0, 0, 0)),
                pl.BlockSpec((CPAD, CPAD), lambda i, j: (0, 0)),
                pl.BlockSpec((CPAD, CPAD), lambda i, j: (0, 0)),
                pl.BlockSpec((3, 3 * CPAD, CPAD), lambda i, j: (0, 0, 0)),
                pl.BlockSpec((1, CPAD), lambda i, j: (0, 0)),
            ],
            out_specs=pl.BlockSpec((1, 1, th, w2, CPAD),
                                   lambda i, j: (i, j, 0, 0, 0)),
        ),
        compiler_params=pltpu.CompilerParams(
            dimension_semantics=("parallel", "parallel")),
    )(fine_tiles, coarse_tiles, lat1_w, lat2_w, fpn_w, fpn_b)
    return out.reshape(bn, h2, w2, CPAD)


# ----------------------------------------------------------------------------
# Kernel D: plain 3x3 conv + bias (lat2 folded into its weights offline)
# ----------------------------------------------------------------------------
def _conv_kernel(x_ref, w_ref, b_ref, o_ref, *, th, W, relu):
    x = x_ref[0, 0]
    acc = _conv3x3_acc(x, w_ref, th, W) + b_ref[...]
    if relu:
        acc = jnp.maximum(acc, 0.0)
    o_ref[0, 0] = acc.reshape(th, W, CPAD).astype(o_ref.dtype)


def conv3x3_plain(x, w, b, *, relu=False, tile_h=16):
    bn, h, wd, _ = x.shape
    th = _pick_tile(h, tile_h)
    nt = h // th
    xp = jnp.pad(x, ((0, 0), (1, 1), (1, 1), (0, 0)))
    tiles = _halo_tiles(xp, th)
    kern = functools.partial(_conv_kernel, th=th, W=wd, relu=relu)
    out = pl.pallas_call(
        kern,
        out_shape=jax.ShapeDtypeStruct((bn, nt, th, wd, CPAD), jnp.bfloat16),
        grid_spec=pltpu.PrefetchScalarGridSpec(
            num_scalar_prefetch=0,
            grid=(bn, nt),
            in_specs=[
                pl.BlockSpec((1, 1, th + 2, wd + 2, CPAD),
                             lambda i, j: (i, j, 0, 0, 0)),
                pl.BlockSpec((3, 3 * CPAD, CPAD), lambda i, j: (0, 0, 0)),
                pl.BlockSpec((1, CPAD), lambda i, j: (0, 0)),
            ],
            out_specs=pl.BlockSpec((1, 1, th, wd, CPAD),
                                   lambda i, j: (i, j, 0, 0, 0)),
        ),
        compiler_params=pltpu.CompilerParams(
            dimension_semantics=("parallel", "parallel")),
    )(tiles, w, b)
    return out.reshape(bn, h, wd, CPAD)


# ----------------------------------------------------------------------------
# Parameters (deterministic synthetic init — no checkpoint).
# ----------------------------------------------------------------------------
def _conv_w_format(w_hwio):
    """(3,3,CPAD,CPAD) f32 -> (3, 3*CPAD, CPAD) bf16, dw-major, K ordered (dh,c)."""
    w = jnp.transpose(w_hwio, (1, 0, 2, 3))
    return w.reshape(3, 3 * CPAD, CPAD).astype(jnp.bfloat16)


def init_params(key, c_in=4, c1=64, c2=128, c_neck=128):
    ks = jax.random.split(key, 10)

    def rnd(k, shape, scale):
        return jax.random.normal(k, shape, jnp.float32) * scale

    def pad_io(w):
        return jnp.pad(w, ((0, 0), (0, 0),
                           (0, CPAD - w.shape[2]), (0, CPAD - w.shape[3])))

    def pad_bias(b):
        return jnp.pad(b, (0, CPAD - b.shape[0]))[None, :].astype(jnp.float32)

    stem_hwio = rnd(ks[0], (3, 3, c_in, c1), 1.0 / (3.0 * c_in ** 0.5))
    conv2_hwio = rnd(ks[1], (3, 3, c1, c2), 1.0 / (3.0 * c1 ** 0.5))
    lat1 = rnd(ks[2], (c1, c_neck), 1.0 / c1 ** 0.5)      # laterals: no bias
    lat2 = rnd(ks[3], (c2, c_neck), 1.0 / c2 ** 0.5)
    fpn1_hwio = rnd(ks[4], (3, 3, c_neck, c_neck), 1.0 / (3.0 * c_neck ** 0.5))
    fpn2_hwio = rnd(ks[5], (3, 3, c_neck, c_neck), 1.0 / (3.0 * c_neck ** 0.5))

    # Stem weight in raw-channel im2col order (dh, dw, c_in), K padded to 128.
    stem_w = stem_hwio.reshape(9 * c_in, c1)
    stem_w = jnp.pad(stem_w, ((0, CPAD - 9 * c_in),
                              (0, CPAD - c1))).astype(jnp.bfloat16)

    conv2_w = _conv_w_format(pad_io(conv2_hwio))
    fpn1_w = _conv_w_format(pad_io(fpn1_hwio))
    # Fold the 1x1 lateral (lat2) into the 3x3 fpn2 conv (exact: no lat bias).
    fold2_hwio = jnp.einsum('ck,hwko->hwco', lat2, fpn2_hwio)
    fpn2_w = _conv_w_format(pad_io(fold2_hwio))

    lat1_w = jnp.pad(lat1, ((0, CPAD - c1), (0, CPAD - c_neck))).astype(jnp.bfloat16)
    lat2_w = jnp.pad(lat2, ((0, CPAD - c2), (0, CPAD - c_neck))).astype(jnp.bfloat16)

    return {
        "stem_w": stem_w, "stem_b": pad_bias(rnd(ks[6], (c1,), 0.02)),
        "conv2_w": conv2_w, "conv2_b": pad_bias(rnd(ks[7], (c2,), 0.02)),
        "lat1_w": lat1_w, "lat2_w": lat2_w,
        "fpn1_w": fpn1_w, "fpn1_b": pad_bias(rnd(ks[8], (c_neck,), 0.02)),
        "fpn2_w": fpn2_w, "fpn2_b": pad_bias(rnd(ks[9], (c_neck,), 0.02)),
    }


# ----------------------------------------------------------------------------
# CameraFeatures.forward equivalent
# ----------------------------------------------------------------------------
def camera_features_forward(params, img):
    """img: [B, N, C, H, W] f32. Returns [2*B, N, 128, H//2, W//2] f32."""
    B, N, C, H, W = img.shape
    bn = B * N
    # reshape(B*N, C, H, W); compute in NHWC bf16 with lane-dense channels.
    x = jnp.transpose(img.reshape(bn, C, H, W), (0, 2, 3, 1))

    # --- img_backbone: two conv+ReLU+pool stages (pool fused in-kernel) ---
    xi = _stem_im2col(x)                                           # (bn, H, W, 128)
    c1 = stem_matmul_pool(xi, params["stem_w"], params["stem_b"])  # (bn, H/2, W/2, 128)
    c2 = conv3x3_relu_pool(c1, params["conv2_w"], params["conv2_b"])  # (bn, H/4, W/4, 128)
    img_feats = {"c1": c1, "c2": c2}
    if isinstance(img_feats, dict):
        img_feats = list(img_feats.values())

    # --- img_neck: FPN (laterals + top-down fused into the output convs) ---
    o1 = fpn_top_fused(img_feats[0], img_feats[1],
                       params["lat1_w"], params["lat2_w"],
                       params["fpn1_w"], params["fpn1_b"])         # (bn, H/2, W/2, 128)
    o2s = conv3x3_plain(img_feats[1], params["fpn2_w"], params["fpn2_b"])  # (bn, H/4, W/4, 128)
    # TODO(synk): fuse this nearest-2x upsample into the fpn2 conv epilogue.
    o2 = _upsample2(o2s)                                           # (bn, H/2, W/2, 128)
    neck_feats = [o1, o2]          # both levels at (H/2, W/2) so cat(dim=0) is valid

    # --- reshape each level to [B, N, C', H', W'] and concat along dim 0 ---
    outs = []
    for f in neck_feats:
        f = jnp.transpose(f, (0, 3, 1, 2))                         # (BN, C', H', W')
        _, cf, hf, wf = f.shape
        outs.append(f.reshape(B, bn // B, cf, hf, wf))
    return jnp.concatenate(outs, axis=0).astype(jnp.float32)


if __name__ == "__main__":
    key = jax.random.PRNGKey(0)
    k_img, k_param = jax.random.split(key)

    B, N, C, H, W = 2, 2, 4, 16, 16
    img = jax.random.normal(k_img, (B, N, C, H, W), jnp.float32)
    params = init_params(k_param, c_in=C)

    out = jax.jit(camera_features_forward)(params, img)
    out = jax.block_until_ready(out)
    assert out.shape == (2 * B, N, 128, H // 2, W // 2), out.shape
    assert bool(jnp.all(jnp.isfinite(out)))
    print("KERNEL_OK")
</pallas_src>

<mosaic_0001>
module attributes {stable_mosaic.version = 11 : i64} {
  func.func @_stem_pool_kernel(%arg0: i32, %arg1: i32, %arg2: memref<1x16x16x128xbf16, #tpu.memory_space<vmem>>, %arg3: memref<128x128xbf16, #tpu.memory_space<vmem>>, %arg4: memref<1x128xf32, #tpu.memory_space<vmem>>, %arg5: memref<1x8x8x128xbf16, #tpu.memory_space<vmem>>, %arg6: memref<8x16x128xf32, #tpu.memory_space<vmem>>) attributes {dimension_semantics = [#tpu.dimension_semantics<parallel>, #tpu.dimension_semantics<parallel>], iteration_bounds = array<i64: 4, 1>, scalar_prefetch = 0 : i64, scratch_operands = 1 : i64, tpu.core_type = #tpu.core_type<tc>, window_params = [{transform_indices = @transform_0, window_bounds = array<i64: 1, 16, 16, 128>}, {pipeline_mode = #tpu.pipeline_mode<synchronous>, transform_indices = @transform_1, window_bounds = array<i64: 128, 128>}, {pipeline_mode = #tpu.pipeline_mode<synchronous>, transform_indices = @transform_2, window_bounds = array<i64: 1, 128>}, {transform_indices = @transform_3, window_bounds = array<i64: 1, 8, 8, 128>}]} {
    %c0 = arith.constant 0 : index
    %c0_0 = arith.constant 0 : index
    %c0_1 = arith.constant 0 : index
    %c0_2 = arith.constant 0 : index
    %0 = vector.load %arg2[%c0, %c0_0, %c0_1, %c0_2] : memref<1x16x16x128xbf16, #tpu.memory_space<vmem>>, vector<1x16x16x128xbf16>
    %1 = vector.shape_cast %0 : vector<1x16x16x128xbf16> to vector<16x16x128xbf16>
    %2 = vector.shape_cast %1 : vector<16x16x128xbf16> to vector<256x128xbf16>
    %c0_3 = arith.constant 0 : index
    %c0_4 = arith.constant 0 : index
    %3 = vector.load %arg3[%c0_3, %c0_4] : memref<128x128xbf16, #tpu.memory_space<vmem>>, vector<128x128xbf16>
    %cst = arith.constant dense<0.000000e+00> : vector<256x128xf32>
    %4 = tpu.matmul %2, %3, %cst {dimension_numbers = #tpu.dot_dimension_numbers<[1], [0], [0], [1], [0, 0, 1, 1], [], []>} : vector<256x128xbf16>, vector<128x128xbf16>, vector<256x128xf32> -> vector<256x128xf32>
    %c0_5 = arith.constant 0 : index
    %c0_6 = arith.constant 0 : index
    %5 = vector.load %arg4[%c0_5, %c0_6] : memref<1x128xf32, #tpu.memory_space<vmem>>, vector<1x128xf32>
    %6 = vector.broadcast %5 : vector<1x128xf32> to vector<256x128xf32>
    %7 = arith.addf %4, %6 : vector<256x128xf32>
    %cst_7 = arith.constant 0.000000e+00 : f32
    %8 = vector.broadcast %cst_7 : f32 to vector<256x128xf32>
    %9 = arith.maximumf %7, %8 : vector<256x128xf32>
    %10 = vector.shape_cast %9 : vector<256x128xf32> to vector<16x16x128xf32>
    %11 = vector.shape_cast %10 : vector<16x16x128xf32> to vector<8x2x16x128xf32>
    %12 = vector.extract_strided_slice %11 {offsets = [0, 0, 0, 0], sizes = [8, 1, 16, 128], strides = [1, 1, 1, 1]} : vector<8x2x16x128xf32> to vector<8x1x16x128xf32>
    %13 = vector.shape_cast %12 : vector<8x1x16x128xf32> to vector<8x16x128xf32>
    %14 = vector.extract_strided_slice %11 {offsets = [0, 1, 0, 0], sizes = [8, 1, 16, 128], strides = [1, 1, 1, 1]} : vector<8x2x16x128xf32> to vector<8x1x16x128xf32>
    %15 = vector.shape_cast %14 : vector<8x1x16x128xf32> to vector<8x16x128xf32>
    %16 = arith.addf %13, %15 : vector<8x16x128xf32>
    %c0_8 = arith.constant 0 : index
    %c0_9 = arith.constant 0 : index
    %c0_10 = arith.constant 0 : index
    %17 = vector.load %arg6[%c0_8, %c0_9, %c0_10] : memref<8x16x128xf32, #tpu.memory_space<vmem>>, vector<8x16x128xf32>
    tpu.vector_store %arg6[%c0_8, %c0_9, %c0_10], %16 {strides = array<i32>} : memref<8x16x128xf32, #tpu.memory_space<vmem>>, vector<8x16x128xf32>,
    %c0_11 = arith.constant 0 : index
    %c0_12 = arith.constant 0 : index
    %c0_13 = arith.constant 0 : index
    %18 = tpu.strided_load %arg6[%c0_11, %c0_12, %c0_13] {strides = array<i32: 1, 2, 1>} : memref<8x16x128xf32, #tpu.memory_space<vmem>>, vector<8x8x128xf32>
    %c0_14 = arith.constant 0 : index
    %c1 = arith.constant 1 : index
    %c0_15 = arith.constant 0 : index
    %19 = tpu.strided_load %arg6[%c0_14, %c1, %c0_15] {strides = array<i32: 1, 2, 1>} : memref<8x16x128xf32, #tpu.memory_space<vmem>>, vector<8x8x128xf32>
    %20 = arith.addf %18, %19 : vector<8x8x128xf32>
    %cst_16 = arith.constant 2.500000e-01 : f32
    %21 = vector.broadcast %cst_16 : f32 to vector<8x8x128xf32>
    %22 = arith.mulf %20, %21 : vector<8x8x128xf32>
    %23 = arith.truncf %22 : vector<8x8x128xf32> to vector<8x8x128xbf16>
    %c0_17 = arith.constant 0 : index
    %c0_18 = arith.constant 0 : index
    %c0_19 = arith.constant 0 : index
    %c0_20 = arith.constant 0 : index
    %24 = vector.load %arg5[%c0_17, %c0_18, %c0_19, %c0_20] : memref<1x8x8x128xbf16, #tpu.memory_space<vmem>>, vector<1x8x8x128xbf16>
    %25 = vector.shape_cast %24 : vector<1x8x8x128xbf16> to vector<8x8x128xbf16>
    %26 = vector.shape_cast %23 : vector<8x8x128xbf16> to vector<1x8x8x128xbf16>
    tpu.vector_store %arg5[%c0_17, %c0_18, %c0_19, %c0_20], %26 {strides = array<i32>} : memref<1x8x8x128xbf16, #tpu.memory_space<vmem>>, vector<1x8x8x128xbf16>,
    return
  }
  func.func @transform_0(%arg0: i32, %arg1: i32) -> (i32, i32, i32, i32) {
    %c0_i32 = arith.constant 0 : i32
    %c0_i32_0 = arith.constant 0 : i32
    %c0_i32_1 = arith.constant 0 : i32
    return %arg0, %arg1, %c0_i32, %c0_i32_0 : i32, i32, i32, i32
  }
  func.func @transform_1(%arg0: i32, %arg1: i32) -> (i32, i32) {
    %c0_i32 = arith.constant 0 : i32
    %c0_i32_0 = arith.constant 0 : i32
    %c0_i32_1 = arith.constant 0 : i32
    return %c0_i32, %c0_i32_0 : i32, i32
  }
  func.func @transform_2(%arg0: i32, %arg1: i32) -> (i32, i32) {
    %c0_i32 = arith.constant 0 : i32
    %c0_i32_0 = arith.constant 0 : i32
    %c0_i32_1 = arith.constant 0 : i32
    return %c0_i32, %c0_i32_0 : i32, i32
  }
  func.func @transform_3(%arg0: i32, %arg1: i32) -> (i32, i32, i32, i32) {
    %c0_i32 = arith.constant 0 : i32
    %c0_i32_0 = arith.constant 0 : i32
    %c0_i32_1 = arith.constant 0 : i32
    return %arg0, %arg1, %c0_i32, %c0_i32_0 : i32, i32, i32, i32
  }
}

module attributes {stable_mosaic.version = 11 : i64} {
  func.func @_conv_pool_kernel(%arg0: i32, %arg1: i32, %arg2: memref<1x1x10x10x128xbf16, #tpu.memory_space<vmem>>, %arg3: memref<3x384x128xbf16, #tpu.memory_space<vmem>>, %arg4: memref<1x128xf32, #tpu.memory_space<vmem>>, %arg5: memref<1x1x4x4x128xbf16, #tpu.memory_space<vmem>>, %arg6: memref<4x8x128xf32, #tpu.memory_space<vmem>>) attributes {dimension_semantics = [#tpu.dimension_semantics<parallel>, #tpu.dimension_semantics<parallel>], iteration_bounds = array<i64: 4, 1>, scalar_prefetch = 0 : i64, scratch_operands = 1 : i64, tpu.core_type = #tpu.core_type<tc>, window_params = [{transform_indices = @transform_0, window_bounds = array<i64: 1, 1, 10, 10, 128>}, {pipeline_mode = #tpu.pipeline_mode<synchronous>, transform_indices = @transform_1, window_bounds = array<i64: 3, 384, 128>}, {pipeline_mode = #tpu.pipeline_mode<synchronous>, transform_indices = @transform_2, window_bounds = array<i64: 1, 128>}, {transform_indices = @transform_3, window_bounds = array<i64: 1, 1, 4, 4, 128>}]} {
    %c0 = arith.constant 0 : index
    %c0_0 = arith.constant 0 : index
    %c0_1 = arith.constant 0 : index
    %c0_2 = arith.constant 0 : index
    %c0_3 = arith.constant 0 : index
    %0 = vector.load %arg2[%c0, %c0_0, %c0_1, %c0_2, %c0_3] : memref<1x1x10x10x128xbf16, #tpu.memory_space<vmem>>, vector<1x1x10x10x128xbf16>
    %1 = vector.shape_cast %0 : vector<1x1x10x10x128xbf16> to vector<10x10x128xbf16>
    %2 = vector.extract_strided_slice %1 {offsets = [0, 0, 0], sizes = [10, 8, 128], strides = [1, 1, 1]} : vector<10x10x128xbf16> to vector<10x8x128xbf16>
    %3 = vector.extract_strided_slice %2 {offsets = [0, 0, 0], sizes = [8, 8, 128], strides = [1, 1, 1]} : vector<10x8x128xbf16> to vector<8x8x128xbf16>
    %4 = vector.extract_strided_slice %2 {offsets = [1, 0, 0], sizes = [8, 8, 128], strides = [1, 1, 1]} : vector<10x8x128xbf16> to vector<8x8x128xbf16>
    %5 = vector.extract_strided_slice %2 {offsets = [2, 0, 0], sizes = [8, 8, 128], strides = [1, 1, 1]} : vector<10x8x128xbf16> to vector<8x8x128xbf16>
    %6 = tpu.concatenate %3, %4, %5 in 2 : vector<8x8x128xbf16>, vector<8x8x128xbf16>, vector<8x8x128xbf16> -> vector<8x8x384xbf16>
    %7 = vector.shape_cast %6 : vector<8x8x384xbf16> to vector<64x384xbf16>
    %c0_4 = arith.constant 0 : index
    %c0_5 = arith.constant 0 : index
    %c0_6 = arith.constant 0 : index
    %8 = vector.load %arg3[%c0_4, %c0_5, %c0_6] : memref<3x384x128xbf16, #tpu.memory_space<vmem>>, vector<1x384x128xbf16>
    %9 = vector.shape_cast %8 : vector<1x384x128xbf16> to vector<384x128xbf16>
    %cst = arith.constant dense<0.000000e+00> : vector<64x128xf32>
    %10 = tpu.matmul %7, %9, %cst {dimension_numbers = #tpu.dot_dimension_numbers<[1], [0], [0], [1], [0, 0, 1, 1], [], []>} : vector<64x384xbf16>, vector<384x128xbf16>, vector<64x128xf32> -> vector<64x128xf32>
    %11 = vector.extract_strided_slice %1 {offsets = [0, 1, 0], sizes = [10, 8, 128], strides = [1, 1, 1]} : vector<10x10x128xbf16> to vector<10x8x128xbf16>
    %12 = vector.extract_strided_slice %11 {offsets = [0, 0, 0], sizes = [8, 8, 128], strides = [1, 1, 1]} : vector<10x8x128xbf16> to vector<8x8x128xbf16>
    %13 = vector.extract_strided_slice %11 {offsets = [1, 0, 0], sizes = [8, 8, 128], strides = [1, 1, 1]} : vector<10x8x128xbf16> to vector<8x8x128xbf16>
    %14 = vector.extract_strided_slice %11 {offsets = [2, 0, 0], sizes = [8, 8, 128], strides = [1, 1, 1]} : vector<10x8x128xbf16> to vector<8x8x128xbf16>
    %15 = tpu.concatenate %12, %13, %14 in 2 : vector<8x8x128xbf16>, vector<8x8x128xbf16>, vector<8x8x128xbf16> -> vector<8x8x384xbf16>
    %16 = vector.shape_cast %15 : vector<8x8x384xbf16> to vector<64x384xbf16>
    %c1 = arith.constant 1 : index
    %c0_7 = arith.constant 0 : index
    %c0_8 = arith.constant 0 : index
    %17 = vector.load %arg3[%c1, %c0_7, %c0_8] : memref<3x384x128xbf16, #tpu.memory_space<vmem>>, vector<1x384x128xbf16>
    %18 = vector.shape_cast %17 : vector<1x384x128xbf16> to vector<384x128xbf16>
    %cst_9 = arith.constant dense<0.000000e+00> : vector<64x128xf32>
    %19 = tpu.matmul %16, %18, %cst_9 {dimension_numbers = #tpu.dot_dimension_numbers<[1], [0], [0], [1], [0, 0, 1, 1], [], []>} : vector<64x384xbf16>, vector<384x128xbf16>, vector<64x128xf32> -> vector<64x128xf32>
    %20 = arith.addf %10, %19 : vector<64x128xf32>
    %21 = vector.extract_strided_slice %1 {offsets = [0, 2, 0], sizes = [10, 8, 128], strides = [1, 1, 1]} : vector<10x10x128xbf16> to vector<10x8x128xbf16>
    %22 = vector.extract_strided_slice %21 {offsets = [0, 0, 0], sizes = [8, 8, 128], strides = [1, 1, 1]} : vector<10x8x128xbf16> to vector<8x8x128xbf16>
    %23 = vector.extract_strided_slice %21 {offsets = [1, 0, 0], sizes = [8, 8, 128], strides = [1, 1, 1]} : vector<10x8x128xbf16> to vector<8x8x128xbf16>
    %24 = vector.extract_strided_slice %21 {offsets = [2, 0, 0], sizes = [8, 8, 128], strides = [1, 1, 1]} : vector<10x8x128xbf16> to vector<8x8x128xbf16>
    %25 = tpu.concatenate %22, %23, %24 in 2 : vector<8x8x128xbf16>, vector<8x8x128xbf16>, vector<8x8x128xbf16> -> vector<8x8x384xbf16>
    %26 = vector.shape_cast %25 : vector<8x8x384xbf16> to vector<64x384xbf16>
    %c2 = arith.constant 2 : index
    %c0_10 = arith.constant 0 : index
    %c0_11 = arith.constant 0 : index
    %27 = vector.load %arg3[%c2, %c0_10, %c0_11] : memref<3x384x128xbf16, #tpu.memory_space<vmem>>, vector<1x384x128xbf16>
    %28 = vector.shape_cast %27 : vector<1x384x128xbf16> to vector<384x128xbf16>
    %cst_12 = arith.constant dense<0.000000e+00> : vector<64x128xf32>
    %29 = tpu.matmul %26, %28, %cst_12 {dimension_numbers = #tpu.dot_dimension_numbers<[1], [0], [0], [1], [0, 0, 1, 1], [], []>} : vector<64x384xbf16>, vector<384x128xbf16>, vector<64x128xf32> -> vector<64x128xf32>
    %30 = arith.addf %20, %29 : vector<64x128xf32>
    %c0_13 = arith.constant 0 : index
    %c0_14 = arith.constant 0 : index
    %31 = vector.load %arg4[%c0_13, %c0_14] : memref<1x128xf32, #tpu.memory_space<vmem>>, vector<1x128xf32>
    %32 = vector.broadcast %31 : vector<1x128xf32> to vector<64x128xf32>
    %33 = arith.addf %30, %32 : vector<64x128xf32>
    %cst_15 = arith.constant 0.000000e+00 : f32
    %34 = vector.broadcast %cst_15 : f32 to vector<64x128xf32>
    %35 = arith.maximumf %33, %34 : vector<64x128xf32>
    %36 = vector.shape_cast %35 : vector<64x128xf32> to vector<8x8x128xf32>
    %37 = vector.shape_cast %36 : vector<8x8x128xf32> to vector<4x2x8x128xf32>
    %38 = vector.extract_strided_slice %37 {offsets = [0, 0, 0, 0], sizes = [4, 1, 8, 128], strides = [1, 1, 1, 1]} : vector<4x2x8x128xf32> to vector<4x1x8x128xf32>
    %39 = vector.shape_cast %38 : vector<4x1x8x128xf32> to vector<4x8x128xf32>
    %40 = vector.extract_strided_slice %37 {offsets = [0, 1, 0, 0], sizes = [4, 1, 8, 128], strides = [1, 1, 1, 1]} : vector<4x2x8x128xf32> to vector<4x1x8x128xf32>
    %41 = vector.shape_cast %40 : vector<4x1x8x128xf32> to vector<4x8x128xf32>
    %42 = arith.addf %39, %41 : vector<4x8x128xf32>
    %c0_16 = arith.constant 0 : index
    %c0_17 = arith.constant 0 : index
    %c0_18 = arith.constant 0 : index
    %43 = vector.load %arg6[%c0_16, %c0_17, %c0_18] : memref<4x8x128xf32, #tpu.memory_space<vmem>>, vector<4x8x128xf32>
    tpu.vector_store %arg6[%c0_16, %c0_17, %c0_18], %42 {strides = array<i32>} : memref<4x8x128xf32, #tpu.memory_space<vmem>>, vector<4x8x128xf32>,
    %c0_19 = arith.constant 0 : index
    %c0_20 = arith.constant 0 : index
    %c0_21 = arith.constant 0 : index
    %44 = tpu.strided_load %arg6[%c0_19, %c0_20, %c0_21] {strides = array<i32: 1, 2, 1>} : memref<4x8x128xf32, #tpu.memory_space<vmem>>, vector<4x4x128xf32>
    %c0_22 = arith.constant 0 : index
    %c1_23 = arith.constant 1 : index
    %c0_24 = arith.constant 0 : index
    %45 = tpu.strided_load %arg6[%c0_22, %c1_23, %c0_24] {strides = array<i32: 1, 2, 1>} : memref<4x8x128xf32, #tpu.memory_space<vmem>>, vector<4x4x128xf32>
    %46 = arith.addf %44, %45 : vector<4x4x128xf32>
    %cst_25 = arith.constant 2.500000e-01 : f32
    %47 = vector.broadcast %cst_25 : f32 to vector<4x4x128xf32>
    %48 = arith.mulf %46, %47 : vector<4x4x128xf32>
    %49 = arith.truncf %48 : vector<4x4x128xf32> to vector<4x4x128xbf16>
    %c0_26 = arith.constant 0 : index
    %c0_27 = arith.constant 0 : index
    %c0_28 = arith.constant 0 : index
    %c0_29 = arith.constant 0 : index
    %c0_30 = arith.constant 0 : index
    %50 = vector.load %arg5[%c0_26, %c0_27, %c0_28, %c0_29, %c0_30] : memref<1x1x4x4x128xbf16, #tpu.memory_space<vmem>>, vector<1x1x4x4x128xbf16>
    %51 = vector.shape_cast %50 : vector<1x1x4x4x128xbf16> to vector<4x4x128xbf16>
    %52 = vector.shape_cast %49 : vector<4x4x128xbf16> to vector<1x1x4x4x128xbf16>
    tpu.vector_store %arg5[%c0_26, %c0_27, %c0_28, %c0_29, %c0_30], %52 {strides = array<i32>} : memref<1x1x4x4x128xbf16, #tpu.memory_space<vmem>>, vector<1x1x4x4x128xbf16>,
    return
  }
  func.func @transform_0(%arg0: i32, %arg1: i32) -> (i32, i32, i32, i32, i32) {
    %c0_i32 = arith.constant 0 : i32
    %c0_i32_0 = arith.constant 0 : i32
    %c0_i32_1 = arith.constant 0 : i32
    %c0_i32_2 = arith.constant 0 : i32
    return %arg0, %arg1, %c0_i32, %c0_i32_0, %c0_i32_1 : i32, i32, i32, i32, i32
  }
  func.func @transform_1(%arg0: i32, %arg1: i32) -> (i32, i32, i32) {
    %c0_i32 = arith.constant 0 : i32
    %c0_i32_0 = arith.constant 0 : i32
    %c0_i32_1 = arith.constant 0 : i32
    %c0_i32_2 = arith.constant 0 : i32
    return %c0_i32, %c0_i32_0, %c0_i32_1 : i32, i32, i32
  }
  func.func @transform_2(%arg0: i32, %arg1: i32) -> (i32, i32) {
    %c0_i32 = arith.constant 0 : i32
    %c0_i32_0 = arith.constant 0 : i32
    %c0_i32_1 = arith.constant 0 : i32
    return %c0_i32, %c0_i32_0 : i32, i32
  }
  func.func @transform_3(%arg0: i32, %arg1: i32) -> (i32, i32, i32, i32, i32) {
    %c0_i32 = arith.constant 0 : i32
    %c0_i32_0 = arith.constant 0 : i32
    %c0_i32_1 = arith.constant 0 : i32
    %c0_i32_2 = arith.constant 0 : i32
    return %arg0, %arg1, %c0_i32, %c0_i32_0, %c0_i32_1 : i32, i32, i32, i32, i32
  }
}

module attributes {stable_mosaic.version = 11 : i64} {
  func.func @_conv_kernel(%arg0: i32, %arg1: i32, %arg2: memref<1x1x6x6x128xbf16, #tpu.memory_space<vmem>>, %arg3: memref<3x384x128xbf16, #tpu.memory_space<vmem>>, %arg4: memref<1x128xf32, #tpu.memory_space<vmem>>, %arg5: memref<1x1x4x4x128xbf16, #tpu.memory_space<vmem>>) attributes {dimension_semantics = [#tpu.dimension_semantics<parallel>, #tpu.dimension_semantics<parallel>], iteration_bounds = array<i64: 4, 1>, scalar_prefetch = 0 : i64, scratch_operands = 0 : i64, tpu.core_type = #tpu.core_type<tc>, window_params = [{transform_indices = @transform_0, window_bounds = array<i64: 1, 1, 6, 6, 128>}, {pipeline_mode = #tpu.pipeline_mode<synchronous>, transform_indices = @transform_1, window_bounds = array<i64: 3, 384, 128>}, {pipeline_mode = #tpu.pipeline_mode<synchronous>, transform_indices = @transform_2, window_bounds = array<i64: 1, 128>}, {transform_indices = @transform_3, window_bounds = array<i64: 1, 1, 4, 4, 128>}]} {
    %c0 = arith.constant 0 : index
    %c0_0 = arith.constant 0 : index
    %c0_1 = arith.constant 0 : index
    %c0_2 = arith.constant 0 : index
    %c0_3 = arith.constant 0 : index
    %0 = vector.load %arg2[%c0, %c0_0, %c0_1, %c0_2, %c0_3] : memref<1x1x6x6x128xbf16, #tpu.memory_space<vmem>>, vector<1x1x6x6x128xbf16>
    %1 = vector.shape_cast %0 : vector<1x1x6x6x128xbf16> to vector<6x6x128xbf16>
    %2 = vector.extract_strided_slice %1 {offsets = [0, 0, 0], sizes = [6, 4, 128], strides = [1, 1, 1]} : vector<6x6x128xbf16> to vector<6x4x128xbf16>
    %3 = vector.extract_strided_slice %2 {offsets = [0, 0, 0], sizes = [4, 4, 128], strides = [1, 1, 1]} : vector<6x4x128xbf16> to vector<4x4x128xbf16>
    %4 = vector.extract_strided_slice %2 {offsets = [1, 0, 0], sizes = [4, 4, 128], strides = [1, 1, 1]} : vector<6x4x128xbf16> to vector<4x4x128xbf16>
    %5 = vector.extract_strided_slice %2 {offsets = [2, 0, 0], sizes = [4, 4, 128], strides = [1, 1, 1]} : vector<6x4x128xbf16> to vector<4x4x128xbf16>
    %6 = tpu.concatenate %3, %4, %5 in 2 : vector<4x4x128xbf16>, vector<4x4x128xbf16>, vector<4x4x128xbf16> -> vector<4x4x384xbf16>
    %7 = vector.shape_cast %6 : vector<4x4x384xbf16> to vector<16x384xbf16>
    %c0_4 = arith.constant 0 : index
    %c0_5 = arith.constant 0 : index
    %c0_6 = arith.constant 0 : index
    %8 = vector.load %arg3[%c0_4, %c0_5, %c0_6] : memref<3x384x128xbf16, #tpu.memory_space<vmem>>, vector<1x384x128xbf16>
    %9 = vector.shape_cast %8 : vector<1x384x128xbf16> to vector<384x128xbf16>
    %cst = arith.constant dense<0.000000e+00> : vector<16x128xf32>
    %10 = tpu.matmul %7, %9, %cst {dimension_numbers = #tpu.dot_dimension_numbers<[1], [0], [0], [1], [0, 0, 1, 1], [], []>} : vector<16x384xbf16>, vector<384x128xbf16>, vector<16x128xf32> -> vector<16x128xf32>
    %11 = vector.extract_strided_slice %1 {offsets = [0, 1, 0], sizes = [6, 4, 128], strides = [1, 1, 1]} : vector<6x6x128xbf16> to vector<6x4x128xbf16>
    %12 = vector.extract_strided_slice %11 {offsets = [0, 0, 0], sizes = [4, 4, 128], strides = [1, 1, 1]} : vector<6x4x128xbf16> to vector<4x4x128xbf16>
    %13 = vector.extract_strided_slice %11 {offsets = [1, 0, 0], sizes = [4, 4, 128], strides = [1, 1, 1]} : vector<6x4x128xbf16> to vector<4x4x128xbf16>
    %14 = vector.extract_strided_slice %11 {offsets = [2, 0, 0], sizes = [4, 4, 128], strides = [1, 1, 1]} : vector<6x4x128xbf16> to vector<4x4x128xbf16>
    %15 = tpu.concatenate %12, %13, %14 in 2 : vector<4x4x128xbf16>, vector<4x4x128xbf16>, vector<4x4x128xbf16> -> vector<4x4x384xbf16>
    %16 = vector.shape_cast %15 : vector<4x4x384xbf16> to vector<16x384xbf16>
    %c1 = arith.constant 1 : index
    %c0_7 = arith.constant 0 : index
    %c0_8 = arith.constant 0 : index
    %17 = vector.load %arg3[%c1, %c0_7, %c0_8] : memref<3x384x128xbf16, #tpu.memory_space<vmem>>, vector<1x384x128xbf16>
    %18 = vector.shape_cast %17 : vector<1x384x128xbf16> to vector<384x128xbf16>
    %cst_9 = arith.constant dense<0.000000e+00> : vector<16x128xf32>
    %19 = tpu.matmul %16, %18, %cst_9 {dimension_numbers = #tpu.dot_dimension_numbers<[1], [0], [0], [1], [0, 0, 1, 1], [], []>} : vector<16x384xbf16>, vector<384x128xbf16>, vector<16x128xf32> -> vector<16x128xf32>
    %20 = arith.addf %10, %19 : vector<16x128xf32>
    %21 = vector.extract_strided_slice %1 {offsets = [0, 2, 0], sizes = [6, 4, 128], strides = [1, 1, 1]} : vector<6x6x128xbf16> to vector<6x4x128xbf16>
    %22 = vector.extract_strided_slice %21 {offsets = [0, 0, 0], sizes = [4, 4, 128], strides = [1, 1, 1]} : vector<6x4x128xbf16> to vector<4x4x128xbf16>
    %23 = vector.extract_strided_slice %21 {offsets = [1, 0, 0], sizes = [4, 4, 128], strides = [1, 1, 1]} : vector<6x4x128xbf16> to vector<4x4x128xbf16>
    %24 = vector.extract_strided_slice %21 {offsets = [2, 0, 0], sizes = [4, 4, 128], strides = [1, 1, 1]} : vector<6x4x128xbf16> to vector<4x4x128xbf16>
    %25 = tpu.concatenate %22, %23, %24 in 2 : vector<4x4x128xbf16>, vector<4x4x128xbf16>, vector<4x4x128xbf16> -> vector<4x4x384xbf16>
    %26 = vector.shape_cast %25 : vector<4x4x384xbf16> to vector<16x384xbf16>
    %c2 = arith.constant 2 : index
    %c0_10 = arith.constant 0 : index
    %c0_11 = arith.constant 0 : index
    %27 = vector.load %arg3[%c2, %c0_10, %c0_11] : memref<3x384x128xbf16, #tpu.memory_space<vmem>>, vector<1x384x128xbf16>
    %28 = vector.shape_cast %27 : vector<1x384x128xbf16> to vector<384x128xbf16>
    %cst_12 = arith.constant dense<0.000000e+00> : vector<16x128xf32>
    %29 = tpu.matmul %26, %28, %cst_12 {dimension_numbers = #tpu.dot_dimension_numbers<[1], [0], [0], [1], [0, 0, 1, 1], [], []>} : vector<16x384xbf16>, vector<384x128xbf16>, vector<16x128xf32> -> vector<16x128xf32>
    %30 = arith.addf %20, %29 : vector<16x128xf32>
    %c0_13 = arith.constant 0 : index
    %c0_14 = arith.constant 0 : index
    %31 = vector.load %arg4[%c0_13, %c0_14] : memref<1x128xf32, #tpu.memory_space<vmem>>, vector<1x128xf32>
    %32 = vector.broadcast %31 : vector<1x128xf32> to vector<16x128xf32>
    %33 = arith.addf %30, %32 : vector<16x128xf32>
    %34 = vector.shape_cast %33 : vector<16x128xf32> to vector<4x4x128xf32>
    %35 = arith.truncf %34 : vector<4x4x128xf32> to vector<4x4x128xbf16>
    %c0_15 = arith.constant 0 : index
    %c0_16 = arith.constant 0 : index
    %c0_17 = arith.constant 0 : index
    %c0_18 = arith.constant 0 : index
    %c0_19 = arith.constant 0 : index
    %36 = vector.load %arg5[%c0_15, %c0_16, %c0_17, %c0_18, %c0_19] : memref<1x1x4x4x128xbf16, #tpu.memory_space<vmem>>, vector<1x1x4x4x128xbf16>
    %37 = vector.shape_cast %36 : vector<1x1x4x4x128xbf16> to vector<4x4x128xbf16>
    %38 = vector.shape_cast %35 : vector<4x4x128xbf16> to vector<1x1x4x4x128xbf16>
    tpu.vector_store %arg5[%c0_15, %c0_16, %c0_17, %c0_18, %c0_19], %38 {strides = array<i32>} : memref<1x1x4x4x128xbf16, #tpu.memory_space<vmem>>, vector<1x1x4x4x128xbf16>,
    return
  }
  func.func @transform_0(%arg0: i32, %arg1: i32) -> (i32, i32, i32, i32, i32) {
    %c0_i32 = arith.constant 0 : i32
    %c0_i32_0 = arith.constant 0 : i32
    %c0_i32_1 = arith.constant 0 : i32
    %c0_i32_2 = arith.constant 0 : i32
    return %arg0, %arg1, %c0_i32, %c0_i32_0, %c0_i32_1 : i32, i32, i32, i32, i32
  }
  func.func @transform_1(%arg0: i32, %arg1: i32) -> (i32, i32, i32) {
    %c0_i32 = arith.constant 0 : i32
    %c0_i32_0 = arith.constant 0 : i32
    %c0_i32_1 = arith.constant 0 : i32
    %c0_i32_2 = arith.constant 0 : i32
    return %c0_i32, %c0_i32_0, %c0_i32_1 : i32, i32, i32
  }
  func.func @transform_2(%arg0: i32, %arg1: i32) -> (i32, i32) {
    %c0_i32 = arith.constant 0 : i32
    %c0_i32_0 = arith.constant 0 : i32
    %c0_i32_1 = arith.constant 0 : i32
    return %c0_i32, %c0_i32_0 : i32, i32
  }
  func.func @transform_3(%arg0: i32, %arg1: i32) -> (i32, i32, i32, i32, i32) {
    %c0_i32 = arith.constant 0 : i32
    %c0_i32_0 = arith.constant 0 : i32
    %c0_i32_1 = arith.constant 0 : i32
    %c0_i32_2 = arith.constant 0 : i32
    return %arg0, %arg1, %c0_i32, %c0_i32_0, %c0_i32_1 : i32, i32, i32, i32, i32
  }
}

module attributes {stable_mosaic.version = 11 : i64} {
  func.func @_fpn_top_kernel(%arg0: i32, %arg1: i32, %arg2: memref<1x1x10x10x128xbf16, #tpu.memory_space<vmem>>, %arg3: memref<1x1x6x10x128xbf16, #tpu.memory_space<vmem>>, %arg4: memref<128x128xbf16, #tpu.memory_space<vmem>>, %arg5: memref<128x128xbf16, #tpu.memory_space<vmem>>, %arg6: memref<3x384x128xbf16, #tpu.memory_space<vmem>>, %arg7: memref<1x128xf32, #tpu.memory_space<vmem>>, %arg8: memref<1x1x8x8x128xbf16, #tpu.memory_space<vmem>>) attributes {dimension_semantics = [#tpu.dimension_semantics<parallel>, #tpu.dimension_semantics<parallel>], iteration_bounds = array<i64: 4, 1>, scalar_prefetch = 0 : i64, scratch_operands = 0 : i64, tpu.core_type = #tpu.core_type<tc>, window_params = [{transform_indices = @transform_0, window_bounds = array<i64: 1, 1, 10, 10, 128>}, {transform_indices = @transform_1, window_bounds = array<i64: 1, 1, 6, 10, 128>}, {pipeline_mode = #tpu.pipeline_mode<synchronous>, transform_indices = @transform_2, window_bounds = array<i64: 128, 128>}, {pipeline_mode = #tpu.pipeline_mode<synchronous>, transform_indices = @transform_3, window_bounds = array<i64: 128, 128>}, {pipeline_mode = #tpu.pipeline_mode<synchronous>, transform_indices = @transform_4, window_bounds = array<i64: 3, 384, 128>}, {pipeline_mode = #tpu.pipeline_mode<synchronous>, transform_indices = @transform_5, window_bounds = array<i64: 1, 128>}, {transform_indices = @transform_6, window_bounds = array<i64: 1, 1, 8, 8, 128>}]} {
    %c0 = arith.constant 0 : index
    %c0_0 = arith.constant 0 : index
    %c0_1 = arith.constant 0 : index
    %c0_2 = arith.constant 0 : index
    %c0_3 = arith.constant 0 : index
    %0 = vector.load %arg2[%c0, %c0_0, %c0_1, %c0_2, %c0_3] : memref<1x1x10x10x128xbf16, #tpu.memory_space<vmem>>, vector<1x1x10x10x128xbf16>
    %1 = vector.shape_cast %0 : vector<1x1x10x10x128xbf16> to vector<10x10x128xbf16>
    %2 = vector.shape_cast %1 : vector<10x10x128xbf16> to vector<100x128xbf16>
    %c0_4 = arith.constant 0 : index
    %c0_5 = arith.constant 0 : index
    %3 = vector.load %arg4[%c0_4, %c0_5] : memref<128x128xbf16, #tpu.memory_space<vmem>>, vector<128x128xbf16>
    %cst = arith.constant dense<0.000000e+00> : vector<100x128xf32>
    %4 = tpu.matmul %2, %3, %cst {dimension_numbers = #tpu.dot_dimension_numbers<[1], [0], [0], [1], [0, 0, 1, 1], [], []>} : vector<100x128xbf16>, vector<128x128xbf16>, vector<100x128xf32> -> vector<100x128xf32>
    %5 = vector.shape_cast %4 : vector<100x128xf32> to vector<10x10x128xf32>
    %c0_6 = arith.constant 0 : index
    %c0_7 = arith.constant 0 : index
    %c0_8 = arith.constant 0 : index
    %c0_9 = arith.constant 0 : index
    %c0_10 = arith.constant 0 : index
    %6 = vector.load %arg3[%c0_6, %c0_7, %c0_8, %c0_9, %c0_10] : memref<1x1x6x10x128xbf16, #tpu.memory_space<vmem>>, vector<1x1x6x10x128xbf16>
    %7 = vector.shape_cast %6 : vector<1x1x6x10x128xbf16> to vector<6x10x128xbf16>
    %8 = vector.shape_cast %7 : vector<6x10x128xbf16> to vector<60x128xbf16>
    %c0_11 = arith.constant 0 : index
    %c0_12 = arith.constant 0 : index
    %9 = vector.load %arg5[%c0_11, %c0_12] : memref<128x128xbf16, #tpu.memory_space<vmem>>, vector<128x128xbf16>
    %cst_13 = arith.constant dense<0.000000e+00> : vector<60x128xf32>
    %10 = tpu.matmul %8, %9, %cst_13 {dimension_numbers = #tpu.dot_dimension_numbers<[1], [0], [0], [1], [0, 0, 1, 1], [], []>} : vector<60x128xbf16>, vector<128x128xbf16>, vector<60x128xf32> -> vector<60x128xf32>
    %11 = vector.shape_cast %10 : vector<60x128xf32> to vector<6x10x128xf32>
    %12 = vector.extract_strided_slice %11 {offsets = [1, 0, 0], sizes = [4, 10, 128], strides = [1, 1, 1]} : vector<6x10x128xf32> to vector<4x10x128xf32>
    %13 = vector.shape_cast %12 : vector<4x10x128xf32> to vector<4x1x10x128xf32>
    %14 = vector.shape_cast %13 : vector<4x1x10x128xf32> to vector<4x1x10x128xf32>
    %15 = vector.broadcast %14 : vector<4x1x10x128xf32> to vector<4x2x10x128xf32>
    %16 = vector.shape_cast %15 : vector<4x2x10x128xf32> to vector<8x10x128xf32>
    %17 = vector.extract_strided_slice %11 {offsets = [0, 0, 0], sizes = [1, 10, 128], strides = [1, 1, 1]} : vector<6x10x128xf32> to vector<1x10x128xf32>
    %18 = vector.extract_strided_slice %11 {offsets = [5, 0, 0], sizes = [1, 10, 128], strides = [1, 1, 1]} : vector<6x10x128xf32> to vector<1x10x128xf32>
    %19 = tpu.concatenate %17, %16, %18 in 0 : vector<1x10x128xf32>, vector<8x10x128xf32>, vector<1x10x128xf32> -> vector<10x10x128xf32>
    %20 = arith.addf %5, %19 : vector<10x10x128xf32>
    %21 = arith.truncf %20 : vector<10x10x128xf32> to vector<10x10x128xbf16>
    %22 = vector.extract_strided_slice %21 {offsets = [0, 0, 0], sizes = [10, 8, 128], strides = [1, 1, 1]} : vector<10x10x128xbf16> to vector<10x8x128xbf16>
    %23 = vector.extract_strided_slice %22 {offsets = [0, 0, 0], sizes = [8, 8, 128], strides = [1, 1, 1]} : vector<10x8x128xbf16> to vector<8x8x128xbf16>
    %24 = vector.extract_strided_slice %22 {offsets = [1, 0, 0], sizes = [8, 8, 128], strides = [1, 1, 1]} : vector<10x8x128xbf16> to vector<8x8x128xbf16>
    %25 = vector.extract_strided_slice %22 {offsets = [2, 0, 0], sizes = [8, 8, 128], strides = [1, 1, 1]} : vector<10x8x128xbf16> to vector<8x8x128xbf16>
    %26 = tpu.concatenate %23, %24, %25 in 2 : vector<8x8x128xbf16>, vector<8x8x128xbf16>, vector<8x8x128xbf16> -> vector<8x8x384xbf16>
    %27 = vector.shape_cast %26 : vector<8x8x384xbf16> to vector<64x384xbf16>
    %c0_14 = arith.constant 0 : index
    %c0_15 = arith.constant 0 : index
    %c0_16 = arith.constant 0 : index
    %28 = vector.load %arg6[%c0_14, %c0_15, %c0_16] : memref<3x384x128xbf16, #tpu.memory_space<vmem>>, vector<1x384x128xbf16>
    %29 = vector.shape_cast %28 : vector<1x384x128xbf16> to vector<384x128xbf16>
    %cst_17 = arith.constant dense<0.000000e+00> : vector<64x128xf32>
    %30 = tpu.matmul %27, %29, %cst_17 {dimension_numbers = #tpu.dot_dimension_numbers<[1], [0], [0], [1], [0, 0, 1, 1], [], []>} : vector<64x384xbf16>, vector<384x128xbf16>, vector<64x128xf32> -> vector<64x128xf32>
    %31 = vector.extract_strided_slice %21 {offsets = [0, 1, 0], sizes = [10, 8, 128], strides = [1, 1, 1]} : vector<10x10x128xbf16> to vector<10x8x128xbf16>
    %32 = vector.extract_strided_slice %31 {offsets = [0, 0, 0], sizes = [8, 8, 128], strides = [1, 1, 1]} : vector<10x8x128xbf16> to vector<8x8x128xbf16>
    %33 = vector.extract_strided_slice %31 {offsets = [1, 0, 0], sizes = [8, 8, 128], strides = [1, 1, 1]} : vector<10x8x128xbf16> to vector<8x8x128xbf16>
    %34 = vector.extract_strided_slice %31 {offsets = [2, 0, 0], sizes = [8, 8, 128], strides = [1, 1, 1]} : vector<10x8x128xbf16> to vector<8x8x128xbf16>
    %35 = tpu.concatenate %32, %33, %34 in 2 : vector<8x8x128xbf16>, vector<8x8x128xbf16>, vector<8x8x128xbf16> -> vector<8x8x384xbf16>
    %36 = vector.shape_cast %35 : vector<8x8x384xbf16> to vector<64x384xbf16>
    %c1 = arith.constant 1 : index
    %c0_18 = arith.constant 0 : index
    %c0_19 = arith.constant 0 : index
    %37 = vector.load %arg6[%c1, %c0_18, %c0_19] : memref<3x384x128xbf16, #tpu.memory_space<vmem>>, vector<1x384x128xbf16>
    %38 = vector.shape_cast %37 : vector<1x384x128xbf16> to vector<384x128xbf16>
    %cst_20 = arith.constant dense<0.000000e+00> : vector<64x128xf32>
    %39 = tpu.matmul %36, %38, %cst_20 {dimension_numbers = #tpu.dot_dimension_numbers<[1], [0], [0], [1], [0, 0, 1, 1], [], []>} : vector<64x384xbf16>, vector<384x128xbf16>, vector<64x128xf32> -> vector<64x128xf32>
    %40 = arith.addf %30, %39 : vector<64x128xf32>
    %41 = vector.extract_strided_slice %21 {offsets = [0, 2, 0], sizes = [10, 8, 128], strides = [1, 1, 1]} : vector<10x10x128xbf16> to vector<10x8x128xbf16>
    %42 = vector.extract_strided_slice %41 {offsets = [0, 0, 0], sizes = [8, 8, 128], strides = [1, 1, 1]} : vector<10x8x128xbf16> to vector<8x8x128xbf16>
    %43 = vector.extract_strided_slice %41 {offsets = [1, 0, 0], sizes = [8, 8, 128], strides = [1, 1, 1]} : vector<10x8x128xbf16> to vector<8x8x128xbf16>
    %44 = vector.extract_strided_slice %41 {offsets = [2, 0, 0], sizes = [8, 8, 128], strides = [1, 1, 1]} : vector<10x8x128xbf16> to vector<8x8x128xbf16>
    %45 = tpu.concatenate %42, %43, %44 in 2 : vector<8x8x128xbf16>, vector<8x8x128xbf16>, vector<8x8x128xbf16> -> vector<8x8x384xbf16>
    %46 = vector.shape_cast %45 : vector<8x8x384xbf16> to vector<64x384xbf16>
    %c2 = arith.constant 2 : index
    %c0_21 = arith.constant 0 : index
    %c0_22 = arith.constant 0 : index
    %47 = vector.load %arg6[%c2, %c0_21, %c0_22] : memref<3x384x128xbf16, #tpu.memory_space<vmem>>, vector<1x384x128xbf16>
    %48 = vector.shape_cast %47 : vector<1x384x128xbf16> to vector<384x128xbf16>
    %cst_23 = arith.constant dense<0.000000e+00> : vector<64x128xf32>
    %49 = tpu.matmul %46, %48, %cst_23 {dimension_numbers = #tpu.dot_dimension_numbers<[1], [0], [0], [1], [0, 0, 1, 1], [], []>} : vector<64x384xbf16>, vector<384x128xbf16>, vector<64x128xf32> -> vector<64x128xf32>
    %50 = arith.addf %40, %49 : vector<64x128xf32>
    %c0_24 = arith.constant 0 : index
    %c0_25 = arith.constant 0 : index
    %51 = vector.load %arg7[%c0_24, %c0_25] : memref<1x128xf32, #tpu.memory_space<vmem>>, vector<1x128xf32>
    %52 = vector.broadcast %51 : vector<1x128xf32> to vector<64x128xf32>
    %53 = arith.addf %50, %52 : vector<64x128xf32>
    %54 = vector.shape_cast %53 : vector<64x128xf32> to vector<8x8x128xf32>
    %55 = arith.truncf %54 : vector<8x8x128xf32> to vector<8x8x128xbf16>
    %c0_26 = arith.constant 0 : index
    %c0_27 = arith.constant 0 : index
    %c0_28 = arith.constant 0 : index
    %c0_29 = arith.constant 0 : index
    %c0_30 = arith.constant 0 : index
    %56 = vector.load %arg8[%c0_26, %c0_27, %c0_28, %c0_29, %c0_30] : memref<1x1x8x8x128xbf16, #tpu.memory_space<vmem>>, vector<1x1x8x8x128xbf16>
    %57 = vector.shape_cast %56 : vector<1x1x8x8x128xbf16> to vector<8x8x128xbf16>
    %58 = vector.shape_cast %55 : vector<8x8x128xbf16> to vector<1x1x8x8x128xbf16>
    tpu.vector_store %arg8[%c0_26, %c0_27, %c0_28, %c0_29, %c0_30], %58 {strides = array<i32>} : memref<1x1x8x8x128xbf16, #tpu.memory_space<vmem>>, vector<1x1x8x8x128xbf16>,
    return
  }
  func.func @transform_0(%arg0: i32, %arg1: i32) -> (i32, i32, i32, i32, i32) {
    %c0_i32 = arith.constant 0 : i32
    %c0_i32_0 = arith.constant 0 : i32
    %c0_i32_1 = arith.constant 0 : i32
    %c0_i32_2 = arith.constant 0 : i32
    return %arg0, %arg1, %c0_i32, %c0_i32_0, %c0_i32_1 : i32, i32, i32, i32, i32
  }
  func.func @transform_1(%arg0: i32, %arg1: i32) -> (i32, i32, i32, i32, i32) {
    %c0_i32 = arith.constant 0 : i32
    %c0_i32_0 = arith.constant 0 : i32
    %c0_i32_1 = arith.constant 0 : i32
    %c0_i32_2 = arith.constant 0 : i32
    return %arg0, %arg1, %c0_i32, %c0_i32_0, %c0_i32_1 : i32, i32, i32, i32, i32
  }
  func.func @transform_2(%arg0: i32, %arg1: i32) -> (i32, i32) {
    %c0_i32 = arith.constant 0 : i32
    %c0_i32_0 = arith.constant 0 : i32
    %c0_i32_1 = arith.constant 0 : i32
    return %c0_i32, %c0_i32_0 : i32, i32
  }
  func.func @transform_3(%arg0: i32, %arg1: i32) -> (i32, i32) {
    %c0_i32 = arith.constant 0 : i32
    %c0_i32_0 = arith.constant 0 : i32
    %c0_i32_1 = arith.constant 0 : i32
    return %c0_i32, %c0_i32_0 : i32, i32
  }
  func.func @transform_4(%arg0: i32, %arg1: i32) -> (i32, i32, i32) {
    %c0_i32 = arith.constant 0 : i32
    %c0_i32_0 = arith.constant 0 : i32
    %c0_i32_1 = arith.constant 0 : i32
    %c0_i32_2 = arith.constant 0 : i32
    return %c0_i32, %c0_i32_0, %c0_i32_1 : i32, i32, i32
  }
  func.func @transform_5(%arg0: i32, %arg1: i32) -> (i32, i32) {
    %c0_i32 = arith.constant 0 : i32
    %c0_i32_0 = arith.constant 0 : i32
    %c0_i32_1 = arith.constant 0 : i32
    return %c0_i32, %c0_i32_0 : i32, i32
  }
  func.func @transform_6(%arg0: i32, %arg1: i32) -> (i32, i32, i32, i32, i32) {
    %c0_i32 = arith.constant 0 : i32
    %c0_i32_0 = arith.constant 0 : i32
    %c0_i32_1 = arith.constant 0 : i32
    %c0_i32_2 = arith.constant 0 : i32
    return %arg0, %arg1, %c0_i32, %c0_i32_0, %c0_i32_1 : i32, i32, i32, i32, i32
  }
}

</mosaic_0001>

<llo_original>
// kernel: camera_features_forward.4
$region0: #{camera_features_forward.4}
  #allocation0 [shape = 'u32[]', space=smem, size = 0x4, offset = 0x4, fixed_abs, tag = 'smem constant byte address 0x4 - core index']
  #allocation1 [shape = 'u32[144,128]{1,0:T(1,128)}', space=vmem, size = 0x12000, scoped, tag = 'internal scratch']
  #allocation2 [shape = 'f32[8,16,128]{2,1,0:T(8,128)}', space=vmem, size = 0x10000, scoped, tag = 'scratch operand']
  %s0 = inlined_call_operand.vmem [shape: bf16[4,16,16,128], index: 0, kind: input, shape index: {}]
  %s1 = inlined_call_operand.vmem [shape: bf16[128,128], index: 1, kind: input, shape index: {}]
  %s2 = inlined_call_operand.vmem [shape: f32[1,128], index: 2, kind: input, shape index: {}]
  %s3 = inlined_call_operand.vmem [shape: bf16[4,8,8,128], index: 3, kind: output, shape index: {}]
  %s4 = sld [smem:[#allocation0]]
  $region45: #{camera_features_forward.4} parent=0
    _
  %s6 = ssub.s32 1, %s4
  %s7 = scalar_select 0, %s6, %s4
  loop: start=0, step=1, limit=6
  $region2: #{camera_features_forward.4} parent=0 // loop_pre_header
    _
  $region3: #{camera_features_forward.4} parent=0 // loop_header
    %s9 = sphi 0, %s13
    %p10 = scmp.ge.s32.totalorder %s9, 6
    %s16 = sphi 0, %s28
    %s17 = sphi 0, %s24
    %s18 = sphi 0, %s16
    %s19 = sphi 0, %s17
    %s20 = sphi 0, %s18
    %s21 = sphi 0, %s19
    %s33 = sphi 0, %s35
    %s36 = sphi 0, %s33
    %s37 = sphi 0, %s36
    %s53 = sphi 0, %s37
    %s57 = sphi 0, %s57
    %s59 = sphi 0, %s57
    %s60 = sphi 0, %s59
    %s74 = sphi 0, %s60
    %s78 = sphi 0, %s78
    %s80 = sphi 0, %s78
    %s81 = sphi 0, %s80
    %s95 = sphi 0, %s81
    %s103 = sphi 0, %s105
    %s106 = sphi 0, %s103
    %s107 = sphi 0, %s106
    %s123 = sphi 0, %s107
  $region4: #{camera_features_forward.4} parent=0 // loop_header_branch
    %12 = sbr.rel (%p10) target = $region8
  $region5: #{camera_features_forward.4} parent=0 // loop_body
    %s14 = ssub.s32 %s9, 1
    %s15 = ssub.s32 %s9, 2
    %s22 = sadd.s32 1, %s17
    %p23 = scmp.ge.s32.totalorder %s22, 1
    %s24 = scalar_select %p23, 0, %s22
    %s25 = sadd.s32 1, %s16
    %s26 = scalar_select %p23, %s25, %s16
    %p27 = scmp.ge.s32.totalorder %s26, 4
    %s28 = scalar_select %p27, 0, %s26
    %s29 = ssub.s32 %s16, %s28
    %s30 = ssub.s32 %s17, %s24
    %s31 = sor.u32 %s29, %s30
    %p32 = scmp.eq.s32.totalorder %s31, 0
    %s34 = sadd.s32 %s33, 1
    %s35 = scalar_select %p32, %s33, %s34
    %p38 = pneg %p32
    %p39 = scmp.eq.s32.totalorder %s9, 3
    %p40 = por %p38, %p39
    %p41 = scmp.ne.s32.totalorder %s33, %s36
    %p42 = scmp.eq.s32.totalorder %s9, 0
    %p43 = por %p41, %p42
    %p44 = scmp.ne.s32.totalorder %s33, %s36
    %p45 = scmp.eq.s32.totalorder %s14, 3
    %p46 = por %p44, %p45
    %p47 = scmp.ne.s32.totalorder %s36, %s37
    %p48 = scmp.eq.s32.totalorder %s14, 0
    %p49 = por %p47, %p48
    %p50 = scmp.ne.s32.totalorder %s36, %s37
    %p51 = scmp.eq.s32.totalorder %s15, 3
    %p52 = por %p50, %p51
    %p54 = scmp.ne.s32.totalorder %s37, %s53
    %p55 = scmp.eq.s32.totalorder %s15, 0
    %p56 = por %p54, %p55
    %s58 = sadd.s32 %s57, 1
    %p61 = scmp.eq.s32.totalorder %s9, 3
    %p62 = scmp.ne.s32.totalorder %s57, %s59
    %p63 = scmp.eq.s32.totalorder %s9, 0
    %p64 = por %p62, %p63
    %p65 = scmp.ne.s32.totalorder %s57, %s59
    %p66 = scmp.eq.s32.totalorder %s14, 3
    %p67 = por %p65, %p66
    %p68 = scmp.ne.s32.totalorder %s59, %s60
    %p69 = scmp.eq.s32.totalorder %s14, 0
    %p70 = por %p68, %p69
    %p71 = scmp.ne.s32.totalorder %s59, %s60
    %p72 = scmp.eq.s32.totalorder %s15, 3
    %p73 = por %p71, %p72
    %p75 = scmp.ne.s32.totalorder %s60, %s74
    %p76 = scmp.eq.s32.totalorder %s15, 0
    %p77 = por %p75, %p76
    %s79 = sadd.s32 %s78, 1
    %p82 = scmp.eq.s32.totalorder %s9, 3
    %p83 = scmp.ne.s32.totalorder %s78, %s80
    %p84 = scmp.eq.s32.totalorder %s9, 0
    %p85 = por %p83, %p84
    %p86 = scmp.ne.s32.totalorder %s78, %s80
    %p87 = scmp.eq.s32.totalorder %s14, 3
    %p88 = por %p86, %p87
    %p89 = scmp.ne.s32.totalorder %s80, %s81
    %p90 = scmp.eq.s32.totalorder %s14, 0
    %p91 = por %p89, %p90
    %p92 = scmp.ne.s32.totalorder %s80, %s81
    %p93 = scmp.eq.s32.totalorder %s15, 3
    %p94 = por %p92, %p93
    %p96 = scmp.ne.s32.totalorder %s81, %s95
    %p97 = scmp.eq.s32.totalorder %s15, 0
    %p98 = por %p96, %p97
    %s99 = ssub.s32 %s16, %s28
    %s100 = ssub.s32 %s17, %s24
    %s101 = sor.u32 %s99, %s100
    %p102 = scmp.eq.s32.totalorder %s101, 0
    %s104 = sadd.s32 %s103, 1
    %s105 = scalar_select %p102, %s103, %s104
    %p108 = pneg %p102
    %p109 = scmp.eq.s32.totalorder %s9, 3
    %p110 = por %p108, %p109
    %p111 = scmp.ne.s32.totalorder %s103, %s106
    %p112 = scmp.eq.s32.totalorder %s9, 0
    %p113 = por %p111, %p112
    %p114 = scmp.ne.s32.totalorder %s103, %s106
    %p115 = scmp.eq.s32.totalorder %s14, 3
    %p116 = por %p114, %p115
    %p117 = scmp.ne.s32.totalorder %s106, %s107
    %p118 = scmp.eq.s32.totalorder %s14, 0
    %p119 = por %p117, %p118
    %p120 = scmp.ne.s32.totalorder %s106, %s107
    %p121 = scmp.eq.s32.totalorder %s15, 3
    %p122 = por %p120, %p121
    %p124 = scmp.ne.s32.totalorder %s107, %s123
    %p125 = scmp.eq.s32.totalorder %s15, 0
    %p126 = por %p124, %p125
    %p127 = scmp.le.s32.totalorder 1, %s9
    %p128 = scmp.lt.s32.totalorder %s9, 5
    %p129 = pnand %p127, %p128
    %p130 = pneg %p129
    // Predicated region
    $region9: #{camera_features_forward.4} parent=5 // pred_check
      _
    $region10: #{camera_features_forward.4} parent=5 // pred_check_branch
      %132 = sbr.rel (%p129) target = $region12
    $region11: #{camera_features_forward.4} parent=5 // pred_region
      %s133 = ssub.s32 %s9, 1
      // Predicated region
      $region13: #{camera_features_forward.4} parent=11 // pred_check
        %p134 = pneg %p70
      $region14: #{camera_features_forward.4} parent=11 // pred_check_branch
        %136 = sbr.rel (%p134) target = $region16
      $region15: #{camera_features_forward.4} parent=11 // pred_region
        _
      $region16: #{camera_features_forward.4} parent=11 // pred_fallthru
        _
      // Predicated region
      $region17: #{camera_features_forward.4} parent=11 // pred_check
        %p137 = pneg %p91
      $region18: #{camera_features_forward.4} parent=11 // pred_check_branch
        %139 = sbr.rel (%p137) target = $region20
      $region19: #{camera_features_forward.4} parent=11 // pred_region
        _
      $region20: #{camera_features_forward.4} parent=11 // pred_fallthru
        _
    $region12: #{camera_features_forward.4} parent=5 // pred_fallthru
      _
    %p140 = scmp.lt.s32.totalorder %s9, 4
    // Predicated region
    $region21: #{camera_features_forward.4} parent=5 // pred_check
      %p141 = pneg %p140
    $region22: #{camera_features_forward.4} parent=5 // pred_check_branch
      %143 = sbr.rel (%p141) target = $region24
    $region23: #{camera_features_forward.4} parent=5 // pred_region
      // Predicated region
      $region25: #{camera_features_forward.4} parent=23 // pred_check
        %p144 = pneg %p43
      $region26: #{camera_features_forward.4} parent=23 // pred_check_branch
        %146 = sbr.rel (%p144) target = $region28
      $region27: #{camera_features_forward.4} parent=23 // pred_region
        %s147 = smul.u32 16, %s17
        %p148 = scmp.lt.s32.totalorder %s16, 3
        %s149 = scalar_select %p148, %s16, 3
        %p150 = scmp.lt.s32.totalorder %s147, 15
        %s151 = scalar_select %p150, %s147, 15
        %s152 = smul.addr %s151, 2
        %s153 = smul.addr %s149, 32
        %s154 = sadd.s32 %s152, %s153
        %s155 = smul.addr %s154, 4
        %s156 = scalar_lea.vmem %s0, %s155
        %s157 = smul.u32 16, %s17
      $region28: #{camera_features_forward.4} parent=23 // pred_fallthru
        _
    $region24: #{camera_features_forward.4} parent=5 // pred_fallthru
      _
    %p158 = scmp.le.s32.totalorder 1, %s9
    %p159 = scmp.lt.s32.totalorder %s9, 5
    %p160 = pnand %p158, %p159
    %p161 = pneg %p160
    // Predicated region
    $region29: #{camera_features_forward.4} parent=5 // pred_check
      _
    $region30: #{camera_features_forward.4} parent=5 // pred_check_branch
      %163 = sbr.rel (%p160) target = $region32
    $region31: #{camera_features_forward.4} parent=5 // pred_region
      %s164 = ssub.s32 %s9, 1
      %s165 = smul.u32 16, %s19
      %p166 = scmp.lt.s32.totalorder %s18, 3
      %s167 = scalar_select %p166, %s18, 3
      %p168 = scmp.lt.s32.totalorder %s165, 15
      %s169 = scalar_select %p168, %s165, 15
      %s170 = smul.addr %s169, 2
      %s171 = smul.addr %s167, 32
      %s172 = sadd.s32 %s170, %s171
      %s173 = smul.addr %s172, 4
      %s174 = scalar_lea.vmem %s0, %s173
      %p175 = pneg %p49
      %p176 = pneg %p46
      %p177 = pneg %p70
      %p178 = pneg %p67
      %p179 = pneg %p91
      %p180 = pneg %p88
      %p181 = pneg %p119
      %p182 = pneg %p116
      %s183 = smul.u32 8, %s19
      %p184 = scmp.lt.s32.totalorder %s18, 3
      %s185 = scalar_select %p184, %s18, 3
      %p186 = scmp.lt.s32.totalorder %s183, 7
      %s187 = scalar_select %p186, %s183, 7
      %s188 = smul.addr %s185, 8
      %s189 = sadd.s32 %s187, %s188
      %s190 = smul.addr %s189, 4
      %s191 = scalar_lea.vmem %s3, %s190
      %s192 = smul.u32 16, %s19
      %p193 = scmp.lt.s32.totalorder %s18, 3
      %s194 = scalar_select %p193, %s18, 3
      %p195 = scmp.lt.s32.totalorder %s192, 15
      %s196 = scalar_select %p195, %s192, 15
      %s197 = smul.addr %s196, 2
      %s198 = smul.addr %s194, 32
      %s199 = sadd.s32 %s197, %s198
      %s200 = smul.addr %s199, 4
      %s201 = scalar_lea.vmem %s0, %s200
      %s202 = smul.u32 16, %s19
      %s203 = smul.u32 8, %s19
      %p204 = scmp.lt.s32.totalorder %s18, 3
      %s205 = scalar_select %p204, %s18, 3
      %p206 = scmp.lt.s32.totalorder %s203, 7
      %s207 = scalar_select %p206, %s203, 7
      %s208 = smul.addr %s205, 8
      %s209 = sadd.s32 %s207, %s208
      %s210 = smul.addr %s209, 4
      %s211 = scalar_lea.vmem %s3, %s210
      %s212 = smul.u32 8, %s19
      %v214 = vld [vmem:[%s201] sm:$0xf]
      %v215 = vld [vmem:[%s201 + $0x4] sm:$0xf]
      %v216 = vld [vmem:[%s201 + $0x8] sm:$0xf]
      %v217 = vld [vmem:[%s201 + $0xc] sm:$0xf]
      %v218 = vld [vmem:[%s201 + $0x10] sm:$0xf]
      %v219 = vld [vmem:[%s201 + $0x14] sm:$0xf]
      %v220 = vld [vmem:[%s201 + $0x18] sm:$0xf]
      %v221 = vld [vmem:[%s201 + $0x1c] sm:$0xf]
      %v222 = vld [vmem:[%s201 + $0x20] sm:$0xf]
      %v223 = vld [vmem:[%s201 + $0x24] sm:$0xf]
      %v224 = vld [vmem:[%s201 + $0x28] sm:$0xf]
      %v225 = vld [vmem:[%s201 + $0x2c] sm:$0xf]
      %v226 = vld [vmem:[%s201 + $0x30] sm:$0xf]
      %v227 = vld [vmem:[%s201 + $0x34] sm:$0xf]
      %v228 = vld [vmem:[%s201 + $0x38] sm:$0xf]
      %v229 = vld [vmem:[%s201 + $0x3c] sm:$0xf]
      %v230 = vld [vmem:[%s201 + $0x40] sm:$0xf]
      %v231 = vld [vmem:[%s201 + $0x44] sm:$0xf]
      %v232 = vld [vmem:[%s201 + $0x48] sm:$0xf]
      %v233 = vld [vmem:[%s201 + $0x4c] sm:$0xf]
      %v234 = vld [vmem:[%s201 + $0x50] sm:$0xf]
      %v235 = vld [vmem:[%s201 + $0x54] sm:$0xf]
      %v236 = vld [vmem:[%s201 + $0x58] sm:$0xf]
      %v237 = vld [vmem:[%s201 + $0x5c] sm:$0xf]
      %v238 = vld [vmem:[%s201 + $0x60] sm:$0xf]
      %v239 = vld [vmem:[%s201 + $0x64] sm:$0xf]
      %v240 = vld [vmem:[%s201 + $0x68] sm:$0xf]
      %v241 = vld [vmem:[%s201 + $0x6c] sm:$0xf]
      %v242 = vld [vmem:[%s201 + $0x70] sm:$0xf]
      %v243 = vld [vmem:[%s201 + $0x74] sm:$0xf]
      %v244 = vld [vmem:[%s201 + $0x78] sm:$0xf]
      %v245 = vld [vmem:[%s201 + $0x7c] sm:$0xf]
      %v246 = vld [vmem:[%s1] sm:$0xf]
      %v247 = vld [vmem:[%s1 + $0x4] sm:$0xf]
      %v248 = vld [vmem:[%s1 + $0x8] sm:$0xf]
      %v249 = vld [vmem:[%s1 + $0xc] sm:$0xf]
      %v250 = vld [vmem:[%s1 + $0x10] sm:$0xf]
      %v251 = vld [vmem:[%s1 + $0x14] sm:$0xf]
      %v252 = vld [vmem:[%s1 + $0x18] sm:$0xf]
      %v253 = vld [vmem:[%s1 + $0x1c] sm:$0xf]
      %v254 = vld [vmem:[%s1 + $0x20] sm:$0xf]
      %v255 = vld [vmem:[%s1 + $0x24] sm:$0xf]
      %v256 = vld [vmem:[%s1 + $0x28] sm:$0xf]
      %v257 = vld [vmem:[%s1 + $0x2c] sm:$0xf]
      %v258 = vld [vmem:[%s1 + $0x30] sm:$0xf]
      %v259 = vld [vmem:[%s1 + $0x34] sm:$0xf]
      %v260 = vld [vmem:[%s1 + $0x38] sm:$0xf]
      %v261 = vld [vmem:[%s1 + $0x3c] sm:$0xf]
      %v262 = vld [vmem:[%s2] sm:$0x1]
      %v264 = vlaneseq
      %v265 = vshrl.u32 %v264, 7
      %v266 = vsub.s32 0, %v265
      %v267 = vrot.slane %v262, %v266
      %v301 = vunpack.c.l.b16 %v214
      %v302 = vunpack.c.l.b16 %v215
      %v303 = vunpack.c.l.b16 %v216
      %v304 = vunpack.c.l.b16 %v217
      %v305 = vunpack.c.l.b16 %v218
      %v306 = vunpack.c.l.b16 %v219
      %v307 = vunpack.c.l.b16 %v220
      %v308 = vunpack.c.l.b16 %v221
      %v309 = vunpack.c.l.b16 %v222
      %v310 = vunpack.c.l.b16 %v223
      %v311 = vunpack.c.l.b16 %v224
      %v312 = vunpack.c.l.b16 %v225
      %v313 = vunpack.c.l.b16 %v226
      %v314 = vunpack.c.l.b16 %v227
      %v315 = vunpack.c.l.b16 %v228
      %v316 = vunpack.c.l.b16 %v229
      %v317 = vunpack.c.l.b16 %v230
      %v318 = vunpack.c.l.b16 %v231
      %v319 = vunpack.c.l.b16 %v232
      %v320 = vunpack.c.l.b16 %v233
      %v321 = vunpack.c.l.b16 %v234
      %v322 = vunpack.c.l.b16 %v235
      %v323 = vunpack.c.l.b16 %v236
      %v324 = vunpack.c.l.b16 %v237
      %v325 = vunpack.c.l.b16 %v238
      %v326 = vunpack.c.l.b16 %v239
      %v327 = vunpack.c.l.b16 %v240
      %v328 = vunpack.c.l.b16 %v241
      %v329 = vunpack.c.l.b16 %v242
      %v330 = vunpack.c.l.b16 %v243
      %v331 = vunpack.c.l.b16 %v244
      %v332 = vunpack.c.l.b16 %v245
      %v333 = vpack.c.b16 %v302, %v301
      %v334 = vpack.c.b16 %v304, %v303
      %v335 = vpack.c.b16 %v306, %v305
      %v336 = vpack.c.b16 %v308, %v307
      %v337 = vpack.c.b16 %v310, %v309
      %v338 = vpack.c.b16 %v312, %v311
      %v339 = vpack.c.b16 %v314, %v313
      %v340 = vpack.c.b16 %v316, %v315
      %v341 = vpack.c.b16 %v318, %v317
      %v342 = vpack.c.b16 %v320, %v319
      %v343 = vpack.c.b16 %v322, %v321
      %v344 = vpack.c.b16 %v324, %v323
      %v345 = vpack.c.b16 %v326, %v325
      %v346 = vpack.c.b16 %v328, %v327
      %v347 = vpack.c.b16 %v330, %v329
      %v348 = vpack.c.b16 %v332, %v331
      %v381 = vunpack.c.l.b16 %v246
      %v382 = vunpack.c.l.b16 %v247
      %v383 = vunpack.c.l.b16 %v248
      %v384 = vunpack.c.l.b16 %v249
      %v385 = vunpack.c.l.b16 %v250
      %v386 = vunpack.c.l.b16 %v251
      %v387 = vunpack.c.l.b16 %v252
      %v388 = vunpack.c.l.b16 %v253
      %v389 = vunpack.c.l.b16 %v254
      %v390 = vunpack.c.l.b16 %v255
      %v391 = vunpack.c.l.b16 %v256
      %v392 = vunpack.c.l.b16 %v257
      %v393 = vunpack.c.l.b16 %v258
      %v394 = vunpack.c.l.b16 %v259
      %v395 = vunpack.c.l.b16 %v260
      %v396 = vunpack.c.l.b16 %v261
      %v397 = vpack.c.b16 %v382, %v381
      %v398 = vpack.c.b16 %v384, %v383
      %v399 = vpack.c.b16 %v386, %v385
      %v400 = vpack.c.b16 %v388, %v387
      %v401 = vpack.c.b16 %v390, %v389
      %v402 = vpack.c.b16 %v392, %v391
      %v403 = vpack.c.b16 %v394, %v393
      %v404 = vpack.c.b16 %v396, %v395
      %413 = vmatprep.subr.bf16.mxu0 0
      %414 = vmatpush1.bf16.msra.mxu0 %v397
      %415 = vmatprep.subr.bf16.mxu0 0
      %416 = vmatpush1.bf16.msra.mxu0 %v398
      %417 = vmatprep.subr.bf16.mxu0 0
      %418 = vmatpush1.bf16.msra.mxu0 %v399
      %419 = vmatprep.subr.bf16.mxu0 0
      %420 = vmatpush1.bf16.msra.mxu0 %v400
      %421 = vmatprep.subr.bf16.mxu0 0
      %422 = vmatpush1.bf16.msra.mxu0 %v401
      %423 = vmatprep.subr.bf16.mxu0 0
      %424 = vmatpush1.bf16.msra.mxu0 %v402
      %425 = vmatprep.subr.bf16.mxu0 0
      %426 = vmatpush1.bf16.msra.mxu0 %v403
      %427 = vmatprep.subr.bf16.mxu0 0
      %428 = vmatpush1.bf16.msra.mxu0 %v404
      %429 = vmatprep.subr.bf16.mxu0 0
      %430 = vmatpush1.bf16.msra.mxu0 0
      %431 = vmatprep.subr.bf16.mxu0 0
      %432 = vmatpush1.bf16.msra.mxu0 0
      %433 = vmatprep.subr.bf16.mxu0 0
      %434 = vmatpush1.bf16.msra.mxu0 0
      %435 = vmatprep.subr.bf16.mxu0 0
      %436 = vmatpush1.bf16.msra.mxu0 0
      %437 = vmatprep.subr.bf16.mxu0 0
      %438 = vmatpush1.bf16.msra.mxu0 0
      %439 = vmatprep.subr.bf16.mxu0 0
      %440 = vmatpush1.bf16.msra.mxu0 0
      %441 = vmatprep.subr.bf16.mxu0 0
      %442 = vmatpush1.bf16.msra.mxu0 0
      %443 = vmatprep.subr.bf16.mxu0 0
      %444 = vmatpush1.bf16.msra.mxu0 0
      %445 = vmatprep.mubr.bf16.mxu0 0
      %446 = vmatmul.mubr.bf16.gmra.mrb[0].mxu0 %v333
      %v447 = vpop.f32.mrb[0].mxu0
      %v448 = vadd.f32 %v267, %v447
      %v449 = vpop.f32.mrb[0].mxu0
      %v450 = vpop.f32.mrb[0].mxu0
      %v451 = vadd.f32 %v267, %v450
      %v452 = vpop.f32.mrb[0].mxu0
      %453 = vmatprep.mubr.bf16.mxu0 0
      %454 = vmatmul.mubr.bf16.gmra.mrb[0].mxu0 %v334
      %v455 = vpop.f32.mrb[0].mxu0
      %v456 = vadd.f32 %v267, %v455
      %v457 = vpop.f32.mrb[0].mxu0
      %v458 = vpop.f32.mrb[0].mxu0
      %v459 = vadd.f32 %v267, %v458
      %v460 = vpop.f32.mrb[0].mxu0
      %461 = vmatprep.mubr.bf16.mxu0 0
      %462 = vmatmul.mubr.bf16.gmra.mrb[0].mxu0 %v335
      %v463 = vpop.f32.mrb[0].mxu0
      %v464 = vadd.f32 %v267, %v463
      %v465 = vpop.f32.mrb[0].mxu0
      %v466 = vpop.f32.mrb[0].mxu0
      %v467 = vadd.f32 %v267, %v466
      %v468 = vpop.f32.mrb[0].mxu0
      %469 = vmatprep.mubr.bf16.mxu0 0
      %470 = vmatmul.mubr.bf16.gmra.mrb[0].mxu0 %v336
      %v471 = vpop.f32.mrb[0].mxu0
      %v472 = vadd.f32 %v267, %v471
      %v473 = vpop.f32.mrb[0].mxu0
      %v474 = vpop.f32.mrb[0].mxu0
      %v475 = vadd.f32 %v267, %v474
      %v476 = vpop.f32.mrb[0].mxu0
      %477 = vmatprep.mubr.bf16.mxu0 0
      %478 = vmatmul.mubr.bf16.gmra.mrb[0].mxu0 %v337
      %v479 = vpop.f32.mrb[0].mxu0
      %v480 = vadd.f32 %v267, %v479
      %v481 = vpop.f32.mrb[0].mxu0
      %v482 = vpop.f32.mrb[0].mxu0
      %v483 = vadd.f32 %v267, %v482
      %v484 = vpop.f32.mrb[0].mxu0
      %485 = vmatprep.mubr.bf16.mxu0 0
      %486 = vmatmul.mubr.bf16.gmra.mrb[0].mxu0 %v338
      %v487 = vpop.f32.mrb[0].mxu0
      %v488 = vadd.f32 %v267, %v487
      %v489 = vpop.f32.mrb[0].mxu0
      %v490 = vpop.f32.mrb[0].mxu0
      %v491 = vadd.f32 %v267, %v490
      %v492 = vpop.f32.mrb[0].mxu0
      %493 = vmatprep.mubr.bf16.mxu0 0
      %494 = vmatmul.mubr.bf16.gmra.mrb[0].mxu0 %v339
      %v495 = vpop.f32.mrb[0].mxu0
      %v496 = vadd.f32 %v267, %v495
      %v497 = vpop.f32.mrb[0].mxu0
      %v498 = vpop.f32.mrb[0].mxu0
      %v499 = vadd.f32 %v267, %v498
      %v500 = vpop.f32.mrb[0].mxu0
      %501 = vmatprep.mubr.bf16.mxu0 0
      %502 = vmatmul.mubr.bf16.gmra.mrb[0].mxu0 %v340
      %v503 = vpop.f32.mrb[0].mxu0
      %v504 = vadd.f32 %v267, %v503
      %v505 = vpop.f32.mrb[0].mxu0
      %v506 = vpop.f32.mrb[0].mxu0
      %v507 = vadd.f32 %v267, %v506
      %v508 = vpop.f32.mrb[0].mxu0
      %509 = vmatprep.mubr.bf16.mxu0 0
      %510 = vmatmul.mubr.bf16.gmra.mrb[0].mxu0 %v341
      %v511 = vpop.f32.mrb[0].mxu0
      %v512 = vadd.f32 %v267, %v511
      %v513 = vpop.f32.mrb[0].mxu0
      %v514 = vpop.f32.mrb[0].mxu0
      %v515 = vadd.f32 %v267, %v514
      %v516 = vpop.f32.mrb[0].mxu0
      %517 = vmatprep.mubr.bf16.mxu0 0
      %518 = vmatmul.mubr.bf16.gmra.mrb[0].mxu0 %v342
      %v519 = vpop.f32.mrb[0].mxu0
      %v520 = vadd.f32 %v267, %v519
      %v521 = vpop.f32.mrb[0].mxu0
      %v522 = vpop.f32.mrb[0].mxu0
      %v523 = vadd.f32 %v267, %v522
      %v524 = vpop.f32.mrb[0].mxu0
      %525 = vmatprep.mubr.bf16.mxu0 0
      %526 = vmatmul.mubr.bf16.gmra.mrb[0].mxu0 %v343
      %v527 = vpop.f32.mrb[0].mxu0
      %v528 = vadd.f32 %v267, %v527
      %v529 = vpop.f32.mrb[0].mxu0
      %v530 = vpop.f32.mrb[0].mxu0
      %v531 = vadd.f32 %v267, %v530
      %v532 = vpop.f32.mrb[0].mxu0
      %533 = vmatprep.mubr.bf16.mxu0 0
      %534 = vmatmul.mubr.bf16.gmra.mrb[0].mxu0 %v344
      %v535 = vpop.f32.mrb[0].mxu0
      %v536 = vadd.f32 %v267, %v535
      %v537 = vpop.f32.mrb[0].mxu0
      %v538 = vpop.f32.mrb[0].mxu0
      %v539 = vadd.f32 %v267, %v538
      %v540 = vpop.f32.mrb[0].mxu0
      %541 = vmatprep.mubr.bf16.mxu0 0
      %542 = vmatmul.mubr.bf16.gmra.mrb[0].mxu0 %v345
      %v543 = vpop.f32.mrb[0].mxu0
      %v544 = vadd.f32 %v267, %v543
      %v545 = vpop.f32.mrb[0].mxu0
      %v546 = vpop.f32.mrb[0].mxu0
      %v547 = vadd.f32 %v267, %v546
      %v548 = vpop.f32.mrb[0].mxu0
      %549 = vmatprep.mubr.bf16.mxu0 0
      %550 = vmatmul.mubr.bf16.gmra.mrb[0].mxu0 %v346
      %v551 = vpop.f32.mrb[0].mxu0
      %v552 = vadd.f32 %v267, %v551
      %v553 = vpop.f32.mrb[0].mxu0
      %v554 = vpop.f32.mrb[0].mxu0
      %v555 = vadd.f32 %v267, %v554
      %v556 = vpop.f32.mrb[0].mxu0
      %557 = vmatprep.mubr.bf16.mxu0 0
      %558 = vmatmul.mubr.bf16.gmra.mrb[0].mxu0 %v347
      %v559 = vpop.f32.mrb[0].mxu0
      %v560 = vadd.f32 %v267, %v559
      %v561 = vpop.f32.mrb[0].mxu0
      %v562 = vpop.f32.mrb[0].mxu0
      %v563 = vadd.f32 %v267, %v562
      %v564 = vpop.f32.mrb[0].mxu0
      %565 = vmatprep.mubr.bf16.mxu0 0
      %566 = vmatmul.mubr.bf16.gmra.mrb[0].mxu0 %v348
      %v567 = vpop.f32.mrb[0].mxu0
      %v568 = vadd.f32 %v267, %v567
      %v569 = vpop.f32.mrb[0].mxu0
      %v570 = vpop.f32.mrb[0].mxu0
      %v571 = vadd.f32 %v267, %v570
      %v572 = vpop.f32.mrb[0].mxu0
      %573 = vdwg.mxu0
      %v574 = vmax.f32 %v448, 0.0
      %v575 = vmax.f32 %v451, 0.0
      %v576 = vmax.f32 %v456, 0.0
      %v577 = vmax.f32 %v459, 0.0
      %v578 = vmax.f32 %v464, 0.0
      %v579 = vmax.f32 %v467, 0.0
      %v580 = vmax.f32 %v472, 0.0
      %v581 = vmax.f32 %v475, 0.0
      %v582 = vmax.f32 %v480, 0.0
      %v583 = vmax.f32 %v483, 0.0
      %v584 = vmax.f32 %v488, 0.0
      %v585 = vmax.f32 %v491, 0.0
      %v586 = vmax.f32 %v496, 0.0
      %v587 = vmax.f32 %v499, 0.0
      %v588 = vmax.f32 %v504, 0.0
      %v589 = vmax.f32 %v507, 0.0
      %v590 = vmax.f32 %v512, 0.0
      %v591 = vmax.f32 %v515, 0.0
      %v592 = vmax.f32 %v520, 0.0
      %v593 = vmax.f32 %v523, 0.0
      %v594 = vmax.f32 %v528, 0.0
      %v595 = vmax.f32 %v531, 0.0
      %v596 = vmax.f32 %v536, 0.0
      %v597 = vmax.f32 %v539, 0.0
      %v598 = vmax.f32 %v544, 0.0
      %v599 = vmax.f32 %v547, 0.0
      %v600 = vmax.f32 %v552, 0.0
      %v601 = vmax.f32 %v555, 0.0
      %v602 = vmax.f32 %v560, 0.0
      %v603 = vmax.f32 %v563, 0.0
      %v604 = vmax.f32 %v568, 0.0
      %v605 = vmax.f32 %v571, 0.0
      %v606 = vadd.f32 %v574, %v576
      %v607 = vadd.f32 %v575, %v577
      %v608 = vadd.f32 %v578, %v580
      %v609 = vadd.f32 %v579, %v581
      %v610 = vadd.f32 %v582, %v584
      %v611 = vadd.f32 %v583, %v585
      %v612 = vadd.f32 %v586, %v588
      %v613 = vadd.f32 %v587, %v589
      %v614 = vadd.f32 %v590, %v592
      %v615 = vadd.f32 %v591, %v593
      %v616 = vadd.f32 %v594, %v596
      %v617 = vadd.f32 %v595, %v597
      %v618 = vadd.f32 %v598, %v600
      %v619 = vadd.f32 %v599, %v601
      %v620 = vadd.f32 %v602, %v604
      %v621 = vadd.f32 %v603, %v605
      %622 = vst [vmem:[#allocation2] sm:$0xff] %v606
      %623 = vst [vmem:[#allocation2 + $0x8] sm:$0xff] %v607
      %624 = vst [vmem:[#allocation2 + $0x10] sm:$0xff] %v608
      %625 = vst [vmem:[#allocation2 + $0x18] sm:$0xff] %v609
      %626 = vst [vmem:[#allocation2 + $0x20] sm:$0xff] %v610
      %627 = vst [vmem:[#allocation2 + $0x28] sm:$0xff] %v611
      %628 = vst [vmem:[#allocation2 + $0x30] sm:$0xff] %v612
      %629 = vst [vmem:[#allocation2 + $0x38] sm:$0xff] %v613
      %630 = vst [vmem:[#allocation2 + $0x40] sm:$0xff] %v614
      %631 = vst [vmem:[#allocation2 + $0x48] sm:$0xff] %v615
      %632 = vst [vmem:[#allocation2 + $0x50] sm:$0xff] %v616
      %633 = vst [vmem:[#allocation2 + $0x58] sm:$0xff] %v617
      %634 = vst [vmem:[#allocation2 + $0x60] sm:$0xff] %v618
      %635 = vst [vmem:[#allocation2 + $0x68] sm:$0xff] %v619
      %636 = vst [vmem:[#allocation2 + $0x70] sm:$0xff] %v620
      %637 = vst [vmem:[#allocation2 + $0x78] sm:$0xff] %v621
      %v638 = vld [vmem:[#allocation2] ss:$2 sm:$0xff]
      %s639 = scalar_lea.vmem [#allocation2], 16
      %v640 = vld [vmem:[%s639] ss:$2 sm:$0xff]
      %s641 = scalar_lea.vmem [#allocation2], 32
      %v642 = vld [vmem:[%s641] ss:$2 sm:$0xff]
      %s643 = scalar_lea.vmem [#allocation2], 48
      %v644 = vld [vmem:[%s643] ss:$2 sm:$0xff]
      %s645 = scalar_lea.vmem [#allocation2], 64
      %v646 = vld [vmem:[%s645] ss:$2 sm:$0xff]
      %s647 = scalar_lea.vmem [#allocation2], 80
      %v648 = vld [vmem:[%s647] ss:$2 sm:$0xff]
      %s649 = scalar_lea.vmem [#allocation2], 96
      %v650 = vld [vmem:[%s649] ss:$2 sm:$0xff]
      %s651 = scalar_lea.vmem [#allocation2], 112
      %v652 = vld [vmem:[%s651] ss:$2 sm:$0xff]
      %s653 = scalar_lea.vmem [#allocation2], 1
      %v654 = vld [vmem:[%s653] ss:$2 sm:$0xff]
      %s655 = scalar_lea.vmem [#allocation2], 17
      %v656 = vld [vmem:[%s655] ss:$2 sm:$0xff]
      %s657 = scalar_lea.vmem [#allocation2], 33
      %v658 = vld [vmem:[%s657] ss:$2 sm:$0xff]
      %s659 = scalar_lea.vmem [#allocation2], 49
      %v660 = vld [vmem:[%s659] ss:$2 sm:$0xff]
      %s661 = scalar_lea.vmem [#allocation2], 65
      %v662 = vld [vmem:[%s661] ss:$2 sm:$0xff]
      %s663 = scalar_lea.vmem [#allocation2], 81
      %v664 = vld [vmem:[%s663] ss:$2 sm:$0xff]
      %s665 = scalar_lea.vmem [#allocation2], 97
      %v666 = vld [vmem:[%s665] ss:$2 sm:$0xff]
      %s667 = scalar_lea.vmem [#allocation2], 113
      %v668 = vld [vmem:[%s667] ss:$2 sm:$0xff]
      %v669 = vadd.f32 %v638, %v654
      %v670 = vadd.f32 %v640, %v656
      %v671 = vadd.f32 %v642, %v658
      %v672 = vadd.f32 %v644, %v660
      %v673 = vadd.f32 %v646, %v662
      %v674 = vadd.f32 %v648, %v664
      %v675 = vadd.f32 %v650, %v666
      %v676 = vadd.f32 %v652, %v668
      %v677 = vmul.f32 %v669, 0.25
      %v678 = vmul.f32 %v670, 0.25
      %v679 = vmul.f32 %v671, 0.25
      %v680 = vmul.f32 %v672, 0.25
      %v681 = vmul.f32 %v673, 0.25
      %v682 = vmul.f32 %v674, 0.25
      %v683 = vmul.f32 %v675, 0.25
      %v684 = vmul.f32 %v676, 0.25
      %v685 = vpack.c.bf16 %v677, %v677
      %v686 = vpack.c.bf16 %v678, %v678
      %v687 = vpack.c.bf16 %v679, %v679
      %v688 = vpack.c.bf16 %v680, %v680
      %v689 = vpack.c.bf16 %v681, %v681
      %v690 = vpack.c.bf16 %v682, %v682
      %v691 = vpack.c.bf16 %v683, %v683
      %v692 = vpack.c.bf16 %v684, %v684
      %693 = vst [vmem:[%s211] sm:$0xf] %v685
      %694 = vst [vmem:[%s211 + $0x4] sm:$0xf] %v686
      %695 = vst [vmem:[%s211 + $0x8] sm:$0xf] %v687
      %696 = vst [vmem:[%s211 + $0xc] sm:$0xf] %v688
      %697 = vst [vmem:[%s211 + $0x10] sm:$0xf] %v689
      %698 = vst [vmem:[%s211 + $0x14] sm:$0xf] %v690
      %699 = vst [vmem:[%s211 + $0x18] sm:$0xf] %v691
      %700 = vst [vmem:[%s211 + $0x1c] sm:$0xf] %v692
      %s701 = smul.u32 8, %s19
      %p702 = scmp.lt.s32.totalorder %s18, 3
      %s703 = scalar_select %p702, %s18, 3
      %p704 = scmp.lt.s32.totalorder %s701, 7
      %s705 = scalar_select %p704, %s701, 7
      %s706 = smul.addr %s703, 8
      %s707 = sadd.s32 %s705, %s706
      %s708 = smul.addr %s707, 4
      %s709 = scalar_lea.vmem %s3, %s708
      // Predicated region
      $region33: #{camera_features_forward.4} parent=31 // pred_check
        %p710 = pneg %p116
      $region34: #{camera_features_forward.4} parent=31 // pred_check_branch
        %712 = sbr.rel (%p710) target = $region36
      $region35: #{camera_features_forward.4} parent=31 // pred_region
        %s713 = smul.u32 8, %s19
      $region36: #{camera_features_forward.4} parent=31 // pred_fallthru
        _
    $region32: #{camera_features_forward.4} parent=5 // pred_fallthru
      _
    %p714 = scmp.le.s32.totalorder 2, %s9
    // Predicated region
    $region37: #{camera_features_forward.4} parent=5 // pred_check
      %p715 = pneg %p714
    $region38: #{camera_features_forward.4} parent=5 // pred_check_branch
      %717 = sbr.rel (%p715) target = $region40
    $region39: #{camera_features_forward.4} parent=5 // pred_region
      %s718 = ssub.s32 %s9, 2
      // Predicated region
      $region41: #{camera_features_forward.4} parent=39 // pred_check
        %p719 = pneg %p122
      $region42: #{camera_features_forward.4} parent=39 // pred_check_branch
        %721 = sbr.rel (%p719) target = $region44
      $region43: #{camera_features_forward.4} parent=39 // pred_region
        %s722 = smul.u32 8, %s21
        %p723 = scmp.lt.s32.totalorder %s20, 3
        %s724 = scalar_select %p723, %s20, 3
        %p725 = scmp.lt.s32.totalorder %s722, 7
        %s726 = scalar_select %p725, %s722, 7
        %s727 = smul.addr %s724, 8
        %s728 = sadd.s32 %s726, %s727
        %s729 = smul.addr %s728, 4
        %s730 = scalar_lea.vmem %s3, %s729
      $region44: #{camera_features_forward.4} parent=39 // pred_fallthru
        _
    $region40: #{camera_features_forward.4} parent=5 // pred_fallthru
      _
  $region6: #{camera_features_forward.4} parent=0 // loop_footer
    %s13 = sadd.s32 1, %s9
  $region7: #{camera_features_forward.4} parent=0 // loop_footer_branch
    %8 = sbr.rel target = $region3
  $region8: #{camera_features_forward.4} parent=0 // loop_exit
    _

// kernel: camera_features_forward.5
$region0: #{camera_features_forward.5}
  #allocation0 [shape = 'u32[]', space=smem, size = 0x4, offset = 0x4, fixed_abs, tag = 'smem constant byte address 0x4 - core index']
  #allocation1 [shape = 'u32[144,128]{1,0:T(1,128)}', space=vmem, size = 0x12000, scoped, tag = 'internal scratch']
  #allocation2 [shape = 'f32[4,8,128]{2,1,0:T(8,128)}', space=vmem, size = 0x4000, scoped, tag = 'scratch operand']
  %s0 = inlined_call_operand.vmem [shape: bf16[4,1,10,10,128], index: 0, kind: input, shape index: {}]
  %s1 = inlined_call_operand.vmem [shape: bf16[3,384,128], index: 1, kind: input, shape index: {}]
  %s2 = inlined_call_operand.vmem [shape: f32[1,128], index: 2, kind: input, shape index: {}]
  %s3 = inlined_call_operand.vmem [shape: bf16[4,1,4,4,128], index: 3, kind: output, shape index: {}]
  %s4 = sld [smem:[#allocation0]]
  $region45: #{camera_features_forward.5} parent=0
    _
  %s6 = ssub.s32 1, %s4
  %s7 = scalar_select 0, %s6, %s4
  loop: start=0, step=1, limit=6
  $region2: #{camera_features_forward.5} parent=0 // loop_pre_header
    _
  $region3: #{camera_features_forward.5} parent=0 // loop_header
    %s9 = sphi 0, %s13
    %p10 = scmp.ge.s32.totalorder %s9, 6
    %s16 = sphi 0, %s28
    %s17 = sphi 0, %s24
    %s18 = sphi 0, %s16
    %s19 = sphi 0, %s17
    %s20 = sphi 0, %s18
    %s21 = sphi 0, %s19
    %s33 = sphi 0, %s35
    %s36 = sphi 0, %s33
    %s37 = sphi 0, %s36
    %s53 = sphi 0, %s37
    %s57 = sphi 0, %s57
    %s59 = sphi 0, %s57
    %s60 = sphi 0, %s59
    %s74 = sphi 0, %s60
    %s78 = sphi 0, %s78
    %s80 = sphi 0, %s78
    %s81 = sphi 0, %s80
    %s95 = sphi 0, %s81
    %s103 = sphi 0, %s105
    %s106 = sphi 0, %s103
    %s107 = sphi 0, %s106
    %s123 = sphi 0, %s107
  $region4: #{camera_features_forward.5} parent=0 // loop_header_branch
    %12 = sbr.rel (%p10) target = $region8
  $region5: #{camera_features_forward.5} parent=0 // loop_body
    %s14 = ssub.s32 %s9, 1
    %s15 = ssub.s32 %s9, 2
    %s22 = sadd.s32 1, %s17
    %p23 = scmp.ge.s32.totalorder %s22, 1
    %s24 = scalar_select %p23, 0, %s22
    %s25 = sadd.s32 1, %s16
    %s26 = scalar_select %p23, %s25, %s16
    %p27 = scmp.ge.s32.totalorder %s26, 4
    %s28 = scalar_select %p27, 0, %s26
    %s29 = ssub.s32 %s16, %s28
    %s30 = ssub.s32 %s17, %s24
    %s31 = sor.u32 %s29, %s30
    %p32 = scmp.eq.s32.totalorder %s31, 0
    %s34 = sadd.s32 %s33, 1
    %s35 = scalar_select %p32, %s33, %s34
    %p38 = pneg %p32
    %p39 = scmp.eq.s32.totalorder %s9, 3
    %p40 = por %p38, %p39
    %p41 = scmp.ne.s32.totalorder %s33, %s36
    %p42 = scmp.eq.s32.totalorder %s9, 0
    %p43 = por %p41, %p42
    %p44 = scmp.ne.s32.totalorder %s33, %s36
    %p45 = scmp.eq.s32.totalorder %s14, 3
    %p46 = por %p44, %p45
    %p47 = scmp.ne.s32.totalorder %s36, %s37
    %p48 = scmp.eq.s32.totalorder %s14, 0
    %p49 = por %p47, %p48
    %p50 = scmp.ne.s32.totalorder %s36, %s37
    %p51 = scmp.eq.s32.totalorder %s15, 3
    %p52 = por %p50, %p51
    %p54 = scmp.ne.s32.totalorder %s37, %s53
    %p55 = scmp.eq.s32.totalorder %s15, 0
    %p56 = por %p54, %p55
    %s58 = sadd.s32 %s57, 1
    %p61 = scmp.eq.s32.totalorder %s9, 3
    %p62 = scmp.ne.s32.totalorder %s57, %s59
    %p63 = scmp.eq.s32.totalorder %s9, 0
    %p64 = por %p62, %p63
    %p65 = scmp.ne.s32.totalorder %s57, %s59
    %p66 = scmp.eq.s32.totalorder %s14, 3
    %p67 = por %p65, %p66
    %p68 = scmp.ne.s32.totalorder %s59, %s60
    %p69 = scmp.eq.s32.totalorder %s14, 0
    %p70 = por %p68, %p69
    %p71 = scmp.ne.s32.totalorder %s59, %s60
    %p72 = scmp.eq.s32.totalorder %s15, 3
    %p73 = por %p71, %p72
    %p75 = scmp.ne.s32.totalorder %s60, %s74
    %p76 = scmp.eq.s32.totalorder %s15, 0
    %p77 = por %p75, %p76
    %s79 = sadd.s32 %s78, 1
    %p82 = scmp.eq.s32.totalorder %s9, 3
    %p83 = scmp.ne.s32.totalorder %s78, %s80
    %p84 = scmp.eq.s32.totalorder %s9, 0
    %p85 = por %p83, %p84
    %p86 = scmp.ne.s32.totalorder %s78, %s80
    %p87 = scmp.eq.s32.totalorder %s14, 3
    %p88 = por %p86, %p87
    %p89 = scmp.ne.s32.totalorder %s80, %s81
    %p90 = scmp.eq.s32.totalorder %s14, 0
    %p91 = por %p89, %p90
    %p92 = scmp.ne.s32.totalorder %s80, %s81
    %p93 = scmp.eq.s32.totalorder %s15, 3
    %p94 = por %p92, %p93
    %p96 = scmp.ne.s32.totalorder %s81, %s95
    %p97 = scmp.eq.s32.totalorder %s15, 0
    %p98 = por %p96, %p97
    %s99 = ssub.s32 %s16, %s28
    %s100 = ssub.s32 %s17, %s24
    %s101 = sor.u32 %s99, %s100
    %p102 = scmp.eq.s32.totalorder %s101, 0
    %s104 = sadd.s32 %s103, 1
    %s105 = scalar_select %p102, %s103, %s104
    %p108 = pneg %p102
    %p109 = scmp.eq.s32.totalorder %s9, 3
    %p110 = por %p108, %p109
    %p111 = scmp.ne.s32.totalorder %s103, %s106
    %p112 = scmp.eq.s32.totalorder %s9, 0
    %p113 = por %p111, %p112
    %p114 = scmp.ne.s32.totalorder %s103, %s106
    %p115 = scmp.eq.s32.totalorder %s14, 3
    %p116 = por %p114, %p115
    %p117 = scmp.ne.s32.totalorder %s106, %s107
    %p118 = scmp.eq.s32.totalorder %s14, 0
    %p119 = por %p117, %p118
    %p120 = scmp.ne.s32.totalorder %s106, %s107
    %p121 = scmp.eq.s32.totalorder %s15, 3
    %p122 = por %p120, %p121
    %p124 = scmp.ne.s32.totalorder %s107, %s123
    %p125 = scmp.eq.s32.totalorder %s15, 0
    %p126 = por %p124, %p125
    %p127 = scmp.le.s32.totalorder 1, %s9
    %p128 = scmp.lt.s32.totalorder %s9, 5
    %p129 = pnand %p127, %p128
    %p130 = pneg %p129
    // Predicated region
    $region9: #{camera_features_forward.5} parent=5 // pred_check
      _
    $region10: #{camera_features_forward.5} parent=5 // pred_check_branch
      %132 = sbr.rel (%p129) target = $region12
    $region11: #{camera_features_forward.5} parent=5 // pred_region
      %s133 = ssub.s32 %s9, 1
      // Predicated region
      $region13: #{camera_features_forward.5} parent=11 // pred_check
        %p134 = pneg %p70
      $region14: #{camera_features_forward.5} parent=11 // pred_check_branch
        %136 = sbr.rel (%p134) target = $region16
      $region15: #{camera_features_forward.5} parent=11 // pred_region
        _
      $region16: #{camera_features_forward.5} parent=11 // pred_fallthru
        _
      // Predicated region
      $region17: #{camera_features_forward.5} parent=11 // pred_check
        %p137 = pneg %p91
      $region18: #{camera_features_forward.5} parent=11 // pred_check_branch
        %139 = sbr.rel (%p137) target = $region20
      $region19: #{camera_features_forward.5} parent=11 // pred_region
        _
      $region20: #{camera_features_forward.5} parent=11 // pred_fallthru
        _
    $region12: #{camera_features_forward.5} parent=5 // pred_fallthru
      _
    %p140 = scmp.lt.s32.totalorder %s9, 4
    // Predicated region
    $region21: #{camera_features_forward.5} parent=5 // pred_check
      %p141 = pneg %p140
    $region22: #{camera_features_forward.5} parent=5 // pred_check_branch
      %143 = sbr.rel (%p141) target = $region24
    $region23: #{camera_features_forward.5} parent=5 // pred_region
      // Predicated region
      $region25: #{camera_features_forward.5} parent=23 // pred_check
        %p144 = pneg %p43
      $region26: #{camera_features_forward.5} parent=23 // pred_check_branch
        %146 = sbr.rel (%p144) target = $region28
      $region27: #{camera_features_forward.5} parent=23 // pred_region
        %p147 = scmp.lt.s32.totalorder %s16, 3
        %s148 = scalar_select %p147, %s16, 3
        %p149 = scmp.lt.s32.totalorder %s17, 0
        %s150 = scalar_select %p149, %s17, 0
        %s151 = smul.addr %s150, 20
        %s152 = smul.addr %s148, 20
        %s153 = sadd.s32 %s151, %s152
        %s154 = smul.addr %s153, 4
        %s155 = scalar_lea.vmem %s0, %s154
      $region28: #{camera_features_forward.5} parent=23 // pred_fallthru
        _
    $region24: #{camera_features_forward.5} parent=5 // pred_fallthru
      _
    %p156 = scmp.le.s32.totalorder 1, %s9
    %p157 = scmp.lt.s32.totalorder %s9, 5
    %p158 = pnand %p156, %p157
    %p159 = pneg %p158
    // Predicated region
    $region29: #{camera_features_forward.5} parent=5 // pred_check
      _
    $region30: #{camera_features_forward.5} parent=5 // pred_check_branch
      %161 = sbr.rel (%p158) target = $region32
    $region31: #{camera_features_forward.5} parent=5 // pred_region
      %s162 = ssub.s32 %s9, 1
      %p163 = scmp.lt.s32.totalorder %s18, 3
      %s164 = scalar_select %p163, %s18, 3
      %p165 = scmp.lt.s32.totalorder %s19, 0
      %s166 = scalar_select %p165, %s19, 0
      %s167 = smul.addr %s166, 20
      %s168 = smul.addr %s164, 20
      %s169 = sadd.s32 %s167, %s168
      %s170 = smul.addr %s169, 4
      %s171 = scalar_lea.vmem %s0, %s170
      %p172 = pneg %p49
      %p173 = pneg %p46
      %p174 = pneg %p70
      %p175 = pneg %p67
      %p176 = pneg %p91
      %p177 = pneg %p88
      %p178 = pneg %p119
      %p179 = pneg %p116
      %p180 = scmp.lt.s32.totalorder %s18, 3
      %s181 = scalar_select %p180, %s18, 3
      %p182 = scmp.lt.s32.totalorder %s19, 0
      %s183 = scalar_select %p182, %s19, 0
      %s184 = smul.addr %s183, 4
      %s185 = smul.addr %s181, 4
      %s186 = sadd.s32 %s184, %s185
      %s187 = smul.addr %s186, 2
      %s188 = scalar_lea.vmem %s3, %s187
      %p189 = scmp.lt.s32.totalorder %s18, 3
      %s190 = scalar_select %p189, %s18, 3
      %p191 = scmp.lt.s32.totalorder %s19, 0
      %s192 = scalar_select %p191, %s19, 0
      %s193 = smul.addr %s192, 20
      %s194 = smul.addr %s190, 20
      %s195 = sadd.s32 %s193, %s194
      %s196 = smul.addr %s195, 4
      %s197 = scalar_lea.vmem %s0, %s196
      %p198 = scmp.lt.s32.totalorder %s18, 3
      %s199 = scalar_select %p198, %s18, 3
      %p200 = scmp.lt.s32.totalorder %s19, 0
      %s201 = scalar_select %p200, %s19, 0
      %s202 = smul.addr %s201, 4
      %s203 = smul.addr %s199, 4
      %s204 = sadd.s32 %s202, %s203
      %s205 = smul.addr %s204, 2
      %s206 = scalar_lea.vmem %s3, %s205
      %v208 = vld [vmem:[%s197] sm:$0xf]
      %v209 = vld [vmem:[%s197 + $0x4] sm:$0x1]
      %v210 = vld [vmem:[%s197 + $0x8] sm:$0xf]
      %v211 = vld [vmem:[%s197 + $0xc] sm:$0x1]
      %v212 = vld [vmem:[%s197 + $0x10] sm:$0xf]
      %v213 = vld [vmem:[%s197 + $0x14] sm:$0x1]
      %v214 = vld [vmem:[%s197 + $0x18] sm:$0xf]
      %v215 = vld [vmem:[%s197 + $0x1c] sm:$0x1]
      %v216 = vld [vmem:[%s197 + $0x20] sm:$0xf]
      %v217 = vld [vmem:[%s197 + $0x24] sm:$0x1]
      %v218 = vld [vmem:[%s197 + $0x28] sm:$0xf]
      %v219 = vld [vmem:[%s197 + $0x2c] sm:$0x1]
      %v220 = vld [vmem:[%s197 + $0x30] sm:$0xf]
      %v221 = vld [vmem:[%s197 + $0x34] sm:$0x1]
      %v222 = vld [vmem:[%s197 + $0x38] sm:$0xf]
      %v223 = vld [vmem:[%s197 + $0x3c] sm:$0x1]
      %v224 = vld [vmem:[%s197 + $0x40] sm:$0xf]
      %v225 = vld [vmem:[%s197 + $0x44] sm:$0x1]
      %v226 = vld [vmem:[%s197 + $0x48] sm:$0xf]
      %v227 = vld [vmem:[%s197 + $0x4c] sm:$0x1]
      %v238 = vunpack.c.l.b16 %v208
      %v239 = vunpack.c.l.b16 %v210
      %v240 = vunpack.c.l.b16 %v212
      %v241 = vunpack.c.l.b16 %v214
      %v242 = vunpack.c.l.b16 %v216
      %v243 = vunpack.c.l.b16 %v218
      %v244 = vunpack.c.l.b16 %v220
      %v245 = vunpack.c.l.b16 %v222
      %v246 = vunpack.c.l.b16 %v224
      %v247 = vunpack.c.l.b16 %v226
      %v248 = vld [vmem:[%s1] sm:$0xf]
      %v249 = vld [vmem:[%s1 + $0x4] sm:$0xf]
      %v250 = vld [vmem:[%s1 + $0x8] sm:$0xf]
      %v251 = vld [vmem:[%s1 + $0xc] sm:$0xf]
      %v252 = vld [vmem:[%s1 + $0x10] sm:$0xf]
      %v253 = vld [vmem:[%s1 + $0x14] sm:$0xf]
      %v254 = vld [vmem:[%s1 + $0x18] sm:$0xf]
      %v255 = vld [vmem:[%s1 + $0x1c] sm:$0xf]
      %v256 = vld [vmem:[%s1 + $0x20] sm:$0xf]
      %v257 = vld [vmem:[%s1 + $0x24] sm:$0xf]
      %v258 = vld [vmem:[%s1 + $0x28] sm:$0xf]
      %v259 = vld [vmem:[%s1 + $0x2c] sm:$0xf]
      %v260 = vld [vmem:[%s1 + $0x30] sm:$0xf]
      %v261 = vld [vmem:[%s1 + $0x34] sm:$0xf]
      %v262 = vld [vmem:[%s1 + $0x38] sm:$0xf]
      %v263 = vld [vmem:[%s1 + $0x3c] sm:$0xf]
      %v264 = vld [vmem:[%s1 + $0x40] sm:$0xf]
      %v265 = vld [vmem:[%s1 + $0x44] sm:$0xf]
      %v266 = vld [vmem:[%s1 + $0x48] sm:$0xf]
      %v267 = vld [vmem:[%s1 + $0x4c] sm:$0xf]
      %v268 = vld [vmem:[%s1 + $0x50] sm:$0xf]
      %v269 = vld [vmem:[%s1 + $0x54] sm:$0xf]
      %v270 = vld [vmem:[%s1 + $0x58] sm:$0xf]
      %v271 = vld [vmem:[%s1 + $0x5c] sm:$0xf]
      %v272 = vld [vmem:[%s1 + $0x60] sm:$0xf]
      %v273 = vld [vmem:[%s1 + $0x64] sm:$0xf]
      %v274 = vld [vmem:[%s1 + $0x68] sm:$0xf]
      %v275 = vld [vmem:[%s1 + $0x6c] sm:$0xf]
      %v276 = vld [vmem:[%s1 + $0x70] sm:$0xf]
      %v277 = vld [vmem:[%s1 + $0x74] sm:$0xf]
      %v278 = vld [vmem:[%s1 + $0x78] sm:$0xf]
      %v279 = vld [vmem:[%s1 + $0x7c] sm:$0xf]
      %v280 = vld [vmem:[%s1 + $0x80] sm:$0xf]
      %v281 = vld [vmem:[%s1 + $0x84] sm:$0xf]
      %v282 = vld [vmem:[%s1 + $0x88] sm:$0xf]
      %v283 = vld [vmem:[%s1 + $0x8c] sm:$0xf]
      %v284 = vld [vmem:[%s1 + $0x90] sm:$0xf]
      %v285 = vld [vmem:[%s1 + $0x94] sm:$0xf]
      %v286 = vld [vmem:[%s1 + $0x98] sm:$0xf]
      %v287 = vld [vmem:[%s1 + $0x9c] sm:$0xf]
      %v288 = vld [vmem:[%s1 + $0xa0] sm:$0xf]
      %v289 = vld [vmem:[%s1 + $0xa4] sm:$0xf]
      %v290 = vld [vmem:[%s1 + $0xa8] sm:$0xf]
      %v291 = vld [vmem:[%s1 + $0xac] sm:$0xf]
      %v292 = vld [vmem:[%s1 + $0xb0] sm:$0xf]
      %v293 = vld [vmem:[%s1 + $0xb4] sm:$0xf]
      %v294 = vld [vmem:[%s1 + $0xb8] sm:$0xf]
      %v295 = vld [vmem:[%s1 + $0xbc] sm:$0xf]
      %v304 = vunpack.c.l.b16 %v209
      %v305 = vunpack.c.l.b16 %v211
      %v306 = vunpack.c.l.b16 %v213
      %v307 = vunpack.c.l.b16 %v215
      %v308 = vunpack.c.l.b16 %v217
      %v309 = vunpack.c.l.b16 %v219
      %v310 = vunpack.c.l.b16 %v221
      %v311 = vunpack.c.l.b16 %v223
      %v313 = vunpack.c.l.b16 %v225
      %v315 = vunpack.c.l.b16 %v227
      %v316 = vpack.c.b16 %v239, %v238
      %v317 = vpack.c.b16 %v240, %v240
      %v318 = vpack.c.b16 %v305, %v304
      %v319 = vpack.c.b16 %v306, %v306
      %v320 = vpack.c.b16 %v240, %v239
      %v321 = vpack.c.b16 %v241, %v241
      %v322 = vpack.c.b16 %v306, %v305
      %v323 = vpack.c.b16 %v307, %v307
      %v324 = vpack.c.b16 %v241, %v240
      %v325 = vpack.c.b16 %v242, %v242
      %v326 = vpack.c.b16 %v307, %v306
      %v327 = vpack.c.b16 %v308, %v308
      %v328 = vpack.c.b16 %v242, %v241
      %v329 = vpack.c.b16 %v243, %v243
      %v330 = vpack.c.b16 %v308, %v307
      %v331 = vpack.c.b16 %v309, %v309
      %v332 = vpack.c.b16 %v243, %v242
      %v333 = vpack.c.b16 %v244, %v244
      %v334 = vpack.c.b16 %v309, %v308
      %v335 = vpack.c.b16 %v310, %v310
      %v336 = vpack.c.b16 %v244, %v243
      %v337 = vpack.c.b16 %v245, %v245
      %v338 = vpack.c.b16 %v310, %v309
      %v339 = vpack.c.b16 %v311, %v311
      %v340 = vpack.c.b16 %v245, %v244
      %v341 = vpack.c.b16 %v246, %v246
      %v342 = vpack.c.b16 %v311, %v310
      %v343 = vpack.c.b16 %v313, %v313
      %v344 = vpack.c.b16 %v246, %v245
      %v345 = vpack.c.b16 %v247, %v247
      %v346 = vpack.c.b16 %v313, %v311
      %v347 = vpack.c.b16 %v315, %v315
      %vm348 = vsmask.f32 3328
      %vm349 = vsmask.f32 7440
      %vm350 = vmor %vm348, %vm349
      %v352 = vshrl.u32 %v316, 16
      %v354 = vrot.slane %v352, 4
      %v355 = vshll.u32 %v316, 16
      %v357 = vrot.slane %v355, 5
      %v358 = vor.u32 %v354, %v357
      %v359 = vrot.slane %v358, 4
      %v361 = vshll.u32 %v318, 16
      %v363 = vrot.slane %v361, 5
      %v364 = vsel %vm350, %v359, %v363
      %v366 = vshrl.u32 %v317, 16
      %v368 = vrot.slane %v366, 4
      %v369 = vshll.u32 %v317, 16
      %v371 = vrot.slane %v369, 5
      %v372 = vor.u32 %v368, %v371
      %v373 = vrot.slane %v372, 4
      %v375 = vshll.u32 %v319, 16
      %v377 = vrot.slane %v375, 5
      %v378 = vsel %vm350, %v373, %v377
      %v380 = vshrl.u32 %v320, 16
      %v382 = vrot.slane %v380, 4
      %v383 = vshll.u32 %v320, 16
      %v385 = vrot.slane %v383, 5
      %v386 = vor.u32 %v382, %v385
      %v387 = vrot.slane %v386, 4
      %v389 = vshll.u32 %v322, 16
      %v391 = vrot.slane %v389, 5
      %v392 = vsel %vm350, %v387, %v391
      %v394 = vshrl.u32 %v321, 16
      %v396 = vrot.slane %v394, 4
      %v397 = vshll.u32 %v321, 16
      %v399 = vrot.slane %v397, 5
      %v400 = vor.u32 %v396, %v399
      %v401 = vrot.slane %v400, 4
      %v403 = vshll.u32 %v323, 16
      %v405 = vrot.slane %v403, 5
      %v406 = vsel %vm350, %v401, %v405
      %v408 = vshrl.u32 %v324, 16
      %v410 = vrot.slane %v408, 4
      %v411 = vshll.u32 %v324, 16
      %v413 = vrot.slane %v411, 5
      %v414 = vor.u32 %v410, %v413
      %v415 = vrot.slane %v414, 4
      %v417 = vshll.u32 %v326, 16
      %v419 = vrot.slane %v417, 5
      %v420 = vsel %vm350, %v415, %v419
      %v422 = vshrl.u32 %v325, 16
      %v424 = vrot.slane %v422, 4
      %v425 = vshll.u32 %v325, 16
      %v427 = vrot.slane %v425, 5
      %v428 = vor.u32 %v424, %v427
      %v429 = vrot.slane %v428, 4
      %v431 = vshll.u32 %v327, 16
      %v433 = vrot.slane %v431, 5
      %v434 = vsel %vm350, %v429, %v433
      %v436 = vshrl.u32 %v328, 16
      %v438 = vrot.slane %v436, 4
      %v439 = vshll.u32 %v328, 16
      %v441 = vrot.slane %v439, 5
      %v442 = vor.u32 %v438, %v441
      %v443 = vrot.slane %v442, 4
      %v445 = vshll.u32 %v330, 16
      %v447 = vrot.slane %v445, 5
      %v448 = vsel %vm350, %v443, %v447
      %v450 = vshrl.u32 %v329, 16
      %v452 = vrot.slane %v450, 4
      %v453 = vshll.u32 %v329, 16
      %v455 = vrot.slane %v453, 5
      %v456 = vor.u32 %v452, %v455
      %v457 = vrot.slane %v456, 4
      %v459 = vshll.u32 %v331, 16
      %v461 = vrot.slane %v459, 5
      %v462 = vsel %vm350, %v457, %v461
      %v464 = vshrl.u32 %v332, 16
      %v466 = vrot.slane %v464, 4
      %v467 = vshll.u32 %v332, 16
      %v469 = vrot.slane %v467, 5
      %v470 = vor.u32 %v466, %v469
      %v471 = vrot.slane %v470, 4
      %v473 = vshll.u32 %v334, 16
      %v475 = vrot.slane %v473, 5
      %v476 = vsel %vm350, %v471, %v475
      %v478 = vshrl.u32 %v333, 16
      %v480 = vrot.slane %v478, 4
      %v481 = vshll.u32 %v333, 16
      %v483 = vrot.slane %v481, 5
      %v484 = vor.u32 %v480, %v483
      %v485 = vrot.slane %v484, 4
      %v487 = vshll.u32 %v335, 16
      %v489 = vrot.slane %v487, 5
      %v490 = vsel %vm350, %v485, %v489
      %v492 = vshrl.u32 %v336, 16
      %v494 = vrot.slane %v492, 4
      %v495 = vshll.u32 %v336, 16
      %v497 = vrot.slane %v495, 5
      %v498 = vor.u32 %v494, %v497
      %v499 = vrot.slane %v498, 4
      %v501 = vshll.u32 %v338, 16
      %v503 = vrot.slane %v501, 5
      %v504 = vsel %vm350, %v499, %v503
      %v506 = vshrl.u32 %v337, 16
      %v508 = vrot.slane %v506, 4
      %v509 = vshll.u32 %v337, 16
      %v511 = vrot.slane %v509, 5
      %v512 = vor.u32 %v508, %v511
      %v513 = vrot.slane %v512, 4
      %v515 = vshll.u32 %v339, 16
      %v517 = vrot.slane %v515, 5
      %v518 = vsel %vm350, %v513, %v517
      %v520 = vshrl.u32 %v340, 16
      %v522 = vrot.slane %v520, 4
      %v523 = vshll.u32 %v340, 16
      %v525 = vrot.slane %v523, 5
      %v526 = vor.u32 %v522, %v525
      %v527 = vrot.slane %v526, 4
      %v529 = vshll.u32 %v342, 16
      %v531 = vrot.slane %v529, 5
      %v532 = vsel %vm350, %v527, %v531
      %v534 = vshrl.u32 %v341, 16
      %v536 = vrot.slane %v534, 4
      %v537 = vshll.u32 %v341, 16
      %v539 = vrot.slane %v537, 5
      %v540 = vor.u32 %v536, %v539
      %v541 = vrot.slane %v540, 4
      %v543 = vshll.u32 %v343, 16
      %v545 = vrot.slane %v543, 5
      %v546 = vsel %vm350, %v541, %v545
      %v548 = vshrl.u32 %v344, 16
      %v550 = vrot.slane %v548, 4
      %v551 = vshll.u32 %v344, 16
      %v553 = vrot.slane %v551, 5
      %v554 = vor.u32 %v550, %v553
      %v555 = vrot.slane %v554, 4
      %v557 = vshll.u32 %v346, 16
      %v559 = vrot.slane %v557, 5
      %v560 = vsel %vm350, %v555, %v559
      %v562 = vshrl.u32 %v345, 16
      %v564 = vrot.slane %v562, 4
      %v565 = vshll.u32 %v345, 16
      %v567 = vrot.slane %v565, 5
      %v568 = vor.u32 %v564, %v567
      %v569 = vrot.slane %v568, 4
      %v571 = vshll.u32 %v347, 16
      %v573 = vrot.slane %v571, 5
      %v574 = vsel %vm350, %v569, %v573
      %s575 = scalar_lea.vmem %s1, 192
      %v576 = vld [vmem:[%s575] sm:$0xf]
      %v577 = vld [vmem:[%s575 + $0x4] sm:$0xf]
      %v578 = vld [vmem:[%s575 + $0x8] sm:$0xf]
      %v579 = vld [vmem:[%s575 + $0xc] sm:$0xf]
      %v580 = vld [vmem:[%s575 + $0x10] sm:$0xf]
      %v581 = vld [vmem:[%s575 + $0x14] sm:$0xf]
      %v582 = vld [vmem:[%s575 + $0x18] sm:$0xf]
      %v583 = vld [vmem:[%s575 + $0x1c] sm:$0xf]
      %v584 = vld [vmem:[%s575 + $0x20] sm:$0xf]
      %v585 = vld [vmem:[%s575 + $0x24] sm:$0xf]
      %v586 = vld [vmem:[%s575 + $0x28] sm:$0xf]
      %v587 = vld [vmem:[%s575 + $0x2c] sm:$0xf]
      %v588 = vld [vmem:[%s575 + $0x30] sm:$0xf]
      %v589 = vld [vmem:[%s575 + $0x34] sm:$0xf]
      %v590 = vld [vmem:[%s575 + $0x38] sm:$0xf]
      %v591 = vld [vmem:[%s575 + $0x3c] sm:$0xf]
      %v592 = vld [vmem:[%s575 + $0x40] sm:$0xf]
      %v593 = vld [vmem:[%s575 + $0x44] sm:$0xf]
      %v594 = vld [vmem:[%s575 + $0x48] sm:$0xf]
      %v595 = vld [vmem:[%s575 + $0x4c] sm:$0xf]
      %v596 = vld [vmem:[%s575 + $0x50] sm:$0xf]
      %v597 = vld [vmem:[%s575 + $0x54] sm:$0xf]
      %v598 = vld [vmem:[%s575 + $0x58] sm:$0xf]
      %v599 = vld [vmem:[%s575 + $0x5c] sm:$0xf]
      %v600 = vld [vmem:[%s575 + $0x60] sm:$0xf]
      %v601 = vld [vmem:[%s575 + $0x64] sm:$0xf]
      %v602 = vld [vmem:[%s575 + $0x68] sm:$0xf]
      %v603 = vld [vmem:[%s575 + $0x6c] sm:$0xf]
      %v604 = vld [vmem:[%s575 + $0x70] sm:$0xf]
      %v605 = vld [vmem:[%s575 + $0x74] sm:$0xf]
      %v606 = vld [vmem:[%s575 + $0x78] sm:$0xf]
      %v607 = vld [vmem:[%s575 + $0x7c] sm:$0xf]
      %v608 = vld [vmem:[%s575 + $0x80] sm:$0xf]
      %v609 = vld [vmem:[%s575 + $0x84] sm:$0xf]
      %v610 = vld [vmem:[%s575 + $0x88] sm:$0xf]
      %v611 = vld [vmem:[%s575 + $0x8c] sm:$0xf]
      %v612 = vld [vmem:[%s575 + $0x90] sm:$0xf]
      %v613 = vld [vmem:[%s575 + $0x94] sm:$0xf]
      %v614 = vld [vmem:[%s575 + $0x98] sm:$0xf]
      %v615 = vld [vmem:[%s575 + $0x9c] sm:$0xf]
      %v616 = vld [vmem:[%s575 + $0xa0] sm:$0xf]
      %v617 = vld [vmem:[%s575 + $0xa4] sm:$0xf]
      %v618 = vld [vmem:[%s575 + $0xa8] sm:$0xf]
      %v619 = vld [vmem:[%s575 + $0xac] sm:$0xf]
      %v620 = vld [vmem:[%s575 + $0xb0] sm:$0xf]
      %v621 = vld [vmem:[%s575 + $0xb4] sm:$0xf]
      %v622 = vld [vmem:[%s575 + $0xb8] sm:$0xf]
      %v623 = vld [vmem:[%s575 + $0xbc] sm:$0xf]
      %v624 = vunpack.c.l.b16 %v364
      %v625 = vunpack.c.h.b16 %v364
      %v626 = vunpack.c.l.b16 %v378
      %v627 = vunpack.c.l.b16 %v392
      %v628 = vunpack.c.h.b16 %v392
      %v629 = vunpack.c.l.b16 %v406
      %v630 = vunpack.c.l.b16 %v420
      %v631 = vunpack.c.h.b16 %v420
      %v632 = vunpack.c.l.b16 %v434
      %v633 = vunpack.c.l.b16 %v448
      %v634 = vunpack.c.h.b16 %v448
      %v635 = vunpack.c.l.b16 %v462
      %v636 = vunpack.c.l.b16 %v476
      %v637 = vunpack.c.h.b16 %v476
      %v638 = vunpack.c.l.b16 %v490
      %v639 = vunpack.c.l.b16 %v504
      %v640 = vunpack.c.h.b16 %v504
      %v641 = vunpack.c.l.b16 %v518
      %v642 = vunpack.c.l.b16 %v532
      %v643 = vunpack.c.h.b16 %v532
      %v644 = vunpack.c.l.b16 %v546
      %v645 = vunpack.c.l.b16 %v560
      %v646 = vunpack.c.h.b16 %v560
      %v647 = vunpack.c.l.b16 %v574
      %v648 = vpack.c.b16 %v627, %v624
      %v649 = vpack.c.b16 %v628, %v625
      %v650 = vpack.c.b16 %v629, %v626
      %v651 = vpack.c.b16 %v633, %v630
      %v652 = vpack.c.b16 %v634, %v631
      %v653 = vpack.c.b16 %v635, %v632
      %v654 = vpack.c.b16 %v639, %v636
      %v655 = vpack.c.b16 %v640, %v637
      %v656 = vpack.c.b16 %v641, %v638
      %v657 = vpack.c.b16 %v645, %v642
      %v658 = vpack.c.b16 %v646, %v643
      %v659 = vpack.c.b16 %v647, %v644
      %v720 = vunpack.c.l.b16 %v576
      %v721 = vunpack.c.l.b16 %v577
      %v722 = vunpack.c.l.b16 %v578
      %v723 = vunpack.c.l.b16 %v579
      %v724 = vunpack.c.l.b16 %v580
      %v725 = vunpack.c.l.b16 %v581
      %v726 = vunpack.c.l.b16 %v582
      %v727 = vunpack.c.l.b16 %v583
      %v728 = vunpack.c.l.b16 %v584
      %v729 = vunpack.c.l.b16 %v585
      %v730 = vunpack.c.l.b16 %v586
      %v731 = vunpack.c.l.b16 %v587
      %v732 = vunpack.c.l.b16 %v588
      %v733 = vunpack.c.l.b16 %v589
      %v734 = vunpack.c.l.b16 %v590
      %v735 = vunpack.c.l.b16 %v591
      %v736 = vunpack.c.l.b16 %v592
      %v737 = vunpack.c.l.b16 %v593
      %v738 = vunpack.c.l.b16 %v594
      %v739 = vunpack.c.l.b16 %v595
      %v740 = vunpack.c.l.b16 %v596
      %v741 = vunpack.c.l.b16 %v597
      %v742 = vunpack.c.l.b16 %v598
      %v743 = vunpack.c.l.b16 %v599
      %v744 = vunpack.c.l.b16 %v600
      %v745 = vunpack.c.l.b16 %v601
      %v746 = vunpack.c.l.b16 %v602
      %v747 = vunpack.c.l.b16 %v603
      %v748 = vunpack.c.l.b16 %v604
      %v749 = vunpack.c.l.b16 %v605
      %v750 = vunpack.c.l.b16 %v606
      %v751 = vunpack.c.l.b16 %v607
      %v752 = vunpack.c.l.b16 %v608
      %v753 = vunpack.c.l.b16 %v609
      %v754 = vunpack.c.l.b16 %v610
      %v755 = vunpack.c.l.b16 %v611
      %v756 = vunpack.c.l.b16 %v612
      %v757 = vunpack.c.l.b16 %v613
      %v758 = vunpack.c.l.b16 %v614
      %v759 = vunpack.c.l.b16 %v615
      %v760 = vunpack.c.l.b16 %v616
      %v761 = vunpack.c.l.b16 %v617
      %v762 = vunpack.c.l.b16 %v618
      %v763 = vunpack.c.l.b16 %v619
      %v764 = vunpack.c.l.b16 %v620
      %v765 = vunpack.c.l.b16 %v621
      %v766 = vunpack.c.l.b16 %v622
      %v767 = vunpack.c.l.b16 %v623
      %v768 = vpack.c.b16 %v721, %v720
      %v769 = vpack.c.b16 %v723, %v722
      %v770 = vpack.c.b16 %v725, %v724
      %v771 = vpack.c.b16 %v727, %v726
      %v772 = vpack.c.b16 %v729, %v728
      %v773 = vpack.c.b16 %v731, %v730
      %v774 = vpack.c.b16 %v733, %v732
      %v775 = vpack.c.b16 %v735, %v734
      %v776 = vpack.c.b16 %v737, %v736
      %v777 = vpack.c.b16 %v739, %v738
      %v778 = vpack.c.b16 %v741, %v740
      %v779 = vpack.c.b16 %v743, %v742
      %v780 = vpack.c.b16 %v745, %v744
      %v781 = vpack.c.b16 %v747, %v746
      %v782 = vpack.c.b16 %v749, %v748
      %v783 = vpack.c.b16 %v751, %v750
      %v784 = vpack.c.b16 %v753, %v752
      %v785 = vpack.c.b16 %v755, %v754
      %v786 = vpack.c.b16 %v757, %v756
      %v787 = vpack.c.b16 %v759, %v758
      %v788 = vpack.c.b16 %v761, %v760
      %v789 = vpack.c.b16 %v763, %v762
      %v790 = vpack.c.b16 %v765, %v764
      %v791 = vpack.c.b16 %v767, %v766
      %816 = vmatprep.subr.bf16.mxu0 0
      %817 = vmatpush1.bf16.msra.mxu0 %v768
      %818 = vmatprep.subr.bf16.mxu0 0
      %819 = vmatpush1.bf16.msra.mxu0 %v769
      %820 = vmatprep.subr.bf16.mxu0 0
      %821 = vmatpush1.bf16.msra.mxu0 %v770
      %822 = vmatprep.subr.bf16.mxu0 0
      %823 = vmatpush1.bf16.msra.mxu0 %v771
      %824 = vmatprep.subr.bf16.mxu0 0
      %825 = vmatpush1.bf16.msra.mxu0 %v772
      %826 = vmatprep.subr.bf16.mxu0 0
      %827 = vmatpush1.bf16.msra.mxu0 %v773
      %828 = vmatprep.subr.bf16.mxu0 0
      %829 = vmatpush1.bf16.msra.mxu0 %v774
      %830 = vmatprep.subr.bf16.mxu0 0
      %831 = vmatpush1.bf16.msra.mxu0 %v775
      %832 = vmatprep.subr.bf16.mxu0 0
      %833 = vmatpush1.bf16.msra.mxu0 %v776
      %834 = vmatprep.subr.bf16.mxu0 0
      %835 = vmatpush1.bf16.msra.mxu0 %v777
      %836 = vmatprep.subr.bf16.mxu0 0
      %837 = vmatpush1.bf16.msra.mxu0 %v778
      %838 = vmatprep.subr.bf16.mxu0 0
      %839 = vmatpush1.bf16.msra.mxu0 %v779
      %840 = vmatprep.subr.bf16.mxu0 0
      %841 = vmatpush1.bf16.msra.mxu0 %v780
      %842 = vmatprep.subr.bf16.mxu0 0
      %843 = vmatpush1.bf16.msra.mxu0 %v781
      %844 = vmatprep.subr.bf16.mxu0 0
      %845 = vmatpush1.bf16.msra.mxu0 %v782
      %846 = vmatprep.subr.bf16.mxu0 0
      %847 = vmatpush1.bf16.msra.mxu0 %v783
      %848 = vmatprep.mubr.bf16.mxu0 %v649
      %849 = vmatmul.mubr.bf16.gmra.mrb[0].mxu0 %v648
      %v850 = vpop.f32.mrb[0].mxu0
      %v851 = vadd.f32 0.0, %v850
      %v852 = vpop.f32.mrb[0].mxu0
      %v853 = vpop.f32.mrb[0].mxu0
      %v854 = vadd.f32 0.0, %v853
      %v855 = vpop.f32.mrb[0].mxu0
      %856 = vmatprep.mubr.bf16.mxu0 %v652
      %857 = vmatmul.mubr.bf16.gmra.mrb[0].mxu0 %v651
      %v858 = vpop.f32.mrb[0].mxu0
      %v859 = vadd.f32 0.0, %v858
      %v860 = vpop.f32.mrb[0].mxu0
      %v861 = vpop.f32.mrb[0].mxu0
      %v862 = vadd.f32 0.0, %v861
      %v863 = vpop.f32.mrb[0].mxu0
      %864 = vmatprep.mubr.bf16.mxu0 %v655
      %865 = vmatmul.mubr.bf16.gmra.mrb[0].mxu0 %v654
      %v866 = vpop.f32.mrb[0].mxu0
      %v867 = vadd.f32 0.0, %v866
      %v868 = vpop.f32.mrb[0].mxu0
      %v869 = vpop.f32.mrb[0].mxu0
      %v870 = vadd.f32 0.0, %v869
      %v871 = vpop.f32.mrb[0].mxu0
      %872 = vmatprep.mubr.bf16.mxu0 %v658
      %873 = vmatmul.mubr.bf16.gmra.mrb[0].mxu0 %v657
      %v874 = vpop.f32.mrb[0].mxu0
      %v875 = vadd.f32 0.0, %v874
      %v876 = vpop.f32.mrb[0].mxu0
      %v877 = vpop.f32.mrb[0].mxu0
      %v878 = vadd.f32 0.0, %v877
      %v879 = vpop.f32.mrb[0].mxu0
      %880 = vdwg.mxu0
      %881 = vmatprep.subr.bf16.mxu0 0
      %882 = vmatpush1.bf16.msra.mxu0 %v784
      %883 = vmatprep.subr.bf16.mxu0 0
      %884 = vmatpush1.bf16.msra.mxu0 %v785
      %885 = vmatprep.subr.bf16.mxu0 0
      %886 = vmatpush1.bf16.msra.mxu0 %v786
      %887 = vmatprep.subr.bf16.mxu0 0
      %888 = vmatpush1.bf16.msra.mxu0 %v787
      %889 = vmatprep.subr.bf16.mxu0 0
      %890 = vmatpush1.bf16.msra.mxu0 %v788
      %891 = vmatprep.subr.bf16.mxu0 0
      %892 = vmatpush1.bf16.msra.mxu0 %v789
      %893 = vmatprep.subr.bf16.mxu0 0
      %894 = vmatpush1.bf16.msra.mxu0 %v790
      %895 = vmatprep.subr.bf16.mxu0 0
      %896 = vmatpush1.bf16.msra.mxu0 %v791
      %897 = vmatprep.subr.bf16.mxu0 0
      %898 = vmatpush1.bf16.msra.mxu0 0
      %899 = vmatprep.subr.bf16.mxu0 0
      %900 = vmatpush1.bf16.msra.mxu0 0
      %901 = vmatprep.subr.bf16.mxu0 0
      %902 = vmatpush1.bf16.msra.mxu0 0
      %903 = vmatprep.subr.bf16.mxu0 0
      %904 = vmatpush1.bf16.msra.mxu0 0
      %905 = vmatprep.subr.bf16.mxu0 0
      %906 = vmatpush1.bf16.msra.mxu0 0
      %907 = vmatprep.subr.bf16.mxu0 0
      %908 = vmatpush1.bf16.msra.mxu0 0
      %909 = vmatprep.subr.bf16.mxu0 0
      %910 = vmatpush1.bf16.msra.mxu0 0
      %911 = vmatprep.subr.bf16.mxu0 0
      %912 = vmatpush1.bf16.msra.mxu0 0
      %913 = vmatprep.mubr.bf16.mxu0 0
      %914 = vmatmul.mubr.bf16.gmra.mrb[0].mxu0 %v650
      %v915 = vpop.f32.mrb[0].mxu0
      %v916 = vadd.f32 %v851, %v915
      %v917 = vpop.f32.mrb[0].mxu0
      %v918 = vpop.f32.mrb[0].mxu0
      %v919 = vadd.f32 %v854, %v918
      %v920 = vpop.f32.mrb[0].mxu0
      %921 = vmatprep.mubr.bf16.mxu0 0
      %922 = vmatmul.mubr.bf16.gmra.mrb[0].mxu0 %v653
      %v923 = vpop.f32.mrb[0].mxu0
      %v924 = vadd.f32 %v859, %v923
      %v925 = vpop.f32.mrb[0].mxu0
      %v926 = vpop.f32.mrb[0].mxu0
      %v927 = vadd.f32 %v862, %v926
      %v928 = vpop.f32.mrb[0].mxu0
      %929 = vmatprep.mubr.bf16.mxu0 0
      %930 = vmatmul.mubr.bf16.gmra.mrb[0].mxu0 %v656
      %v931 = vpop.f32.mrb[0].mxu0
      %v932 = vadd.f32 %v867, %v931
      %v933 = vpop.f32.mrb[0].mxu0
      %v934 = vpop.f32.mrb[0].mxu0
      %v935 = vadd.f32 %v870, %v934
      %v936 = vpop.f32.mrb[0].mxu0
      %937 = vmatprep.mubr.bf16.mxu0 0
      %938 = vmatmul.mubr.bf16.gmra.mrb[0].mxu0 %v659
      %v939 = vpop.f32.mrb[0].mxu0
      %v940 = vadd.f32 %v875, %v939
      %v941 = vpop.f32.mrb[0].mxu0
      %v942 = vpop.f32.mrb[0].mxu0
      %v943 = vadd.f32 %v878, %v942
      %v944 = vpop.f32.mrb[0].mxu0
      %945 = vdwg.mxu0
      %v946 = vpack.c.b16 %v247, %v246
      %v1004 = vunpack.c.l.b16 %v248
      %v1005 = vunpack.c.l.b16 %v249
      %v1006 = vunpack.c.l.b16 %v250
      %v1007 = vunpack.c.l.b16 %v251
      %v1008 = vunpack.c.l.b16 %v252
      %v1009 = vunpack.c.l.b16 %v253
      %v1010 = vunpack.c.l.b16 %v254
      %v1011 = vunpack.c.l.b16 %v255
      %v1012 = vunpack.c.l.b16 %v256
      %v1013 = vunpack.c.l.b16 %v257
      %v1014 = vunpack.c.l.b16 %v258
      %v1015 = vunpack.c.l.b16 %v259
      %v1016 = vunpack.c.l.b16 %v260
      %v1017 = vunpack.c.l.b16 %v261
      %v1018 = vunpack.c.l.b16 %v262
      %v1019 = vunpack.c.l.b16 %v263
      %v1020 = vunpack.c.l.b16 %v264
      %v1021 = vunpack.c.l.b16 %v265
      %v1022 = vunpack.c.l.b16 %v266
      %v1023 = vunpack.c.l.b16 %v267
      %v1024 = vunpack.c.l.b16 %v268
      %v1025 = vunpack.c.l.b16 %v269
      %v1026 = vunpack.c.l.b16 %v270
      %v1027 = vunpack.c.l.b16 %v271
      %v1028 = vunpack.c.l.b16 %v272
      %v1029 = vunpack.c.l.b16 %v273
      %v1030 = vunpack.c.l.b16 %v274
      %v1031 = vunpack.c.l.b16 %v275
      %v1032 = vunpack.c.l.b16 %v276
      %v1033 = vunpack.c.l.b16 %v277
      %v1034 = vunpack.c.l.b16 %v278
      %v1035 = vunpack.c.l.b16 %v279
      %v1036 = vunpack.c.l.b16 %v280
      %v1037 = vunpack.c.l.b16 %v281
      %v1038 = vunpack.c.l.b16 %v282
      %v1039 = vunpack.c.l.b16 %v283
      %v1040 = vunpack.c.l.b16 %v284
      %v1041 = vunpack.c.l.b16 %v285
      %v1042 = vunpack.c.l.b16 %v286
      %v1043 = vunpack.c.l.b16 %v287
      %v1044 = vunpack.c.l.b16 %v288
      %v1045 = vunpack.c.l.b16 %v289
      %v1046 = vunpack.c.l.b16 %v290
      %v1047 = vunpack.c.l.b16 %v291
      %v1048 = vunpack.c.l.b16 %v292
      %v1049 = vunpack.c.l.b16 %v293
      %v1050 = vunpack.c.l.b16 %v294
      %v1051 = vunpack.c.l.b16 %v295
      %v1052 = vpack.c.b16 %v1005, %v1004
      %v1053 = vpack.c.b16 %v1007, %v1006
      %v1054 = vpack.c.b16 %v1009, %v1008
      %v1055 = vpack.c.b16 %v1011, %v1010
      %v1056 = vpack.c.b16 %v1013, %v1012
      %v1057 = vpack.c.b16 %v1015, %v1014
      %v1058 = vpack.c.b16 %v1017, %v1016
      %v1059 = vpack.c.b16 %v1019, %v1018
      %v1060 = vpack.c.b16 %v1021, %v1020
      %v1061 = vpack.c.b16 %v1023, %v1022
      %v1062 = vpack.c.b16 %v1025, %v1024
      %v1063 = vpack.c.b16 %v1027, %v1026
      %v1064 = vpack.c.b16 %v1029, %v1028
      %v1065 = vpack.c.b16 %v1031, %v1030
      %v1066 = vpack.c.b16 %v1033, %v1032
      %v1067 = vpack.c.b16 %v1035, %v1034
      %v1068 = vpack.c.b16 %v1037, %v1036
      %v1069 = vpack.c.b16 %v1039, %v1038
      %v1070 = vpack.c.b16 %v1041, %v1040
      %v1071 = vpack.c.b16 %v1043, %v1042
      %v1072 = vpack.c.b16 %v1045, %v1044
      %v1073 = vpack.c.b16 %v1047, %v1046
      %v1074 = vpack.c.b16 %v1049, %v1048
      %v1075 = vpack.c.b16 %v1051, %v1050
      %1100 = vmatprep.subr.bf16.mxu0 0
      %1101 = vmatpush1.bf16.msra.mxu0 %v1052
      %1102 = vmatprep.subr.bf16.mxu0 0
      %1103 = vmatpush1.bf16.msra.mxu0 %v1053
      %1104 = vmatprep.subr.bf16.mxu0 0
      %1105 = vmatpush1.bf16.msra.mxu0 %v1054
      %1106 = vmatprep.subr.bf16.mxu0 0
      %1107 = vmatpush1.bf16.msra.mxu0 %v1055
      %1108 = vmatprep.subr.bf16.mxu0 0
      %1109 = vmatpush1.bf16.msra.mxu0 %v1056
      %1110 = vmatprep.subr.bf16.mxu0 0
      %1111 = vmatpush1.bf16.msra.mxu0 %v1057
      %1112 = vmatprep.subr.bf16.mxu0 0
      %1113 = vmatpush1.bf16.msra.mxu0 %v1058
      %1114 = vmatprep.subr.bf16.mxu0 0
      %1115 = vmatpush1.bf16.msra.mxu0 %v1059
      %1116 = vmatprep.subr.bf16.mxu0 0
      %1117 = vmatpush1.bf16.msra.mxu0 %v1060
      %1118 = vmatprep.subr.bf16.mxu0 0
      %1119 = vmatpush1.bf16.msra.mxu0 %v1061
      %1120 = vmatprep.subr.bf16.mxu0 0
      %1121 = vmatpush1.bf16.msra.mxu0 %v1062
      %1122 = vmatprep.subr.bf16.mxu0 0
      %1123 = vmatpush1.bf16.msra.mxu0 %v1063
      %1124 = vmatprep.subr.bf16.mxu0 0
      %1125 = vmatpush1.bf16.msra.mxu0 %v1064
      %1126 = vmatprep.subr.bf16.mxu0 0
      %1127 = vmatpush1.bf16.msra.mxu0 %v1065
      %1128 = vmatprep.subr.bf16.mxu0 0
      %1129 = vmatpush1.bf16.msra.mxu0 %v1066
      %1130 = vmatprep.subr.bf16.mxu0 0
      %1131 = vmatpush1.bf16.msra.mxu0 %v1067
      %1132 = vmatprep.mubr.bf16.mxu0 %v320
      %1133 = vmatmul.mubr.bf16.gmra.mrb[0].mxu0 %v316
      %v1134 = vpop.f32.mrb[0].mxu0
      %v1135 = vadd.f32 %v916, %v1134
      %v1136 = vpop.f32.mrb[0].mxu0
      %v1137 = vpop.f32.mrb[0].mxu0
      %v1138 = vadd.f32 %v919, %v1137
      %v1139 = vpop.f32.mrb[0].mxu0
      %1140 = vmatprep.mubr.bf16.mxu0 %v328
      %1141 = vmatmul.mubr.bf16.gmra.mrb[0].mxu0 %v324
      %v1142 = vpop.f32.mrb[0].mxu0
      %v1143 = vadd.f32 %v924, %v1142
      %v1144 = vpop.f32.mrb[0].mxu0
      %v1145 = vpop.f32.mrb[0].mxu0
      %v1146 = vadd.f32 %v927, %v1145
      %v1147 = vpop.f32.mrb[0].mxu0
      %1148 = vmatprep.mubr.bf16.mxu0 %v336
      %1149 = vmatmul.mubr.bf16.gmra.mrb[0].mxu0 %v332
      %v1150 = vpop.f32.mrb[0].mxu0
      %v1151 = vadd.f32 %v932, %v1150
      %v1152 = vpop.f32.mrb[0].mxu0
      %v1153 = vpop.f32.mrb[0].mxu0
      %v1154 = vadd.f32 %v935, %v1153
      %v1155 = vpop.f32.mrb[0].mxu0
      %1156 = vmatprep.mubr.bf16.mxu0 %v344
      %1157 = vmatmul.mubr.bf16.gmra.mrb[0].mxu0 %v340
      %v1158 = vpop.f32.mrb[0].mxu0
      %v1159 = vadd.f32 %v940, %v1158
      %v1160 = vpop.f32.mrb[0].mxu0
      %v1161 = vpop.f32.mrb[0].mxu0
      %v1162 = vadd.f32 %v943, %v1161
      %v1163 = vpop.f32.mrb[0].mxu0
      %1164 = vdwg.mxu0
      %1165 = vmatprep.subr.bf16.mxu0 0
      %1166 = vmatpush1.bf16.msra.mxu0 %v1068
      %1167 = vmatprep.subr.bf16.mxu0 0
      %1168 = vmatpush1.bf16.msra.mxu0 %v1069
      %1169 = vmatprep.subr.bf16.mxu0 0
      %1170 = vmatpush1.bf16.msra.mxu0 %v1070
      %1171 = vmatprep.subr.bf16.mxu0 0
      %1172 = vmatpush1.bf16.msra.mxu0 %v1071
      %1173 = vmatprep.subr.bf16.mxu0 0
      %1174 = vmatpush1.bf16.msra.mxu0 %v1072
      %1175 = vmatprep.subr.bf16.mxu0 0
      %1176 = vmatpush1.bf16.msra.mxu0 %v1073
      %1177 = vmatprep.subr.bf16.mxu0 0
      %1178 = vmatpush1.bf16.msra.mxu0 %v1074
      %1179 = vmatprep.subr.bf16.mxu0 0
      %1180 = vmatpush1.bf16.msra.mxu0 %v1075
      %1181 = vmatprep.subr.bf16.mxu0 0
      %1182 = vmatpush1.bf16.msra.mxu0 0
      %1183 = vmatprep.subr.bf16.mxu0 0
      %1184 = vmatpush1.bf16.msra.mxu0 0
      %1185 = vmatprep.subr.bf16.mxu0 0
      %1186 = vmatpush1.bf16.msra.mxu0 0
      %1187 = vmatprep.subr.bf16.mxu0 0
      %1188 = vmatpush1.bf16.msra.mxu0 0
      %1189 = vmatprep.subr.bf16.mxu0 0
      %1190 = vmatpush1.bf16.msra.mxu0 0
      %1191 = vmatprep.subr.bf16.mxu0 0
      %1192 = vmatpush1.bf16.msra.mxu0 0
      %1193 = vmatprep.subr.bf16.mxu0 0
      %1194 = vmatpush1.bf16.msra.mxu0 0
      %1195 = vmatprep.subr.bf16.mxu0 0
      %1196 = vmatpush1.bf16.msra.mxu0 0
      %1197 = vmatprep.mubr.bf16.mxu0 0
      %1198 = vmatmul.mubr.bf16.gmra.mrb[0].mxu0 %v324
      %v1199 = vpop.f32.mrb[0].mxu0
      %v1200 = vadd.f32 %v1135, %v1199
      %v1201 = vpop.f32.mrb[0].mxu0
      %v1202 = vpop.f32.mrb[0].mxu0
      %v1203 = vadd.f32 %v1138, %v1202
      %v1204 = vpop.f32.mrb[0].mxu0
      %1205 = vmatprep.mubr.bf16.mxu0 0
      %1206 = vmatmul.mubr.bf16.gmra.mrb[0].mxu0 %v332
      %v1207 = vpop.f32.mrb[0].mxu0
      %v1208 = vadd.f32 %v1143, %v1207
      %v1209 = vpop.f32.mrb[0].mxu0
      %v1210 = vpop.f32.mrb[0].mxu0
      %v1211 = vadd.f32 %v1146, %v1210
      %v1212 = vpop.f32.mrb[0].mxu0
      %1213 = vmatprep.mubr.bf16.mxu0 0
      %1214 = vmatmul.mubr.bf16.gmra.mrb[0].mxu0 %v340
      %v1215 = vpop.f32.mrb[0].mxu0
      %v1216 = vadd.f32 %v1151, %v1215
      %v1217 = vpop.f32.mrb[0].mxu0
      %v1218 = vpop.f32.mrb[0].mxu0
      %v1219 = vadd.f32 %v1154, %v1218
      %v1220 = vpop.f32.mrb[0].mxu0
      %1221 = vmatprep.mubr.bf16.mxu0 0
      %1222 = vmatmul.mubr.bf16.gmra.mrb[0].mxu0 %v946
      %v1223 = vpop.f32.mrb[0].mxu0
      %v1224 = vadd.f32 %v1159, %v1223
      %v1225 = vpop.f32.mrb[0].mxu0
      %v1226 = vpop.f32.mrb[0].mxu0
      %v1227 = vadd.f32 %v1162, %v1226
      %v1228 = vpop.f32.mrb[0].mxu0
      %1229 = vdwg.mxu0
      %vm1230 = vcmask 1042432
      %vm1231 = vcmask 1046532
      %vm1232 = vmor %vm1230, %vm1231
      %v1233 = vrot.slane %v316, 5
      %v1234 = vrot.slane %v1233, 4
      %v1235 = vrot.slane %v318, 5
      %v1236 = vsel %vm1232, %v1234, %v1235
      %v1237 = vrot.slane %v317, 5
      %v1238 = vrot.slane %v1237, 4
      %v1239 = vrot.slane %v319, 5
      %v1240 = vsel %vm1232, %v1238, %v1239
      %v1241 = vrot.slane %v320, 5
      %v1242 = vrot.slane %v1241, 4
      %v1243 = vrot.slane %v322, 5
      %v1244 = vsel %vm1232, %v1242, %v1243
      %v1245 = vrot.slane %v321, 5
      %v1246 = vrot.slane %v1245, 4
      %v1247 = vrot.slane %v323, 5
      %v1248 = vsel %vm1232, %v1246, %v1247
      %v1249 = vrot.slane %v324, 5
      %v1250 = vrot.slane %v1249, 4
      %v1251 = vrot.slane %v326, 5
      %v1252 = vsel %vm1232, %v1250, %v1251
      %v1253 = vrot.slane %v325, 5
      %v1254 = vrot.slane %v1253, 4
      %v1255 = vrot.slane %v327, 5
      %v1256 = vsel %vm1232, %v1254, %v1255
      %v1257 = vrot.slane %v328, 5
      %v1258 = vrot.slane %v1257, 4
      %v1259 = vrot.slane %v330, 5
      %v1260 = vsel %vm1232, %v1258, %v1259
      %v1261 = vrot.slane %v329, 5
      %v1262 = vrot.slane %v1261, 4
      %v1263 = vrot.slane %v331, 5
      %v1264 = vsel %vm1232, %v1262, %v1263
      %v1265 = vrot.slane %v332, 5
      %v1266 = vrot.slane %v1265, 4
      %v1267 = vrot.slane %v334, 5
      %v1268 = vsel %vm1232, %v1266, %v1267
      %v1269 = vrot.slane %v333, 5
      %v1270 = vrot.slane %v1269, 4
      %v1271 = vrot.slane %v335, 5
      %v1272 = vsel %vm1232, %v1270, %v1271
      %v1273 = vrot.slane %v336, 5
      %v1274 = vrot.slane %v1273, 4
      %v1275 = vrot.slane %v338, 5
      %v1276 = vsel %vm1232, %v1274, %v1275
      %v1277 = vrot.slane %v337, 5
      %v1278 = vrot.slane %v1277, 4
      %v1279 = vrot.slane %v339, 5
      %v1280 = vsel %vm1232, %v1278, %v1279
      %v1281 = vrot.slane %v340, 5
      %v1282 = vrot.slane %v1281, 4
      %v1283 = vrot.slane %v342, 5
      %v1284 = vsel %vm1232, %v1282, %v1283
      %v1285 = vrot.slane %v341, 5
      %v1286 = vrot.slane %v1285, 4
      %v1287 = vrot.slane %v343, 5
      %v1288 = vsel %vm1232, %v1286, %v1287
      %v1289 = vrot.slane %v344, 5
      %v1290 = vrot.slane %v1289, 4
      %v1291 = vrot.slane %v346, 5
      %v1292 = vsel %vm1232, %v1290, %v1291
      %v1293 = vrot.slane %v345, 5
      %v1294 = vrot.slane %v1293, 4
      %v1295 = vrot.slane %v347, 5
      %v1296 = vsel %vm1232, %v1294, %v1295
      %s1297 = scalar_lea.vmem %s1, 384
      %v1298 = vld [vmem:[%s1297] sm:$0xf]
      %v1299 = vld [vmem:[%s1297 + $0x4] sm:$0xf]
      %v1300 = vld [vmem:[%s1297 + $0x8] sm:$0xf]
      %v1301 = vld [vmem:[%s1297 + $0xc] sm:$0xf]
      %v1302 = vld [vmem:[%s1297 + $0x10] sm:$0xf]
      %v1303 = vld [vmem:[%s1297 + $0x14] sm:$0xf]
      %v1304 = vld [vmem:[%s1297 + $0x18] sm:$0xf]
      %v1305 = vld [vmem:[%s1297 + $0x1c] sm:$0xf]
      %v1306 = vld [vmem:[%s1297 + $0x20] sm:$0xf]
      %v1307 = vld [vmem:[%s1297 + $0x24] sm:$0xf]
      %v1308 = vld [vmem:[%s1297 + $0x28] sm:$0xf]
      %v1309 = vld [vmem:[%s1297 + $0x2c] sm:$0xf]
      %v1310 = vld [vmem:[%s1297 + $0x30] sm:$0xf]
      %v1311 = vld [vmem:[%s1297 + $0x34] sm:$0xf]
      %v1312 = vld [vmem:[%s1297 + $0x38] sm:$0xf]
      %v1313 = vld [vmem:[%s1297 + $0x3c] sm:$0xf]
      %v1314 = vld [vmem:[%s1297 + $0x40] sm:$0xf]
      %v1315 = vld [vmem:[%s1297 + $0x44] sm:$0xf]
      %v1316 = vld [vmem:[%s1297 + $0x48] sm:$0xf]
      %v1317 = vld [vmem:[%s1297 + $0x4c] sm:$0xf]
      %v1318 = vld [vmem:[%s1297 + $0x50] sm:$0xf]
      %v1319 = vld [vmem:[%s1297 + $0x54] sm:$0xf]
      %v1320 = vld [vmem:[%s1297 + $0x58] sm:$0xf]
      %v1321 = vld [vmem:[%s1297 + $0x5c] sm:$0xf]
      %v1322 = vld [vmem:[%s1297 + $0x60] sm:$0xf]
      %v1323 = vld [vmem:[%s1297 + $0x64] sm:$0xf]
      %v1324 = vld [vmem:[%s1297 + $0x68] sm:$0xf]
      %v1325 = vld [vmem:[%s1297 + $0x6c] sm:$0xf]
      %v1326 = vld [vmem:[%s1297 + $0x70] sm:$0xf]
      %v1327 = vld [vmem:[%s1297 + $0x74] sm:$0xf]
      %v1328 = vld [vmem:[%s1297 + $0x78] sm:$0xf]
      %v1329 = vld [vmem:[%s1297 + $0x7c] sm:$0xf]
      %v1330 = vld [vmem:[%s1297 + $0x80] sm:$0xf]
      %v1331 = vld [vmem:[%s1297 + $0x84] sm:$0xf]
      %v1332 = vld [vmem:[%s1297 + $0x88] sm:$0xf]
      %v1333 = vld [vmem:[%s1297 + $0x8c] sm:$0xf]
      %v1334 = vld [vmem:[%s1297 + $0x90] sm:$0xf]
      %v1335 = vld [vmem:[%s1297 + $0x94] sm:$0xf]
      %v1336 = vld [vmem:[%s1297 + $0x98] sm:$0xf]
      %v1337 = vld [vmem:[%s1297 + $0x9c] sm:$0xf]
      %v1338 = vld [vmem:[%s1297 + $0xa0] sm:$0xf]
      %v1339 = vld [vmem:[%s1297 + $0xa4] sm:$0xf]
      %v1340 = vld [vmem:[%s1297 + $0xa8] sm:$0xf]
      %v1341 = vld [vmem:[%s1297 + $0xac] sm:$0xf]
      %v1342 = vld [vmem:[%s1297 + $0xb0] sm:$0xf]
      %v1343 = vld [vmem:[%s1297 + $0xb4] sm:$0xf]
      %v1344 = vld [vmem:[%s1297 + $0xb8] sm:$0xf]
      %v1345 = vld [vmem:[%s1297 + $0xbc] sm:$0xf]
      %v1346 = vunpack.c.l.b16 %v1236
      %v1347 = vunpack.c.h.b16 %v1236
      %v1348 = vunpack.c.l.b16 %v1240
      %v1349 = vunpack.c.l.b16 %v1244
      %v1350 = vunpack.c.h.b16 %v1244
      %v1351 = vunpack.c.l.b16 %v1248
      %v1352 = vunpack.c.l.b16 %v1252
      %v1353 = vunpack.c.h.b16 %v1252
      %v1354 = vunpack.c.l.b16 %v1256
      %v1355 = vunpack.c.l.b16 %v1260
      %v1356 = vunpack.c.h.b16 %v1260
      %v1357 = vunpack.c.l.b16 %v1264
      %v1358 = vunpack.c.l.b16 %v1268
      %v1359 = vunpack.c.h.b16 %v1268
      %v1360 = vunpack.c.l.b16 %v1272
      %v1361 = vunpack.c.l.b16 %v1276
      %v1362 = vunpack.c.h.b16 %v1276
      %v1363 = vunpack.c.l.b16 %v1280
      %v1364 = vunpack.c.l.b16 %v1284
      %v1365 = vunpack.c.h.b16 %v1284
      %v1366 = vunpack.c.l.b16 %v1288
      %v1367 = vunpack.c.l.b16 %v1292
      %v1368 = vunpack.c.h.b16 %v1292
      %v1369 = vunpack.c.l.b16 %v1296
      %v1370 = vpack.c.b16 %v1349, %v1346
      %v1371 = vpack.c.b16 %v1350, %v1347
      %v1372 = vpack.c.b16 %v1351, %v1348
      %v1373 = vpack.c.b16 %v1355, %v1352
      %v1374 = vpack.c.b16 %v1356, %v1353
      %v1375 = vpack.c.b16 %v1357, %v1354
      %v1376 = vpack.c.b16 %v1361, %v1358
      %v1377 = vpack.c.b16 %v1362, %v1359
      %v1378 = vpack.c.b16 %v1363, %v1360
      %v1379 = vpack.c.b16 %v1367, %v1364
      %v1380 = vpack.c.b16 %v1368, %v1365
      %v1381 = vpack.c.b16 %v1369, %v1366
      %v1442 = vunpack.c.l.b16 %v1298
      %v1443 = vunpack.c.l.b16 %v1299
      %v1444 = vunpack.c.l.b16 %v1300
      %v1445 = vunpack.c.l.b16 %v1301
      %v1446 = vunpack.c.l.b16 %v1302
      %v1447 = vunpack.c.l.b16 %v1303
      %v1448 = vunpack.c.l.b16 %v1304
      %v1449 = vunpack.c.l.b16 %v1305
      %v1450 = vunpack.c.l.b16 %v1306
      %v1451 = vunpack.c.l.b16 %v1307
      %v1452 = vunpack.c.l.b16 %v1308
      %v1453 = vunpack.c.l.b16 %v1309
      %v1454 = vunpack.c.l.b16 %v1310
      %v1455 = vunpack.c.l.b16 %v1311
      %v1456 = vunpack.c.l.b16 %v1312
      %v1457 = vunpack.c.l.b16 %v1313
      %v1458 = vunpack.c.l.b16 %v1314
      %v1459 = vunpack.c.l.b16 %v1315
      %v1460 = vunpack.c.l.b16 %v1316
      %v1461 = vunpack.c.l.b16 %v1317
      %v1462 = vunpack.c.l.b16 %v1318
      %v1463 = vunpack.c.l.b16 %v1319
      %v1464 = vunpack.c.l.b16 %v1320
      %v1465 = vunpack.c.l.b16 %v1321
      %v1466 = vunpack.c.l.b16 %v1322
      %v1467 = vunpack.c.l.b16 %v1323
      %v1468 = vunpack.c.l.b16 %v1324
      %v1469 = vunpack.c.l.b16 %v1325
      %v1470 = vunpack.c.l.b16 %v1326
      %v1471 = vunpack.c.l.b16 %v1327
      %v1472 = vunpack.c.l.b16 %v1328
      %v1473 = vunpack.c.l.b16 %v1329
      %v1474 = vunpack.c.l.b16 %v1330
      %v1475 = vunpack.c.l.b16 %v1331
      %v1476 = vunpack.c.l.b16 %v1332
      %v1477 = vunpack.c.l.b16 %v1333
      %v1478 = vunpack.c.l.b16 %v1334
      %v1479 = vunpack.c.l.b16 %v1335
      %v1480 = vunpack.c.l.b16 %v1336
      %v1481 = vunpack.c.l.b16 %v1337
      %v1482 = vunpack.c.l.b16 %v1338
      %v1483 = vunpack.c.l.b16 %v1339
      %v1484 = vunpack.c.l.b16 %v1340
      %v1485 = vunpack.c.l.b16 %v1341
      %v1486 = vunpack.c.l.b16 %v1342
      %v1487 = vunpack.c.l.b16 %v1343
      %v1488 = vunpack.c.l.b16 %v1344
      %v1489 = vunpack.c.l.b16 %v1345
      %v1490 = vpack.c.b16 %v1443, %v1442
      %v1491 = vpack.c.b16 %v1445, %v1444
      %v1492 = vpack.c.b16 %v1447, %v1446
      %v1493 = vpack.c.b16 %v1449, %v1448
      %v1494 = vpack.c.b16 %v1451, %v1450
      %v1495 = vpack.c.b16 %v1453, %v1452
      %v1496 = vpack.c.b16 %v1455, %v1454
      %v1497 = vpack.c.b16 %v1457, %v1456
      %v1498 = vpack.c.b16 %v1459, %v1458
      %v1499 = vpack.c.b16 %v1461, %v1460
      %v1500 = vpack.c.b16 %v1463, %v1462
      %v1501 = vpack.c.b16 %v1465, %v1464
      %v1502 = vpack.c.b16 %v1467, %v1466
      %v1503 = vpack.c.b16 %v1469, %v1468
      %v1504 = vpack.c.b16 %v1471, %v1470
      %v1505 = vpack.c.b16 %v1473, %v1472
      %v1506 = vpack.c.b16 %v1475, %v1474
      %v1507 = vpack.c.b16 %v1477, %v1476
      %v1508 = vpack.c.b16 %v1479, %v1478
      %v1509 = vpack.c.b16 %v1481, %v1480
      %v1510 = vpack.c.b16 %v1483, %v1482
      %v1511 = vpack.c.b16 %v1485, %v1484
      %v1512 = vpack.c.b16 %v1487, %v1486
      %v1513 = vpack.c.b16 %v1489, %v1488
      %1538 = vmatprep.subr.bf16.mxu0 0
      %1539 = vmatpush1.bf16.msra.mxu0 %v1490
      %1540 = vmatprep.subr.bf16.mxu0 0
      %1541 = vmatpush1.bf16.msra.mxu0 %v1491
      %1542 = vmatprep.subr.bf16.mxu0 0
      %1543 = vmatpush1.bf16.msra.mxu0 %v1492
      %1544 = vmatprep.subr.bf16.mxu0 0
      %1545 = vmatpush1.bf16.msra.mxu0 %v1493
      %1546 = vmatprep.subr.bf16.mxu0 0
      %1547 = vmatpush1.bf16.msra.mxu0 %v1494
      %1548 = vmatprep.subr.bf16.mxu0 0
      %1549 = vmatpush1.bf16.msra.mxu0 %v1495
      %1550 = vmatprep.subr.bf16.mxu0 0
      %1551 = vmatpush1.bf16.msra.mxu0 %v1496
      %1552 = vmatprep.subr.bf16.mxu0 0
      %1553 = vmatpush1.bf16.msra.mxu0 %v1497
      %1554 = vmatprep.subr.bf16.mxu0 0
      %1555 = vmatpush1.bf16.msra.mxu0 %v1498
      %1556 = vmatprep.subr.bf16.mxu0 0
      %1557 = vmatpush1.bf16.msra.mxu0 %v1499
      %1558 = vmatprep.subr.bf16.mxu0 0
      %1559 = vmatpush1.bf16.msra.mxu0 %v1500
      %1560 = vmatprep.subr.bf16.mxu0 0
      %1561 = vmatpush1.bf16.msra.mxu0 %v1501
      %1562 = vmatprep.subr.bf16.mxu0 0
      %1563 = vmatpush1.bf16.msra.mxu0 %v1502
      %1564 = vmatprep.subr.bf16.mxu0 0
      %1565 = vmatpush1.bf16.msra.mxu0 %v1503
      %1566 = vmatprep.subr.bf16.mxu0 0
      %1567 = vmatpush1.bf16.msra.mxu0 %v1504
      %1568 = vmatprep.subr.bf16.mxu0 0
      %1569 = vmatpush1.bf16.msra.mxu0 %v1505
      %1570 = vmatprep.mubr.bf16.mxu0 %v1371
      %1571 = vmatmul.mubr.bf16.gmra.mrb[0].mxu0 %v1370
      %v1572 = vpop.f32.mrb[0].mxu0
      %v1573 = vadd.f32 0.0, %v1572
      %v1574 = vpop.f32.mrb[0].mxu0
      %v1575 = vpop.f32.mrb[0].mxu0
      %v1576 = vadd.f32 0.0, %v1575
      %v1577 = vpop.f32.mrb[0].mxu0
      %1578 = vmatprep.mubr.bf16.mxu0 %v1374
      %1579 = vmatmul.mubr.bf16.gmra.mrb[0].mxu0 %v1373
      %v1580 = vpop.f32.mrb[0].mxu0
      %v1581 = vadd.f32 0.0, %v1580
      %v1582 = vpop.f32.mrb[0].mxu0
      %v1583 = vpop.f32.mrb[0].mxu0
      %v1584 = vadd.f32 0.0, %v1583
      %v1585 = vpop.f32.mrb[0].mxu0
      %1586 = vmatprep.mubr.bf16.mxu0 %v1377
      %1587 = vmatmul.mubr.bf16.gmra.mrb[0].mxu0 %v1376
      %v1588 = vpop.f32.mrb[0].mxu0
      %v1589 = vadd.f32 0.0, %v1588
      %v1590 = vpop.f32.mrb[0].mxu0
      %v1591 = vpop.f32.mrb[0].mxu0
      %v1592 = vadd.f32 0.0, %v1591
      %v1593 = vpop.f32.mrb[0].mxu0
      %1594 = vmatprep.mubr.bf16.mxu0 %v1380
      %1595 = vmatmul.mubr.bf16.gmra.mrb[0].mxu0 %v1379
      %v1596 = vpop.f32.mrb[0].mxu0
      %v1597 = vadd.f32 0.0, %v1596
      %v1598 = vpop.f32.mrb[0].mxu0
      %v1599 = vpop.f32.mrb[0].mxu0
      %v1600 = vadd.f32 0.0, %v1599
      %v1601 = vpop.f32.mrb[0].mxu0
      %1602 = vdwg.mxu0
      %1603 = vmatprep.subr.bf16.mxu0 0
      %1604 = vmatpush1.bf16.msra.mxu0 %v1506
      %1605 = vmatprep.subr.bf16.mxu0 0
      %1606 = vmatpush1.bf16.msra.mxu0 %v1507
      %1607 = vmatprep.subr.bf16.mxu0 0
      %1608 = vmatpush1.bf16.msra.mxu0 %v1508
      %1609 = vmatprep.subr.bf16.mxu0 0
      %1610 = vmatpush1.bf16.msra.mxu0 %v1509
      %1611 = vmatprep.subr.bf16.mxu0 0
      %1612 = vmatpush1.bf16.msra.mxu0 %v1510
      %1613 = vmatprep.subr.bf16.mxu0 0
      %1614 = vmatpush1.bf16.msra.mxu0 %v1511
      %1615 = vmatprep.subr.bf16.mxu0 0
      %1616 = vmatpush1.bf16.msra.mxu0 %v1512
      %1617 = vmatprep.subr.bf16.mxu0 0
      %1618 = vmatpush1.bf16.msra.mxu0 %v1513
      %1619 = vmatprep.subr.bf16.mxu0 0
      %1620 = vmatpush1.bf16.msra.mxu0 0
      %1621 = vmatprep.subr.bf16.mxu0 0
      %1622 = vmatpush1.bf16.msra.mxu0 0
      %1623 = vmatprep.subr.bf16.mxu0 0
      %1624 = vmatpush1.bf16.msra.mxu0 0
      %1625 = vmatprep.subr.bf16.mxu0 0
      %1626 = vmatpush1.bf16.msra.mxu0 0
      %1627 = vmatprep.subr.bf16.mxu0 0
      %1628 = vmatpush1.bf16.msra.mxu0 0
      %1629 = vmatprep.subr.bf16.mxu0 0
      %1630 = vmatpush1.bf16.msra.mxu0 0
      %1631 = vmatprep.subr.bf16.mxu0 0
      %1632 = vmatpush1.bf16.msra.mxu0 0
      %1633 = vmatprep.subr.bf16.mxu0 0
      %1634 = vmatpush1.bf16.msra.mxu0 0
      %1635 = vmatprep.mubr.bf16.mxu0 0
      %1636 = vmatmul.mubr.bf16.gmra.mrb[0].mxu0 %v1372
      %v1637 = vpop.f32.mrb[0].mxu0
      %v1638 = vadd.f32 %v1573, %v1637
      %v1639 = vpop.f32.mrb[0].mxu0
      %v1640 = vpop.f32.mrb[0].mxu0
      %v1641 = vadd.f32 %v1576, %v1640
      %v1642 = vpop.f32.mrb[0].mxu0
      %1643 = vmatprep.mubr.bf16.mxu0 0
      %1644 = vmatmul.mubr.bf16.gmra.mrb[0].mxu0 %v1375
      %v1645 = vpop.f32.mrb[0].mxu0
      %v1646 = vadd.f32 %v1581, %v1645
      %v1647 = vpop.f32.mrb[0].mxu0
      %v1648 = vpop.f32.mrb[0].mxu0
      %v1649 = vadd.f32 %v1584, %v1648
      %v1650 = vpop.f32.mrb[0].mxu0
      %1651 = vmatprep.mubr.bf16.mxu0 0
      %1652 = vmatmul.mubr.bf16.gmra.mrb[0].mxu0 %v1378
      %v1653 = vpop.f32.mrb[0].mxu0
      %v1654 = vadd.f32 %v1589, %v1653
      %v1655 = vpop.f32.mrb[0].mxu0
      %v1656 = vpop.f32.mrb[0].mxu0
      %v1657 = vadd.f32 %v1592, %v1656
      %v1658 = vpop.f32.mrb[0].mxu0
      %1659 = vmatprep.mubr.bf16.mxu0 0
      %1660 = vmatmul.mubr.bf16.gmra.mrb[0].mxu0 %v1381
      %v1661 = vpop.f32.mrb[0].mxu0
      %v1662 = vadd.f32 %v1597, %v1661
      %v1663 = vpop.f32.mrb[0].mxu0
      %v1664 = vpop.f32.mrb[0].mxu0
      %v1665 = vadd.f32 %v1600, %v1664
      %v1666 = vpop.f32.mrb[0].mxu0
      %1667 = vdwg.mxu0
      %v1668 = vadd.f32 %v1200, %v1638
      %v1669 = vadd.f32 %v1203, %v1641
      %v1670 = vadd.f32 %v1208, %v1646
      %v1671 = vadd.f32 %v1211, %v1649
      %v1672 = vadd.f32 %v1216, %v1654
      %v1673 = vadd.f32 %v1219, %v1657
      %v1674 = vadd.f32 %v1224, %v1662
      %v1675 = vadd.f32 %v1227, %v1665
      %v1676 = vld [vmem:[%s2] sm:$0x1]
      %v1678 = vlaneseq
      %v1679 = vshrl.u32 %v1678, 7
      %v1680 = vsub.s32 0, %v1679
      %v1681 = vrot.slane %v1676, %v1680
      %v1683 = vadd.f32 %v1668, %v1681
      %v1684 = vadd.f32 %v1669, %v1681
      %v1685 = vadd.f32 %v1670, %v1681
      %v1686 = vadd.f32 %v1671, %v1681
      %v1687 = vadd.f32 %v1672, %v1681
      %v1688 = vadd.f32 %v1673, %v1681
      %v1689 = vadd.f32 %v1674, %v1681
      %v1690 = vadd.f32 %v1675, %v1681
      %v1691 = vmax.f32 %v1683, 0.0
      %v1692 = vmax.f32 %v1684, 0.0
      %v1693 = vmax.f32 %v1685, 0.0
      %v1694 = vmax.f32 %v1686, 0.0
      %v1695 = vmax.f32 %v1687, 0.0
      %v1696 = vmax.f32 %v1688, 0.0
      %v1697 = vmax.f32 %v1689, 0.0
      %v1698 = vmax.f32 %v1690, 0.0
      %v1699 = vadd.f32 %v1691, %v1692
      %v1700 = vadd.f32 %v1693, %v1694
      %v1701 = vadd.f32 %v1695, %v1696
      %v1702 = vadd.f32 %v1697, %v1698
      %1703 = vst [vmem:[#allocation2] sm:$0xff] %v1699
      %1704 = vst [vmem:[#allocation2 + $0x8] sm:$0xff] %v1700
      %1705 = vst [vmem:[#allocation2 + $0x10] sm:$0xff] %v1701
      %1706 = vst [vmem:[#allocation2 + $0x18] sm:$0xff] %v1702
      %v1707 = vld [vmem:[#allocation2] ss:$2 sm:$0xf]
      %s1708 = scalar_lea.vmem [#allocation2], 8
      %v1709 = vld [vmem:[%s1708] ss:$2 sm:$0xf]
      %s1710 = scalar_lea.vmem [#allocation2], 16
      %v1711 = vld [vmem:[%s1710] ss:$2 sm:$0xf]
      %s1712 = scalar_lea.vmem [#allocation2], 24
      %v1713 = vld [vmem:[%s1712] ss:$2 sm:$0xf]
      %s1714 = scalar_lea.vmem [#allocation2], 1
      %v1715 = vld [vmem:[%s1714] ss:$2 sm:$0xf]
      %s1716 = scalar_lea.vmem [#allocation2], 9
      %v1717 = vld [vmem:[%s1716] ss:$2 sm:$0xf]
      %s1718 = scalar_lea.vmem [#allocation2], 17
      %v1719 = vld [vmem:[%s1718] ss:$2 sm:$0xf]
      %s1720 = scalar_lea.vmem [#allocation2], 25
      %v1721 = vld [vmem:[%s1720] ss:$2 sm:$0xf]
      %v1722 = vadd.f32 %v1707, %v1715
      %v1723 = vadd.f32 %v1709, %v1717
      %v1724 = vadd.f32 %v1711, %v1719
      %v1725 = vadd.f32 %v1713, %v1721
      %v1726 = vmul.f32 %v1722, 0.25
      %v1727 = vmul.f32 %v1723, 0.25
      %v1728 = vmul.f32 %v1724, 0.25
      %v1729 = vmul.f32 %v1725, 0.25
      %v1730 = vpack.c.bf16 %v1726, %v1726
      %v1731 = vpack.c.bf16 %v1727, %v1727
      %v1732 = vpack.c.bf16 %v1728, %v1728
      %v1733 = vpack.c.bf16 %v1729, %v1729
      %1734 = vst [vmem:[%s206] sm:$0x3] %v1730
      %1735 = vst [vmem:[%s206 + $0x2] sm:$0x3] %v1731
      %1736 = vst [vmem:[%s206 + $0x4] sm:$0x3] %v1732
      %1737 = vst [vmem:[%s206 + $0x6] sm:$0x3] %v1733
      %p1738 = scmp.lt.s32.totalorder %s18, 3
      %s1739 = scalar_select %p1738, %s18, 3
      %p1740 = scmp.lt.s32.totalorder %s19, 0
      %s1741 = scalar_select %p1740, %s19, 0
      %s1742 = smul.addr %s1741, 4
      %s1743 = smul.addr %s1739, 4
      %s1744 = sadd.s32 %s1742, %s1743
      %s1745 = smul.addr %s1744, 2
      %s1746 = scalar_lea.vmem %s3, %s1745
      // Predicated region
      $region33: #{camera_features_forward.5} parent=31 // pred_check
        %p1747 = pneg %p116
      $region34: #{camera_features_forward.5} parent=31 // pred_check_branch
        %1749 = sbr.rel (%p1747) target = $region36
      $region35: #{camera_features_forward.5} parent=31 // pred_region
        _
      $region36: #{camera_features_forward.5} parent=31 // pred_fallthru
        _
    $region32: #{camera_features_forward.5} parent=5 // pred_fallthru
      _
    %p1750 = scmp.le.s32.totalorder 2, %s9
    // Predicated region
    $region37: #{camera_features_forward.5} parent=5 // pred_check
      %p1751 = pneg %p1750
    $region38: #{camera_features_forward.5} parent=5 // pred_check_branch
      %1753 = sbr.rel (%p1751) target = $region40
    $region39: #{camera_features_forward.5} parent=5 // pred_region
      %s1754 = ssub.s32 %s9, 2
      // Predicated region
      $region41: #{camera_features_forward.5} parent=39 // pred_check
        %p1755 = pneg %p122
      $region42: #{camera_features_forward.5} parent=39 // pred_check_branch
        %1757 = sbr.rel (%p1755) target = $region44
      $region43: #{camera_features_forward.5} parent=39 // pred_region
        %p1758 = scmp.lt.s32.totalorder %s20, 3
        %s1759 = scalar_select %p1758, %s20, 3
        %p1760 = scmp.lt.s32.totalorder %s21, 0
        %s1761 = scalar_select %p1760, %s21, 0
        %s1762 = smul.addr %s1761, 4
        %s1763 = smul.addr %s1759, 4
        %s1764 = sadd.s32 %s1762, %s1763
        %s1765 = smul.addr %s1764, 2
        %s1766 = scalar_lea.vmem %s3, %s1765
      $region44: #{camera_features_forward.5} parent=39 // pred_fallthru
        _
    $region40: #{camera_features_forward.5} parent=5 // pred_fallthru
      _
  $region6: #{camera_features_forward.5} parent=0 // loop_footer
    %s13 = sadd.s32 1, %s9
  $region7: #{camera_features_forward.5} parent=0 // loop_footer_branch
    %8 = sbr.rel target = $region3
  $region8: #{camera_features_forward.5} parent=0 // loop_exit
    _

// kernel: camera_features_forward.7
$region0: #{camera_features_forward.7}
  #allocation0 [shape = 'u32[]', space=smem, size = 0x4, offset = 0x4, fixed_abs, tag = 'smem constant byte address 0x4 - core index']
  #allocation1 [shape = 'u32[144,128]{1,0:T(1,128)}', space=vmem, size = 0x12000, scoped, tag = 'internal scratch']
  %s0 = inlined_call_operand.vmem [shape: bf16[4,1,6,6,128], index: 0, kind: input, shape index: {}]
  %s1 = inlined_call_operand.vmem [shape: bf16[3,384,128], index: 1, kind: input, shape index: {}]
  %s2 = inlined_call_operand.vmem [shape: f32[1,128], index: 2, kind: input, shape index: {}]
  %s3 = inlined_call_operand.vmem [shape: bf16[4,1,4,4,128], index: 3, kind: output, shape index: {}]
  %s4 = sld [smem:[#allocation0]]
  $region45: #{camera_features_forward.7} parent=0
    _
  %s6 = ssub.s32 1, %s4
  %s7 = scalar_select 0, %s6, %s4
  loop: start=0, step=1, limit=6
  $region2: #{camera_features_forward.7} parent=0 // loop_pre_header
    _
  $region3: #{camera_features_forward.7} parent=0 // loop_header
    %s9 = sphi 0, %s13
    %p10 = scmp.ge.s32.totalorder %s9, 6
    %s16 = sphi 0, %s28
    %s17 = sphi 0, %s24
    %s18 = sphi 0, %s16
    %s19 = sphi 0, %s17
    %s20 = sphi 0, %s18
    %s21 = sphi 0, %s19
    %s33 = sphi 0, %s35
    %s36 = sphi 0, %s33
    %s37 = sphi 0, %s36
    %s53 = sphi 0, %s37
    %s57 = sphi 0, %s57
    %s59 = sphi 0, %s57
    %s60 = sphi 0, %s59
    %s74 = sphi 0, %s60
    %s78 = sphi 0, %s78
    %s80 = sphi 0, %s78
    %s81 = sphi 0, %s80
    %s95 = sphi 0, %s81
    %s103 = sphi 0, %s105
    %s106 = sphi 0, %s103
    %s107 = sphi 0, %s106
    %s123 = sphi 0, %s107
  $region4: #{camera_features_forward.7} parent=0 // loop_header_branch
    %12 = sbr.rel (%p10) target = $region8
  $region5: #{camera_features_forward.7} parent=0 // loop_body
    %s14 = ssub.s32 %s9, 1
    %s15 = ssub.s32 %s9, 2
    %s22 = sadd.s32 1, %s17
    %p23 = scmp.ge.s32.totalorder %s22, 1
    %s24 = scalar_select %p23, 0, %s22
    %s25 = sadd.s32 1, %s16
    %s26 = scalar_select %p23, %s25, %s16
    %p27 = scmp.ge.s32.totalorder %s26, 4
    %s28 = scalar_select %p27, 0, %s26
    %s29 = ssub.s32 %s16, %s28
    %s30 = ssub.s32 %s17, %s24
    %s31 = sor.u32 %s29, %s30
    %p32 = scmp.eq.s32.totalorder %s31, 0
    %s34 = sadd.s32 %s33, 1
    %s35 = scalar_select %p32, %s33, %s34
    %p38 = pneg %p32
    %p39 = scmp.eq.s32.totalorder %s9, 3
    %p40 = por %p38, %p39
    %p41 = scmp.ne.s32.totalorder %s33, %s36
    %p42 = scmp.eq.s32.totalorder %s9, 0
    %p43 = por %p41, %p42
    %p44 = scmp.ne.s32.totalorder %s33, %s36
    %p45 = scmp.eq.s32.totalorder %s14, 3
    %p46 = por %p44, %p45
    %p47 = scmp.ne.s32.totalorder %s36, %s37
    %p48 = scmp.eq.s32.totalorder %s14, 0
    %p49 = por %p47, %p48
    %p50 = scmp.ne.s32.totalorder %s36, %s37
    %p51 = scmp.eq.s32.totalorder %s15, 3
    %p52 = por %p50, %p51
    %p54 = scmp.ne.s32.totalorder %s37, %s53
    %p55 = scmp.eq.s32.totalorder %s15, 0
    %p56 = por %p54, %p55
    %s58 = sadd.s32 %s57, 1
    %p61 = scmp.eq.s32.totalorder %s9, 3
    %p62 = scmp.ne.s32.totalorder %s57, %s59
    %p63 = scmp.eq.s32.totalorder %s9, 0
    %p64 = por %p62, %p63
    %p65 = scmp.ne.s32.totalorder %s57, %s59
    %p66 = scmp.eq.s32.totalorder %s14, 3
    %p67 = por %p65, %p66
    %p68 = scmp.ne.s32.totalorder %s59, %s60
    %p69 = scmp.eq.s32.totalorder %s14, 0
    %p70 = por %p68, %p69
    %p71 = scmp.ne.s32.totalorder %s59, %s60
    %p72 = scmp.eq.s32.totalorder %s15, 3
    %p73 = por %p71, %p72
    %p75 = scmp.ne.s32.totalorder %s60, %s74
    %p76 = scmp.eq.s32.totalorder %s15, 0
    %p77 = por %p75, %p76
    %s79 = sadd.s32 %s78, 1
    %p82 = scmp.eq.s32.totalorder %s9, 3
    %p83 = scmp.ne.s32.totalorder %s78, %s80
    %p84 = scmp.eq.s32.totalorder %s9, 0
    %p85 = por %p83, %p84
    %p86 = scmp.ne.s32.totalorder %s78, %s80
    %p87 = scmp.eq.s32.totalorder %s14, 3
    %p88 = por %p86, %p87
    %p89 = scmp.ne.s32.totalorder %s80, %s81
    %p90 = scmp.eq.s32.totalorder %s14, 0
    %p91 = por %p89, %p90
    %p92 = scmp.ne.s32.totalorder %s80, %s81
    %p93 = scmp.eq.s32.totalorder %s15, 3
    %p94 = por %p92, %p93
    %p96 = scmp.ne.s32.totalorder %s81, %s95
    %p97 = scmp.eq.s32.totalorder %s15, 0
    %p98 = por %p96, %p97
    %s99 = ssub.s32 %s16, %s28
    %s100 = ssub.s32 %s17, %s24
    %s101 = sor.u32 %s99, %s100
    %p102 = scmp.eq.s32.totalorder %s101, 0
    %s104 = sadd.s32 %s103, 1
    %s105 = scalar_select %p102, %s103, %s104
    %p108 = pneg %p102
    %p109 = scmp.eq.s32.totalorder %s9, 3
    %p110 = por %p108, %p109
    %p111 = scmp.ne.s32.totalorder %s103, %s106
    %p112 = scmp.eq.s32.totalorder %s9, 0
    %p113 = por %p111, %p112
    %p114 = scmp.ne.s32.totalorder %s103, %s106
    %p115 = scmp.eq.s32.totalorder %s14, 3
    %p116 = por %p114, %p115
    %p117 = scmp.ne.s32.totalorder %s106, %s107
    %p118 = scmp.eq.s32.totalorder %s14, 0
    %p119 = por %p117, %p118
    %p120 = scmp.ne.s32.totalorder %s106, %s107
    %p121 = scmp.eq.s32.totalorder %s15, 3
    %p122 = por %p120, %p121
    %p124 = scmp.ne.s32.totalorder %s107, %s123
    %p125 = scmp.eq.s32.totalorder %s15, 0
    %p126 = por %p124, %p125
    %p127 = scmp.le.s32.totalorder 1, %s9
    %p128 = scmp.lt.s32.totalorder %s9, 5
    %p129 = pnand %p127, %p128
    %p130 = pneg %p129
    // Predicated region
    $region9: #{camera_features_forward.7} parent=5 // pred_check
      _
    $region10: #{camera_features_forward.7} parent=5 // pred_check_branch
      %132 = sbr.rel (%p129) target = $region12
    $region11: #{camera_features_forward.7} parent=5 // pred_region
      %s133 = ssub.s32 %s9, 1
      // Predicated region
      $region13: #{camera_features_forward.7} parent=11 // pred_check
        %p134 = pneg %p70
      $region14: #{camera_features_forward.7} parent=11 // pred_check_branch
        %136 = sbr.rel (%p134) target = $region16
      $region15: #{camera_features_forward.7} parent=11 // pred_region
        _
      $region16: #{camera_features_forward.7} parent=11 // pred_fallthru
        _
      // Predicated region
      $region17: #{camera_features_forward.7} parent=11 // pred_check
        %p137 = pneg %p91
      $region18: #{camera_features_forward.7} parent=11 // pred_check_branch
        %139 = sbr.rel (%p137) target = $region20
      $region19: #{camera_features_forward.7} parent=11 // pred_region
        _
      $region20: #{camera_features_forward.7} parent=11 // pred_fallthru
        _
    $region12: #{camera_features_forward.7} parent=5 // pred_fallthru
      _
    %p140 = scmp.lt.s32.totalorder %s9, 4
    // Predicated region
    $region21: #{camera_features_forward.7} parent=5 // pred_check
      %p141 = pneg %p140
    $region22: #{camera_features_forward.7} parent=5 // pred_check_branch
      %143 = sbr.rel (%p141) target = $region24
    $region23: #{camera_features_forward.7} parent=5 // pred_region
      // Predicated region
      $region25: #{camera_features_forward.7} parent=23 // pred_check
        %p144 = pneg %p43
      $region26: #{camera_features_forward.7} parent=23 // pred_check_branch
        %146 = sbr.rel (%p144) target = $region28
      $region27: #{camera_features_forward.7} parent=23 // pred_region
        %p147 = scmp.lt.s32.totalorder %s16, 3
        %s148 = scalar_select %p147, %s16, 3
        %p149 = scmp.lt.s32.totalorder %s17, 0
        %s150 = scalar_select %p149, %s17, 0
        %s151 = smul.addr %s150, 6
        %s152 = smul.addr %s148, 6
        %s153 = sadd.s32 %s151, %s152
        %s154 = smul.addr %s153, 4
        %s155 = scalar_lea.vmem %s0, %s154
      $region28: #{camera_features_forward.7} parent=23 // pred_fallthru
        _
    $region24: #{camera_features_forward.7} parent=5 // pred_fallthru
      _
    %p156 = scmp.le.s32.totalorder 1, %s9
    %p157 = scmp.lt.s32.totalorder %s9, 5
    %p158 = pnand %p156, %p157
    %p159 = pneg %p158
    // Predicated region
    $region29: #{camera_features_forward.7} parent=5 // pred_check
      _
    $region30: #{camera_features_forward.7} parent=5 // pred_check_branch
      %161 = sbr.rel (%p158) target = $region32
    $region31: #{camera_features_forward.7} parent=5 // pred_region
      %s162 = ssub.s32 %s9, 1
      %p163 = scmp.lt.s32.totalorder %s18, 3
      %s164 = scalar_select %p163, %s18, 3
      %p165 = scmp.lt.s32.totalorder %s19, 0
      %s166 = scalar_select %p165, %s19, 0
      %s167 = smul.addr %s166, 6
      %s168 = smul.addr %s164, 6
      %s169 = sadd.s32 %s167, %s168
      %s170 = smul.addr %s169, 4
      %s171 = scalar_lea.vmem %s0, %s170
      %p172 = pneg %p49
      %p173 = pneg %p46
      %p174 = pneg %p70
      %p175 = pneg %p67
      %p176 = pneg %p91
      %p177 = pneg %p88
      %p178 = pneg %p119
      %p179 = pneg %p116
      %p180 = scmp.lt.s32.totalorder %s18, 3
      %s181 = scalar_select %p180, %s18, 3
      %p182 = scmp.lt.s32.totalorder %s19, 0
      %s183 = scalar_select %p182, %s19, 0
      %s184 = smul.addr %s183, 4
      %s185 = smul.addr %s181, 4
      %s186 = sadd.s32 %s184, %s185
      %s187 = smul.addr %s186, 2
      %s188 = scalar_lea.vmem %s3, %s187
      %p189 = scmp.lt.s32.totalorder %s18, 3
      %s190 = scalar_select %p189, %s18, 3
      %p191 = scmp.lt.s32.totalorder %s19, 0
      %s192 = scalar_select %p191, %s19, 0
      %s193 = smul.addr %s192, 6
      %s194 = smul.addr %s190, 6
      %s195 = sadd.s32 %s193, %s194
      %s196 = smul.addr %s195, 4
      %s197 = scalar_lea.vmem %s0, %s196
      %p198 = scmp.lt.s32.totalorder %s18, 3
      %s199 = scalar_select %p198, %s18, 3
      %p200 = scmp.lt.s32.totalorder %s19, 0
      %s201 = scalar_select %p200, %s19, 0
      %s202 = smul.addr %s201, 4
      %s203 = smul.addr %s199, 4
      %s204 = sadd.s32 %s202, %s203
      %s205 = smul.addr %s204, 2
      %s206 = scalar_lea.vmem %s3, %s205
      %v208 = vld [vmem:[%s197] sm:$0x7]
      %v209 = vld [vmem:[%s197 + $0x4] sm:$0x7]
      %v210 = vld [vmem:[%s197 + $0x8] sm:$0x7]
      %v211 = vld [vmem:[%s197 + $0xc] sm:$0x7]
      %v212 = vld [vmem:[%s197 + $0x10] sm:$0x7]
      %v213 = vld [vmem:[%s197 + $0x14] sm:$0x7]
      %v220 = vcombine.low %v208, %v209
      %v222 = vunpack.c.l.s4 1983009808
      %v223 = vunpack.c.0.s8 %v222
      %v224 = vlaneseq
      %v225 = vshrl.u32 %v224, 7
      %v226 = vsub.s32 %v223, %v225
      %v227 = vrot.slane %v220, %v226
      %v229 = vunpack.c.l.s4 1983009808
      %v230 = vunpack.c.0.s8 %v229
      %v231 = vlaneseq
      %v232 = vshrl.u32 %v231, 7
      %v233 = vsub.s32 %v230, %v232
      %v234 = vrot.slane %v210, %v233
      %v235 = vcombine.low %v227, %v234
      %v236 = vcombine.low %v209, %v210
      %v238 = vunpack.c.l.s4 1983009808
      %v239 = vunpack.c.0.s8 %v238
      %v240 = vlaneseq
      %v241 = vshrl.u32 %v240, 7
      %v242 = vsub.s32 %v239, %v241
      %v243 = vrot.slane %v236, %v242
      %v245 = vunpack.c.l.s4 1983009808
      %v246 = vunpack.c.0.s8 %v245
      %v247 = vlaneseq
      %v248 = vshrl.u32 %v247, 7
      %v249 = vsub.s32 %v246, %v248
      %v250 = vrot.slane %v211, %v249
      %v251 = vcombine.low %v243, %v250
      %v252 = vcombine.low %v210, %v211
      %v254 = vunpack.c.l.s4 1983009808
      %v255 = vunpack.c.0.s8 %v254
      %v256 = vlaneseq
      %v257 = vshrl.u32 %v256, 7
      %v258 = vsub.s32 %v255, %v257
      %v259 = vrot.slane %v252, %v258
      %v261 = vunpack.c.l.s4 1983009808
      %v262 = vunpack.c.0.s8 %v261
      %v263 = vlaneseq
      %v264 = vshrl.u32 %v263, 7
      %v265 = vsub.s32 %v262, %v264
      %v266 = vrot.slane %v212, %v265
      %v267 = vcombine.low %v259, %v266
      %v268 = vcombine.low %v211, %v212
      %v270 = vunpack.c.l.s4 1983009808
      %v271 = vunpack.c.0.s8 %v270
      %v272 = vlaneseq
      %v273 = vshrl.u32 %v272, 7
      %v274 = vsub.s32 %v271, %v273
      %v275 = vrot.slane %v268, %v274
      %v277 = vunpack.c.l.s4 1983009808
      %v278 = vunpack.c.0.s8 %v277
      %v279 = vlaneseq
      %v280 = vshrl.u32 %v279, 7
      %v281 = vsub.s32 %v278, %v280
      %v282 = vrot.slane %v213, %v281
      %v283 = vcombine.low %v275, %v282
      %v284 = vld [vmem:[%s1] sm:$0xf]
      %v285 = vld [vmem:[%s1 + $0x4] sm:$0xf]
      %v286 = vld [vmem:[%s1 + $0x8] sm:$0xf]
      %v287 = vld [vmem:[%s1 + $0xc] sm:$0xf]
      %v288 = vld [vmem:[%s1 + $0x10] sm:$0xf]
      %v289 = vld [vmem:[%s1 + $0x14] sm:$0xf]
      %v290 = vld [vmem:[%s1 + $0x18] sm:$0xf]
      %v291 = vld [vmem:[%s1 + $0x1c] sm:$0xf]
      %v292 = vld [vmem:[%s1 + $0x20] sm:$0xf]
      %v293 = vld [vmem:[%s1 + $0x24] sm:$0xf]
      %v294 = vld [vmem:[%s1 + $0x28] sm:$0xf]
      %v295 = vld [vmem:[%s1 + $0x2c] sm:$0xf]
      %v296 = vld [vmem:[%s1 + $0x30] sm:$0xf]
      %v297 = vld [vmem:[%s1 + $0x34] sm:$0xf]
      %v298 = vld [vmem:[%s1 + $0x38] sm:$0xf]
      %v299 = vld [vmem:[%s1 + $0x3c] sm:$0xf]
      %v300 = vld [vmem:[%s1 + $0x40] sm:$0xf]
      %v301 = vld [vmem:[%s1 + $0x44] sm:$0xf]
      %v302 = vld [vmem:[%s1 + $0x48] sm:$0xf]
      %v303 = vld [vmem:[%s1 + $0x4c] sm:$0xf]
      %v304 = vld [vmem:[%s1 + $0x50] sm:$0xf]
      %v305 = vld [vmem:[%s1 + $0x54] sm:$0xf]
      %v306 = vld [vmem:[%s1 + $0x58] sm:$0xf]
      %v307 = vld [vmem:[%s1 + $0x5c] sm:$0xf]
      %v308 = vld [vmem:[%s1 + $0x60] sm:$0xf]
      %v309 = vld [vmem:[%s1 + $0x64] sm:$0xf]
      %v310 = vld [vmem:[%s1 + $0x68] sm:$0xf]
      %v311 = vld [vmem:[%s1 + $0x6c] sm:$0xf]
      %v312 = vld [vmem:[%s1 + $0x70] sm:$0xf]
      %v313 = vld [vmem:[%s1 + $0x74] sm:$0xf]
      %v314 = vld [vmem:[%s1 + $0x78] sm:$0xf]
      %v315 = vld [vmem:[%s1 + $0x7c] sm:$0xf]
      %v316 = vld [vmem:[%s1 + $0x80] sm:$0xf]
      %v317 = vld [vmem:[%s1 + $0x84] sm:$0xf]
      %v318 = vld [vmem:[%s1 + $0x88] sm:$0xf]
      %v319 = vld [vmem:[%s1 + $0x8c] sm:$0xf]
      %v320 = vld [vmem:[%s1 + $0x90] sm:$0xf]
      %v321 = vld [vmem:[%s1 + $0x94] sm:$0xf]
      %v322 = vld [vmem:[%s1 + $0x98] sm:$0xf]
      %v323 = vld [vmem:[%s1 + $0x9c] sm:$0xf]
      %v324 = vld [vmem:[%s1 + $0xa0] sm:$0xf]
      %v325 = vld [vmem:[%s1 + $0xa4] sm:$0xf]
      %v326 = vld [vmem:[%s1 + $0xa8] sm:$0xf]
      %v327 = vld [vmem:[%s1 + $0xac] sm:$0xf]
      %v328 = vld [vmem:[%s1 + $0xb0] sm:$0xf]
      %v329 = vld [vmem:[%s1 + $0xb4] sm:$0xf]
      %v330 = vld [vmem:[%s1 + $0xb8] sm:$0xf]
      %v331 = vld [vmem:[%s1 + $0xbc] sm:$0xf]
      %v332 = vcombine.high %v227, %v234
      %v333 = vcombine.high %v243, %v250
      %v334 = vcombine.high %v259, %v266
      %v335 = vcombine.high %v275, %v282
      %vm336 = vsmask.f32 1280
      %vm337 = vsmask.f32 3336
      %vm338 = vmor %vm336, %vm337
      %vm339 = vsmask.f32 5392
      %vm340 = vmor %vm338, %vm339
      %vm341 = vsmask.f32 7448
      %vm342 = vmor %vm340, %vm341
      %v344 = vshrl.u32 %v235, 16
      %v346 = vrot.slane %v344, 6
      %v347 = vshll.u32 %v235, 16
      %v349 = vrot.slane %v347, 7
      %v350 = vor.u32 %v346, %v349
      %v351 = vrot.slane %v350, 2
      %v353 = vshll.u32 %v332, 16
      %v355 = vrot.slane %v353, 7
      %v356 = vsel %vm342, %v351, %v355
      %v358 = vshrl.u32 %v251, 16
      %v360 = vrot.slane %v358, 6
      %v361 = vshll.u32 %v251, 16
      %v363 = vrot.slane %v361, 7
      %v364 = vor.u32 %v360, %v363
      %v365 = vrot.slane %v364, 2
      %v367 = vshll.u32 %v333, 16
      %v369 = vrot.slane %v367, 7
      %v370 = vsel %vm342, %v365, %v369
      %v372 = vshrl.u32 %v267, 16
      %v374 = vrot.slane %v372, 6
      %v375 = vshll.u32 %v267, 16
      %v377 = vrot.slane %v375, 7
      %v378 = vor.u32 %v374, %v377
      %v379 = vrot.slane %v378, 2
      %v381 = vshll.u32 %v334, 16
      %v383 = vrot.slane %v381, 7
      %v384 = vsel %vm342, %v379, %v383
      %v386 = vshrl.u32 %v283, 16
      %v388 = vrot.slane %v386, 6
      %v389 = vshll.u32 %v283, 16
      %v391 = vrot.slane %v389, 7
      %v392 = vor.u32 %v388, %v391
      %v393 = vrot.slane %v392, 2
      %v395 = vshll.u32 %v335, 16
      %v397 = vrot.slane %v395, 7
      %v398 = vsel %vm342, %v393, %v397
      %s399 = scalar_lea.vmem %s1, 192
      %v400 = vld [vmem:[%s399] sm:$0xf]
      %v401 = vld [vmem:[%s399 + $0x4] sm:$0xf]
      %v402 = vld [vmem:[%s399 + $0x8] sm:$0xf]
      %v403 = vld [vmem:[%s399 + $0xc] sm:$0xf]
      %v404 = vld [vmem:[%s399 + $0x10] sm:$0xf]
      %v405 = vld [vmem:[%s399 + $0x14] sm:$0xf]
      %v406 = vld [vmem:[%s399 + $0x18] sm:$0xf]
      %v407 = vld [vmem:[%s399 + $0x1c] sm:$0xf]
      %v408 = vld [vmem:[%s399 + $0x20] sm:$0xf]
      %v409 = vld [vmem:[%s399 + $0x24] sm:$0xf]
      %v410 = vld [vmem:[%s399 + $0x28] sm:$0xf]
      %v411 = vld [vmem:[%s399 + $0x2c] sm:$0xf]
      %v412 = vld [vmem:[%s399 + $0x30] sm:$0xf]
      %v413 = vld [vmem:[%s399 + $0x34] sm:$0xf]
      %v414 = vld [vmem:[%s399 + $0x38] sm:$0xf]
      %v415 = vld [vmem:[%s399 + $0x3c] sm:$0xf]
      %v416 = vld [vmem:[%s399 + $0x40] sm:$0xf]
      %v417 = vld [vmem:[%s399 + $0x44] sm:$0xf]
      %v418 = vld [vmem:[%s399 + $0x48] sm:$0xf]
      %v419 = vld [vmem:[%s399 + $0x4c] sm:$0xf]
      %v420 = vld [vmem:[%s399 + $0x50] sm:$0xf]
      %v421 = vld [vmem:[%s399 + $0x54] sm:$0xf]
      %v422 = vld [vmem:[%s399 + $0x58] sm:$0xf]
      %v423 = vld [vmem:[%s399 + $0x5c] sm:$0xf]
      %v424 = vld [vmem:[%s399 + $0x60] sm:$0xf]
      %v425 = vld [vmem:[%s399 + $0x64] sm:$0xf]
      %v426 = vld [vmem:[%s399 + $0x68] sm:$0xf]
      %v427 = vld [vmem:[%s399 + $0x6c] sm:$0xf]
      %v428 = vld [vmem:[%s399 + $0x70] sm:$0xf]
      %v429 = vld [vmem:[%s399 + $0x74] sm:$0xf]
      %v430 = vld [vmem:[%s399 + $0x78] sm:$0xf]
      %v431 = vld [vmem:[%s399 + $0x7c] sm:$0xf]
      %v432 = vld [vmem:[%s399 + $0x80] sm:$0xf]
      %v433 = vld [vmem:[%s399 + $0x84] sm:$0xf]
      %v434 = vld [vmem:[%s399 + $0x88] sm:$0xf]
      %v435 = vld [vmem:[%s399 + $0x8c] sm:$0xf]
      %v436 = vld [vmem:[%s399 + $0x90] sm:$0xf]
      %v437 = vld [vmem:[%s399 + $0x94] sm:$0xf]
      %v438 = vld [vmem:[%s399 + $0x98] sm:$0xf]
      %v439 = vld [vmem:[%s399 + $0x9c] sm:$0xf]
      %v440 = vld [vmem:[%s399 + $0xa0] sm:$0xf]
      %v441 = vld [vmem:[%s399 + $0xa4] sm:$0xf]
      %v442 = vld [vmem:[%s399 + $0xa8] sm:$0xf]
      %v443 = vld [vmem:[%s399 + $0xac] sm:$0xf]
      %v444 = vld [vmem:[%s399 + $0xb0] sm:$0xf]
      %v445 = vld [vmem:[%s399 + $0xb4] sm:$0xf]
      %v446 = vld [vmem:[%s399 + $0xb8] sm:$0xf]
      %v447 = vld [vmem:[%s399 + $0xbc] sm:$0xf]
      %v448 = vcombine.low %v356, %v370
      %v449 = vcombine.high %v356, %v370
      %v450 = vcombine.low %v384, %v398
      %v451 = vcombine.high %v384, %v398
      %v453 = vunpack.c.l.s4 1983009808
      %v454 = vunpack.c.0.s8 %v453
      %v455 = vlaneseq
      %v456 = vshrl.u32 %v455, 7
      %v457 = vsub.s32 %v454, %v456
      %v458 = vrot.slane %v448, %v457
      %v460 = vunpack.c.l.s4 1983009808
      %v461 = vunpack.c.0.s8 %v460
      %v462 = vlaneseq
      %v463 = vshrl.u32 %v462, 7
      %v464 = vsub.s32 %v461, %v463
      %v465 = vrot.slane %v449, %v464
      %v467 = vunpack.c.l.s4 1983009808
      %v468 = vunpack.c.0.s8 %v467
      %v469 = vlaneseq
      %v470 = vshrl.u32 %v469, 7
      %v471 = vsub.s32 %v468, %v470
      %v472 = vrot.slane %v450, %v471
      %v474 = vunpack.c.l.s4 1983009808
      %v475 = vunpack.c.0.s8 %v474
      %v476 = vlaneseq
      %v477 = vshrl.u32 %v476, 7
      %v478 = vsub.s32 %v475, %v477
      %v479 = vrot.slane %v451, %v478
      %v480 = vcombine.low %v458, %v472
      %v481 = vcombine.high %v458, %v472
      %v482 = vcombine.low %v465, %v479
      %v534 = vunpack.c.l.b16 %v400
      %v535 = vunpack.c.l.b16 %v401
      %v536 = vunpack.c.l.b16 %v402
      %v537 = vunpack.c.l.b16 %v403
      %v538 = vunpack.c.l.b16 %v404
      %v539 = vunpack.c.l.b16 %v405
      %v540 = vunpack.c.l.b16 %v406
      %v541 = vunpack.c.l.b16 %v407
      %v542 = vunpack.c.l.b16 %v408
      %v543 = vunpack.c.l.b16 %v409
      %v544 = vunpack.c.l.b16 %v410
      %v545 = vunpack.c.l.b16 %v411
      %v546 = vunpack.c.l.b16 %v412
      %v547 = vunpack.c.l.b16 %v413
      %v548 = vunpack.c.l.b16 %v414
      %v549 = vunpack.c.l.b16 %v415
      %v550 = vunpack.c.l.b16 %v416
      %v551 = vunpack.c.l.b16 %v417
      %v552 = vunpack.c.l.b16 %v418
      %v553 = vunpack.c.l.b16 %v419
      %v554 = vunpack.c.l.b16 %v420
      %v555 = vunpack.c.l.b16 %v421
      %v556 = vunpack.c.l.b16 %v422
      %v557 = vunpack.c.l.b16 %v423
      %v558 = vunpack.c.l.b16 %v424
      %v559 = vunpack.c.l.b16 %v425
      %v560 = vunpack.c.l.b16 %v426
      %v561 = vunpack.c.l.b16 %v427
      %v562 = vunpack.c.l.b16 %v428
      %v563 = vunpack.c.l.b16 %v429
      %v564 = vunpack.c.l.b16 %v430
      %v565 = vunpack.c.l.b16 %v431
      %v566 = vunpack.c.l.b16 %v432
      %v567 = vunpack.c.l.b16 %v433
      %v568 = vunpack.c.l.b16 %v434
      %v569 = vunpack.c.l.b16 %v435
      %v570 = vunpack.c.l.b16 %v436
      %v571 = vunpack.c.l.b16 %v437
      %v572 = vunpack.c.l.b16 %v438
      %v573 = vunpack.c.l.b16 %v439
      %v574 = vunpack.c.l.b16 %v440
      %v575 = vunpack.c.l.b16 %v441
      %v576 = vunpack.c.l.b16 %v442
      %v577 = vunpack.c.l.b16 %v443
      %v578 = vunpack.c.l.b16 %v444
      %v579 = vunpack.c.l.b16 %v445
      %v580 = vunpack.c.l.b16 %v446
      %v581 = vunpack.c.l.b16 %v447
      %v582 = vpack.c.b16 %v535, %v534
      %v583 = vpack.c.b16 %v537, %v536
      %v584 = vpack.c.b16 %v539, %v538
      %v585 = vpack.c.b16 %v541, %v540
      %v586 = vpack.c.b16 %v543, %v542
      %v587 = vpack.c.b16 %v545, %v544
      %v588 = vpack.c.b16 %v547, %v546
      %v589 = vpack.c.b16 %v549, %v548
      %v590 = vpack.c.b16 %v551, %v550
      %v591 = vpack.c.b16 %v553, %v552
      %v592 = vpack.c.b16 %v555, %v554
      %v593 = vpack.c.b16 %v557, %v556
      %v594 = vpack.c.b16 %v559, %v558
      %v595 = vpack.c.b16 %v561, %v560
      %v596 = vpack.c.b16 %v563, %v562
      %v597 = vpack.c.b16 %v565, %v564
      %v598 = vpack.c.b16 %v567, %v566
      %v599 = vpack.c.b16 %v569, %v568
      %v600 = vpack.c.b16 %v571, %v570
      %v601 = vpack.c.b16 %v573, %v572
      %v602 = vpack.c.b16 %v575, %v574
      %v603 = vpack.c.b16 %v577, %v576
      %v604 = vpack.c.b16 %v579, %v578
      %v605 = vpack.c.b16 %v581, %v580
      %630 = vmatprep.subr.bf16.mxu0 0
      %631 = vmatpush1.bf16.msra.mxu0 %v582
      %632 = vmatprep.subr.bf16.mxu0 0
      %633 = vmatpush1.bf16.msra.mxu0 %v583
      %634 = vmatprep.subr.bf16.mxu0 0
      %635 = vmatpush1.bf16.msra.mxu0 %v584
      %636 = vmatprep.subr.bf16.mxu0 0
      %637 = vmatpush1.bf16.msra.mxu0 %v585
      %638 = vmatprep.subr.bf16.mxu0 0
      %639 = vmatpush1.bf16.msra.mxu0 %v586
      %640 = vmatprep.subr.bf16.mxu0 0
      %641 = vmatpush1.bf16.msra.mxu0 %v587
      %642 = vmatprep.subr.bf16.mxu0 0
      %643 = vmatpush1.bf16.msra.mxu0 %v588
      %644 = vmatprep.subr.bf16.mxu0 0
      %645 = vmatpush1.bf16.msra.mxu0 %v589
      %646 = vmatprep.subr.bf16.mxu0 0
      %647 = vmatpush1.bf16.msra.mxu0 %v590
      %648 = vmatprep.subr.bf16.mxu0 0
      %649 = vmatpush1.bf16.msra.mxu0 %v591
      %650 = vmatprep.subr.bf16.mxu0 0
      %651 = vmatpush1.bf16.msra.mxu0 %v592
      %652 = vmatprep.subr.bf16.mxu0 0
      %653 = vmatpush1.bf16.msra.mxu0 %v593
      %654 = vmatprep.subr.bf16.mxu0 0
      %655 = vmatpush1.bf16.msra.mxu0 %v594
      %656 = vmatprep.subr.bf16.mxu0 0
      %657 = vmatpush1.bf16.msra.mxu0 %v595
      %658 = vmatprep.subr.bf16.mxu0 0
      %659 = vmatpush1.bf16.msra.mxu0 %v596
      %660 = vmatprep.subr.bf16.mxu0 0
      %661 = vmatpush1.bf16.msra.mxu0 %v597
      %662 = vmatprep.mubr.bf16.mxu0 %v481
      %663 = vmatmul.mubr.bf16.gmra.mrb[0].mxu0 %v480
      %v664 = vpop.f32.mrb[0].mxu0
      %v665 = vadd.f32 0.0, %v664
      %v666 = vpop.f32.mrb[0].mxu0
      %v667 = vpop.f32.mrb[0].mxu0
      %v668 = vadd.f32 0.0, %v667
      %v669 = vpop.f32.mrb[0].mxu0
      %670 = vdwg.mxu0
      %671 = vmatprep.subr.bf16.mxu0 0
      %672 = vmatpush1.bf16.msra.mxu0 %v598
      %673 = vmatprep.subr.bf16.mxu0 0
      %674 = vmatpush1.bf16.msra.mxu0 %v599
      %675 = vmatprep.subr.bf16.mxu0 0
      %676 = vmatpush1.bf16.msra.mxu0 %v600
      %677 = vmatprep.subr.bf16.mxu0 0
      %678 = vmatpush1.bf16.msra.mxu0 %v601
      %679 = vmatprep.subr.bf16.mxu0 0
      %680 = vmatpush1.bf16.msra.mxu0 %v602
      %681 = vmatprep.subr.bf16.mxu0 0
      %682 = vmatpush1.bf16.msra.mxu0 %v603
      %683 = vmatprep.subr.bf16.mxu0 0
      %684 = vmatpush1.bf16.msra.mxu0 %v604
      %685 = vmatprep.subr.bf16.mxu0 0
      %686 = vmatpush1.bf16.msra.mxu0 %v605
      %687 = vmatprep.subr.bf16.mxu0 0
      %688 = vmatpush1.bf16.msra.mxu0 0
      %689 = vmatprep.subr.bf16.mxu0 0
      %690 = vmatpush1.bf16.msra.mxu0 0
      %691 = vmatprep.subr.bf16.mxu0 0
      %692 = vmatpush1.bf16.msra.mxu0 0
      %693 = vmatprep.subr.bf16.mxu0 0
      %694 = vmatpush1.bf16.msra.mxu0 0
      %695 = vmatprep.subr.bf16.mxu0 0
      %696 = vmatpush1.bf16.msra.mxu0 0
      %697 = vmatprep.subr.bf16.mxu0 0
      %698 = vmatpush1.bf16.msra.mxu0 0
      %699 = vmatprep.subr.bf16.mxu0 0
      %700 = vmatpush1.bf16.msra.mxu0 0
      %701 = vmatprep.subr.bf16.mxu0 0
      %702 = vmatpush1.bf16.msra.mxu0 0
      %703 = vmatprep.mubr.bf16.mxu0 0
      %704 = vmatmul.mubr.bf16.gmra.mrb[0].mxu0 %v482
      %v705 = vpop.f32.mrb[0].mxu0
      %v706 = vadd.f32 %v665, %v705
      %v707 = vpop.f32.mrb[0].mxu0
      %v708 = vpop.f32.mrb[0].mxu0
      %v709 = vadd.f32 %v668, %v708
      %v710 = vpop.f32.mrb[0].mxu0
      %711 = vdwg.mxu0
      %v712 = vcombine.low %v235, %v251
      %v713 = vcombine.high %v235, %v251
      %v714 = vcombine.low %v267, %v283
      %v715 = vcombine.high %v267, %v283
      %v717 = vunpack.c.l.s4 1983009808
      %v718 = vunpack.c.0.s8 %v717
      %v719 = vlaneseq
      %v720 = vshrl.u32 %v719, 7
      %v721 = vsub.s32 %v718, %v720
      %v722 = vrot.slane %v712, %v721
      %v724 = vunpack.c.l.s4 1983009808
      %v725 = vunpack.c.0.s8 %v724
      %v726 = vlaneseq
      %v727 = vshrl.u32 %v726, 7
      %v728 = vsub.s32 %v725, %v727
      %v729 = vrot.slane %v713, %v728
      %v731 = vunpack.c.l.s4 1983009808
      %v732 = vunpack.c.0.s8 %v731
      %v733 = vlaneseq
      %v734 = vshrl.u32 %v733, 7
      %v735 = vsub.s32 %v732, %v734
      %v736 = vrot.slane %v714, %v735
      %v738 = vunpack.c.l.s4 1983009808
      %v739 = vunpack.c.0.s8 %v738
      %v740 = vlaneseq
      %v741 = vshrl.u32 %v740, 7
      %v742 = vsub.s32 %v739, %v741
      %v743 = vrot.slane %v715, %v742
      %v744 = vcombine.low %v722, %v736
      %v745 = vcombine.high %v722, %v736
      %v746 = vcombine.low %v729, %v743
      %v798 = vunpack.c.l.b16 %v284
      %v799 = vunpack.c.l.b16 %v285
      %v800 = vunpack.c.l.b16 %v286
      %v801 = vunpack.c.l.b16 %v287
      %v802 = vunpack.c.l.b16 %v288
      %v803 = vunpack.c.l.b16 %v289
      %v804 = vunpack.c.l.b16 %v290
      %v805 = vunpack.c.l.b16 %v291
      %v806 = vunpack.c.l.b16 %v292
      %v807 = vunpack.c.l.b16 %v293
      %v808 = vunpack.c.l.b16 %v294
      %v809 = vunpack.c.l.b16 %v295
      %v810 = vunpack.c.l.b16 %v296
      %v811 = vunpack.c.l.b16 %v297
      %v812 = vunpack.c.l.b16 %v298
      %v813 = vunpack.c.l.b16 %v299
      %v814 = vunpack.c.l.b16 %v300
      %v815 = vunpack.c.l.b16 %v301
      %v816 = vunpack.c.l.b16 %v302
      %v817 = vunpack.c.l.b16 %v303
      %v818 = vunpack.c.l.b16 %v304
      %v819 = vunpack.c.l.b16 %v305
      %v820 = vunpack.c.l.b16 %v306
      %v821 = vunpack.c.l.b16 %v307
      %v822 = vunpack.c.l.b16 %v308
      %v823 = vunpack.c.l.b16 %v309
      %v824 = vunpack.c.l.b16 %v310
      %v825 = vunpack.c.l.b16 %v311
      %v826 = vunpack.c.l.b16 %v312
      %v827 = vunpack.c.l.b16 %v313
      %v828 = vunpack.c.l.b16 %v314
      %v829 = vunpack.c.l.b16 %v315
      %v830 = vunpack.c.l.b16 %v316
      %v831 = vunpack.c.l.b16 %v317
      %v832 = vunpack.c.l.b16 %v318
      %v833 = vunpack.c.l.b16 %v319
      %v834 = vunpack.c.l.b16 %v320
      %v835 = vunpack.c.l.b16 %v321
      %v836 = vunpack.c.l.b16 %v322
      %v837 = vunpack.c.l.b16 %v323
      %v838 = vunpack.c.l.b16 %v324
      %v839 = vunpack.c.l.b16 %v325
      %v840 = vunpack.c.l.b16 %v326
      %v841 = vunpack.c.l.b16 %v327
      %v842 = vunpack.c.l.b16 %v328
      %v843 = vunpack.c.l.b16 %v329
      %v844 = vunpack.c.l.b16 %v330
      %v845 = vunpack.c.l.b16 %v331
      %v846 = vpack.c.b16 %v799, %v798
      %v847 = vpack.c.b16 %v801, %v800
      %v848 = vpack.c.b16 %v803, %v802
      %v849 = vpack.c.b16 %v805, %v804
      %v850 = vpack.c.b16 %v807, %v806
      %v851 = vpack.c.b16 %v809, %v808
      %v852 = vpack.c.b16 %v811, %v810
      %v853 = vpack.c.b16 %v813, %v812
      %v854 = vpack.c.b16 %v815, %v814
      %v855 = vpack.c.b16 %v817, %v816
      %v856 = vpack.c.b16 %v819, %v818
      %v857 = vpack.c.b16 %v821, %v820
      %v858 = vpack.c.b16 %v823, %v822
      %v859 = vpack.c.b16 %v825, %v824
      %v860 = vpack.c.b16 %v827, %v826
      %v861 = vpack.c.b16 %v829, %v828
      %v862 = vpack.c.b16 %v831, %v830
      %v863 = vpack.c.b16 %v833, %v832
      %v864 = vpack.c.b16 %v835, %v834
      %v865 = vpack.c.b16 %v837, %v836
      %v866 = vpack.c.b16 %v839, %v838
      %v867 = vpack.c.b16 %v841, %v840
      %v868 = vpack.c.b16 %v843, %v842
      %v869 = vpack.c.b16 %v845, %v844
      %894 = vmatprep.subr.bf16.mxu0 0
      %895 = vmatpush1.bf16.msra.mxu0 %v846
      %896 = vmatprep.subr.bf16.mxu0 0
      %897 = vmatpush1.bf16.msra.mxu0 %v847
      %898 = vmatprep.subr.bf16.mxu0 0
      %899 = vmatpush1.bf16.msra.mxu0 %v848
      %900 = vmatprep.subr.bf16.mxu0 0
      %901 = vmatpush1.bf16.msra.mxu0 %v849
      %902 = vmatprep.subr.bf16.mxu0 0
      %903 = vmatpush1.bf16.msra.mxu0 %v850
      %904 = vmatprep.subr.bf16.mxu0 0
      %905 = vmatpush1.bf16.msra.mxu0 %v851
      %906 = vmatprep.subr.bf16.mxu0 0
      %907 = vmatpush1.bf16.msra.mxu0 %v852
      %908 = vmatprep.subr.bf16.mxu0 0
      %909 = vmatpush1.bf16.msra.mxu0 %v853
      %910 = vmatprep.subr.bf16.mxu0 0
      %911 = vmatpush1.bf16.msra.mxu0 %v854
      %912 = vmatprep.subr.bf16.mxu0 0
      %913 = vmatpush1.bf16.msra.mxu0 %v855
      %914 = vmatprep.subr.bf16.mxu0 0
      %915 = vmatpush1.bf16.msra.mxu0 %v856
      %916 = vmatprep.subr.bf16.mxu0 0
      %917 = vmatpush1.bf16.msra.mxu0 %v857
      %918 = vmatprep.subr.bf16.mxu0 0
      %919 = vmatpush1.bf16.msra.mxu0 %v858
      %920 = vmatprep.subr.bf16.mxu0 0
      %921 = vmatpush1.bf16.msra.mxu0 %v859
      %922 = vmatprep.subr.bf16.mxu0 0
      %923 = vmatpush1.bf16.msra.mxu0 %v860
      %924 = vmatprep.subr.bf16.mxu0 0
      %925 = vmatpush1.bf16.msra.mxu0 %v861
      %926 = vmatprep.mubr.bf16.mxu0 %v745
      %927 = vmatmul.mubr.bf16.gmra.mrb[0].mxu0 %v744
      %v928 = vpop.f32.mrb[0].mxu0
      %v929 = vadd.f32 %v706, %v928
      %v930 = vpop.f32.mrb[0].mxu0
      %v931 = vpop.f32.mrb[0].mxu0
      %v932 = vadd.f32 %v709, %v931
      %v933 = vpop.f32.mrb[0].mxu0
      %934 = vdwg.mxu0
      %935 = vmatprep.subr.bf16.mxu0 0
      %936 = vmatpush1.bf16.msra.mxu0 %v862
      %937 = vmatprep.subr.bf16.mxu0 0
      %938 = vmatpush1.bf16.msra.mxu0 %v863
      %939 = vmatprep.subr.bf16.mxu0 0
      %940 = vmatpush1.bf16.msra.mxu0 %v864
      %941 = vmatprep.subr.bf16.mxu0 0
      %942 = vmatpush1.bf16.msra.mxu0 %v865
      %943 = vmatprep.subr.bf16.mxu0 0
      %944 = vmatpush1.bf16.msra.mxu0 %v866
      %945 = vmatprep.subr.bf16.mxu0 0
      %946 = vmatpush1.bf16.msra.mxu0 %v867
      %947 = vmatprep.subr.bf16.mxu0 0
      %948 = vmatpush1.bf16.msra.mxu0 %v868
      %949 = vmatprep.subr.bf16.mxu0 0
      %950 = vmatpush1.bf16.msra.mxu0 %v869
      %951 = vmatprep.subr.bf16.mxu0 0
      %952 = vmatpush1.bf16.msra.mxu0 0
      %953 = vmatprep.subr.bf16.mxu0 0
      %954 = vmatpush1.bf16.msra.mxu0 0
      %955 = vmatprep.subr.bf16.mxu0 0
      %956 = vmatpush1.bf16.msra.mxu0 0
      %957 = vmatprep.subr.bf16.mxu0 0
      %958 = vmatpush1.bf16.msra.mxu0 0
      %959 = vmatprep.subr.bf16.mxu0 0
      %960 = vmatpush1.bf16.msra.mxu0 0
      %961 = vmatprep.subr.bf16.mxu0 0
      %962 = vmatpush1.bf16.msra.mxu0 0
      %963 = vmatprep.subr.bf16.mxu0 0
      %964 = vmatpush1.bf16.msra.mxu0 0
      %965 = vmatprep.subr.bf16.mxu0 0
      %966 = vmatpush1.bf16.msra.mxu0 0
      %967 = vmatprep.mubr.bf16.mxu0 0
      %968 = vmatmul.mubr.bf16.gmra.mrb[0].mxu0 %v746
      %v969 = vpop.f32.mrb[0].mxu0
      %v970 = vadd.f32 %v929, %v969
      %v971 = vpop.f32.mrb[0].mxu0
      %v972 = vpop.f32.mrb[0].mxu0
      %v973 = vadd.f32 %v932, %v972
      %v974 = vpop.f32.mrb[0].mxu0
      %975 = vdwg.mxu0
      %vm976 = vcmask 1040384
      %vm977 = vcmask 1042434
      %vm978 = vmor %vm976, %vm977
      %vm979 = vcmask 1044484
      %vm980 = vmor %vm978, %vm979
      %vm981 = vcmask 1046534
      %vm982 = vmor %vm980, %vm981
      %v983 = vrot.slane %v235, 7
      %v984 = vrot.slane %v983, 2
      %v985 = vrot.slane %v332, 7
      %v986 = vsel %vm982, %v984, %v985
      %v987 = vrot.slane %v251, 7
      %v988 = vrot.slane %v987, 2
      %v989 = vrot.slane %v333, 7
      %v990 = vsel %vm982, %v988, %v989
      %v991 = vrot.slane %v267, 7
      %v992 = vrot.slane %v991, 2
      %v993 = vrot.slane %v334, 7
      %v994 = vsel %vm982, %v992, %v993
      %v995 = vrot.slane %v283, 7
      %v996 = vrot.slane %v995, 2
      %v997 = vrot.slane %v335, 7
      %v998 = vsel %vm982, %v996, %v997
      %s999 = scalar_lea.vmem %s1, 384
      %v1000 = vld [vmem:[%s999] sm:$0xf]
      %v1001 = vld [vmem:[%s999 + $0x4] sm:$0xf]
      %v1002 = vld [vmem:[%s999 + $0x8] sm:$0xf]
      %v1003 = vld [vmem:[%s999 + $0xc] sm:$0xf]
      %v1004 = vld [vmem:[%s999 + $0x10] sm:$0xf]
      %v1005 = vld [vmem:[%s999 + $0x14] sm:$0xf]
      %v1006 = vld [vmem:[%s999 + $0x18] sm:$0xf]
      %v1007 = vld [vmem:[%s999 + $0x1c] sm:$0xf]
      %v1008 = vld [vmem:[%s999 + $0x20] sm:$0xf]
      %v1009 = vld [vmem:[%s999 + $0x24] sm:$0xf]
      %v1010 = vld [vmem:[%s999 + $0x28] sm:$0xf]
      %v1011 = vld [vmem:[%s999 + $0x2c] sm:$0xf]
      %v1012 = vld [vmem:[%s999 + $0x30] sm:$0xf]
      %v1013 = vld [vmem:[%s999 + $0x34] sm:$0xf]
      %v1014 = vld [vmem:[%s999 + $0x38] sm:$0xf]
      %v1015 = vld [vmem:[%s999 + $0x3c] sm:$0xf]
      %v1016 = vld [vmem:[%s999 + $0x40] sm:$0xf]
      %v1017 = vld [vmem:[%s999 + $0x44] sm:$0xf]
      %v1018 = vld [vmem:[%s999 + $0x48] sm:$0xf]
      %v1019 = vld [vmem:[%s999 + $0x4c] sm:$0xf]
      %v1020 = vld [vmem:[%s999 + $0x50] sm:$0xf]
      %v1021 = vld [vmem:[%s999 + $0x54] sm:$0xf]
      %v1022 = vld [vmem:[%s999 + $0x58] sm:$0xf]
      %v1023 = vld [vmem:[%s999 + $0x5c] sm:$0xf]
      %v1024 = vld [vmem:[%s999 + $0x60] sm:$0xf]
      %v1025 = vld [vmem:[%s999 + $0x64] sm:$0xf]
      %v1026 = vld [vmem:[%s999 + $0x68] sm:$0xf]
      %v1027 = vld [vmem:[%s999 + $0x6c] sm:$0xf]
      %v1028 = vld [vmem:[%s999 + $0x70] sm:$0xf]
      %v1029 = vld [vmem:[%s999 + $0x74] sm:$0xf]
      %v1030 = vld [vmem:[%s999 + $0x78] sm:$0xf]
      %v1031 = vld [vmem:[%s999 + $0x7c] sm:$0xf]
      %v1032 = vld [vmem:[%s999 + $0x80] sm:$0xf]
      %v1033 = vld [vmem:[%s999 + $0x84] sm:$0xf]
      %v1034 = vld [vmem:[%s999 + $0x88] sm:$0xf]
      %v1035 = vld [vmem:[%s999 + $0x8c] sm:$0xf]
      %v1036 = vld [vmem:[%s999 + $0x90] sm:$0xf]
      %v1037 = vld [vmem:[%s999 + $0x94] sm:$0xf]
      %v1038 = vld [vmem:[%s999 + $0x98] sm:$0xf]
      %v1039 = vld [vmem:[%s999 + $0x9c] sm:$0xf]
      %v1040 = vld [vmem:[%s999 + $0xa0] sm:$0xf]
      %v1041 = vld [vmem:[%s999 + $0xa4] sm:$0xf]
      %v1042 = vld [vmem:[%s999 + $0xa8] sm:$0xf]
      %v1043 = vld [vmem:[%s999 + $0xac] sm:$0xf]
      %v1044 = vld [vmem:[%s999 + $0xb0] sm:$0xf]
      %v1045 = vld [vmem:[%s999 + $0xb4] sm:$0xf]
      %v1046 = vld [vmem:[%s999 + $0xb8] sm:$0xf]
      %v1047 = vld [vmem:[%s999 + $0xbc] sm:$0xf]
      %v1048 = vcombine.low %v986, %v990
      %v1049 = vcombine.high %v986, %v990
      %v1050 = vcombine.low %v994, %v998
      %v1051 = vcombine.high %v994, %v998
      %v1053 = vunpack.c.l.s4 1983009808
      %v1054 = vunpack.c.0.s8 %v1053
      %v1055 = vlaneseq
      %v1056 = vshrl.u32 %v1055, 7
      %v1057 = vsub.s32 %v1054, %v1056
      %v1058 = vrot.slane %v1048, %v1057
      %v1060 = vunpack.c.l.s4 1983009808
      %v1061 = vunpack.c.0.s8 %v1060
      %v1062 = vlaneseq
      %v1063 = vshrl.u32 %v1062, 7
      %v1064 = vsub.s32 %v1061, %v1063
      %v1065 = vrot.slane %v1049, %v1064
      %v1067 = vunpack.c.l.s4 1983009808
      %v1068 = vunpack.c.0.s8 %v1067
      %v1069 = vlaneseq
      %v1070 = vshrl.u32 %v1069, 7
      %v1071 = vsub.s32 %v1068, %v1070
      %v1072 = vrot.slane %v1050, %v1071
      %v1074 = vunpack.c.l.s4 1983009808
      %v1075 = vunpack.c.0.s8 %v1074
      %v1076 = vlaneseq
      %v1077 = vshrl.u32 %v1076, 7
      %v1078 = vsub.s32 %v1075, %v1077
      %v1079 = vrot.slane %v1051, %v1078
      %v1080 = vcombine.low %v1058, %v1072
      %v1081 = vcombine.high %v1058, %v1072
      %v1082 = vcombine.low %v1065, %v1079
      %v1134 = vunpack.c.l.b16 %v1000
      %v1135 = vunpack.c.l.b16 %v1001
      %v1136 = vunpack.c.l.b16 %v1002
      %v1137 = vunpack.c.l.b16 %v1003
      %v1138 = vunpack.c.l.b16 %v1004
      %v1139 = vunpack.c.l.b16 %v1005
      %v1140 = vunpack.c.l.b16 %v1006
      %v1141 = vunpack.c.l.b16 %v1007
      %v1142 = vunpack.c.l.b16 %v1008
      %v1143 = vunpack.c.l.b16 %v1009
      %v1144 = vunpack.c.l.b16 %v1010
      %v1145 = vunpack.c.l.b16 %v1011
      %v1146 = vunpack.c.l.b16 %v1012
      %v1147 = vunpack.c.l.b16 %v1013
      %v1148 = vunpack.c.l.b16 %v1014
      %v1149 = vunpack.c.l.b16 %v1015
      %v1150 = vunpack.c.l.b16 %v1016
      %v1151 = vunpack.c.l.b16 %v1017
      %v1152 = vunpack.c.l.b16 %v1018
      %v1153 = vunpack.c.l.b16 %v1019
      %v1154 = vunpack.c.l.b16 %v1020
      %v1155 = vunpack.c.l.b16 %v1021
      %v1156 = vunpack.c.l.b16 %v1022
      %v1157 = vunpack.c.l.b16 %v1023
      %v1158 = vunpack.c.l.b16 %v1024
      %v1159 = vunpack.c.l.b16 %v1025
      %v1160 = vunpack.c.l.b16 %v1026
      %v1161 = vunpack.c.l.b16 %v1027
      %v1162 = vunpack.c.l.b16 %v1028
      %v1163 = vunpack.c.l.b16 %v1029
      %v1164 = vunpack.c.l.b16 %v1030
      %v1165 = vunpack.c.l.b16 %v1031
      %v1166 = vunpack.c.l.b16 %v1032
      %v1167 = vunpack.c.l.b16 %v1033
      %v1168 = vunpack.c.l.b16 %v1034
      %v1169 = vunpack.c.l.b16 %v1035
      %v1170 = vunpack.c.l.b16 %v1036
      %v1171 = vunpack.c.l.b16 %v1037
      %v1172 = vunpack.c.l.b16 %v1038
      %v1173 = vunpack.c.l.b16 %v1039
      %v1174 = vunpack.c.l.b16 %v1040
      %v1175 = vunpack.c.l.b16 %v1041
      %v1176 = vunpack.c.l.b16 %v1042
      %v1177 = vunpack.c.l.b16 %v1043
      %v1178 = vunpack.c.l.b16 %v1044
      %v1179 = vunpack.c.l.b16 %v1045
      %v1180 = vunpack.c.l.b16 %v1046
      %v1181 = vunpack.c.l.b16 %v1047
      %v1182 = vpack.c.b16 %v1135, %v1134
      %v1183 = vpack.c.b16 %v1137, %v1136
      %v1184 = vpack.c.b16 %v1139, %v1138
      %v1185 = vpack.c.b16 %v1141, %v1140
      %v1186 = vpack.c.b16 %v1143, %v1142
      %v1187 = vpack.c.b16 %v1145, %v1144
      %v1188 = vpack.c.b16 %v1147, %v1146
      %v1189 = vpack.c.b16 %v1149, %v1148
      %v1190 = vpack.c.b16 %v1151, %v1150
      %v1191 = vpack.c.b16 %v1153, %v1152
      %v1192 = vpack.c.b16 %v1155, %v1154
      %v1193 = vpack.c.b16 %v1157, %v1156
      %v1194 = vpack.c.b16 %v1159, %v1158
      %v1195 = vpack.c.b16 %v1161, %v1160
      %v1196 = vpack.c.b16 %v1163, %v1162
      %v1197 = vpack.c.b16 %v1165, %v1164
      %v1198 = vpack.c.b16 %v1167, %v1166
      %v1199 = vpack.c.b16 %v1169, %v1168
      %v1200 = vpack.c.b16 %v1171, %v1170
      %v1201 = vpack.c.b16 %v1173, %v1172
      %v1202 = vpack.c.b16 %v1175, %v1174
      %v1203 = vpack.c.b16 %v1177, %v1176
      %v1204 = vpack.c.b16 %v1179, %v1178
      %v1205 = vpack.c.b16 %v1181, %v1180
      %1230 = vmatprep.subr.bf16.mxu0 0
      %1231 = vmatpush1.bf16.msra.mxu0 %v1182
      %1232 = vmatprep.subr.bf16.mxu0 0
      %1233 = vmatpush1.bf16.msra.mxu0 %v1183
      %1234 = vmatprep.subr.bf16.mxu0 0
      %1235 = vmatpush1.bf16.msra.mxu0 %v1184
      %1236 = vmatprep.subr.bf16.mxu0 0
      %1237 = vmatpush1.bf16.msra.mxu0 %v1185
      %1238 = vmatprep.subr.bf16.mxu0 0
      %1239 = vmatpush1.bf16.msra.mxu0 %v1186
      %1240 = vmatprep.subr.bf16.mxu0 0
      %1241 = vmatpush1.bf16.msra.mxu0 %v1187
      %1242 = vmatprep.subr.bf16.mxu0 0
      %1243 = vmatpush1.bf16.msra.mxu0 %v1188
      %1244 = vmatprep.subr.bf16.mxu0 0
      %1245 = vmatpush1.bf16.msra.mxu0 %v1189
      %1246 = vmatprep.subr.bf16.mxu0 0
      %1247 = vmatpush1.bf16.msra.mxu0 %v1190
      %1248 = vmatprep.subr.bf16.mxu0 0
      %1249 = vmatpush1.bf16.msra.mxu0 %v1191
      %1250 = vmatprep.subr.bf16.mxu0 0
      %1251 = vmatpush1.bf16.msra.mxu0 %v1192
      %1252 = vmatprep.subr.bf16.mxu0 0
      %1253 = vmatpush1.bf16.msra.mxu0 %v1193
      %1254 = vmatprep.subr.bf16.mxu0 0
      %1255 = vmatpush1.bf16.msra.mxu0 %v1194
      %1256 = vmatprep.subr.bf16.mxu0 0
      %1257 = vmatpush1.bf16.msra.mxu0 %v1195
      %1258 = vmatprep.subr.bf16.mxu0 0
      %1259 = vmatpush1.bf16.msra.mxu0 %v1196
      %1260 = vmatprep.subr.bf16.mxu0 0
      %1261 = vmatpush1.bf16.msra.mxu0 %v1197
      %1262 = vmatprep.mubr.bf16.mxu0 %v1081
      %1263 = vmatmul.mubr.bf16.gmra.mrb[0].mxu0 %v1080
      %v1264 = vpop.f32.mrb[0].mxu0
      %v1265 = vadd.f32 0.0, %v1264
      %v1266 = vpop.f32.mrb[0].mxu0
      %v1267 = vpop.f32.mrb[0].mxu0
      %v1268 = vadd.f32 0.0, %v1267
      %v1269 = vpop.f32.mrb[0].mxu0
      %1270 = vdwg.mxu0
      %1271 = vmatprep.subr.bf16.mxu0 0
      %1272 = vmatpush1.bf16.msra.mxu0 %v1198
      %1273 = vmatprep.subr.bf16.mxu0 0
      %1274 = vmatpush1.bf16.msra.mxu0 %v1199
      %1275 = vmatprep.subr.bf16.mxu0 0
      %1276 = vmatpush1.bf16.msra.mxu0 %v1200
      %1277 = vmatprep.subr.bf16.mxu0 0
      %1278 = vmatpush1.bf16.msra.mxu0 %v1201
      %1279 = vmatprep.subr.bf16.mxu0 0
      %1280 = vmatpush1.bf16.msra.mxu0 %v1202
      %1281 = vmatprep.subr.bf16.mxu0 0
      %1282 = vmatpush1.bf16.msra.mxu0 %v1203
      %1283 = vmatprep.subr.bf16.mxu0 0
      %1284 = vmatpush1.bf16.msra.mxu0 %v1204
      %1285 = vmatprep.subr.bf16.mxu0 0
      %1286 = vmatpush1.bf16.msra.mxu0 %v1205
      %1287 = vmatprep.subr.bf16.mxu0 0
      %1288 = vmatpush1.bf16.msra.mxu0 0
      %1289 = vmatprep.subr.bf16.mxu0 0
      %1290 = vmatpush1.bf16.msra.mxu0 0
      %1291 = vmatprep.subr.bf16.mxu0 0
      %1292 = vmatpush1.bf16.msra.mxu0 0
      %1293 = vmatprep.subr.bf16.mxu0 0
      %1294 = vmatpush1.bf16.msra.mxu0 0
      %1295 = vmatprep.subr.bf16.mxu0 0
      %1296 = vmatpush1.bf16.msra.mxu0 0
      %1297 = vmatprep.subr.bf16.mxu0 0
      %1298 = vmatpush1.bf16.msra.mxu0 0
      %1299 = vmatprep.subr.bf16.mxu0 0
      %1300 = vmatpush1.bf16.msra.mxu0 0
      %1301 = vmatprep.subr.bf16.mxu0 0
      %1302 = vmatpush1.bf16.msra.mxu0 0
      %1303 = vmatprep.mubr.bf16.mxu0 0
      %1304 = vmatmul.mubr.bf16.gmra.mrb[0].mxu0 %v1082
      %v1305 = vpop.f32.mrb[0].mxu0
      %v1306 = vadd.f32 %v1265, %v1305
      %v1307 = vpop.f32.mrb[0].mxu0
      %v1308 = vpop.f32.mrb[0].mxu0
      %v1309 = vadd.f32 %v1268, %v1308
      %v1310 = vpop.f32.mrb[0].mxu0
      %1311 = vdwg.mxu0
      %v1312 = vadd.f32 %v970, %v1306
      %v1313 = vadd.f32 %v973, %v1309
      %v1314 = vld [vmem:[%s2] sm:$0x1]
      %v1316 = vlaneseq
      %v1317 = vshrl.u32 %v1316, 7
      %v1318 = vsub.s32 0, %v1317
      %v1319 = vrot.slane %v1314, %v1318
      %v1321 = vadd.f32 %v1312, %v1319
      %v1322 = vadd.f32 %v1313, %v1319
      %v1325 = vcombine.high %v1321, %v1321
      %v1326 = vcombine.high %v1322, %v1322
      %v1329 = vpack.c.bf16 %v1321, %v1321
      %v1330 = vpack.c.bf16 %v1325, %v1325
      %v1331 = vpack.c.bf16 %v1322, %v1322
      %v1332 = vpack.c.bf16 %v1326, %v1326
      %1333 = vst [vmem:[%s206] sm:$0x3] %v1329
      %1334 = vst [vmem:[%s206 + $0x2] sm:$0x3] %v1330
      %1335 = vst [vmem:[%s206 + $0x4] sm:$0x3] %v1331
      %1336 = vst [vmem:[%s206 + $0x6] sm:$0x3] %v1332
      %p1337 = scmp.lt.s32.totalorder %s18, 3
      %s1338 = scalar_select %p1337, %s18, 3
      %p1339 = scmp.lt.s32.totalorder %s19, 0
      %s1340 = scalar_select %p1339, %s19, 0
      %s1341 = smul.addr %s1340, 4
      %s1342 = smul.addr %s1338, 4
      %s1343 = sadd.s32 %s1341, %s1342
      %s1344 = smul.addr %s1343, 2
      %s1345 = scalar_lea.vmem %s3, %s1344
      // Predicated region
      $region33: #{camera_features_forward.7} parent=31 // pred_check
        %p1346 = pneg %p116
      $region34: #{camera_features_forward.7} parent=31 // pred_check_branch
        %1348 = sbr.rel (%p1346) target = $region36
      $region35: #{camera_features_forward.7} parent=31 // pred_region
        _
      $region36: #{camera_features_forward.7} parent=31 // pred_fallthru
        _
    $region32: #{camera_features_forward.7} parent=5 // pred_fallthru
      _
    %p1349 = scmp.le.s32.totalorder 2, %s9
    // Predicated region
    $region37: #{camera_features_forward.7} parent=5 // pred_check
      %p1350 = pneg %p1349
    $region38: #{camera_features_forward.7} parent=5 // pred_check_branch
      %1352 = sbr.rel (%p1350) target = $region40
    $region39: #{camera_features_forward.7} parent=5 // pred_region
      %s1353 = ssub.s32 %s9, 2
      // Predicated region
      $region41: #{camera_features_forward.7} parent=39 // pred_check
        %p1354 = pneg %p122
      $region42: #{camera_features_forward.7} parent=39 // pred_check_branch
        %1356 = sbr.rel (%p1354) target = $region44
      $region43: #{camera_features_forward.7} parent=39 // pred_region
        %p1357 = scmp.lt.s32.totalorder %s20, 3
        %s1358 = scalar_select %p1357, %s20, 3
        %p1359 = scmp.lt.s32.totalorder %s21, 0
        %s1360 = scalar_select %p1359, %s21, 0
        %s1361 = smul.addr %s1360, 4
        %s1362 = smul.addr %s1358, 4
        %s1363 = sadd.s32 %s1361, %s1362
        %s1364 = smul.addr %s1363, 2
        %s1365 = scalar_lea.vmem %s3, %s1364
      $region44: #{camera_features_forward.7} parent=39 // pred_fallthru
        _
    $region40: #{camera_features_forward.7} parent=5 // pred_fallthru
      _
  $region6: #{camera_features_forward.7} parent=0 // loop_footer
    %s13 = sadd.s32 1, %s9
  $region7: #{camera_features_forward.7} parent=0 // loop_footer_branch
    %8 = sbr.rel target = $region3
  $region8: #{camera_features_forward.7} parent=0 // loop_exit
    _

// kernel: camera_features_forward.6
$region0: #{camera_features_forward.6}
  #allocation0 [shape = 'u32[]', space=smem, size = 0x4, offset = 0x4, fixed_abs, tag = 'smem constant byte address 0x4 - core index']
  #allocation1 [shape = 'u32[144,128]{1,0:T(1,128)}', space=vmem, size = 0x12000, scoped, tag = 'internal scratch']
  %s0 = inlined_call_operand.vmem [shape: bf16[4,1,10,10,128], index: 0, kind: input, shape index: {}]
  %s1 = inlined_call_operand.vmem [shape: bf16[4,1,6,10,128], index: 1, kind: input, shape index: {}]
  %s2 = inlined_call_operand.vmem [shape: bf16[128,128], index: 2, kind: input, shape index: {}]
  %s3 = inlined_call_operand.vmem [shape: bf16[128,128], index: 3, kind: input, shape index: {}]
  %s4 = inlined_call_operand.vmem [shape: bf16[3,384,128], index: 4, kind: input, shape index: {}]
  %s5 = inlined_call_operand.vmem [shape: f32[1,128], index: 5, kind: input, shape index: {}]
  %s6 = inlined_call_operand.vmem [shape: bf16[4,1,8,8,128], index: 6, kind: output, shape index: {}]
  %s7 = sld [smem:[#allocation0]]
  $region57: #{camera_features_forward.6} parent=0
    _
  %s9 = ssub.s32 1, %s7
  %s10 = scalar_select 0, %s9, %s7
  loop: start=0, step=1, limit=6
  $region2: #{camera_features_forward.6} parent=0 // loop_pre_header
    _
  $region3: #{camera_features_forward.6} parent=0 // loop_header
    %s12 = sphi 0, %s16
    %p13 = scmp.ge.s32.totalorder %s12, 6
    %s19 = sphi 0, %s31
    %s20 = sphi 0, %s27
    %s21 = sphi 0, %s19
    %s22 = sphi 0, %s20
    %s23 = sphi 0, %s21
    %s24 = sphi 0, %s22
    %s36 = sphi 0, %s38
    %s39 = sphi 0, %s36
    %s40 = sphi 0, %s39
    %s56 = sphi 0, %s40
    %s64 = sphi 0, %s66
    %s67 = sphi 0, %s64
    %s68 = sphi 0, %s67
    %s84 = sphi 0, %s68
    %s88 = sphi 0, %s88
    %s90 = sphi 0, %s88
    %s91 = sphi 0, %s90
    %s105 = sphi 0, %s91
    %s109 = sphi 0, %s109
    %s111 = sphi 0, %s109
    %s112 = sphi 0, %s111
    %s126 = sphi 0, %s112
    %s130 = sphi 0, %s130
    %s132 = sphi 0, %s130
    %s133 = sphi 0, %s132
    %s147 = sphi 0, %s133
    %s151 = sphi 0, %s151
    %s153 = sphi 0, %s151
    %s154 = sphi 0, %s153
    %s168 = sphi 0, %s154
    %s176 = sphi 0, %s178
    %s179 = sphi 0, %s176
    %s180 = sphi 0, %s179
    %s196 = sphi 0, %s180
  $region4: #{camera_features_forward.6} parent=0 // loop_header_branch
    %15 = sbr.rel (%p13) target = $region8
  $region5: #{camera_features_forward.6} parent=0 // loop_body
    %s17 = ssub.s32 %s12, 1
    %s18 = ssub.s32 %s12, 2
    %s25 = sadd.s32 1, %s20
    %p26 = scmp.ge.s32.totalorder %s25, 1
    %s27 = scalar_select %p26, 0, %s25
    %s28 = sadd.s32 1, %s19
    %s29 = scalar_select %p26, %s28, %s19
    %p30 = scmp.ge.s32.totalorder %s29, 4
    %s31 = scalar_select %p30, 0, %s29
    %s32 = ssub.s32 %s19, %s31
    %s33 = ssub.s32 %s20, %s27
    %s34 = sor.u32 %s32, %s33
    %p35 = scmp.eq.s32.totalorder %s34, 0
    %s37 = sadd.s32 %s36, 1
    %s38 = scalar_select %p35, %s36, %s37
    %p41 = pneg %p35
    %p42 = scmp.eq.s32.totalorder %s12, 3
    %p43 = por %p41, %p42
    %p44 = scmp.ne.s32.totalorder %s36, %s39
    %p45 = scmp.eq.s32.totalorder %s12, 0
    %p46 = por %p44, %p45
    %p47 = scmp.ne.s32.totalorder %s36, %s39
    %p48 = scmp.eq.s32.totalorder %s17, 3
    %p49 = por %p47, %p48
    %p50 = scmp.ne.s32.totalorder %s39, %s40
    %p51 = scmp.eq.s32.totalorder %s17, 0
    %p52 = por %p50, %p51
    %p53 = scmp.ne.s32.totalorder %s39, %s40
    %p54 = scmp.eq.s32.totalorder %s18, 3
    %p55 = por %p53, %p54
    %p57 = scmp.ne.s32.totalorder %s40, %s56
    %p58 = scmp.eq.s32.totalorder %s18, 0
    %p59 = por %p57, %p58
    %s60 = ssub.s32 %s19, %s31
    %s61 = ssub.s32 %s20, %s27
    %s62 = sor.u32 %s60, %s61
    %p63 = scmp.eq.s32.totalorder %s62, 0
    %s65 = sadd.s32 %s64, 1
    %s66 = scalar_select %p63, %s64, %s65
    %p69 = pneg %p63
    %p70 = scmp.eq.s32.totalorder %s12, 3
    %p71 = por %p69, %p70
    %p72 = scmp.ne.s32.totalorder %s64, %s67
    %p73 = scmp.eq.s32.totalorder %s12, 0
    %p74 = por %p72, %p73
    %p75 = scmp.ne.s32.totalorder %s64, %s67
    %p76 = scmp.eq.s32.totalorder %s17, 3
    %p77 = por %p75, %p76
    %p78 = scmp.ne.s32.totalorder %s67, %s68
    %p79 = scmp.eq.s32.totalorder %s17, 0
    %p80 = por %p78, %p79
    %p81 = scmp.ne.s32.totalorder %s67, %s68
    %p82 = scmp.eq.s32.totalorder %s18, 3
    %p83 = por %p81, %p82
    %p85 = scmp.ne.s32.totalorder %s68, %s84
    %p86 = scmp.eq.s32.totalorder %s18, 0
    %p87 = por %p85, %p86
    %s89 = sadd.s32 %s88, 1
    %p92 = scmp.eq.s32.totalorder %s12, 3
    %p93 = scmp.ne.s32.totalorder %s88, %s90
    %p94 = scmp.eq.s32.totalorder %s12, 0
    %p95 = por %p93, %p94
    %p96 = scmp.ne.s32.totalorder %s88, %s90
    %p97 = scmp.eq.s32.totalorder %s17, 3
    %p98 = por %p96, %p97
    %p99 = scmp.ne.s32.totalorder %s90, %s91
    %p100 = scmp.eq.s32.totalorder %s17, 0
    %p101 = por %p99, %p100
    %p102 = scmp.ne.s32.totalorder %s90, %s91
    %p103 = scmp.eq.s32.totalorder %s18, 3
    %p104 = por %p102, %p103
    %p106 = scmp.ne.s32.totalorder %s91, %s105
    %p107 = scmp.eq.s32.totalorder %s18, 0
    %p108 = por %p106, %p107
    %s110 = sadd.s32 %s109, 1
    %p113 = scmp.eq.s32.totalorder %s12, 3
    %p114 = scmp.ne.s32.totalorder %s109, %s111
    %p115 = scmp.eq.s32.totalorder %s12, 0
    %p116 = por %p114, %p115
    %p117 = scmp.ne.s32.totalorder %s109, %s111
    %p118 = scmp.eq.s32.totalorder %s17, 3
    %p119 = por %p117, %p118
    %p120 = scmp.ne.s32.totalorder %s111, %s112
    %p121 = scmp.eq.s32.totalorder %s17, 0
    %p122 = por %p120, %p121
    %p123 = scmp.ne.s32.totalorder %s111, %s112
    %p124 = scmp.eq.s32.totalorder %s18, 3
    %p125 = por %p123, %p124
    %p127 = scmp.ne.s32.totalorder %s112, %s126
    %p128 = scmp.eq.s32.totalorder %s18, 0
    %p129 = por %p127, %p128
    %s131 = sadd.s32 %s130, 1
    %p134 = scmp.eq.s32.totalorder %s12, 3
    %p135 = scmp.ne.s32.totalorder %s130, %s132
    %p136 = scmp.eq.s32.totalorder %s12, 0
    %p137 = por %p135, %p136
    %p138 = scmp.ne.s32.totalorder %s130, %s132
    %p139 = scmp.eq.s32.totalorder %s17, 3
    %p140 = por %p138, %p139
    %p141 = scmp.ne.s32.totalorder %s132, %s133
    %p142 = scmp.eq.s32.totalorder %s17, 0
    %p143 = por %p141, %p142
    %p144 = scmp.ne.s32.totalorder %s132, %s133
    %p145 = scmp.eq.s32.totalorder %s18, 3
    %p146 = por %p144, %p145
    %p148 = scmp.ne.s32.totalorder %s133, %s147
    %p149 = scmp.eq.s32.totalorder %s18, 0
    %p150 = por %p148, %p149
    %s152 = sadd.s32 %s151, 1
    %p155 = scmp.eq.s32.totalorder %s12, 3
    %p156 = scmp.ne.s32.totalorder %s151, %s153
    %p157 = scmp.eq.s32.totalorder %s12, 0
    %p158 = por %p156, %p157
    %p159 = scmp.ne.s32.totalorder %s151, %s153
    %p160 = scmp.eq.s32.totalorder %s17, 3
    %p161 = por %p159, %p160
    %p162 = scmp.ne.s32.totalorder %s153, %s154
    %p163 = scmp.eq.s32.totalorder %s17, 0
    %p164 = por %p162, %p163
    %p165 = scmp.ne.s32.totalorder %s153, %s154
    %p166 = scmp.eq.s32.totalorder %s18, 3
    %p167 = por %p165, %p166
    %p169 = scmp.ne.s32.totalorder %s154, %s168
    %p170 = scmp.eq.s32.totalorder %s18, 0
    %p171 = por %p169, %p170
    %s172 = ssub.s32 %s19, %s31
    %s173 = ssub.s32 %s20, %s27
    %s174 = sor.u32 %s172, %s173
    %p175 = scmp.eq.s32.totalorder %s174, 0
    %s177 = sadd.s32 %s176, 1
    %s178 = scalar_select %p175, %s176, %s177
    %p181 = pneg %p175
    %p182 = scmp.eq.s32.totalorder %s12, 3
    %p183 = por %p181, %p182
    %p184 = scmp.ne.s32.totalorder %s176, %s179
    %p185 = scmp.eq.s32.totalorder %s12, 0
    %p186 = por %p184, %p185
    %p187 = scmp.ne.s32.totalorder %s176, %s179
    %p188 = scmp.eq.s32.totalorder %s17, 3
    %p189 = por %p187, %p188
    %p190 = scmp.ne.s32.totalorder %s179, %s180
    %p191 = scmp.eq.s32.totalorder %s17, 0
    %p192 = por %p190, %p191
    %p193 = scmp.ne.s32.totalorder %s179, %s180
    %p194 = scmp.eq.s32.totalorder %s18, 3
    %p195 = por %p193, %p194
    %p197 = scmp.ne.s32.totalorder %s180, %s196
    %p198 = scmp.eq.s32.totalorder %s18, 0
    %p199 = por %p197, %p198
    %p200 = scmp.le.s32.totalorder 1, %s12
    %p201 = scmp.lt.s32.totalorder %s12, 5
    %p202 = pnand %p200, %p201
    %p203 = pneg %p202
    // Predicated region
    $region9: #{camera_features_forward.6} parent=5 // pred_check
      _
    $region10: #{camera_features_forward.6} parent=5 // pred_check_branch
      %205 = sbr.rel (%p202) target = $region12
    $region11: #{camera_features_forward.6} parent=5 // pred_region
      %s206 = ssub.s32 %s12, 1
      // Predicated region
      $region13: #{camera_features_forward.6} parent=11 // pred_check
        %p207 = pneg %p101
      $region14: #{camera_features_forward.6} parent=11 // pred_check_branch
        %209 = sbr.rel (%p207) target = $region16
      $region15: #{camera_features_forward.6} parent=11 // pred_region
        _
      $region16: #{camera_features_forward.6} parent=11 // pred_fallthru
        _
      // Predicated region
      $region17: #{camera_features_forward.6} parent=11 // pred_check
        %p210 = pneg %p122
      $region18: #{camera_features_forward.6} parent=11 // pred_check_branch
        %212 = sbr.rel (%p210) target = $region20
      $region19: #{camera_features_forward.6} parent=11 // pred_region
        _
      $region20: #{camera_features_forward.6} parent=11 // pred_fallthru
        _
      // Predicated region
      $region21: #{camera_features_forward.6} parent=11 // pred_check
        %p213 = pneg %p143
      $region22: #{camera_features_forward.6} parent=11 // pred_check_branch
        %215 = sbr.rel (%p213) target = $region24
      $region23: #{camera_features_forward.6} parent=11 // pred_region
        _
      $region24: #{camera_features_forward.6} parent=11 // pred_fallthru
        _
      // Predicated region
      $region25: #{camera_features_forward.6} parent=11 // pred_check
        %p216 = pneg %p164
      $region26: #{camera_features_forward.6} parent=11 // pred_check_branch
        %218 = sbr.rel (%p216) target = $region28
      $region27: #{camera_features_forward.6} parent=11 // pred_region
        _
      $region28: #{camera_features_forward.6} parent=11 // pred_fallthru
        _
    $region12: #{camera_features_forward.6} parent=5 // pred_fallthru
      _
    %p219 = scmp.lt.s32.totalorder %s12, 4
    // Predicated region
    $region29: #{camera_features_forward.6} parent=5 // pred_check
      %p220 = pneg %p219
    $region30: #{camera_features_forward.6} parent=5 // pred_check_branch
      %222 = sbr.rel (%p220) target = $region32
    $region31: #{camera_features_forward.6} parent=5 // pred_region
      // Predicated region
      $region33: #{camera_features_forward.6} parent=31 // pred_check
        %p223 = pneg %p46
      $region34: #{camera_features_forward.6} parent=31 // pred_check_branch
        %225 = sbr.rel (%p223) target = $region36
      $region35: #{camera_features_forward.6} parent=31 // pred_region
        %p226 = scmp.lt.s32.totalorder %s19, 3
        %s227 = scalar_select %p226, %s19, 3
        %p228 = scmp.lt.s32.totalorder %s20, 0
        %s229 = scalar_select %p228, %s20, 0
        %s230 = smul.addr %s229, 20
        %s231 = smul.addr %s227, 20
        %s232 = sadd.s32 %s230, %s231
        %s233 = smul.addr %s232, 4
        %s234 = scalar_lea.vmem %s0, %s233
      $region36: #{camera_features_forward.6} parent=31 // pred_fallthru
        _
      // Predicated region
      $region37: #{camera_features_forward.6} parent=31 // pred_check
        %p235 = pneg %p74
      $region38: #{camera_features_forward.6} parent=31 // pred_check_branch
        %237 = sbr.rel (%p235) target = $region40
      $region39: #{camera_features_forward.6} parent=31 // pred_region
        %p238 = scmp.lt.s32.totalorder %s19, 3
        %s239 = scalar_select %p238, %s19, 3
        %p240 = scmp.lt.s32.totalorder %s20, 0
        %s241 = scalar_select %p240, %s20, 0
        %s242 = smul.addr %s241, 12
        %s243 = smul.addr %s239, 12
        %s244 = sadd.s32 %s242, %s243
        %s245 = smul.addr %s244, 4
        %s246 = scalar_lea.vmem %s1, %s245
      $region40: #{camera_features_forward.6} parent=31 // pred_fallthru
        _
    $region32: #{camera_features_forward.6} parent=5 // pred_fallthru
      _
    %p247 = scmp.le.s32.totalorder 1, %s12
    %p248 = scmp.lt.s32.totalorder %s12, 5
    %p249 = pnand %p247, %p248
    %p250 = pneg %p249
    // Predicated region
    $region41: #{camera_features_forward.6} parent=5 // pred_check
      _
    $region42: #{camera_features_forward.6} parent=5 // pred_check_branch
      %252 = sbr.rel (%p249) target = $region44
    $region43: #{camera_features_forward.6} parent=5 // pred_region
      %s253 = ssub.s32 %s12, 1
      %p254 = scmp.lt.s32.totalorder %s21, 3
      %s255 = scalar_select %p254, %s21, 3
      %p256 = scmp.lt.s32.totalorder %s22, 0
      %s257 = scalar_select %p256, %s22, 0
      %s258 = smul.addr %s257, 20
      %s259 = smul.addr %s255, 20
      %s260 = sadd.s32 %s258, %s259
      %s261 = smul.addr %s260, 4
      %s262 = scalar_lea.vmem %s0, %s261
      %p263 = pneg %p52
      %p264 = pneg %p49
      %p265 = scmp.lt.s32.totalorder %s21, 3
      %s266 = scalar_select %p265, %s21, 3
      %p267 = scmp.lt.s32.totalorder %s22, 0
      %s268 = scalar_select %p267, %s22, 0
      %s269 = smul.addr %s268, 12
      %s270 = smul.addr %s266, 12
      %s271 = sadd.s32 %s269, %s270
      %s272 = smul.addr %s271, 4
      %s273 = scalar_lea.vmem %s1, %s272
      %p274 = pneg %p80
      %p275 = pneg %p77
      %p276 = pneg %p101
      %p277 = pneg %p98
      %p278 = pneg %p122
      %p279 = pneg %p119
      %p280 = pneg %p143
      %p281 = pneg %p140
      %p282 = pneg %p164
      %p283 = pneg %p161
      %p284 = pneg %p192
      %p285 = pneg %p189
      %p286 = scmp.lt.s32.totalorder %s21, 3
      %s287 = scalar_select %p286, %s21, 3
      %p288 = scmp.lt.s32.totalorder %s22, 0
      %s289 = scalar_select %p288, %s22, 0
      %s290 = smul.addr %s289, 8
      %s291 = smul.addr %s287, 8
      %s292 = sadd.s32 %s290, %s291
      %s293 = smul.addr %s292, 4
      %s294 = scalar_lea.vmem %s6, %s293
      %p295 = scmp.lt.s32.totalorder %s21, 3
      %s296 = scalar_select %p295, %s21, 3
      %p297 = scmp.lt.s32.totalorder %s22, 0
      %s298 = scalar_select %p297, %s22, 0
      %s299 = smul.addr %s298, 20
      %s300 = smul.addr %s296, 20
      %s301 = sadd.s32 %s299, %s300
      %s302 = smul.addr %s301, 4
      %s303 = scalar_lea.vmem %s0, %s302
      %p304 = scmp.lt.s32.totalorder %s21, 3
      %s305 = scalar_select %p304, %s21, 3
      %p306 = scmp.lt.s32.totalorder %s22, 0
      %s307 = scalar_select %p306, %s22, 0
      %s308 = smul.addr %s307, 12
      %s309 = smul.addr %s305, 12
      %s310 = sadd.s32 %s308, %s309
      %s311 = smul.addr %s310, 4
      %s312 = scalar_lea.vmem %s1, %s311
      %p313 = scmp.lt.s32.totalorder %s21, 3
      %s314 = scalar_select %p313, %s21, 3
      %p315 = scmp.lt.s32.totalorder %s22, 0
      %s316 = scalar_select %p315, %s22, 0
      %s317 = smul.addr %s316, 8
      %s318 = smul.addr %s314, 8
      %s319 = sadd.s32 %s317, %s318
      %s320 = smul.addr %s319, 4
      %s321 = scalar_lea.vmem %s6, %s320
      %v323 = vld [vmem:[%s303] sm:$0xf]
      %v324 = vld [vmem:[%s303 + $0x4] sm:$0x1]
      %v325 = vld [vmem:[%s303 + $0x8] sm:$0xf]
      %v326 = vld [vmem:[%s303 + $0xc] sm:$0x1]
      %v327 = vld [vmem:[%s303 + $0x10] sm:$0xf]
      %v328 = vld [vmem:[%s303 + $0x14] sm:$0x1]
      %v329 = vld [vmem:[%s303 + $0x18] sm:$0xf]
      %v330 = vld [vmem:[%s303 + $0x1c] sm:$0x1]
      %v331 = vld [vmem:[%s303 + $0x20] sm:$0xf]
      %v332 = vld [vmem:[%s303 + $0x24] sm:$0x1]
      %v333 = vld [vmem:[%s303 + $0x28] sm:$0xf]
      %v334 = vld [vmem:[%s303 + $0x2c] sm:$0x1]
      %v335 = vld [vmem:[%s303 + $0x30] sm:$0xf]
      %v336 = vld [vmem:[%s303 + $0x34] sm:$0x1]
      %v337 = vld [vmem:[%s303 + $0x38] sm:$0xf]
      %v338 = vld [vmem:[%s303 + $0x3c] sm:$0x1]
      %v339 = vld [vmem:[%s303 + $0x40] sm:$0xf]
      %v340 = vld [vmem:[%s303 + $0x44] sm:$0x1]
      %v341 = vld [vmem:[%s303 + $0x48] sm:$0xf]
      %v342 = vld [vmem:[%s303 + $0x4c] sm:$0x1]
      %v364 = vunpack.c.l.s4 1966171168
      %v365 = vunpack.c.0.s8 %v364
      %v366 = vlaneseq
      %v367 = vshrl.u32 %v366, 7
      %v368 = vsub.s32 %v365, %v367
      %v369 = vrot.slane %v323, %v368
      %v370 = vcombine.high %v369, %v369
      %v372 = vunpack.c.l.s4 1966171168
      %v373 = vunpack.c.0.s8 %v372
      %v374 = vlaneseq
      %v375 = vshrl.u32 %v374, 7
      %v376 = vsub.s32 %v373, %v375
      %v377 = vrot.slane %v369, %v376
      %v379 = vunpack.c.l.s4 1966171168
      %v380 = vunpack.c.0.s8 %v379
      %v381 = vlaneseq
      %v382 = vshrl.u32 %v381, 7
      %v383 = vsub.s32 %v380, %v382
      %v384 = vrot.slane %v370, %v383
      %v385 = vcombine.high %v377, %v377
      %v386 = vcombine.high %v384, %v384
      %v388 = vunpack.c.l.s4 1966171168
      %v389 = vunpack.c.0.s8 %v388
      %v390 = vlaneseq
      %v391 = vshrl.u32 %v390, 7
      %v392 = vsub.s32 %v389, %v391
      %v393 = vrot.slane %v324, %v392
      %v395 = vunpack.c.l.s4 1966171168
      %v396 = vunpack.c.0.s8 %v395
      %v397 = vlaneseq
      %v398 = vshrl.u32 %v397, 7
      %v399 = vsub.s32 %v396, %v398
      %v400 = vrot.slane %v393, %v399
      %v402 = vunpack.c.l.s4 1966171168
      %v403 = vunpack.c.0.s8 %v402
      %v404 = vlaneseq
      %v405 = vshrl.u32 %v404, 7
      %v406 = vsub.s32 %v403, %v405
      %v407 = vrot.slane %v325, %v406
      %v408 = vcombine.high %v407, %v407
      %v410 = vunpack.c.l.s4 1966171168
      %v411 = vunpack.c.0.s8 %v410
      %v412 = vlaneseq
      %v413 = vshrl.u32 %v412, 7
      %v414 = vsub.s32 %v411, %v413
      %v415 = vrot.slane %v407, %v414
      %v417 = vunpack.c.l.s4 1966171168
      %v418 = vunpack.c.0.s8 %v417
      %v419 = vlaneseq
      %v420 = vshrl.u32 %v419, 7
      %v421 = vsub.s32 %v418, %v420
      %v422 = vrot.slane %v408, %v421
      %v423 = vcombine.high %v415, %v415
      %v424 = vcombine.high %v422, %v422
      %v426 = vunpack.c.l.s4 1966171168
      %v427 = vunpack.c.0.s8 %v426
      %v428 = vlaneseq
      %v429 = vshrl.u32 %v428, 7
      %v430 = vsub.s32 %v427, %v429
      %v431 = vrot.slane %v326, %v430
      %v433 = vunpack.c.l.s4 1966171168
      %v434 = vunpack.c.0.s8 %v433
      %v435 = vlaneseq
      %v436 = vshrl.u32 %v435, 7
      %v437 = vsub.s32 %v434, %v436
      %v438 = vrot.slane %v431, %v437
      %v440 = vunpack.c.l.s4 1966171168
      %v441 = vunpack.c.0.s8 %v440
      %v442 = vlaneseq
      %v443 = vshrl.u32 %v442, 7
      %v444 = vsub.s32 %v441, %v443
      %v445 = vrot.slane %v327, %v444
      %v446 = vcombine.high %v445, %v445
      %v448 = vunpack.c.l.s4 1966171168
      %v449 = vunpack.c.0.s8 %v448
      %v450 = vlaneseq
      %v451 = vshrl.u32 %v450, 7
      %v452 = vsub.s32 %v449, %v451
      %v453 = vrot.slane %v445, %v452
      %v455 = vunpack.c.l.s4 1966171168
      %v456 = vunpack.c.0.s8 %v455
      %v457 = vlaneseq
      %v458 = vshrl.u32 %v457, 7
      %v459 = vsub.s32 %v456, %v458
      %v460 = vrot.slane %v446, %v459
      %v461 = vcombine.high %v453, %v453
      %v462 = vcombine.high %v460, %v460
      %v464 = vunpack.c.l.s4 1966171168
      %v465 = vunpack.c.0.s8 %v464
      %v466 = vlaneseq
      %v467 = vshrl.u32 %v466, 7
      %v468 = vsub.s32 %v465, %v467
      %v469 = vrot.slane %v328, %v468
      %v471 = vunpack.c.l.s4 1966171168
      %v472 = vunpack.c.0.s8 %v471
      %v473 = vlaneseq
      %v474 = vshrl.u32 %v473, 7
      %v475 = vsub.s32 %v472, %v474
      %v476 = vrot.slane %v469, %v475
      %v478 = vunpack.c.l.s4 1966171168
      %v479 = vunpack.c.0.s8 %v478
      %v480 = vlaneseq
      %v481 = vshrl.u32 %v480, 7
      %v482 = vsub.s32 %v479, %v481
      %v483 = vrot.slane %v329, %v482
      %v484 = vcombine.high %v483, %v483
      %v486 = vunpack.c.l.s4 1966171168
      %v487 = vunpack.c.0.s8 %v486
      %v488 = vlaneseq
      %v489 = vshrl.u32 %v488, 7
      %v490 = vsub.s32 %v487, %v489
      %v491 = vrot.slane %v483, %v490
      %v493 = vunpack.c.l.s4 1966171168
      %v494 = vunpack.c.0.s8 %v493
      %v495 = vlaneseq
      %v496 = vshrl.u32 %v495, 7
      %v497 = vsub.s32 %v494, %v496
      %v498 = vrot.slane %v484, %v497
      %v499 = vcombine.high %v491, %v491
      %v500 = vcombine.high %v498, %v498
      %v502 = vunpack.c.l.s4 1966171168
      %v503 = vunpack.c.0.s8 %v502
      %v504 = vlaneseq
      %v505 = vshrl.u32 %v504, 7
      %v506 = vsub.s32 %v503, %v505
      %v507 = vrot.slane %v330, %v506
      %v509 = vunpack.c.l.s4 1966171168
      %v510 = vunpack.c.0.s8 %v509
      %v511 = vlaneseq
      %v512 = vshrl.u32 %v511, 7
      %v513 = vsub.s32 %v510, %v512
      %v514 = vrot.slane %v507, %v513
      %v516 = vunpack.c.l.s4 1966171168
      %v517 = vunpack.c.0.s8 %v516
      %v518 = vlaneseq
      %v519 = vshrl.u32 %v518, 7
      %v520 = vsub.s32 %v517, %v519
      %v521 = vrot.slane %v331, %v520
      %v522 = vcombine.high %v521, %v521
      %v524 = vunpack.c.l.s4 1966171168
      %v525 = vunpack.c.0.s8 %v524
      %v526 = vlaneseq
      %v527 = vshrl.u32 %v526, 7
      %v528 = vsub.s32 %v525, %v527
      %v529 = vrot.slane %v521, %v528
      %v531 = vunpack.c.l.s4 1966171168
      %v532 = vunpack.c.0.s8 %v531
      %v533 = vlaneseq
      %v534 = vshrl.u32 %v533, 7
      %v535 = vsub.s32 %v532, %v534
      %v536 = vrot.slane %v522, %v535
      %v537 = vcombine.high %v529, %v529
      %v538 = vcombine.high %v536, %v536
      %v540 = vunpack.c.l.s4 1966171168
      %v541 = vunpack.c.0.s8 %v540
      %v542 = vlaneseq
      %v543 = vshrl.u32 %v542, 7
      %v544 = vsub.s32 %v541, %v543
      %v545 = vrot.slane %v332, %v544
      %v547 = vunpack.c.l.s4 1966171168
      %v548 = vunpack.c.0.s8 %v547
      %v549 = vlaneseq
      %v550 = vshrl.u32 %v549, 7
      %v551 = vsub.s32 %v548, %v550
      %v552 = vrot.slane %v545, %v551
      %v554 = vunpack.c.l.s4 1966171168
      %v555 = vunpack.c.0.s8 %v554
      %v556 = vlaneseq
      %v557 = vshrl.u32 %v556, 7
      %v558 = vsub.s32 %v555, %v557
      %v559 = vrot.slane %v333, %v558
      %v560 = vcombine.high %v559, %v559
      %v562 = vunpack.c.l.s4 1966171168
      %v563 = vunpack.c.0.s8 %v562
      %v564 = vlaneseq
      %v565 = vshrl.u32 %v564, 7
      %v566 = vsub.s32 %v563, %v565
      %v567 = vrot.slane %v559, %v566
      %v569 = vunpack.c.l.s4 1966171168
      %v570 = vunpack.c.0.s8 %v569
      %v571 = vlaneseq
      %v572 = vshrl.u32 %v571, 7
      %v573 = vsub.s32 %v570, %v572
      %v574 = vrot.slane %v560, %v573
      %v575 = vcombine.high %v567, %v567
      %v576 = vcombine.high %v574, %v574
      %v578 = vunpack.c.l.s4 1966171168
      %v579 = vunpack.c.0.s8 %v578
      %v580 = vlaneseq
      %v581 = vshrl.u32 %v580, 7
      %v582 = vsub.s32 %v579, %v581
      %v583 = vrot.slane %v334, %v582
      %v585 = vunpack.c.l.s4 1966171168
      %v586 = vunpack.c.0.s8 %v585
      %v587 = vlaneseq
      %v588 = vshrl.u32 %v587, 7
      %v589 = vsub.s32 %v586, %v588
      %v590 = vrot.slane %v583, %v589
      %v592 = vunpack.c.l.s4 1966171168
      %v593 = vunpack.c.0.s8 %v592
      %v594 = vlaneseq
      %v595 = vshrl.u32 %v594, 7
      %v596 = vsub.s32 %v593, %v595
      %v597 = vrot.slane %v335, %v596
      %v598 = vcombine.high %v597, %v597
      %v600 = vunpack.c.l.s4 1966171168
      %v601 = vunpack.c.0.s8 %v600
      %v602 = vlaneseq
      %v603 = vshrl.u32 %v602, 7
      %v604 = vsub.s32 %v601, %v603
      %v605 = vrot.slane %v597, %v604
      %v607 = vunpack.c.l.s4 1966171168
      %v608 = vunpack.c.0.s8 %v607
      %v609 = vlaneseq
      %v610 = vshrl.u32 %v609, 7
      %v611 = vsub.s32 %v608, %v610
      %v612 = vrot.slane %v598, %v611
      %v613 = vcombine.high %v605, %v605
      %v614 = vcombine.high %v612, %v612
      %v616 = vunpack.c.l.s4 1966171168
      %v617 = vunpack.c.0.s8 %v616
      %v618 = vlaneseq
      %v619 = vshrl.u32 %v618, 7
      %v620 = vsub.s32 %v617, %v619
      %v621 = vrot.slane %v336, %v620
      %v623 = vunpack.c.l.s4 1966171168
      %v624 = vunpack.c.0.s8 %v623
      %v625 = vlaneseq
      %v626 = vshrl.u32 %v625, 7
      %v627 = vsub.s32 %v624, %v626
      %v628 = vrot.slane %v621, %v627
      %v630 = vunpack.c.l.s4 1966171168
      %v631 = vunpack.c.0.s8 %v630
      %v632 = vlaneseq
      %v633 = vshrl.u32 %v632, 7
      %v634 = vsub.s32 %v631, %v633
      %v635 = vrot.slane %v337, %v634
      %v636 = vcombine.high %v635, %v635
      %v638 = vunpack.c.l.s4 1966171168
      %v639 = vunpack.c.0.s8 %v638
      %v640 = vlaneseq
      %v641 = vshrl.u32 %v640, 7
      %v642 = vsub.s32 %v639, %v641
      %v643 = vrot.slane %v635, %v642
      %v645 = vunpack.c.l.s4 1966171168
      %v646 = vunpack.c.0.s8 %v645
      %v647 = vlaneseq
      %v648 = vshrl.u32 %v647, 7
      %v649 = vsub.s32 %v646, %v648
      %v650 = vrot.slane %v636, %v649
      %v651 = vcombine.high %v643, %v643
      %v652 = vcombine.high %v650, %v650
      %v654 = vunpack.c.l.s4 1966171168
      %v655 = vunpack.c.0.s8 %v654
      %v656 = vlaneseq
      %v657 = vshrl.u32 %v656, 7
      %v658 = vsub.s32 %v655, %v657
      %v659 = vrot.slane %v338, %v658
      %v661 = vunpack.c.l.s4 1966171168
      %v662 = vunpack.c.0.s8 %v661
      %v663 = vlaneseq
      %v664 = vshrl.u32 %v663, 7
      %v665 = vsub.s32 %v662, %v664
      %v666 = vrot.slane %v659, %v665
      %v668 = vunpack.c.l.s4 1966171168
      %v669 = vunpack.c.0.s8 %v668
      %v670 = vlaneseq
      %v671 = vshrl.u32 %v670, 7
      %v672 = vsub.s32 %v669, %v671
      %v673 = vrot.slane %v339, %v672
      %v674 = vcombine.high %v673, %v673
      %v676 = vunpack.c.l.s4 1966171168
      %v677 = vunpack.c.0.s8 %v676
      %v678 = vlaneseq
      %v679 = vshrl.u32 %v678, 7
      %v680 = vsub.s32 %v677, %v679
      %v681 = vrot.slane %v673, %v680
      %v683 = vunpack.c.l.s4 1966171168
      %v684 = vunpack.c.0.s8 %v683
      %v685 = vlaneseq
      %v686 = vshrl.u32 %v685, 7
      %v687 = vsub.s32 %v684, %v686
      %v688 = vrot.slane %v674, %v687
      %v689 = vcombine.high %v681, %v681
      %v690 = vcombine.high %v688, %v688
      %v692 = vunpack.c.l.s4 1966171168
      %v693 = vunpack.c.0.s8 %v692
      %v694 = vlaneseq
      %v695 = vshrl.u32 %v694, 7
      %v696 = vsub.s32 %v693, %v695
      %v697 = vrot.slane %v340, %v696
      %v699 = vunpack.c.l.s4 1966171168
      %v700 = vunpack.c.0.s8 %v699
      %v701 = vlaneseq
      %v702 = vshrl.u32 %v701, 7
      %v703 = vsub.s32 %v700, %v702
      %v704 = vrot.slane %v697, %v703
      %v706 = vunpack.c.l.s4 1966171168
      %v707 = vunpack.c.0.s8 %v706
      %v708 = vlaneseq
      %v709 = vshrl.u32 %v708, 7
      %v710 = vsub.s32 %v707, %v709
      %v711 = vrot.slane %v341, %v710
      %v712 = vcombine.high %v711, %v711
      %v714 = vunpack.c.l.s4 1966171168
      %v715 = vunpack.c.0.s8 %v714
      %v716 = vlaneseq
      %v717 = vshrl.u32 %v716, 7
      %v718 = vsub.s32 %v715, %v717
      %v719 = vrot.slane %v711, %v718
      %v721 = vunpack.c.l.s4 1966171168
      %v722 = vunpack.c.0.s8 %v721
      %v723 = vlaneseq
      %v724 = vshrl.u32 %v723, 7
      %v725 = vsub.s32 %v722, %v724
      %v726 = vrot.slane %v712, %v725
      %v727 = vcombine.high %v719, %v719
      %v728 = vcombine.high %v726, %v726
      %v730 = vunpack.c.l.s4 1966171168
      %v731 = vunpack.c.0.s8 %v730
      %v732 = vlaneseq
      %v733 = vshrl.u32 %v732, 7
      %v734 = vsub.s32 %v731, %v733
      %v735 = vrot.slane %v342, %v734
      %v737 = vunpack.c.l.s4 1966171168
      %v738 = vunpack.c.0.s8 %v737
      %v739 = vlaneseq
      %v740 = vshrl.u32 %v739, 7
      %v741 = vsub.s32 %v738, %v740
      %v742 = vrot.slane %v735, %v741
      %v743 = vld [vmem:[%s2] sm:$0xf]
      %v744 = vld [vmem:[%s2 + $0x4] sm:$0xf]
      %v745 = vld [vmem:[%s2 + $0x8] sm:$0xf]
      %v746 = vld [vmem:[%s2 + $0xc] sm:$0xf]
      %v747 = vld [vmem:[%s2 + $0x10] sm:$0xf]
      %v748 = vld [vmem:[%s2 + $0x14] sm:$0xf]
      %v749 = vld [vmem:[%s2 + $0x18] sm:$0xf]
      %v750 = vld [vmem:[%s2 + $0x1c] sm:$0xf]
      %v751 = vld [vmem:[%s2 + $0x20] sm:$0xf]
      %v752 = vld [vmem:[%s2 + $0x24] sm:$0xf]
      %v753 = vld [vmem:[%s2 + $0x28] sm:$0xf]
      %v754 = vld [vmem:[%s2 + $0x2c] sm:$0xf]
      %v755 = vld [vmem:[%s2 + $0x30] sm:$0xf]
      %v756 = vld [vmem:[%s2 + $0x34] sm:$0xf]
      %v757 = vld [vmem:[%s2 + $0x38] sm:$0xf]
      %v758 = vld [vmem:[%s2 + $0x3c] sm:$0xf]
      %v759 = vcombine.low %v377, %v384
      %v760 = vcombine.low %v385, %v386
      %v761 = vcombine.low %v400, %v415
      %v762 = vcombine.low %v422, %v423
      %v764 = vunpack.c.l.s4 1966171168
      %v765 = vunpack.c.0.s8 %v764
      %v766 = vlaneseq
      %v767 = vshrl.u32 %v766, 7
      %v768 = vsub.s32 %v765, %v767
      %v769 = vrot.slane %v759, %v768
      %v771 = vunpack.c.l.s4 1966171168
      %v772 = vunpack.c.0.s8 %v771
      %v773 = vlaneseq
      %v774 = vshrl.u32 %v773, 7
      %v775 = vsub.s32 %v772, %v774
      %v776 = vrot.slane %v760, %v775
      %v778 = vunpack.c.l.s4 1966171168
      %v779 = vunpack.c.0.s8 %v778
      %v780 = vlaneseq
      %v781 = vshrl.u32 %v780, 7
      %v782 = vsub.s32 %v779, %v781
      %v783 = vrot.slane %v761, %v782
      %v785 = vunpack.c.l.s4 1966171168
      %v786 = vunpack.c.0.s8 %v785
      %v787 = vlaneseq
      %v788 = vshrl.u32 %v787, 7
      %v789 = vsub.s32 %v786, %v788
      %v790 = vrot.slane %v762, %v789
      %v791 = vcombine.low %v769, %v776
      %v792 = vcombine.low %v783, %v790
      %v794 = vunpack.c.l.s4 1966171168
      %v795 = vunpack.c.0.s8 %v794
      %v796 = vlaneseq
      %v797 = vshrl.u32 %v796, 7
      %v798 = vsub.s32 %v795, %v797
      %v799 = vrot.slane %v791, %v798
      %v801 = vunpack.c.l.s4 1966171168
      %v802 = vunpack.c.0.s8 %v801
      %v803 = vlaneseq
      %v804 = vshrl.u32 %v803, 7
      %v805 = vsub.s32 %v802, %v804
      %v806 = vrot.slane %v792, %v805
      %v807 = vcombine.low %v799, %v806
      %v808 = vcombine.low %v424, %v438
      %v809 = vcombine.low %v453, %v460
      %v810 = vcombine.low %v461, %v462
      %v811 = vcombine.low %v476, %v491
      %v813 = vunpack.c.l.s4 1966171168
      %v814 = vunpack.c.0.s8 %v813
      %v815 = vlaneseq
      %v816 = vshrl.u32 %v815, 7
      %v817 = vsub.s32 %v814, %v816
      %v818 = vrot.slane %v808, %v817
      %v820 = vunpack.c.l.s4 1966171168
      %v821 = vunpack.c.0.s8 %v820
      %v822 = vlaneseq
      %v823 = vshrl.u32 %v822, 7
      %v824 = vsub.s32 %v821, %v823
      %v825 = vrot.slane %v809, %v824
      %v827 = vunpack.c.l.s4 1966171168
      %v828 = vunpack.c.0.s8 %v827
      %v829 = vlaneseq
      %v830 = vshrl.u32 %v829, 7
      %v831 = vsub.s32 %v828, %v830
      %v832 = vrot.slane %v810, %v831
      %v834 = vunpack.c.l.s4 1966171168
      %v835 = vunpack.c.0.s8 %v834
      %v836 = vlaneseq
      %v837 = vshrl.u32 %v836, 7
      %v838 = vsub.s32 %v835, %v837
      %v839 = vrot.slane %v811, %v838
      %v840 = vcombine.low %v818, %v825
      %v841 = vcombine.low %v832, %v839
      %v843 = vunpack.c.l.s4 1966171168
      %v844 = vunpack.c.0.s8 %v843
      %v845 = vlaneseq
      %v846 = vshrl.u32 %v845, 7
      %v847 = vsub.s32 %v844, %v846
      %v848 = vrot.slane %v840, %v847
      %v850 = vunpack.c.l.s4 1966171168
      %v851 = vunpack.c.0.s8 %v850
      %v852 = vlaneseq
      %v853 = vshrl.u32 %v852, 7
      %v854 = vsub.s32 %v851, %v853
      %v855 = vrot.slane %v841, %v854
      %v856 = vcombine.low %v848, %v855
      %v857 = vcombine.low %v498, %v499
      %v858 = vcombine.low %v500, %v514
      %v859 = vcombine.low %v529, %v536
      %v860 = vcombine.low %v537, %v538
      %v862 = vunpack.c.l.s4 1966171168
      %v863 = vunpack.c.0.s8 %v862
      %v864 = vlaneseq
      %v865 = vshrl.u32 %v864, 7
      %v866 = vsub.s32 %v863, %v865
      %v867 = vrot.slane %v857, %v866
      %v869 = vunpack.c.l.s4 1966171168
      %v870 = vunpack.c.0.s8 %v869
      %v871 = vlaneseq
      %v872 = vshrl.u32 %v871, 7
      %v873 = vsub.s32 %v870, %v872
      %v874 = vrot.slane %v858, %v873
      %v876 = vunpack.c.l.s4 1966171168
      %v877 = vunpack.c.0.s8 %v876
      %v878 = vlaneseq
      %v879 = vshrl.u32 %v878, 7
      %v880 = vsub.s32 %v877, %v879
      %v881 = vrot.slane %v859, %v880
      %v883 = vunpack.c.l.s4 1966171168
      %v884 = vunpack.c.0.s8 %v883
      %v885 = vlaneseq
      %v886 = vshrl.u32 %v885, 7
      %v887 = vsub.s32 %v884, %v886
      %v888 = vrot.slane %v860, %v887
      %v889 = vcombine.low %v867, %v874
      %v890 = vcombine.low %v881, %v888
      %v892 = vunpack.c.l.s4 1966171168
      %v893 = vunpack.c.0.s8 %v892
      %v894 = vlaneseq
      %v895 = vshrl.u32 %v894, 7
      %v896 = vsub.s32 %v893, %v895
      %v897 = vrot.slane %v889, %v896
      %v899 = vunpack.c.l.s4 1966171168
      %v900 = vunpack.c.0.s8 %v899
      %v901 = vlaneseq
      %v902 = vshrl.u32 %v901, 7
      %v903 = vsub.s32 %v900, %v902
      %v904 = vrot.slane %v890, %v903
      %v905 = vcombine.low %v897, %v904
      %v906 = vcombine.low %v552, %v567
      %v907 = vcombine.low %v574, %v575
      %v908 = vcombine.low %v576, %v590
      %v909 = vcombine.low %v605, %v612
      %v911 = vunpack.c.l.s4 1966171168
      %v912 = vunpack.c.0.s8 %v911
      %v913 = vlaneseq
      %v914 = vshrl.u32 %v913, 7
      %v915 = vsub.s32 %v912, %v914
      %v916 = vrot.slane %v906, %v915
      %v918 = vunpack.c.l.s4 1966171168
      %v919 = vunpack.c.0.s8 %v918
      %v920 = vlaneseq
      %v921 = vshrl.u32 %v920, 7
      %v922 = vsub.s32 %v919, %v921
      %v923 = vrot.slane %v907, %v922
      %v925 = vunpack.c.l.s4 1966171168
      %v926 = vunpack.c.0.s8 %v925
      %v927 = vlaneseq
      %v928 = vshrl.u32 %v927, 7
      %v929 = vsub.s32 %v926, %v928
      %v930 = vrot.slane %v908, %v929
      %v932 = vunpack.c.l.s4 1966171168
      %v933 = vunpack.c.0.s8 %v932
      %v934 = vlaneseq
      %v935 = vshrl.u32 %v934, 7
      %v936 = vsub.s32 %v933, %v935
      %v937 = vrot.slane %v909, %v936
      %v938 = vcombine.low %v916, %v923
      %v939 = vcombine.low %v930, %v937
      %v941 = vunpack.c.l.s4 1966171168
      %v942 = vunpack.c.0.s8 %v941
      %v943 = vlaneseq
      %v944 = vshrl.u32 %v943, 7
      %v945 = vsub.s32 %v942, %v944
      %v946 = vrot.slane %v938, %v945
      %v948 = vunpack.c.l.s4 1966171168
      %v949 = vunpack.c.0.s8 %v948
      %v950 = vlaneseq
      %v951 = vshrl.u32 %v950, 7
      %v952 = vsub.s32 %v949, %v951
      %v953 = vrot.slane %v939, %v952
      %v954 = vcombine.low %v946, %v953
      %v955 = vcombine.low %v613, %v614
      %v956 = vcombine.low %v628, %v643
      %v957 = vcombine.low %v650, %v651
      %v958 = vcombine.low %v652, %v666
      %v960 = vunpack.c.l.s4 1966171168
      %v961 = vunpack.c.0.s8 %v960
      %v962 = vlaneseq
      %v963 = vshrl.u32 %v962, 7
      %v964 = vsub.s32 %v961, %v963
      %v965 = vrot.slane %v955, %v964
      %v967 = vunpack.c.l.s4 1966171168
      %v968 = vunpack.c.0.s8 %v967
      %v969 = vlaneseq
      %v970 = vshrl.u32 %v969, 7
      %v971 = vsub.s32 %v968, %v970
      %v972 = vrot.slane %v956, %v971
      %v974 = vunpack.c.l.s4 1966171168
      %v975 = vunpack.c.0.s8 %v974
      %v976 = vlaneseq
      %v977 = vshrl.u32 %v976, 7
      %v978 = vsub.s32 %v975, %v977
      %v979 = vrot.slane %v957, %v978
      %v981 = vunpack.c.l.s4 1966171168
      %v982 = vunpack.c.0.s8 %v981
      %v983 = vlaneseq
      %v984 = vshrl.u32 %v983, 7
      %v985 = vsub.s32 %v982, %v984
      %v986 = vrot.slane %v958, %v985
      %v987 = vcombine.low %v965, %v972
      %v988 = vcombine.low %v979, %v986
      %v990 = vunpack.c.l.s4 1966171168
      %v991 = vunpack.c.0.s8 %v990
      %v992 = vlaneseq
      %v993 = vshrl.u32 %v992, 7
      %v994 = vsub.s32 %v991, %v993
      %v995 = vrot.slane %v987, %v994
      %v997 = vunpack.c.l.s4 1966171168
      %v998 = vunpack.c.0.s8 %v997
      %v999 = vlaneseq
      %v1000 = vshrl.u32 %v999, 7
      %v1001 = vsub.s32 %v998, %v1000
      %v1002 = vrot.slane %v988, %v1001
      %v1003 = vcombine.low %v995, %v1002
      %v1004 = vcombine.low %v681, %v688
      %v1005 = vcombine.low %v689, %v690
      %v1006 = vcombine.low %v704, %v719
      %v1007 = vcombine.low %v726, %v727
      %v1009 = vunpack.c.l.s4 1966171168
      %v1010 = vunpack.c.0.s8 %v1009
      %v1011 = vlaneseq
      %v1012 = vshrl.u32 %v1011, 7
      %v1013 = vsub.s32 %v1010, %v1012
      %v1014 = vrot.slane %v1004, %v1013
      %v1016 = vunpack.c.l.s4 1966171168
      %v1017 = vunpack.c.0.s8 %v1016
      %v1018 = vlaneseq
      %v1019 = vshrl.u32 %v1018, 7
      %v1020 = vsub.s32 %v1017, %v1019
      %v1021 = vrot.slane %v1005, %v1020
      %v1023 = vunpack.c.l.s4 1966171168
      %v1024 = vunpack.c.0.s8 %v1023
      %v1025 = vlaneseq
      %v1026 = vshrl.u32 %v1025, 7
      %v1027 = vsub.s32 %v1024, %v1026
      %v1028 = vrot.slane %v1006, %v1027
      %v1030 = vunpack.c.l.s4 1966171168
      %v1031 = vunpack.c.0.s8 %v1030
      %v1032 = vlaneseq
      %v1033 = vshrl.u32 %v1032, 7
      %v1034 = vsub.s32 %v1031, %v1033
      %v1035 = vrot.slane %v1007, %v1034
      %v1036 = vcombine.low %v1014, %v1021
      %v1037 = vcombine.low %v1028, %v1035
      %v1039 = vunpack.c.l.s4 1966171168
      %v1040 = vunpack.c.0.s8 %v1039
      %v1041 = vlaneseq
      %v1042 = vshrl.u32 %v1041, 7
      %v1043 = vsub.s32 %v1040, %v1042
      %v1044 = vrot.slane %v1036, %v1043
      %v1046 = vunpack.c.l.s4 1966171168
      %v1047 = vunpack.c.0.s8 %v1046
      %v1048 = vlaneseq
      %v1049 = vshrl.u32 %v1048, 7
      %v1050 = vsub.s32 %v1047, %v1049
      %v1051 = vrot.slane %v1037, %v1050
      %v1052 = vcombine.low %v1044, %v1051
      %v1053 = vcombine.low %v728, %v742
      %v1055 = vunpack.c.l.s4 1966171168
      %v1056 = vunpack.c.0.s8 %v1055
      %v1057 = vlaneseq
      %v1058 = vshrl.u32 %v1057, 7
      %v1059 = vsub.s32 %v1056, %v1058
      %v1060 = vrot.slane %v1053, %v1059
      %v1062 = vunpack.c.l.s4 1966171168
      %v1063 = vunpack.c.0.s8 %v1062
      %v1064 = vlaneseq
      %v1065 = vshrl.u32 %v1064, 7
      %v1066 = vsub.s32 %v1063, %v1065
      %v1067 = vrot.slane %v1060, %v1066
      %v1091 = vunpack.c.l.b16 %v743
      %v1092 = vunpack.c.l.b16 %v744
      %v1093 = vunpack.c.l.b16 %v745
      %v1094 = vunpack.c.l.b16 %v746
      %v1095 = vunpack.c.l.b16 %v747
      %v1096 = vunpack.c.l.b16 %v748
      %v1097 = vunpack.c.l.b16 %v749
      %v1098 = vunpack.c.l.b16 %v750
      %v1099 = vunpack.c.l.b16 %v751
      %v1100 = vunpack.c.l.b16 %v752
      %v1101 = vunpack.c.l.b16 %v753
      %v1102 = vunpack.c.l.b16 %v754
      %v1103 = vunpack.c.l.b16 %v755
      %v1104 = vunpack.c.l.b16 %v756
      %v1105 = vunpack.c.l.b16 %v757
      %v1106 = vunpack.c.l.b16 %v758
      %v1107 = vpack.c.b16 %v1092, %v1091
      %v1108 = vpack.c.b16 %v1094, %v1093
      %v1109 = vpack.c.b16 %v1096, %v1095
      %v1110 = vpack.c.b16 %v1098, %v1097
      %v1111 = vpack.c.b16 %v1100, %v1099
      %v1112 = vpack.c.b16 %v1102, %v1101
      %v1113 = vpack.c.b16 %v1104, %v1103
      %v1114 = vpack.c.b16 %v1106, %v1105
      %1123 = vmatprep.subr.bf16.mxu0 0
      %1124 = vmatpush1.bf16.msra.mxu0 %v1107
      %1125 = vmatprep.subr.bf16.mxu0 0
      %1126 = vmatpush1.bf16.msra.mxu0 %v1108
      %1127 = vmatprep.subr.bf16.mxu0 0
      %1128 = vmatpush1.bf16.msra.mxu0 %v1109
      %1129 = vmatprep.subr.bf16.mxu0 0
      %1130 = vmatpush1.bf16.msra.mxu0 %v1110
      %1131 = vmatprep.subr.bf16.mxu0 0
      %1132 = vmatpush1.bf16.msra.mxu0 %v1111
      %1133 = vmatprep.subr.bf16.mxu0 0
      %1134 = vmatpush1.bf16.msra.mxu0 %v1112
      %1135 = vmatprep.subr.bf16.mxu0 0
      %1136 = vmatpush1.bf16.msra.mxu0 %v1113
      %1137 = vmatprep.subr.bf16.mxu0 0
      %1138 = vmatpush1.bf16.msra.mxu0 %v1114
      %1139 = vmatprep.subr.bf16.mxu0 0
      %1140 = vmatpush1.bf16.msra.mxu0 0
      %1141 = vmatprep.subr.bf16.mxu0 0
      %1142 = vmatpush1.bf16.msra.mxu0 0
      %1143 = vmatprep.subr.bf16.mxu0 0
      %1144 = vmatpush1.bf16.msra.mxu0 0
      %1145 = vmatprep.subr.bf16.mxu0 0
      %1146 = vmatpush1.bf16.msra.mxu0 0
      %1147 = vmatprep.subr.bf16.mxu0 0
      %1148 = vmatpush1.bf16.msra.mxu0 0
      %1149 = vmatprep.subr.bf16.mxu0 0
      %1150 = vmatpush1.bf16.msra.mxu0 0
      %1151 = vmatprep.subr.bf16.mxu0 0
      %1152 = vmatpush1.bf16.msra.mxu0 0
      %1153 = vmatprep.subr.bf16.mxu0 0
      %1154 = vmatpush1.bf16.msra.mxu0 0
      %1155 = vmatprep.mubr.bf16.mxu0 0
      %1156 = vmatmul.mubr.bf16.gmra.mrb[0].mxu0 %v807
      %v1157 = vpop.f32.mrb[0].mxu0
      %v1158 = vadd.f32 0.0, %v1157
      %v1159 = vpop.f32.mrb[0].mxu0
      %v1160 = vpop.f32.mrb[0].mxu0
      %v1161 = vadd.f32 0.0, %v1160
      %v1162 = vpop.f32.mrb[0].mxu0
      %1163 = vmatprep.mubr.bf16.mxu0 0
      %1164 = vmatmul.mubr.bf16.gmra.mrb[0].mxu0 %v856
      %v1165 = vpop.f32.mrb[0].mxu0
      %v1166 = vadd.f32 0.0, %v1165
      %v1167 = vpop.f32.mrb[0].mxu0
      %v1168 = vpop.f32.mrb[0].mxu0
      %v1169 = vadd.f32 0.0, %v1168
      %v1170 = vpop.f32.mrb[0].mxu0
      %1171 = vmatprep.mubr.bf16.mxu0 0
      %1172 = vmatmul.mubr.bf16.gmra.mrb[0].mxu0 %v905
      %v1173 = vpop.f32.mrb[0].mxu0
      %v1174 = vadd.f32 0.0, %v1173
      %v1175 = vpop.f32.mrb[0].mxu0
      %v1176 = vpop.f32.mrb[0].mxu0
      %v1177 = vadd.f32 0.0, %v1176
      %v1178 = vpop.f32.mrb[0].mxu0
      %1179 = vmatprep.mubr.bf16.mxu0 0
      %1180 = vmatmul.mubr.bf16.gmra.mrb[0].mxu0 %v954
      %v1181 = vpop.f32.mrb[0].mxu0
      %v1182 = vadd.f32 0.0, %v1181
      %v1183 = vpop.f32.mrb[0].mxu0
      %v1184 = vpop.f32.mrb[0].mxu0
      %v1185 = vadd.f32 0.0, %v1184
      %v1186 = vpop.f32.mrb[0].mxu0
      %1187 = vmatprep.mubr.bf16.mxu0 0
      %1188 = vmatmul.mubr.bf16.gmra.mrb[0].mxu0 %v1003
      %v1189 = vpop.f32.mrb[0].mxu0
      %v1190 = vadd.f32 0.0, %v1189
      %v1191 = vpop.f32.mrb[0].mxu0
      %v1192 = vpop.f32.mrb[0].mxu0
      %v1193 = vadd.f32 0.0, %v1192
      %v1194 = vpop.f32.mrb[0].mxu0
      %1195 = vmatprep.mubr.bf16.mxu0 0
      %1196 = vmatmul.mubr.bf16.gmra.mrb[0].mxu0 %v1052
      %v1197 = vpop.f32.mrb[0].mxu0
      %v1198 = vadd.f32 0.0, %v1197
      %v1199 = vpop.f32.mrb[0].mxu0
      %v1200 = vpop.f32.mrb[0].mxu0
      %v1201 = vadd.f32 0.0, %v1200
      %v1202 = vpop.f32.mrb[0].mxu0
      %1203 = vmatprep.mubr.bf16.mxu0 0
      %1204 = vmatmul.mubr.bf16.gmra.mrb[0].mxu0 %v1067
      %v1205 = vpop.f32.mrb[0].mxu0
      %v1206 = vadd.f32 0.0, %v1205
      %v1207 = vpop.f32.mrb[0].mxu0
      %v1208 = vpop.f32.mrb[0].mxu0
      %v1209 = vpop.f32.mrb[0].mxu0
      %1210 = vdwg.mxu0
      %v1224 = vcombine.high %v1158, %v1158
      %v1226 = vunpack.c.l.s4 1983009808
      %v1227 = vunpack.c.0.s8 %v1226
      %v1228 = vlaneseq
      %v1229 = vshrl.u32 %v1228, 7
      %v1230 = vsub.s32 %v1227, %v1229
      %v1231 = vrot.slane %v1158, %v1230
      %v1233 = vunpack.c.l.s4 1983009808
      %v1234 = vunpack.c.0.s8 %v1233
      %v1235 = vlaneseq
      %v1236 = vshrl.u32 %v1235, 7
      %v1237 = vsub.s32 %v1234, %v1236
      %v1238 = vrot.slane %v1224, %v1237
      %v1239 = vcombine.high %v1231, %v1231
      %v1240 = vcombine.high %v1238, %v1238
      %v1241 = vcombine.high %v1161, %v1161
      %v1243 = vunpack.c.l.s4 1983009808
      %v1244 = vunpack.c.0.s8 %v1243
      %v1245 = vlaneseq
      %v1246 = vshrl.u32 %v1245, 7
      %v1247 = vsub.s32 %v1244, %v1246
      %v1248 = vrot.slane %v1161, %v1247
      %v1250 = vunpack.c.l.s4 1983009808
      %v1251 = vunpack.c.0.s8 %v1250
      %v1252 = vlaneseq
      %v1253 = vshrl.u32 %v1252, 7
      %v1254 = vsub.s32 %v1251, %v1253
      %v1255 = vrot.slane %v1241, %v1254
      %v1256 = vcombine.high %v1248, %v1248
      %v1257 = vcombine.high %v1255, %v1255
      %v1258 = vcombine.high %v1166, %v1166
      %v1260 = vunpack.c.l.s4 1983009808
      %v1261 = vunpack.c.0.s8 %v1260
      %v1262 = vlaneseq
      %v1263 = vshrl.u32 %v1262, 7
      %v1264 = vsub.s32 %v1261, %v1263
      %v1265 = vrot.slane %v1166, %v1264
      %v1267 = vunpack.c.l.s4 1983009808
      %v1268 = vunpack.c.0.s8 %v1267
      %v1269 = vlaneseq
      %v1270 = vshrl.u32 %v1269, 7
      %v1271 = vsub.s32 %v1268, %v1270
      %v1272 = vrot.slane %v1258, %v1271
      %v1273 = vcombine.high %v1265, %v1265
      %v1274 = vcombine.high %v1272, %v1272
      %v1275 = vcombine.high %v1169, %v1169
      %v1277 = vunpack.c.l.s4 1983009808
      %v1278 = vunpack.c.0.s8 %v1277
      %v1279 = vlaneseq
      %v1280 = vshrl.u32 %v1279, 7
      %v1281 = vsub.s32 %v1278, %v1280
      %v1282 = vrot.slane %v1169, %v1281
      %v1284 = vunpack.c.l.s4 1983009808
      %v1285 = vunpack.c.0.s8 %v1284
      %v1286 = vlaneseq
      %v1287 = vshrl.u32 %v1286, 7
      %v1288 = vsub.s32 %v1285, %v1287
      %v1289 = vrot.slane %v1275, %v1288
      %v1290 = vcombine.high %v1282, %v1282
      %v1291 = vcombine.high %v1289, %v1289
      %v1292 = vcombine.high %v1174, %v1174
      %v1294 = vunpack.c.l.s4 1983009808
      %v1295 = vunpack.c.0.s8 %v1294
      %v1296 = vlaneseq
      %v1297 = vshrl.u32 %v1296, 7
      %v1298 = vsub.s32 %v1295, %v1297
      %v1299 = vrot.slane %v1174, %v1298
      %v1301 = vunpack.c.l.s4 1983009808
      %v1302 = vunpack.c.0.s8 %v1301
      %v1303 = vlaneseq
      %v1304 = vshrl.u32 %v1303, 7
      %v1305 = vsub.s32 %v1302, %v1304
      %v1306 = vrot.slane %v1292, %v1305
      %v1307 = vcombine.high %v1299, %v1299
      %v1308 = vcombine.high %v1306, %v1306
      %v1309 = vcombine.high %v1177, %v1177
      %v1311 = vunpack.c.l.s4 1983009808
      %v1312 = vunpack.c.0.s8 %v1311
      %v1313 = vlaneseq
      %v1314 = vshrl.u32 %v1313, 7
      %v1315 = vsub.s32 %v1312, %v1314
      %v1316 = vrot.slane %v1177, %v1315
      %v1318 = vunpack.c.l.s4 1983009808
      %v1319 = vunpack.c.0.s8 %v1318
      %v1320 = vlaneseq
      %v1321 = vshrl.u32 %v1320, 7
      %v1322 = vsub.s32 %v1319, %v1321
      %v1323 = vrot.slane %v1309, %v1322
      %v1324 = vcombine.high %v1316, %v1316
      %v1325 = vcombine.high %v1323, %v1323
      %v1326 = vcombine.high %v1182, %v1182
      %v1328 = vunpack.c.l.s4 1983009808
      %v1329 = vunpack.c.0.s8 %v1328
      %v1330 = vlaneseq
      %v1331 = vshrl.u32 %v1330, 7
      %v1332 = vsub.s32 %v1329, %v1331
      %v1333 = vrot.slane %v1182, %v1332
      %v1335 = vunpack.c.l.s4 1983009808
      %v1336 = vunpack.c.0.s8 %v1335
      %v1337 = vlaneseq
      %v1338 = vshrl.u32 %v1337, 7
      %v1339 = vsub.s32 %v1336, %v1338
      %v1340 = vrot.slane %v1326, %v1339
      %v1341 = vcombine.high %v1333, %v1333
      %v1342 = vcombine.high %v1340, %v1340
      %v1343 = vcombine.high %v1185, %v1185
      %v1345 = vunpack.c.l.s4 1983009808
      %v1346 = vunpack.c.0.s8 %v1345
      %v1347 = vlaneseq
      %v1348 = vshrl.u32 %v1347, 7
      %v1349 = vsub.s32 %v1346, %v1348
      %v1350 = vrot.slane %v1185, %v1349
      %v1352 = vunpack.c.l.s4 1983009808
      %v1353 = vunpack.c.0.s8 %v1352
      %v1354 = vlaneseq
      %v1355 = vshrl.u32 %v1354, 7
      %v1356 = vsub.s32 %v1353, %v1355
      %v1357 = vrot.slane %v1343, %v1356
      %v1358 = vcombine.high %v1350, %v1350
      %v1359 = vcombine.high %v1357, %v1357
      %v1360 = vcombine.high %v1190, %v1190
      %v1362 = vunpack.c.l.s4 1983009808
      %v1363 = vunpack.c.0.s8 %v1362
      %v1364 = vlaneseq
      %v1365 = vshrl.u32 %v1364, 7
      %v1366 = vsub.s32 %v1363, %v1365
      %v1367 = vrot.slane %v1190, %v1366
      %v1369 = vunpack.c.l.s4 1983009808
      %v1370 = vunpack.c.0.s8 %v1369
      %v1371 = vlaneseq
      %v1372 = vshrl.u32 %v1371, 7
      %v1373 = vsub.s32 %v1370, %v1372
      %v1374 = vrot.slane %v1360, %v1373
      %v1375 = vcombine.high %v1367, %v1367
      %v1376 = vcombine.high %v1374, %v1374
      %v1377 = vcombine.high %v1193, %v1193
      %v1379 = vunpack.c.l.s4 1983009808
      %v1380 = vunpack.c.0.s8 %v1379
      %v1381 = vlaneseq
      %v1382 = vshrl.u32 %v1381, 7
      %v1383 = vsub.s32 %v1380, %v1382
      %v1384 = vrot.slane %v1193, %v1383
      %v1386 = vunpack.c.l.s4 1983009808
      %v1387 = vunpack.c.0.s8 %v1386
      %v1388 = vlaneseq
      %v1389 = vshrl.u32 %v1388, 7
      %v1390 = vsub.s32 %v1387, %v1389
      %v1391 = vrot.slane %v1377, %v1390
      %v1392 = vcombine.high %v1384, %v1384
      %v1393 = vcombine.high %v1391, %v1391
      %v1394 = vcombine.high %v1198, %v1198
      %v1396 = vunpack.c.l.s4 1983009808
      %v1397 = vunpack.c.0.s8 %v1396
      %v1398 = vlaneseq
      %v1399 = vshrl.u32 %v1398, 7
      %v1400 = vsub.s32 %v1397, %v1399
      %v1401 = vrot.slane %v1198, %v1400
      %v1403 = vunpack.c.l.s4 1983009808
      %v1404 = vunpack.c.0.s8 %v1403
      %v1405 = vlaneseq
      %v1406 = vshrl.u32 %v1405, 7
      %v1407 = vsub.s32 %v1404, %v1406
      %v1408 = vrot.slane %v1394, %v1407
      %v1409 = vcombine.high %v1401, %v1401
      %v1410 = vcombine.high %v1408, %v1408
      %v1411 = vcombine.high %v1201, %v1201
      %v1413 = vunpack.c.l.s4 1983009808
      %v1414 = vunpack.c.0.s8 %v1413
      %v1415 = vlaneseq
      %v1416 = vshrl.u32 %v1415, 7
      %v1417 = vsub.s32 %v1414, %v1416
      %v1418 = vrot.slane %v1201, %v1417
      %v1420 = vunpack.c.l.s4 1983009808
      %v1421 = vunpack.c.0.s8 %v1420
      %v1422 = vlaneseq
      %v1423 = vshrl.u32 %v1422, 7
      %v1424 = vsub.s32 %v1421, %v1423
      %v1425 = vrot.slane %v1411, %v1424
      %v1426 = vcombine.high %v1418, %v1418
      %v1427 = vcombine.high %v1425, %v1425
      %v1429 = vunpack.c.l.s4 1983009808
      %v1430 = vunpack.c.0.s8 %v1429
      %v1431 = vlaneseq
      %v1432 = vshrl.u32 %v1431, 7
      %v1433 = vsub.s32 %v1430, %v1432
      %v1434 = vrot.slane %v1206, %v1433
      %v1435 = vcombine.high %v1434, %v1434
      %v1486 = vld [vmem:[%s312] sm:$0xf]
      %v1487 = vld [vmem:[%s312 + $0x4] sm:$0x1]
      %v1488 = vld [vmem:[%s312 + $0x8] sm:$0xf]
      %v1489 = vld [vmem:[%s312 + $0xc] sm:$0x1]
      %v1490 = vld [vmem:[%s312 + $0x10] sm:$0xf]
      %v1491 = vld [vmem:[%s312 + $0x14] sm:$0x1]
      %v1492 = vld [vmem:[%s312 + $0x18] sm:$0xf]
      %v1493 = vld [vmem:[%s312 + $0x1c] sm:$0x1]
      %v1494 = vld [vmem:[%s312 + $0x20] sm:$0xf]
      %v1495 = vld [vmem:[%s312 + $0x24] sm:$0x1]
      %v1496 = vld [vmem:[%s312 + $0x28] sm:$0xf]
      %v1497 = vld [vmem:[%s312 + $0x2c] sm:$0x1]
      %v1511 = vunpack.c.l.s4 1966171168
      %v1512 = vunpack.c.0.s8 %v1511
      %v1513 = vlaneseq
      %v1514 = vshrl.u32 %v1513, 7
      %v1515 = vsub.s32 %v1512, %v1514
      %v1516 = vrot.slane %v1486, %v1515
      %v1517 = vcombine.high %v1516, %v1516
      %v1519 = vunpack.c.l.s4 1966171168
      %v1520 = vunpack.c.0.s8 %v1519
      %v1521 = vlaneseq
      %v1522 = vshrl.u32 %v1521, 7
      %v1523 = vsub.s32 %v1520, %v1522
      %v1524 = vrot.slane %v1516, %v1523
      %v1526 = vunpack.c.l.s4 1966171168
      %v1527 = vunpack.c.0.s8 %v1526
      %v1528 = vlaneseq
      %v1529 = vshrl.u32 %v1528, 7
      %v1530 = vsub.s32 %v1527, %v1529
      %v1531 = vrot.slane %v1517, %v1530
      %v1532 = vcombine.high %v1524, %v1524
      %v1533 = vcombine.high %v1531, %v1531
      %v1535 = vunpack.c.l.s4 1966171168
      %v1536 = vunpack.c.0.s8 %v1535
      %v1537 = vlaneseq
      %v1538 = vshrl.u32 %v1537, 7
      %v1539 = vsub.s32 %v1536, %v1538
      %v1540 = vrot.slane %v1487, %v1539
      %v1542 = vunpack.c.l.s4 1966171168
      %v1543 = vunpack.c.0.s8 %v1542
      %v1544 = vlaneseq
      %v1545 = vshrl.u32 %v1544, 7
      %v1546 = vsub.s32 %v1543, %v1545
      %v1547 = vrot.slane %v1540, %v1546
      %v1549 = vunpack.c.l.s4 1966171168
      %v1550 = vunpack.c.0.s8 %v1549
      %v1551 = vlaneseq
      %v1552 = vshrl.u32 %v1551, 7
      %v1553 = vsub.s32 %v1550, %v1552
      %v1554 = vrot.slane %v1488, %v1553
      %v1555 = vcombine.high %v1554, %v1554
      %v1557 = vunpack.c.l.s4 1966171168
      %v1558 = vunpack.c.0.s8 %v1557
      %v1559 = vlaneseq
      %v1560 = vshrl.u32 %v1559, 7
      %v1561 = vsub.s32 %v1558, %v1560
      %v1562 = vrot.slane %v1554, %v1561
      %v1564 = vunpack.c.l.s4 1966171168
      %v1565 = vunpack.c.0.s8 %v1564
      %v1566 = vlaneseq
      %v1567 = vshrl.u32 %v1566, 7
      %v1568 = vsub.s32 %v1565, %v1567
      %v1569 = vrot.slane %v1555, %v1568
      %v1570 = vcombine.high %v1562, %v1562
      %v1571 = vcombine.high %v1569, %v1569
      %v1573 = vunpack.c.l.s4 1966171168
      %v1574 = vunpack.c.0.s8 %v1573
      %v1575 = vlaneseq
      %v1576 = vshrl.u32 %v1575, 7
      %v1577 = vsub.s32 %v1574, %v1576
      %v1578 = vrot.slane %v1489, %v1577
      %v1580 = vunpack.c.l.s4 1966171168
      %v1581 = vunpack.c.0.s8 %v1580
      %v1582 = vlaneseq
      %v1583 = vshrl.u32 %v1582, 7
      %v1584 = vsub.s32 %v1581, %v1583
      %v1585 = vrot.slane %v1578, %v1584
      %v1587 = vunpack.c.l.s4 1966171168
      %v1588 = vunpack.c.0.s8 %v1587
      %v1589 = vlaneseq
      %v1590 = vshrl.u32 %v1589, 7
      %v1591 = vsub.s32 %v1588, %v1590
      %v1592 = vrot.slane %v1490, %v1591
      %v1593 = vcombine.high %v1592, %v1592
      %v1595 = vunpack.c.l.s4 1966171168
      %v1596 = vunpack.c.0.s8 %v1595
      %v1597 = vlaneseq
      %v1598 = vshrl.u32 %v1597, 7
      %v1599 = vsub.s32 %v1596, %v1598
      %v1600 = vrot.slane %v1592, %v1599
      %v1602 = vunpack.c.l.s4 1966171168
      %v1603 = vunpack.c.0.s8 %v1602
      %v1604 = vlaneseq
      %v1605 = vshrl.u32 %v1604, 7
      %v1606 = vsub.s32 %v1603, %v1605
      %v1607 = vrot.slane %v1593, %v1606
      %v1608 = vcombine.high %v1600, %v1600
      %v1609 = vcombine.high %v1607, %v1607
      %v1611 = vunpack.c.l.s4 1966171168
      %v1612 = vunpack.c.0.s8 %v1611
      %v1613 = vlaneseq
      %v1614 = vshrl.u32 %v1613, 7
      %v1615 = vsub.s32 %v1612, %v1614
      %v1616 = vrot.slane %v1491, %v1615
      %v1618 = vunpack.c.l.s4 1966171168
      %v1619 = vunpack.c.0.s8 %v1618
      %v1620 = vlaneseq
      %v1621 = vshrl.u32 %v1620, 7
      %v1622 = vsub.s32 %v1619, %v1621
      %v1623 = vrot.slane %v1616, %v1622
      %v1625 = vunpack.c.l.s4 1966171168
      %v1626 = vunpack.c.0.s8 %v1625
      %v1627 = vlaneseq
      %v1628 = vshrl.u32 %v1627, 7
      %v1629 = vsub.s32 %v1626, %v1628
      %v1630 = vrot.slane %v1492, %v1629
      %v1631 = vcombine.high %v1630, %v1630
      %v1633 = vunpack.c.l.s4 1966171168
      %v1634 = vunpack.c.0.s8 %v1633
      %v1635 = vlaneseq
      %v1636 = vshrl.u32 %v1635, 7
      %v1637 = vsub.s32 %v1634, %v1636
      %v1638 = vrot.slane %v1630, %v1637
      %v1640 = vunpack.c.l.s4 1966171168
      %v1641 = vunpack.c.0.s8 %v1640
      %v1642 = vlaneseq
      %v1643 = vshrl.u32 %v1642, 7
      %v1644 = vsub.s32 %v1641, %v1643
      %v1645 = vrot.slane %v1631, %v1644
      %v1646 = vcombine.high %v1638, %v1638
      %v1647 = vcombine.high %v1645, %v1645
      %v1649 = vunpack.c.l.s4 1966171168
      %v1650 = vunpack.c.0.s8 %v1649
      %v1651 = vlaneseq
      %v1652 = vshrl.u32 %v1651, 7
      %v1653 = vsub.s32 %v1650, %v1652
      %v1654 = vrot.slane %v1493, %v1653
      %v1656 = vunpack.c.l.s4 1966171168
      %v1657 = vunpack.c.0.s8 %v1656
      %v1658 = vlaneseq
      %v1659 = vshrl.u32 %v1658, 7
      %v1660 = vsub.s32 %v1657, %v1659
      %v1661 = vrot.slane %v1654, %v1660
      %v1663 = vunpack.c.l.s4 1966171168
      %v1664 = vunpack.c.0.s8 %v1663
      %v1665 = vlaneseq
      %v1666 = vshrl.u32 %v1665, 7
      %v1667 = vsub.s32 %v1664, %v1666
      %v1668 = vrot.slane %v1494, %v1667
      %v1669 = vcombine.high %v1668, %v1668
      %v1671 = vunpack.c.l.s4 1966171168
      %v1672 = vunpack.c.0.s8 %v1671
      %v1673 = vlaneseq
      %v1674 = vshrl.u32 %v1673, 7
      %v1675 = vsub.s32 %v1672, %v1674
      %v1676 = vrot.slane %v1668, %v1675
      %v1678 = vunpack.c.l.s4 1966171168
      %v1679 = vunpack.c.0.s8 %v1678
      %v1680 = vlaneseq
      %v1681 = vshrl.u32 %v1680, 7
      %v1682 = vsub.s32 %v1679, %v1681
      %v1683 = vrot.slane %v1669, %v1682
      %v1684 = vcombine.high %v1676, %v1676
      %v1685 = vcombine.high %v1683, %v1683
      %v1687 = vunpack.c.l.s4 1966171168
      %v1688 = vunpack.c.0.s8 %v1687
      %v1689 = vlaneseq
      %v1690 = vshrl.u32 %v1689, 7
      %v1691 = vsub.s32 %v1688, %v1690
      %v1692 = vrot.slane %v1495, %v1691
      %v1694 = vunpack.c.l.s4 1966171168
      %v1695 = vunpack.c.0.s8 %v1694
      %v1696 = vlaneseq
      %v1697 = vshrl.u32 %v1696, 7
      %v1698 = vsub.s32 %v1695, %v1697
      %v1699 = vrot.slane %v1692, %v1698
      %v1701 = vunpack.c.l.s4 1966171168
      %v1702 = vunpack.c.0.s8 %v1701
      %v1703 = vlaneseq
      %v1704 = vshrl.u32 %v1703, 7
      %v1705 = vsub.s32 %v1702, %v1704
      %v1706 = vrot.slane %v1496, %v1705
      %v1707 = vcombine.high %v1706, %v1706
      %v1709 = vunpack.c.l.s4 1966171168
      %v1710 = vunpack.c.0.s8 %v1709
      %v1711 = vlaneseq
      %v1712 = vshrl.u32 %v1711, 7
      %v1713 = vsub.s32 %v1710, %v1712
      %v1714 = vrot.slane %v1706, %v1713
      %v1716 = vunpack.c.l.s4 1966171168
      %v1717 = vunpack.c.0.s8 %v1716
      %v1718 = vlaneseq
      %v1719 = vshrl.u32 %v1718, 7
      %v1720 = vsub.s32 %v1717, %v1719
      %v1721 = vrot.slane %v1707, %v1720
      %v1722 = vcombine.high %v1714, %v1714
      %v1723 = vcombine.high %v1721, %v1721
      %v1725 = vunpack.c.l.s4 1966171168
      %v1726 = vunpack.c.0.s8 %v1725
      %v1727 = vlaneseq
      %v1728 = vshrl.u32 %v1727, 7
      %v1729 = vsub.s32 %v1726, %v1728
      %v1730 = vrot.slane %v1497, %v1729
      %v1732 = vunpack.c.l.s4 1966171168
      %v1733 = vunpack.c.0.s8 %v1732
      %v1734 = vlaneseq
      %v1735 = vshrl.u32 %v1734, 7
      %v1736 = vsub.s32 %v1733, %v1735
      %v1737 = vrot.slane %v1730, %v1736
      %v1738 = vld [vmem:[%s3] sm:$0xf]
      %v1739 = vld [vmem:[%s3 + $0x4] sm:$0xf]
      %v1740 = vld [vmem:[%s3 + $0x8] sm:$0xf]
      %v1741 = vld [vmem:[%s3 + $0xc] sm:$0xf]
      %v1742 = vld [vmem:[%s3 + $0x10] sm:$0xf]
      %v1743 = vld [vmem:[%s3 + $0x14] sm:$0xf]
      %v1744 = vld [vmem:[%s3 + $0x18] sm:$0xf]
      %v1745 = vld [vmem:[%s3 + $0x1c] sm:$0xf]
      %v1746 = vld [vmem:[%s3 + $0x20] sm:$0xf]
      %v1747 = vld [vmem:[%s3 + $0x24] sm:$0xf]
      %v1748 = vld [vmem:[%s3 + $0x28] sm:$0xf]
      %v1749 = vld [vmem:[%s3 + $0x2c] sm:$0xf]
      %v1750 = vld [vmem:[%s3 + $0x30] sm:$0xf]
      %v1751 = vld [vmem:[%s3 + $0x34] sm:$0xf]
      %v1752 = vld [vmem:[%s3 + $0x38] sm:$0xf]
      %v1753 = vld [vmem:[%s3 + $0x3c] sm:$0xf]
      %v1754 = vcombine.low %v1524, %v1531
      %v1755 = vcombine.low %v1532, %v1533
      %v1756 = vcombine.low %v1547, %v1562
      %v1757 = vcombine.low %v1569, %v1570
      %v1759 = vunpack.c.l.s4 1966171168
      %v1760 = vunpack.c.0.s8 %v1759
      %v1761 = vlaneseq
      %v1762 = vshrl.u32 %v1761, 7
      %v1763 = vsub.s32 %v1760, %v1762
      %v1764 = vrot.slane %v1754, %v1763
      %v1766 = vunpack.c.l.s4 1966171168
      %v1767 = vunpack.c.0.s8 %v1766
      %v1768 = vlaneseq
      %v1769 = vshrl.u32 %v1768, 7
      %v1770 = vsub.s32 %v1767, %v1769
      %v1771 = vrot.slane %v1755, %v1770
      %v1773 = vunpack.c.l.s4 1966171168
      %v1774 = vunpack.c.0.s8 %v1773
      %v1775 = vlaneseq
      %v1776 = vshrl.u32 %v1775, 7
      %v1777 = vsub.s32 %v1774, %v1776
      %v1778 = vrot.slane %v1756, %v1777
      %v1780 = vunpack.c.l.s4 1966171168
      %v1781 = vunpack.c.0.s8 %v1780
      %v1782 = vlaneseq
      %v1783 = vshrl.u32 %v1782, 7
      %v1784 = vsub.s32 %v1781, %v1783
      %v1785 = vrot.slane %v1757, %v1784
      %v1786 = vcombine.low %v1764, %v1771
      %v1787 = vcombine.low %v1778, %v1785
      %v1789 = vunpack.c.l.s4 1966171168
      %v1790 = vunpack.c.0.s8 %v1789
      %v1791 = vlaneseq
      %v1792 = vshrl.u32 %v1791, 7
      %v1793 = vsub.s32 %v1790, %v1792
      %v1794 = vrot.slane %v1786, %v1793
      %v1796 = vunpack.c.l.s4 1966171168
      %v1797 = vunpack.c.0.s8 %v1796
      %v1798 = vlaneseq
      %v1799 = vshrl.u32 %v1798, 7
      %v1800 = vsub.s32 %v1797, %v1799
      %v1801 = vrot.slane %v1787, %v1800
      %v1802 = vcombine.low %v1794, %v1801
      %v1803 = vcombine.low %v1571, %v1585
      %v1804 = vcombine.low %v1600, %v1607
      %v1805 = vcombine.low %v1608, %v1609
      %v1806 = vcombine.low %v1623, %v1638
      %v1808 = vunpack.c.l.s4 1966171168
      %v1809 = vunpack.c.0.s8 %v1808
      %v1810 = vlaneseq
      %v1811 = vshrl.u32 %v1810, 7
      %v1812 = vsub.s32 %v1809, %v1811
      %v1813 = vrot.slane %v1803, %v1812
      %v1815 = vunpack.c.l.s4 1966171168
      %v1816 = vunpack.c.0.s8 %v1815
      %v1817 = vlaneseq
      %v1818 = vshrl.u32 %v1817, 7
      %v1819 = vsub.s32 %v1816, %v1818
      %v1820 = vrot.slane %v1804, %v1819
      %v1822 = vunpack.c.l.s4 1966171168
      %v1823 = vunpack.c.0.s8 %v1822
      %v1824 = vlaneseq
      %v1825 = vshrl.u32 %v1824, 7
      %v1826 = vsub.s32 %v1823, %v1825
      %v1827 = vrot.slane %v1805, %v1826
      %v1829 = vunpack.c.l.s4 1966171168
      %v1830 = vunpack.c.0.s8 %v1829
      %v1831 = vlaneseq
      %v1832 = vshrl.u32 %v1831, 7
      %v1833 = vsub.s32 %v1830, %v1832
      %v1834 = vrot.slane %v1806, %v1833
      %v1835 = vcombine.low %v1813, %v1820
      %v1836 = vcombine.low %v1827, %v1834
      %v1838 = vunpack.c.l.s4 1966171168
      %v1839 = vunpack.c.0.s8 %v1838
      %v1840 = vlaneseq
      %v1841 = vshrl.u32 %v1840, 7
      %v1842 = vsub.s32 %v1839, %v1841
      %v1843 = vrot.slane %v1835, %v1842
      %v1845 = vunpack.c.l.s4 1966171168
      %v1846 = vunpack.c.0.s8 %v1845
      %v1847 = vlaneseq
      %v1848 = vshrl.u32 %v1847, 7
      %v1849 = vsub.s32 %v1846, %v1848
      %v1850 = vrot.slane %v1836, %v1849
      %v1851 = vcombine.low %v1843, %v1850
      %v1852 = vcombine.low %v1645, %v1646
      %v1853 = vcombine.low %v1647, %v1661
      %v1854 = vcombine.low %v1676, %v1683
      %v1855 = vcombine.low %v1684, %v1685
      %v1857 = vunpack.c.l.s4 1966171168
      %v1858 = vunpack.c.0.s8 %v1857
      %v1859 = vlaneseq
      %v1860 = vshrl.u32 %v1859, 7
      %v1861 = vsub.s32 %v1858, %v1860
      %v1862 = vrot.slane %v1852, %v1861
      %v1864 = vunpack.c.l.s4 1966171168
      %v1865 = vunpack.c.0.s8 %v1864
      %v1866 = vlaneseq
      %v1867 = vshrl.u32 %v1866, 7
      %v1868 = vsub.s32 %v1865, %v1867
      %v1869 = vrot.slane %v1853, %v1868
      %v1871 = vunpack.c.l.s4 1966171168
      %v1872 = vunpack.c.0.s8 %v1871
      %v1873 = vlaneseq
      %v1874 = vshrl.u32 %v1873, 7
      %v1875 = vsub.s32 %v1872, %v1874
      %v1876 = vrot.slane %v1854, %v1875
      %v1878 = vunpack.c.l.s4 1966171168
      %v1879 = vunpack.c.0.s8 %v1878
      %v1880 = vlaneseq
      %v1881 = vshrl.u32 %v1880, 7
      %v1882 = vsub.s32 %v1879, %v1881
      %v1883 = vrot.slane %v1855, %v1882
      %v1884 = vcombine.low %v1862, %v1869
      %v1885 = vcombine.low %v1876, %v1883
      %v1887 = vunpack.c.l.s4 1966171168
      %v1888 = vunpack.c.0.s8 %v1887
      %v1889 = vlaneseq
      %v1890 = vshrl.u32 %v1889, 7
      %v1891 = vsub.s32 %v1888, %v1890
      %v1892 = vrot.slane %v1884, %v1891
      %v1894 = vunpack.c.l.s4 1966171168
      %v1895 = vunpack.c.0.s8 %v1894
      %v1896 = vlaneseq
      %v1897 = vshrl.u32 %v1896, 7
      %v1898 = vsub.s32 %v1895, %v1897
      %v1899 = vrot.slane %v1885, %v1898
      %v1900 = vcombine.low %v1892, %v1899
      %v1901 = vcombine.low %v1699, %v1714
      %v1902 = vcombine.low %v1721, %v1722
      %v1903 = vcombine.low %v1723, %v1737
      %v1905 = vunpack.c.l.s4 1966171168
      %v1906 = vunpack.c.0.s8 %v1905
      %v1907 = vlaneseq
      %v1908 = vshrl.u32 %v1907, 7
      %v1909 = vsub.s32 %v1906, %v1908
      %v1910 = vrot.slane %v1901, %v1909
      %v1912 = vunpack.c.l.s4 1966171168
      %v1913 = vunpack.c.0.s8 %v1912
      %v1914 = vlaneseq
      %v1915 = vshrl.u32 %v1914, 7
      %v1916 = vsub.s32 %v1913, %v1915
      %v1917 = vrot.slane %v1902, %v1916
      %v1919 = vunpack.c.l.s4 1966171168
      %v1920 = vunpack.c.0.s8 %v1919
      %v1921 = vlaneseq
      %v1922 = vshrl.u32 %v1921, 7
      %v1923 = vsub.s32 %v1920, %v1922
      %v1924 = vrot.slane %v1903, %v1923
      %v1925 = vcombine.low %v1910, %v1917
      %v1927 = vunpack.c.l.s4 1966171168
      %v1928 = vunpack.c.0.s8 %v1927
      %v1929 = vlaneseq
      %v1930 = vshrl.u32 %v1929, 7
      %v1931 = vsub.s32 %v1928, %v1930
      %v1932 = vrot.slane %v1925, %v1931
      %v1934 = vunpack.c.l.s4 1966171168
      %v1935 = vunpack.c.0.s8 %v1934
      %v1936 = vlaneseq
      %v1937 = vshrl.u32 %v1936, 7
      %v1938 = vsub.s32 %v1935, %v1937
      %v1939 = vrot.slane %v1924, %v1938
      %v1940 = vcombine.low %v1932, %v1939
      %v1961 = vunpack.c.l.b16 %v1738
      %v1962 = vunpack.c.l.b16 %v1739
      %v1963 = vunpack.c.l.b16 %v1740
      %v1964 = vunpack.c.l.b16 %v1741
      %v1965 = vunpack.c.l.b16 %v1742
      %v1966 = vunpack.c.l.b16 %v1743
      %v1967 = vunpack.c.l.b16 %v1744
      %v1968 = vunpack.c.l.b16 %v1745
      %v1969 = vunpack.c.l.b16 %v1746
      %v1970 = vunpack.c.l.b16 %v1747
      %v1971 = vunpack.c.l.b16 %v1748
      %v1972 = vunpack.c.l.b16 %v1749
      %v1973 = vunpack.c.l.b16 %v1750
      %v1974 = vunpack.c.l.b16 %v1751
      %v1975 = vunpack.c.l.b16 %v1752
      %v1976 = vunpack.c.l.b16 %v1753
      %v1977 = vpack.c.b16 %v1962, %v1961
      %v1978 = vpack.c.b16 %v1964, %v1963
      %v1979 = vpack.c.b16 %v1966, %v1965
      %v1980 = vpack.c.b16 %v1968, %v1967
      %v1981 = vpack.c.b16 %v1970, %v1969
      %v1982 = vpack.c.b16 %v1972, %v1971
      %v1983 = vpack.c.b16 %v1974, %v1973
      %v1984 = vpack.c.b16 %v1976, %v1975
      %1993 = vmatprep.subr.bf16.mxu0 0
      %1994 = vmatpush1.bf16.msra.mxu0 %v1977
      %1995 = vmatprep.subr.bf16.mxu0 0
      %1996 = vmatpush1.bf16.msra.mxu0 %v1978
      %1997 = vmatprep.subr.bf16.mxu0 0
      %1998 = vmatpush1.bf16.msra.mxu0 %v1979
      %1999 = vmatprep.subr.bf16.mxu0 0
      %2000 = vmatpush1.bf16.msra.mxu0 %v1980
      %2001 = vmatprep.subr.bf16.mxu0 0
      %2002 = vmatpush1.bf16.msra.mxu0 %v1981
      %2003 = vmatprep.subr.bf16.mxu0 0
      %2004 = vmatpush1.bf16.msra.mxu0 %v1982
      %2005 = vmatprep.subr.bf16.mxu0 0
      %2006 = vmatpush1.bf16.msra.mxu0 %v1983
      %2007 = vmatprep.subr.bf16.mxu0 0
      %2008 = vmatpush1.bf16.msra.mxu0 %v1984
      %2009 = vmatprep.subr.bf16.mxu0 0
      %2010 = vmatpush1.bf16.msra.mxu0 0
      %2011 = vmatprep.subr.bf16.mxu0 0
      %2012 = vmatpush1.bf16.msra.mxu0 0
      %2013 = vmatprep.subr.bf16.mxu0 0
      %2014 = vmatpush1.bf16.msra.mxu0 0
      %2015 = vmatprep.subr.bf16.mxu0 0
      %2016 = vmatpush1.bf16.msra.mxu0 0
      %2017 = vmatprep.subr.bf16.mxu0 0
      %2018 = vmatpush1.bf16.msra.mxu0 0
      %2019 = vmatprep.subr.bf16.mxu0 0
      %2020 = vmatpush1.bf16.msra.mxu0 0
      %2021 = vmatprep.subr.bf16.mxu0 0
      %2022 = vmatpush1.bf16.msra.mxu0 0
      %2023 = vmatprep.subr.bf16.mxu0 0
      %2024 = vmatpush1.bf16.msra.mxu0 0
      %2025 = vmatprep.mubr.bf16.mxu0 0
      %2026 = vmatmul.mubr.bf16.gmra.mrb[0].mxu0 %v1802
      %v2027 = vpop.f32.mrb[0].mxu0
      %v2028 = vadd.f32 0.0, %v2027
      %v2029 = vpop.f32.mrb[0].mxu0
      %v2030 = vpop.f32.mrb[0].mxu0
      %v2031 = vadd.f32 0.0, %v2030
      %v2032 = vpop.f32.mrb[0].mxu0
      %2033 = vmatprep.mubr.bf16.mxu0 0
      %2034 = vmatmul.mubr.bf16.gmra.mrb[0].mxu0 %v1851
      %v2035 = vpop.f32.mrb[0].mxu0
      %v2036 = vadd.f32 0.0, %v2035
      %v2037 = vpop.f32.mrb[0].mxu0
      %v2038 = vpop.f32.mrb[0].mxu0
      %v2039 = vadd.f32 0.0, %v2038
      %v2040 = vpop.f32.mrb[0].mxu0
      %2041 = vmatprep.mubr.bf16.mxu0 0
      %2042 = vmatmul.mubr.bf16.gmra.mrb[0].mxu0 %v1900
      %v2043 = vpop.f32.mrb[0].mxu0
      %v2044 = vadd.f32 0.0, %v2043
      %v2045 = vpop.f32.mrb[0].mxu0
      %v2046 = vpop.f32.mrb[0].mxu0
      %v2047 = vadd.f32 0.0, %v2046
      %v2048 = vpop.f32.mrb[0].mxu0
      %2049 = vmatprep.mubr.bf16.mxu0 0
      %2050 = vmatmul.mubr.bf16.gmra.mrb[0].mxu0 %v1940
      %v2051 = vpop.f32.mrb[0].mxu0
      %v2052 = vadd.f32 0.0, %v2051
      %v2053 = vpop.f32.mrb[0].mxu0
      %v2054 = vpop.f32.mrb[0].mxu0
      %v2055 = vadd.f32 0.0, %v2054
      %v2056 = vpop.f32.mrb[0].mxu0
      %2057 = vdwg.mxu0
      %v2066 = vcombine.high %v2028, %v2028
      %v2068 = vunpack.c.l.s4 1983009808
      %v2069 = vunpack.c.0.s8 %v2068
      %v2070 = vlaneseq
      %v2071 = vshrl.u32 %v2070, 7
      %v2072 = vsub.s32 %v2069, %v2071
      %v2073 = vrot.slane %v2028, %v2072
      %v2075 = vunpack.c.l.s4 1983009808
      %v2076 = vunpack.c.0.s8 %v2075
      %v2077 = vlaneseq
      %v2078 = vshrl.u32 %v2077, 7
      %v2079 = vsub.s32 %v2076, %v2078
      %v2080 = vrot.slane %v2066, %v2079
      %v2081 = vcombine.high %v2073, %v2073
      %v2082 = vcombine.high %v2080, %v2080
      %v2083 = vcombine.high %v2031, %v2031
      %v2085 = vunpack.c.l.s4 1983009808
      %v2086 = vunpack.c.0.s8 %v2085
      %v2087 = vlaneseq
      %v2088 = vshrl.u32 %v2087, 7
      %v2089 = vsub.s32 %v2086, %v2088
      %v2090 = vrot.slane %v2031, %v2089
      %v2092 = vunpack.c.l.s4 1983009808
      %v2093 = vunpack.c.0.s8 %v2092
      %v2094 = vlaneseq
      %v2095 = vshrl.u32 %v2094, 7
      %v2096 = vsub.s32 %v2093, %v2095
      %v2097 = vrot.slane %v2083, %v2096
      %v2098 = vcombine.high %v2090, %v2090
      %v2099 = vcombine.high %v2097, %v2097
      %v2100 = vcombine.high %v2036, %v2036
      %v2102 = vunpack.c.l.s4 1983009808
      %v2103 = vunpack.c.0.s8 %v2102
      %v2104 = vlaneseq
      %v2105 = vshrl.u32 %v2104, 7
      %v2106 = vsub.s32 %v2103, %v2105
      %v2107 = vrot.slane %v2036, %v2106
      %v2109 = vunpack.c.l.s4 1983009808
      %v2110 = vunpack.c.0.s8 %v2109
      %v2111 = vlaneseq
      %v2112 = vshrl.u32 %v2111, 7
      %v2113 = vsub.s32 %v2110, %v2112
      %v2114 = vrot.slane %v2100, %v2113
      %v2115 = vcombine.high %v2107, %v2107
      %v2116 = vcombine.high %v2114, %v2114
      %v2117 = vcombine.high %v2039, %v2039
      %v2119 = vunpack.c.l.s4 1983009808
      %v2120 = vunpack.c.0.s8 %v2119
      %v2121 = vlaneseq
      %v2122 = vshrl.u32 %v2121, 7
      %v2123 = vsub.s32 %v2120, %v2122
      %v2124 = vrot.slane %v2039, %v2123
      %v2126 = vunpack.c.l.s4 1983009808
      %v2127 = vunpack.c.0.s8 %v2126
      %v2128 = vlaneseq
      %v2129 = vshrl.u32 %v2128, 7
      %v2130 = vsub.s32 %v2127, %v2129
      %v2131 = vrot.slane %v2117, %v2130
      %v2132 = vcombine.high %v2124, %v2124
      %v2133 = vcombine.high %v2131, %v2131
      %v2134 = vcombine.high %v2044, %v2044
      %v2136 = vunpack.c.l.s4 1983009808
      %v2137 = vunpack.c.0.s8 %v2136
      %v2138 = vlaneseq
      %v2139 = vshrl.u32 %v2138, 7
      %v2140 = vsub.s32 %v2137, %v2139
      %v2141 = vrot.slane %v2044, %v2140
      %v2143 = vunpack.c.l.s4 1983009808
      %v2144 = vunpack.c.0.s8 %v2143
      %v2145 = vlaneseq
      %v2146 = vshrl.u32 %v2145, 7
      %v2147 = vsub.s32 %v2144, %v2146
      %v2148 = vrot.slane %v2134, %v2147
      %v2149 = vcombine.high %v2141, %v2141
      %v2150 = vcombine.high %v2148, %v2148
      %v2151 = vcombine.high %v2047, %v2047
      %v2153 = vunpack.c.l.s4 1983009808
      %v2154 = vunpack.c.0.s8 %v2153
      %v2155 = vlaneseq
      %v2156 = vshrl.u32 %v2155, 7
      %v2157 = vsub.s32 %v2154, %v2156
      %v2158 = vrot.slane %v2047, %v2157
      %v2160 = vunpack.c.l.s4 1983009808
      %v2161 = vunpack.c.0.s8 %v2160
      %v2162 = vlaneseq
      %v2163 = vshrl.u32 %v2162, 7
      %v2164 = vsub.s32 %v2161, %v2163
      %v2165 = vrot.slane %v2151, %v2164
      %v2166 = vcombine.high %v2158, %v2158
      %v2167 = vcombine.high %v2165, %v2165
      %v2168 = vcombine.high %v2052, %v2052
      %v2170 = vunpack.c.l.s4 1983009808
      %v2171 = vunpack.c.0.s8 %v2170
      %v2172 = vlaneseq
      %v2173 = vshrl.u32 %v2172, 7
      %v2174 = vsub.s32 %v2171, %v2173
      %v2175 = vrot.slane %v2052, %v2174
      %v2177 = vunpack.c.l.s4 1983009808
      %v2178 = vunpack.c.0.s8 %v2177
      %v2179 = vlaneseq
      %v2180 = vshrl.u32 %v2179, 7
      %v2181 = vsub.s32 %v2178, %v2180
      %v2182 = vrot.slane %v2168, %v2181
      %v2183 = vcombine.high %v2175, %v2175
      %v2184 = vcombine.high %v2182, %v2182
      %v2186 = vunpack.c.l.s4 1983009808
      %v2187 = vunpack.c.0.s8 %v2186
      %v2188 = vlaneseq
      %v2189 = vshrl.u32 %v2188, 7
      %v2190 = vsub.s32 %v2187, %v2189
      %v2191 = vrot.slane %v2055, %v2190
      %v2192 = vcombine.high %v2191, %v2191
      %v2223 = vadd.f32 %v1231, %v2073
      %v2224 = vadd.f32 %v1239, %v2081
      %v2225 = vadd.f32 %v1238, %v2080
      %v2226 = vadd.f32 %v1240, %v2082
      %v2227 = vadd.f32 %v1248, %v2090
      %v2228 = vadd.f32 %v1256, %v2098
      %v2229 = vadd.f32 %v1255, %v2097
      %v2230 = vadd.f32 %v1257, %v2099
      %v2231 = vadd.f32 %v1265, %v2107
      %v2232 = vadd.f32 %v1273, %v2115
      %v2233 = vadd.f32 %v1272, %v2098
      %v2234 = vadd.f32 %v1274, %v2097
      %v2235 = vadd.f32 %v1282, %v2099
      %v2236 = vadd.f32 %v1290, %v2107
      %v2237 = vadd.f32 %v1289, %v2115
      %v2238 = vadd.f32 %v1291, %v2114
      %v2239 = vadd.f32 %v1299, %v2116
      %v2240 = vadd.f32 %v1307, %v2124
      %v2241 = vadd.f32 %v1306, %v2132
      %v2242 = vadd.f32 %v1308, %v2131
      %v2243 = vadd.f32 %v1316, %v2114
      %v2244 = vadd.f32 %v1324, %v2116
      %v2245 = vadd.f32 %v1323, %v2124
      %v2246 = vadd.f32 %v1325, %v2132
      %v2247 = vadd.f32 %v1333, %v2131
      %v2248 = vadd.f32 %v1341, %v2133
      %v2249 = vadd.f32 %v1340, %v2141
      %v2250 = vadd.f32 %v1342, %v2149
      %v2251 = vadd.f32 %v1350, %v2148
      %v2252 = vadd.f32 %v1358, %v2150
      %v2253 = vadd.f32 %v1357, %v2133
      %v2254 = vadd.f32 %v1359, %v2141
      %v2255 = vadd.f32 %v1367, %v2149
      %v2256 = vadd.f32 %v1375, %v2148
      %v2257 = vadd.f32 %v1374, %v2150
      %v2258 = vadd.f32 %v1376, %v2158
      %v2259 = vadd.f32 %v1384, %v2166
      %v2260 = vadd.f32 %v1392, %v2165
      %v2261 = vadd.f32 %v1391, %v2167
      %v2262 = vadd.f32 %v1393, %v2175
      %v2263 = vadd.f32 %v1401, %v2158
      %v2264 = vadd.f32 %v1409, %v2166
      %v2265 = vadd.f32 %v1408, %v2165
      %v2266 = vadd.f32 %v1410, %v2167
      %v2267 = vadd.f32 %v1418, %v2175
      %v2268 = vadd.f32 %v1426, %v2183
      %v2269 = vadd.f32 %v1425, %v2182
      %v2270 = vadd.f32 %v1427, %v2184
      %v2271 = vadd.f32 %v1434, %v2191
      %v2272 = vadd.f32 %v1435, %v2192
      %v2323 = vcombine.low %v2223, %v2224
      %v2324 = vcombine.low %v2225, %v2226
      %v2326 = vunpack.c.l.s4 1983009808
      %v2327 = vunpack.c.0.s8 %v2326
      %v2328 = vlaneseq
      %v2329 = vshrl.u32 %v2328, 7
      %v2330 = vsub.s32 %v2327, %v2329
      %v2331 = vrot.slane %v2323, %v2330
      %v2333 = vunpack.c.l.s4 1983009808
      %v2334 = vunpack.c.0.s8 %v2333
      %v2335 = vlaneseq
      %v2336 = vshrl.u32 %v2335, 7
      %v2337 = vsub.s32 %v2334, %v2336
      %v2338 = vrot.slane %v2324, %v2337
      %v2339 = vcombine.low %v2331, %v2338
      %v2341 = vunpack.c.l.s4 1983009808
      %v2342 = vunpack.c.0.s8 %v2341
      %v2343 = vlaneseq
      %v2344 = vshrl.u32 %v2343, 7
      %v2345 = vsub.s32 %v2342, %v2344
      %v2346 = vrot.slane %v2227, %v2345
      %v2347 = vcombine.low %v2228, %v2229
      %v2348 = vcombine.low %v2230, %v2231
      %v2350 = vunpack.c.l.s4 1983009808
      %v2351 = vunpack.c.0.s8 %v2350
      %v2352 = vlaneseq
      %v2353 = vshrl.u32 %v2352, 7
      %v2354 = vsub.s32 %v2351, %v2353
      %v2355 = vrot.slane %v2347, %v2354
      %v2357 = vunpack.c.l.s4 1983009808
      %v2358 = vunpack.c.0.s8 %v2357
      %v2359 = vlaneseq
      %v2360 = vshrl.u32 %v2359, 7
      %v2361 = vsub.s32 %v2358, %v2360
      %v2362 = vrot.slane %v2348, %v2361
      %v2363 = vcombine.low %v2355, %v2362
      %v2365 = vunpack.c.l.s4 1983009808
      %v2366 = vunpack.c.0.s8 %v2365
      %v2367 = vlaneseq
      %v2368 = vshrl.u32 %v2367, 7
      %v2369 = vsub.s32 %v2366, %v2368
      %v2370 = vrot.slane %v2232, %v2369
      %v2371 = vcombine.low %v2233, %v2234
      %v2372 = vcombine.low %v2235, %v2236
      %v2374 = vunpack.c.l.s4 1983009808
      %v2375 = vunpack.c.0.s8 %v2374
      %v2376 = vlaneseq
      %v2377 = vshrl.u32 %v2376, 7
      %v2378 = vsub.s32 %v2375, %v2377
      %v2379 = vrot.slane %v2371, %v2378
      %v2381 = vunpack.c.l.s4 1983009808
      %v2382 = vunpack.c.0.s8 %v2381
      %v2383 = vlaneseq
      %v2384 = vshrl.u32 %v2383, 7
      %v2385 = vsub.s32 %v2382, %v2384
      %v2386 = vrot.slane %v2372, %v2385
      %v2387 = vcombine.low %v2379, %v2386
      %v2389 = vunpack.c.l.s4 1983009808
      %v2390 = vunpack.c.0.s8 %v2389
      %v2391 = vlaneseq
      %v2392 = vshrl.u32 %v2391, 7
      %v2393 = vsub.s32 %v2390, %v2392
      %v2394 = vrot.slane %v2237, %v2393
      %v2395 = vcombine.low %v2238, %v2239
      %v2396 = vcombine.low %v2240, %v2241
      %v2398 = vunpack.c.l.s4 1983009808
      %v2399 = vunpack.c.0.s8 %v2398
      %v2400 = vlaneseq
      %v2401 = vshrl.u32 %v2400, 7
      %v2402 = vsub.s32 %v2399, %v2401
      %v2403 = vrot.slane %v2395, %v2402
      %v2405 = vunpack.c.l.s4 1983009808
      %v2406 = vunpack.c.0.s8 %v2405
      %v2407 = vlaneseq
      %v2408 = vshrl.u32 %v2407, 7
      %v2409 = vsub.s32 %v2406, %v2408
      %v2410 = vrot.slane %v2396, %v2409
      %v2411 = vcombine.low %v2403, %v2410
      %v2413 = vunpack.c.l.s4 1983009808
      %v2414 = vunpack.c.0.s8 %v2413
      %v2415 = vlaneseq
      %v2416 = vshrl.u32 %v2415, 7
      %v2417 = vsub.s32 %v2414, %v2416
      %v2418 = vrot.slane %v2242, %v2417
      %v2419 = vcombine.low %v2243, %v2244
      %v2420 = vcombine.low %v2245, %v2246
      %v2422 = vunpack.c.l.s4 1983009808
      %v2423 = vunpack.c.0.s8 %v2422
      %v2424 = vlaneseq
      %v2425 = vshrl.u32 %v2424, 7
      %v2426 = vsub.s32 %v2423, %v2425
      %v2427 = vrot.slane %v2419, %v2426
      %v2429 = vunpack.c.l.s4 1983009808
      %v2430 = vunpack.c.0.s8 %v2429
      %v2431 = vlaneseq
      %v2432 = vshrl.u32 %v2431, 7
      %v2433 = vsub.s32 %v2430, %v2432
      %v2434 = vrot.slane %v2420, %v2433
      %v2435 = vcombine.low %v2427, %v2434
      %v2437 = vunpack.c.l.s4 1983009808
      %v2438 = vunpack.c.0.s8 %v2437
      %v2439 = vlaneseq
      %v2440 = vshrl.u32 %v2439, 7
      %v2441 = vsub.s32 %v2438, %v2440
      %v2442 = vrot.slane %v2247, %v2441
      %v2443 = vcombine.low %v2248, %v2249
      %v2444 = vcombine.low %v2250, %v2251
      %v2446 = vunpack.c.l.s4 1983009808
      %v2447 = vunpack.c.0.s8 %v2446
      %v2448 = vlaneseq
      %v2449 = vshrl.u32 %v2448, 7
      %v2450 = vsub.s32 %v2447, %v2449
      %v2451 = vrot.slane %v2443, %v2450
      %v2453 = vunpack.c.l.s4 1983009808
      %v2454 = vunpack.c.0.s8 %v2453
      %v2455 = vlaneseq
      %v2456 = vshrl.u32 %v2455, 7
      %v2457 = vsub.s32 %v2454, %v2456
      %v2458 = vrot.slane %v2444, %v2457
      %v2459 = vcombine.low %v2451, %v2458
      %v2461 = vunpack.c.l.s4 1983009808
      %v2462 = vunpack.c.0.s8 %v2461
      %v2463 = vlaneseq
      %v2464 = vshrl.u32 %v2463, 7
      %v2465 = vsub.s32 %v2462, %v2464
      %v2466 = vrot.slane %v2252, %v2465
      %v2467 = vcombine.low %v2253, %v2254
      %v2468 = vcombine.low %v2255, %v2256
      %v2470 = vunpack.c.l.s4 1983009808
      %v2471 = vunpack.c.0.s8 %v2470
      %v2472 = vlaneseq
      %v2473 = vshrl.u32 %v2472, 7
      %v2474 = vsub.s32 %v2471, %v2473
      %v2475 = vrot.slane %v2467, %v2474
      %v2477 = vunpack.c.l.s4 1983009808
      %v2478 = vunpack.c.0.s8 %v2477
      %v2479 = vlaneseq
      %v2480 = vshrl.u32 %v2479, 7
      %v2481 = vsub.s32 %v2478, %v2480
      %v2482 = vrot.slane %v2468, %v2481
      %v2483 = vcombine.low %v2475, %v2482
      %v2485 = vunpack.c.l.s4 1983009808
      %v2486 = vunpack.c.0.s8 %v2485
      %v2487 = vlaneseq
      %v2488 = vshrl.u32 %v2487, 7
      %v2489 = vsub.s32 %v2486, %v2488
      %v2490 = vrot.slane %v2257, %v2489
      %v2491 = vcombine.low %v2258, %v2259
      %v2492 = vcombine.low %v2260, %v2261
      %v2494 = vunpack.c.l.s4 1983009808
      %v2495 = vunpack.c.0.s8 %v2494
      %v2496 = vlaneseq
      %v2497 = vshrl.u32 %v2496, 7
      %v2498 = vsub.s32 %v2495, %v2497
      %v2499 = vrot.slane %v2491, %v2498
      %v2501 = vunpack.c.l.s4 1983009808
      %v2502 = vunpack.c.0.s8 %v2501
      %v2503 = vlaneseq
      %v2504 = vshrl.u32 %v2503, 7
      %v2505 = vsub.s32 %v2502, %v2504
      %v2506 = vrot.slane %v2492, %v2505
      %v2507 = vcombine.low %v2499, %v2506
      %v2509 = vunpack.c.l.s4 1983009808
      %v2510 = vunpack.c.0.s8 %v2509
      %v2511 = vlaneseq
      %v2512 = vshrl.u32 %v2511, 7
      %v2513 = vsub.s32 %v2510, %v2512
      %v2514 = vrot.slane %v2262, %v2513
      %v2515 = vcombine.low %v2263, %v2264
      %v2516 = vcombine.low %v2265, %v2266
      %v2518 = vunpack.c.l.s4 1983009808
      %v2519 = vunpack.c.0.s8 %v2518
      %v2520 = vlaneseq
      %v2521 = vshrl.u32 %v2520, 7
      %v2522 = vsub.s32 %v2519, %v2521
      %v2523 = vrot.slane %v2515, %v2522
      %v2525 = vunpack.c.l.s4 1983009808
      %v2526 = vunpack.c.0.s8 %v2525
      %v2527 = vlaneseq
      %v2528 = vshrl.u32 %v2527, 7
      %v2529 = vsub.s32 %v2526, %v2528
      %v2530 = vrot.slane %v2516, %v2529
      %v2531 = vcombine.low %v2523, %v2530
      %v2533 = vunpack.c.l.s4 1983009808
      %v2534 = vunpack.c.0.s8 %v2533
      %v2535 = vlaneseq
      %v2536 = vshrl.u32 %v2535, 7
      %v2537 = vsub.s32 %v2534, %v2536
      %v2538 = vrot.slane %v2267, %v2537
      %v2539 = vcombine.low %v2268, %v2269
      %v2540 = vcombine.low %v2270, %v2271
      %v2542 = vunpack.c.l.s4 1983009808
      %v2543 = vunpack.c.0.s8 %v2542
      %v2544 = vlaneseq
      %v2545 = vshrl.u32 %v2544, 7
      %v2546 = vsub.s32 %v2543, %v2545
      %v2547 = vrot.slane %v2539, %v2546
      %v2549 = vunpack.c.l.s4 1983009808
      %v2550 = vunpack.c.0.s8 %v2549
      %v2551 = vlaneseq
      %v2552 = vshrl.u32 %v2551, 7
      %v2553 = vsub.s32 %v2550, %v2552
      %v2554 = vrot.slane %v2540, %v2553
      %v2555 = vcombine.low %v2547, %v2554
      %v2557 = vunpack.c.l.s4 1983009808
      %v2558 = vunpack.c.0.s8 %v2557
      %v2559 = vlaneseq
      %v2560 = vshrl.u32 %v2559, 7
      %v2561 = vsub.s32 %v2558, %v2560
      %v2562 = vrot.slane %v2272, %v2561
      %v2583 = vpack.c.bf16 %v2346, %v2339
      %v2584 = vpack.c.bf16 %v2370, %v2363
      %v2585 = vpack.c.bf16 %v2394, %v2387
      %v2586 = vpack.c.bf16 %v2418, %v2411
      %v2587 = vpack.c.bf16 %v2442, %v2435
      %v2588 = vpack.c.bf16 %v2466, %v2459
      %v2589 = vpack.c.bf16 %v2490, %v2483
      %v2590 = vpack.c.bf16 %v2514, %v2507
      %v2591 = vpack.c.bf16 %v2538, %v2531
      %v2592 = vpack.c.bf16 %v2562, %v2555
      %v2603 = vunpack.c.l.b16 %v2583
      %v2604 = vunpack.c.l.b16 %v2584
      %v2605 = vunpack.c.l.b16 %v2585
      %v2606 = vunpack.c.l.b16 %v2586
      %v2607 = vunpack.c.l.b16 %v2587
      %v2608 = vunpack.c.l.b16 %v2588
      %v2609 = vunpack.c.l.b16 %v2589
      %v2610 = vunpack.c.l.b16 %v2590
      %v2611 = vunpack.c.l.b16 %v2591
      %v2612 = vunpack.c.l.b16 %v2592
      %v2613 = vld [vmem:[%s4] sm:$0xf]
      %v2614 = vld [vmem:[%s4 + $0x4] sm:$0xf]
      %v2615 = vld [vmem:[%s4 + $0x8] sm:$0xf]
      %v2616 = vld [vmem:[%s4 + $0xc] sm:$0xf]
      %v2617 = vld [vmem:[%s4 + $0x10] sm:$0xf]
      %v2618 = vld [vmem:[%s4 + $0x14] sm:$0xf]
      %v2619 = vld [vmem:[%s4 + $0x18] sm:$0xf]
      %v2620 = vld [vmem:[%s4 + $0x1c] sm:$0xf]
      %v2621 = vld [vmem:[%s4 + $0x20] sm:$0xf]
      %v2622 = vld [vmem:[%s4 + $0x24] sm:$0xf]
      %v2623 = vld [vmem:[%s4 + $0x28] sm:$0xf]
      %v2624 = vld [vmem:[%s4 + $0x2c] sm:$0xf]
      %v2625 = vld [vmem:[%s4 + $0x30] sm:$0xf]
      %v2626 = vld [vmem:[%s4 + $0x34] sm:$0xf]
      %v2627 = vld [vmem:[%s4 + $0x38] sm:$0xf]
      %v2628 = vld [vmem:[%s4 + $0x3c] sm:$0xf]
      %v2629 = vld [vmem:[%s4 + $0x40] sm:$0xf]
      %v2630 = vld [vmem:[%s4 + $0x44] sm:$0xf]
      %v2631 = vld [vmem:[%s4 + $0x48] sm:$0xf]
      %v2632 = vld [vmem:[%s4 + $0x4c] sm:$0xf]
      %v2633 = vld [vmem:[%s4 + $0x50] sm:$0xf]
      %v2634 = vld [vmem:[%s4 + $0x54] sm:$0xf]
      %v2635 = vld [vmem:[%s4 + $0x58] sm:$0xf]
      %v2636 = vld [vmem:[%s4 + $0x5c] sm:$0xf]
      %v2637 = vld [vmem:[%s4 + $0x60] sm:$0xf]
      %v2638 = vld [vmem:[%s4 + $0x64] sm:$0xf]
      %v2639 = vld [vmem:[%s4 + $0x68] sm:$0xf]
      %v2640 = vld [vmem:[%s4 + $0x6c] sm:$0xf]
      %v2641 = vld [vmem:[%s4 + $0x70] sm:$0xf]
      %v2642 = vld [vmem:[%s4 + $0x74] sm:$0xf]
      %v2643 = vld [vmem:[%s4 + $0x78] sm:$0xf]
      %v2644 = vld [vmem:[%s4 + $0x7c] sm:$0xf]
      %v2645 = vld [vmem:[%s4 + $0x80] sm:$0xf]
      %v2646 = vld [vmem:[%s4 + $0x84] sm:$0xf]
      %v2647 = vld [vmem:[%s4 + $0x88] sm:$0xf]
      %v2648 = vld [vmem:[%s4 + $0x8c] sm:$0xf]
      %v2649 = vld [vmem:[%s4 + $0x90] sm:$0xf]
      %v2650 = vld [vmem:[%s4 + $0x94] sm:$0xf]
      %v2651 = vld [vmem:[%s4 + $0x98] sm:$0xf]
      %v2652 = vld [vmem:[%s4 + $0x9c] sm:$0xf]
      %v2653 = vld [vmem:[%s4 + $0xa0] sm:$0xf]
      %v2654 = vld [vmem:[%s4 + $0xa4] sm:$0xf]
      %v2655 = vld [vmem:[%s4 + $0xa8] sm:$0xf]
      %v2656 = vld [vmem:[%s4 + $0xac] sm:$0xf]
      %v2657 = vld [vmem:[%s4 + $0xb0] sm:$0xf]
      %v2658 = vld [vmem:[%s4 + $0xb4] sm:$0xf]
      %v2659 = vld [vmem:[%s4 + $0xb8] sm:$0xf]
      %v2660 = vld [vmem:[%s4 + $0xbc] sm:$0xf]
      %v2661 = vunpack.c.h.b16 %v2583
      %v2662 = vunpack.c.h.b16 %v2584
      %v2663 = vunpack.c.h.b16 %v2585
      %v2664 = vunpack.c.h.b16 %v2586
      %v2665 = vunpack.c.h.b16 %v2587
      %v2666 = vunpack.c.h.b16 %v2588
      %v2667 = vunpack.c.h.b16 %v2589
      %v2668 = vunpack.c.h.b16 %v2590
      %v2669 = vunpack.c.h.b16 %v2591
      %v2670 = vunpack.c.h.b16 %v2592
      %v2671 = vpack.c.b16 %v2604, %v2603
      %v2672 = vpack.c.b16 %v2605, %v2605
      %v2673 = vpack.c.b16 %v2662, %v2661
      %v2674 = vpack.c.b16 %v2663, %v2663
      %v2675 = vpack.c.b16 %v2605, %v2604
      %v2676 = vpack.c.b16 %v2606, %v2606
      %v2677 = vpack.c.b16 %v2663, %v2662
      %v2678 = vpack.c.b16 %v2664, %v2664
      %v2679 = vpack.c.b16 %v2606, %v2605
      %v2680 = vpack.c.b16 %v2607, %v2607
      %v2681 = vpack.c.b16 %v2664, %v2663
      %v2682 = vpack.c.b16 %v2665, %v2665
      %v2683 = vpack.c.b16 %v2607, %v2606
      %v2684 = vpack.c.b16 %v2608, %v2608
      %v2685 = vpack.c.b16 %v2665, %v2664
      %v2686 = vpack.c.b16 %v2666, %v2666
      %v2687 = vpack.c.b16 %v2608, %v2607
      %v2688 = vpack.c.b16 %v2609, %v2609
      %v2689 = vpack.c.b16 %v2666, %v2665
      %v2690 = vpack.c.b16 %v2667, %v2667
      %v2691 = vpack.c.b16 %v2609, %v2608
      %v2692 = vpack.c.b16 %v2610, %v2610
      %v2693 = vpack.c.b16 %v2667, %v2666
      %v2694 = vpack.c.b16 %v2668, %v2668
      %v2695 = vpack.c.b16 %v2610, %v2609
      %v2696 = vpack.c.b16 %v2611, %v2611
      %v2697 = vpack.c.b16 %v2668, %v2667
      %v2698 = vpack.c.b16 %v2669, %v2669
      %v2699 = vpack.c.b16 %v2611, %v2610
      %v2700 = vpack.c.b16 %v2612, %v2612
      %v2701 = vpack.c.b16 %v2669, %v2668
      %v2702 = vpack.c.b16 %v2670, %v2670
      %vm2703 = vsmask.f32 3328
      %vm2704 = vsmask.f32 7440
      %vm2705 = vmor %vm2703, %vm2704
      %v2707 = vshrl.u32 %v2671, 16
      %v2709 = vrot.slane %v2707, 4
      %v2710 = vshll.u32 %v2671, 16
      %v2712 = vrot.slane %v2710, 5
      %v2713 = vor.u32 %v2709, %v2712
      %v2714 = vrot.slane %v2713, 4
      %v2716 = vshll.u32 %v2673, 16
      %v2718 = vrot.slane %v2716, 5
      %v2719 = vsel %vm2705, %v2714, %v2718
      %v2721 = vshrl.u32 %v2672, 16
      %v2723 = vrot.slane %v2721, 4
      %v2724 = vshll.u32 %v2672, 16
      %v2726 = vrot.slane %v2724, 5
      %v2727 = vor.u32 %v2723, %v2726
      %v2728 = vrot.slane %v2727, 4
      %v2730 = vshll.u32 %v2674, 16
      %v2732 = vrot.slane %v2730, 5
      %v2733 = vsel %vm2705, %v2728, %v2732
      %v2735 = vshrl.u32 %v2675, 16
      %v2737 = vrot.slane %v2735, 4
      %v2738 = vshll.u32 %v2675, 16
      %v2740 = vrot.slane %v2738, 5
      %v2741 = vor.u32 %v2737, %v2740
      %v2742 = vrot.slane %v2741, 4
      %v2744 = vshll.u32 %v2677, 16
      %v2746 = vrot.slane %v2744, 5
      %v2747 = vsel %vm2705, %v2742, %v2746
      %v2749 = vshrl.u32 %v2676, 16
      %v2751 = vrot.slane %v2749, 4
      %v2752 = vshll.u32 %v2676, 16
      %v2754 = vrot.slane %v2752, 5
      %v2755 = vor.u32 %v2751, %v2754
      %v2756 = vrot.slane %v2755, 4
      %v2758 = vshll.u32 %v2678, 16
      %v2760 = vrot.slane %v2758, 5
      %v2761 = vsel %vm2705, %v2756, %v2760
      %v2763 = vshrl.u32 %v2679, 16
      %v2765 = vrot.slane %v2763, 4
      %v2766 = vshll.u32 %v2679, 16
      %v2768 = vrot.slane %v2766, 5
      %v2769 = vor.u32 %v2765, %v2768
      %v2770 = vrot.slane %v2769, 4
      %v2772 = vshll.u32 %v2681, 16
      %v2774 = vrot.slane %v2772, 5
      %v2775 = vsel %vm2705, %v2770, %v2774
      %v2777 = vshrl.u32 %v2680, 16
      %v2779 = vrot.slane %v2777, 4
      %v2780 = vshll.u32 %v2680, 16
      %v2782 = vrot.slane %v2780, 5
      %v2783 = vor.u32 %v2779, %v2782
      %v2784 = vrot.slane %v2783, 4
      %v2786 = vshll.u32 %v2682, 16
      %v2788 = vrot.slane %v2786, 5
      %v2789 = vsel %vm2705, %v2784, %v2788
      %v2791 = vshrl.u32 %v2683, 16
      %v2793 = vrot.slane %v2791, 4
      %v2794 = vshll.u32 %v2683, 16
      %v2796 = vrot.slane %v2794, 5
      %v2797 = vor.u32 %v2793, %v2796
      %v2798 = vrot.slane %v2797, 4
      %v2800 = vshll.u32 %v2685, 16
      %v2802 = vrot.slane %v2800, 5
      %v2803 = vsel %vm2705, %v2798, %v2802
      %v2805 = vshrl.u32 %v2684, 16
      %v2807 = vrot.slane %v2805, 4
      %v2808 = vshll.u32 %v2684, 16
      %v2810 = vrot.slane %v2808, 5
      %v2811 = vor.u32 %v2807, %v2810
      %v2812 = vrot.slane %v2811, 4
      %v2814 = vshll.u32 %v2686, 16
      %v2816 = vrot.slane %v2814, 5
      %v2817 = vsel %vm2705, %v2812, %v2816
      %v2819 = vshrl.u32 %v2687, 16
      %v2821 = vrot.slane %v2819, 4
      %v2822 = vshll.u32 %v2687, 16
      %v2824 = vrot.slane %v2822, 5
      %v2825 = vor.u32 %v2821, %v2824
      %v2826 = vrot.slane %v2825, 4
      %v2828 = vshll.u32 %v2689, 16
      %v2830 = vrot.slane %v2828, 5
      %v2831 = vsel %vm2705, %v2826, %v2830
      %v2833 = vshrl.u32 %v2688, 16
      %v2835 = vrot.slane %v2833, 4
      %v2836 = vshll.u32 %v2688, 16
      %v2838 = vrot.slane %v2836, 5
      %v2839 = vor.u32 %v2835, %v2838
      %v2840 = vrot.slane %v2839, 4
      %v2842 = vshll.u32 %v2690, 16
      %v2844 = vrot.slane %v2842, 5
      %v2845 = vsel %vm2705, %v2840, %v2844
      %v2847 = vshrl.u32 %v2691, 16
      %v2849 = vrot.slane %v2847, 4
      %v2850 = vshll.u32 %v2691, 16
      %v2852 = vrot.slane %v2850, 5
      %v2853 = vor.u32 %v2849, %v2852
      %v2854 = vrot.slane %v2853, 4
      %v2856 = vshll.u32 %v2693, 16
      %v2858 = vrot.slane %v2856, 5
      %v2859 = vsel %vm2705, %v2854, %v2858
      %v2861 = vshrl.u32 %v2692, 16
      %v2863 = vrot.slane %v2861, 4
      %v2864 = vshll.u32 %v2692, 16
      %v2866 = vrot.slane %v2864, 5
      %v2867 = vor.u32 %v2863, %v2866
      %v2868 = vrot.slane %v2867, 4
      %v2870 = vshll.u32 %v2694, 16
      %v2872 = vrot.slane %v2870, 5
      %v2873 = vsel %vm2705, %v2868, %v2872
      %v2875 = vshrl.u32 %v2695, 16
      %v2877 = vrot.slane %v2875, 4
      %v2878 = vshll.u32 %v2695, 16
      %v2880 = vrot.slane %v2878, 5
      %v2881 = vor.u32 %v2877, %v2880
      %v2882 = vrot.slane %v2881, 4
      %v2884 = vshll.u32 %v2697, 16
      %v2886 = vrot.slane %v2884, 5
      %v2887 = vsel %vm2705, %v2882, %v2886
      %v2889 = vshrl.u32 %v2696, 16
      %v2891 = vrot.slane %v2889, 4
      %v2892 = vshll.u32 %v2696, 16
      %v2894 = vrot.slane %v2892, 5
      %v2895 = vor.u32 %v2891, %v2894
      %v2896 = vrot.slane %v2895, 4
      %v2898 = vshll.u32 %v2698, 16
      %v2900 = vrot.slane %v2898, 5
      %v2901 = vsel %vm2705, %v2896, %v2900
      %v2903 = vshrl.u32 %v2699, 16
      %v2905 = vrot.slane %v2903, 4
      %v2906 = vshll.u32 %v2699, 16
      %v2908 = vrot.slane %v2906, 5
      %v2909 = vor.u32 %v2905, %v2908
      %v2910 = vrot.slane %v2909, 4
      %v2912 = vshll.u32 %v2701, 16
      %v2914 = vrot.slane %v2912, 5
      %v2915 = vsel %vm2705, %v2910, %v2914
      %v2917 = vshrl.u32 %v2700, 16
      %v2919 = vrot.slane %v2917, 4
      %v2920 = vshll.u32 %v2700, 16
      %v2922 = vrot.slane %v2920, 5
      %v2923 = vor.u32 %v2919, %v2922
      %v2924 = vrot.slane %v2923, 4
      %v2926 = vshll.u32 %v2702, 16
      %v2928 = vrot.slane %v2926, 5
      %v2929 = vsel %vm2705, %v2924, %v2928
      %s2930 = scalar_lea.vmem %s4, 192
      %v2931 = vld [vmem:[%s2930] sm:$0xf]
      %v2932 = vld [vmem:[%s2930 + $0x4] sm:$0xf]
      %v2933 = vld [vmem:[%s2930 + $0x8] sm:$0xf]
      %v2934 = vld [vmem:[%s2930 + $0xc] sm:$0xf]
      %v2935 = vld [vmem:[%s2930 + $0x10] sm:$0xf]
      %v2936 = vld [vmem:[%s2930 + $0x14] sm:$0xf]
      %v2937 = vld [vmem:[%s2930 + $0x18] sm:$0xf]
      %v2938 = vld [vmem:[%s2930 + $0x1c] sm:$0xf]
      %v2939 = vld [vmem:[%s2930 + $0x20] sm:$0xf]
      %v2940 = vld [vmem:[%s2930 + $0x24] sm:$0xf]
      %v2941 = vld [vmem:[%s2930 + $0x28] sm:$0xf]
      %v2942 = vld [vmem:[%s2930 + $0x2c] sm:$0xf]
      %v2943 = vld [vmem:[%s2930 + $0x30] sm:$0xf]
      %v2944 = vld [vmem:[%s2930 + $0x34] sm:$0xf]
      %v2945 = vld [vmem:[%s2930 + $0x38] sm:$0xf]
      %v2946 = vld [vmem:[%s2930 + $0x3c] sm:$0xf]
      %v2947 = vld [vmem:[%s2930 + $0x40] sm:$0xf]
      %v2948 = vld [vmem:[%s2930 + $0x44] sm:$0xf]
      %v2949 = vld [vmem:[%s2930 + $0x48] sm:$0xf]
      %v2950 = vld [vmem:[%s2930 + $0x4c] sm:$0xf]
      %v2951 = vld [vmem:[%s2930 + $0x50] sm:$0xf]
      %v2952 = vld [vmem:[%s2930 + $0x54] sm:$0xf]
      %v2953 = vld [vmem:[%s2930 + $0x58] sm:$0xf]
      %v2954 = vld [vmem:[%s2930 + $0x5c] sm:$0xf]
      %v2955 = vld [vmem:[%s2930 + $0x60] sm:$0xf]
      %v2956 = vld [vmem:[%s2930 + $0x64] sm:$0xf]
      %v2957 = vld [vmem:[%s2930 + $0x68] sm:$0xf]
      %v2958 = vld [vmem:[%s2930 + $0x6c] sm:$0xf]
      %v2959 = vld [vmem:[%s2930 + $0x70] sm:$0xf]
      %v2960 = vld [vmem:[%s2930 + $0x74] sm:$0xf]
      %v2961 = vld [vmem:[%s2930 + $0x78] sm:$0xf]
      %v2962 = vld [vmem:[%s2930 + $0x7c] sm:$0xf]
      %v2963 = vld [vmem:[%s2930 + $0x80] sm:$0xf]
      %v2964 = vld [vmem:[%s2930 + $0x84] sm:$0xf]
      %v2965 = vld [vmem:[%s2930 + $0x88] sm:$0xf]
      %v2966 = vld [vmem:[%s2930 + $0x8c] sm:$0xf]
      %v2967 = vld [vmem:[%s2930 + $0x90] sm:$0xf]
      %v2968 = vld [vmem:[%s2930 + $0x94] sm:$0xf]
      %v2969 = vld [vmem:[%s2930 + $0x98] sm:$0xf]
      %v2970 = vld [vmem:[%s2930 + $0x9c] sm:$0xf]
      %v2971 = vld [vmem:[%s2930 + $0xa0] sm:$0xf]
      %v2972 = vld [vmem:[%s2930 + $0xa4] sm:$0xf]
      %v2973 = vld [vmem:[%s2930 + $0xa8] sm:$0xf]
      %v2974 = vld [vmem:[%s2930 + $0xac] sm:$0xf]
      %v2975 = vld [vmem:[%s2930 + $0xb0] sm:$0xf]
      %v2976 = vld [vmem:[%s2930 + $0xb4] sm:$0xf]
      %v2977 = vld [vmem:[%s2930 + $0xb8] sm:$0xf]
      %v2978 = vld [vmem:[%s2930 + $0xbc] sm:$0xf]
      %v2979 = vunpack.c.l.b16 %v2719
      %v2980 = vunpack.c.h.b16 %v2719
      %v2981 = vunpack.c.l.b16 %v2733
      %v2982 = vunpack.c.l.b16 %v2747
      %v2983 = vunpack.c.h.b16 %v2747
      %v2984 = vunpack.c.l.b16 %v2761
      %v2985 = vunpack.c.l.b16 %v2775
      %v2986 = vunpack.c.h.b16 %v2775
      %v2987 = vunpack.c.l.b16 %v2789
      %v2988 = vunpack.c.l.b16 %v2803
      %v2989 = vunpack.c.h.b16 %v2803
      %v2990 = vunpack.c.l.b16 %v2817
      %v2991 = vunpack.c.l.b16 %v2831
      %v2992 = vunpack.c.h.b16 %v2831
      %v2993 = vunpack.c.l.b16 %v2845
      %v2994 = vunpack.c.l.b16 %v2859
      %v2995 = vunpack.c.h.b16 %v2859
      %v2996 = vunpack.c.l.b16 %v2873
      %v2997 = vunpack.c.l.b16 %v2887
      %v2998 = vunpack.c.h.b16 %v2887
      %v2999 = vunpack.c.l.b16 %v2901
      %v3000 = vunpack.c.l.b16 %v2915
      %v3001 = vunpack.c.h.b16 %v2915
      %v3002 = vunpack.c.l.b16 %v2929
      %v3003 = vpack.c.b16 %v2982, %v2979
      %v3004 = vpack.c.b16 %v2983, %v2980
      %v3005 = vpack.c.b16 %v2984, %v2981
      %v3006 = vpack.c.b16 %v2988, %v2985
      %v3007 = vpack.c.b16 %v2989, %v2986
      %v3008 = vpack.c.b16 %v2990, %v2987
      %v3009 = vpack.c.b16 %v2994, %v2991
      %v3010 = vpack.c.b16 %v2995, %v2992
      %v3011 = vpack.c.b16 %v2996, %v2993
      %v3012 = vpack.c.b16 %v3000, %v2997
      %v3013 = vpack.c.b16 %v3001, %v2998
      %v3014 = vpack.c.b16 %v3002, %v2999
      %v3075 = vunpack.c.l.b16 %v2931
      %v3076 = vunpack.c.l.b16 %v2932
      %v3077 = vunpack.c.l.b16 %v2933
      %v3078 = vunpack.c.l.b16 %v2934
      %v3079 = vunpack.c.l.b16 %v2935
      %v3080 = vunpack.c.l.b16 %v2936
      %v3081 = vunpack.c.l.b16 %v2937
      %v3082 = vunpack.c.l.b16 %v2938
      %v3083 = vunpack.c.l.b16 %v2939
      %v3084 = vunpack.c.l.b16 %v2940
      %v3085 = vunpack.c.l.b16 %v2941
      %v3086 = vunpack.c.l.b16 %v2942
      %v3087 = vunpack.c.l.b16 %v2943
      %v3088 = vunpack.c.l.b16 %v2944
      %v3089 = vunpack.c.l.b16 %v2945
      %v3090 = vunpack.c.l.b16 %v2946
      %v3091 = vunpack.c.l.b16 %v2947
      %v3092 = vunpack.c.l.b16 %v2948
      %v3093 = vunpack.c.l.b16 %v2949
      %v3094 = vunpack.c.l.b16 %v2950
      %v3095 = vunpack.c.l.b16 %v2951
      %v3096 = vunpack.c.l.b16 %v2952
      %v3097 = vunpack.c.l.b16 %v2953
      %v3098 = vunpack.c.l.b16 %v2954
      %v3099 = vunpack.c.l.b16 %v2955
      %v3100 = vunpack.c.l.b16 %v2956
      %v3101 = vunpack.c.l.b16 %v2957
      %v3102 = vunpack.c.l.b16 %v2958
      %v3103 = vunpack.c.l.b16 %v2959
      %v3104 = vunpack.c.l.b16 %v2960
      %v3105 = vunpack.c.l.b16 %v2961
      %v3106 = vunpack.c.l.b16 %v2962
      %v3107 = vunpack.c.l.b16 %v2963
      %v3108 = vunpack.c.l.b16 %v2964
      %v3109 = vunpack.c.l.b16 %v2965
      %v3110 = vunpack.c.l.b16 %v2966
      %v3111 = vunpack.c.l.b16 %v2967
      %v3112 = vunpack.c.l.b16 %v2968
      %v3113 = vunpack.c.l.b16 %v2969
      %v3114 = vunpack.c.l.b16 %v2970
      %v3115 = vunpack.c.l.b16 %v2971
      %v3116 = vunpack.c.l.b16 %v2972
      %v3117 = vunpack.c.l.b16 %v2973
      %v3118 = vunpack.c.l.b16 %v2974
      %v3119 = vunpack.c.l.b16 %v2975
      %v3120 = vunpack.c.l.b16 %v2976
      %v3121 = vunpack.c.l.b16 %v2977
      %v3122 = vunpack.c.l.b16 %v2978
      %v3123 = vpack.c.b16 %v3076, %v3075
      %v3124 = vpack.c.b16 %v3078, %v3077
      %v3125 = vpack.c.b16 %v3080, %v3079
      %v3126 = vpack.c.b16 %v3082, %v3081
      %v3127 = vpack.c.b16 %v3084, %v3083
      %v3128 = vpack.c.b16 %v3086, %v3085
      %v3129 = vpack.c.b16 %v3088, %v3087
      %v3130 = vpack.c.b16 %v3090, %v3089
      %v3131 = vpack.c.b16 %v3092, %v3091
      %v3132 = vpack.c.b16 %v3094, %v3093
      %v3133 = vpack.c.b16 %v3096, %v3095
      %v3134 = vpack.c.b16 %v3098, %v3097
      %v3135 = vpack.c.b16 %v3100, %v3099
      %v3136 = vpack.c.b16 %v3102, %v3101
      %v3137 = vpack.c.b16 %v3104, %v3103
      %v3138 = vpack.c.b16 %v3106, %v3105
      %v3139 = vpack.c.b16 %v3108, %v3107
      %v3140 = vpack.c.b16 %v3110, %v3109
      %v3141 = vpack.c.b16 %v3112, %v3111
      %v3142 = vpack.c.b16 %v3114, %v3113
      %v3143 = vpack.c.b16 %v3116, %v3115
      %v3144 = vpack.c.b16 %v3118, %v3117
      %v3145 = vpack.c.b16 %v3120, %v3119
      %v3146 = vpack.c.b16 %v3122, %v3121
      %3171 = vmatprep.subr.bf16.mxu0 0
      %3172 = vmatpush1.bf16.msra.mxu0 %v3123
      %3173 = vmatprep.subr.bf16.mxu0 0
      %3174 = vmatpush1.bf16.msra.mxu0 %v3124
      %3175 = vmatprep.subr.bf16.mxu0 0
      %3176 = vmatpush1.bf16.msra.mxu0 %v3125
      %3177 = vmatprep.subr.bf16.mxu0 0
      %3178 = vmatpush1.bf16.msra.mxu0 %v3126
      %3179 = vmatprep.subr.bf16.mxu0 0
      %3180 = vmatpush1.bf16.msra.mxu0 %v3127
      %3181 = vmatprep.subr.bf16.mxu0 0
      %3182 = vmatpush1.bf16.msra.mxu0 %v3128
      %3183 = vmatprep.subr.bf16.mxu0 0
      %3184 = vmatpush1.bf16.msra.mxu0 %v3129
      %3185 = vmatprep.subr.bf16.mxu0 0
      %3186 = vmatpush1.bf16.msra.mxu0 %v3130
      %3187 = vmatprep.subr.bf16.mxu0 0
      %3188 = vmatpush1.bf16.msra.mxu0 %v3131
      %3189 = vmatprep.subr.bf16.mxu0 0
      %3190 = vmatpush1.bf16.msra.mxu0 %v3132
      %3191 = vmatprep.subr.bf16.mxu0 0
      %3192 = vmatpush1.bf16.msra.mxu0 %v3133
      %3193 = vmatprep.subr.bf16.mxu0 0
      %3194 = vmatpush1.bf16.msra.mxu0 %v3134
      %3195 = vmatprep.subr.bf16.mxu0 0
      %3196 = vmatpush1.bf16.msra.mxu0 %v3135
      %3197 = vmatprep.subr.bf16.mxu0 0
      %3198 = vmatpush1.bf16.msra.mxu0 %v3136
      %3199 = vmatprep.subr.bf16.mxu0 0
      %3200 = vmatpush1.bf16.msra.mxu0 %v3137
      %3201 = vmatprep.subr.bf16.mxu0 0
      %3202 = vmatpush1.bf16.msra.mxu0 %v3138
      %3203 = vmatprep.mubr.bf16.mxu0 %v3004
      %3204 = vmatmul.mubr.bf16.gmra.mrb[0].mxu0 %v3003
      %v3205 = vpop.f32.mrb[0].mxu0
      %v3206 = vadd.f32 0.0, %v3205
      %v3207 = vpop.f32.mrb[0].mxu0
      %v3208 = vpop.f32.mrb[0].mxu0
      %v3209 = vadd.f32 0.0, %v3208
      %v3210 = vpop.f32.mrb[0].mxu0
      %3211 = vmatprep.mubr.bf16.mxu0 %v3007
      %3212 = vmatmul.mubr.bf16.gmra.mrb[0].mxu0 %v3006
      %v3213 = vpop.f32.mrb[0].mxu0
      %v3214 = vadd.f32 0.0, %v3213
      %v3215 = vpop.f32.mrb[0].mxu0
      %v3216 = vpop.f32.mrb[0].mxu0
      %v3217 = vadd.f32 0.0, %v3216
      %v3218 = vpop.f32.mrb[0].mxu0
      %3219 = vmatprep.mubr.bf16.mxu0 %v3010
      %3220 = vmatmul.mubr.bf16.gmra.mrb[0].mxu0 %v3009
      %v3221 = vpop.f32.mrb[0].mxu0
      %v3222 = vadd.f32 0.0, %v3221
      %v3223 = vpop.f32.mrb[0].mxu0
      %v3224 = vpop.f32.mrb[0].mxu0
      %v3225 = vadd.f32 0.0, %v3224
      %v3226 = vpop.f32.mrb[0].mxu0
      %3227 = vmatprep.mubr.bf16.mxu0 %v3013
      %3228 = vmatmul.mubr.bf16.gmra.mrb[0].mxu0 %v3012
      %v3229 = vpop.f32.mrb[0].mxu0
      %v3230 = vadd.f32 0.0, %v3229
      %v3231 = vpop.f32.mrb[0].mxu0
      %v3232 = vpop.f32.mrb[0].mxu0
      %v3233 = vadd.f32 0.0, %v3232
      %v3234 = vpop.f32.mrb[0].mxu0
      %3235 = vdwg.mxu0
      %3236 = vmatprep.subr.bf16.mxu0 0
      %3237 = vmatpush1.bf16.msra.mxu0 %v3139
      %3238 = vmatprep.subr.bf16.mxu0 0
      %3239 = vmatpush1.bf16.msra.mxu0 %v3140
      %3240 = vmatprep.subr.bf16.mxu0 0
      %3241 = vmatpush1.bf16.msra.mxu0 %v3141
      %3242 = vmatprep.subr.bf16.mxu0 0
      %3243 = vmatpush1.bf16.msra.mxu0 %v3142
      %3244 = vmatprep.subr.bf16.mxu0 0
      %3245 = vmatpush1.bf16.msra.mxu0 %v3143
      %3246 = vmatprep.subr.bf16.mxu0 0
      %3247 = vmatpush1.bf16.msra.mxu0 %v3144
      %3248 = vmatprep.subr.bf16.mxu0 0
      %3249 = vmatpush1.bf16.msra.mxu0 %v3145
      %3250 = vmatprep.subr.bf16.mxu0 0
      %3251 = vmatpush1.bf16.msra.mxu0 %v3146
      %3252 = vmatprep.subr.bf16.mxu0 0
      %3253 = vmatpush1.bf16.msra.mxu0 0
      %3254 = vmatprep.subr.bf16.mxu0 0
      %3255 = vmatpush1.bf16.msra.mxu0 0
      %3256 = vmatprep.subr.bf16.mxu0 0
      %3257 = vmatpush1.bf16.msra.mxu0 0
      %3258 = vmatprep.subr.bf16.mxu0 0
      %3259 = vmatpush1.bf16.msra.mxu0 0
      %3260 = vmatprep.subr.bf16.mxu0 0
      %3261 = vmatpush1.bf16.msra.mxu0 0
      %3262 = vmatprep.subr.bf16.mxu0 0
      %3263 = vmatpush1.bf16.msra.mxu0 0
      %3264 = vmatprep.subr.bf16.mxu0 0
      %3265 = vmatpush1.bf16.msra.mxu0 0
      %3266 = vmatprep.subr.bf16.mxu0 0
      %3267 = vmatpush1.bf16.msra.mxu0 0
      %3268 = vmatprep.mubr.bf16.mxu0 0
      %3269 = vmatmul.mubr.bf16.gmra.mrb[0].mxu0 %v3005
      %v3270 = vpop.f32.mrb[0].mxu0
      %v3271 = vadd.f32 %v3206, %v3270
      %v3272 = vpop.f32.mrb[0].mxu0
      %v3273 = vpop.f32.mrb[0].mxu0
      %v3274 = vadd.f32 %v3209, %v3273
      %v3275 = vpop.f32.mrb[0].mxu0
      %3276 = vmatprep.mubr.bf16.mxu0 0
      %3277 = vmatmul.mubr.bf16.gmra.mrb[0].mxu0 %v3008
      %v3278 = vpop.f32.mrb[0].mxu0
      %v3279 = vadd.f32 %v3214, %v3278
      %v3280 = vpop.f32.mrb[0].mxu0
      %v3281 = vpop.f32.mrb[0].mxu0
      %v3282 = vadd.f32 %v3217, %v3281
      %v3283 = vpop.f32.mrb[0].mxu0
      %3284 = vmatprep.mubr.bf16.mxu0 0
      %3285 = vmatmul.mubr.bf16.gmra.mrb[0].mxu0 %v3011
      %v3286 = vpop.f32.mrb[0].mxu0
      %v3287 = vadd.f32 %v3222, %v3286
      %v3288 = vpop.f32.mrb[0].mxu0
      %v3289 = vpop.f32.mrb[0].mxu0
      %v3290 = vadd.f32 %v3225, %v3289
      %v3291 = vpop.f32.mrb[0].mxu0
      %3292 = vmatprep.mubr.bf16.mxu0 0
      %3293 = vmatmul.mubr.bf16.gmra.mrb[0].mxu0 %v3014
      %v3294 = vpop.f32.mrb[0].mxu0
      %v3295 = vadd.f32 %v3230, %v3294
      %v3296 = vpop.f32.mrb[0].mxu0
      %v3297 = vpop.f32.mrb[0].mxu0
      %v3298 = vadd.f32 %v3233, %v3297
      %v3299 = vpop.f32.mrb[0].mxu0
      %3300 = vdwg.mxu0
      %v3301 = vpack.c.b16 %v2612, %v2611
      %v3359 = vunpack.c.l.b16 %v2613
      %v3360 = vunpack.c.l.b16 %v2614
      %v3361 = vunpack.c.l.b16 %v2615
      %v3362 = vunpack.c.l.b16 %v2616
      %v3363 = vunpack.c.l.b16 %v2617
      %v3364 = vunpack.c.l.b16 %v2618
      %v3365 = vunpack.c.l.b16 %v2619
      %v3366 = vunpack.c.l.b16 %v2620
      %v3367 = vunpack.c.l.b16 %v2621
      %v3368 = vunpack.c.l.b16 %v2622
      %v3369 = vunpack.c.l.b16 %v2623
      %v3370 = vunpack.c.l.b16 %v2624
      %v3371 = vunpack.c.l.b16 %v2625
      %v3372 = vunpack.c.l.b16 %v2626
      %v3373 = vunpack.c.l.b16 %v2627
      %v3374 = vunpack.c.l.b16 %v2628
      %v3375 = vunpack.c.l.b16 %v2629
      %v3376 = vunpack.c.l.b16 %v2630
      %v3377 = vunpack.c.l.b16 %v2631
      %v3378 = vunpack.c.l.b16 %v2632
      %v3379 = vunpack.c.l.b16 %v2633
      %v3380 = vunpack.c.l.b16 %v2634
      %v3381 = vunpack.c.l.b16 %v2635
      %v3382 = vunpack.c.l.b16 %v2636
      %v3383 = vunpack.c.l.b16 %v2637
      %v3384 = vunpack.c.l.b16 %v2638
      %v3385 = vunpack.c.l.b16 %v2639
      %v3386 = vunpack.c.l.b16 %v2640
      %v3387 = vunpack.c.l.b16 %v2641
      %v3388 = vunpack.c.l.b16 %v2642
      %v3389 = vunpack.c.l.b16 %v2643
      %v3390 = vunpack.c.l.b16 %v2644
      %v3391 = vunpack.c.l.b16 %v2645
      %v3392 = vunpack.c.l.b16 %v2646
      %v3393 = vunpack.c.l.b16 %v2647
      %v3394 = vunpack.c.l.b16 %v2648
      %v3395 = vunpack.c.l.b16 %v2649
      %v3396 = vunpack.c.l.b16 %v2650
      %v3397 = vunpack.c.l.b16 %v2651
      %v3398 = vunpack.c.l.b16 %v2652
      %v3399 = vunpack.c.l.b16 %v2653
      %v3400 = vunpack.c.l.b16 %v2654
      %v3401 = vunpack.c.l.b16 %v2655
      %v3402 = vunpack.c.l.b16 %v2656
      %v3403 = vunpack.c.l.b16 %v2657
      %v3404 = vunpack.c.l.b16 %v2658
      %v3405 = vunpack.c.l.b16 %v2659
      %v3406 = vunpack.c.l.b16 %v2660
      %v3407 = vpack.c.b16 %v3360, %v3359
      %v3408 = vpack.c.b16 %v3362, %v3361
      %v3409 = vpack.c.b16 %v3364, %v3363
      %v3410 = vpack.c.b16 %v3366, %v3365
      %v3411 = vpack.c.b16 %v3368, %v3367
      %v3412 = vpack.c.b16 %v3370, %v3369
      %v3413 = vpack.c.b16 %v3372, %v3371
      %v3414 = vpack.c.b16 %v3374, %v3373
      %v3415 = vpack.c.b16 %v3376, %v3375
      %v3416 = vpack.c.b16 %v3378, %v3377
      %v3417 = vpack.c.b16 %v3380, %v3379
      %v3418 = vpack.c.b16 %v3382, %v3381
      %v3419 = vpack.c.b16 %v3384, %v3383
      %v3420 = vpack.c.b16 %v3386, %v3385
      %v3421 = vpack.c.b16 %v3388, %v3387
      %v3422 = vpack.c.b16 %v3390, %v3389
      %v3423 = vpack.c.b16 %v3392, %v3391
      %v3424 = vpack.c.b16 %v3394, %v3393
      %v3425 = vpack.c.b16 %v3396, %v3395
      %v3426 = vpack.c.b16 %v3398, %v3397
      %v3427 = vpack.c.b16 %v3400, %v3399
      %v3428 = vpack.c.b16 %v3402, %v3401
      %v3429 = vpack.c.b16 %v3404, %v3403
      %v3430 = vpack.c.b16 %v3406, %v3405
      %3455 = vmatprep.subr.bf16.mxu0 0
      %3456 = vmatpush1.bf16.msra.mxu0 %v3407
      %3457 = vmatprep.subr.bf16.mxu0 0
      %3458 = vmatpush1.bf16.msra.mxu0 %v3408
      %3459 = vmatprep.subr.bf16.mxu0 0
      %3460 = vmatpush1.bf16.msra.mxu0 %v3409
      %3461 = vmatprep.subr.bf16.mxu0 0
      %3462 = vmatpush1.bf16.msra.mxu0 %v3410
      %3463 = vmatprep.subr.bf16.mxu0 0
      %3464 = vmatpush1.bf16.msra.mxu0 %v3411
      %3465 = vmatprep.subr.bf16.mxu0 0
      %3466 = vmatpush1.bf16.msra.mxu0 %v3412
      %3467 = vmatprep.subr.bf16.mxu0 0
      %3468 = vmatpush1.bf16.msra.mxu0 %v3413
      %3469 = vmatprep.subr.bf16.mxu0 0
      %3470 = vmatpush1.bf16.msra.mxu0 %v3414
      %3471 = vmatprep.subr.bf16.mxu0 0
      %3472 = vmatpush1.bf16.msra.mxu0 %v3415
      %3473 = vmatprep.subr.bf16.mxu0 0
      %3474 = vmatpush1.bf16.msra.mxu0 %v3416
      %3475 = vmatprep.subr.bf16.mxu0 0
      %3476 = vmatpush1.bf16.msra.mxu0 %v3417
      %3477 = vmatprep.subr.bf16.mxu0 0
      %3478 = vmatpush1.bf16.msra.mxu0 %v3418
      %3479 = vmatprep.subr.bf16.mxu0 0
      %3480 = vmatpush1.bf16.msra.mxu0 %v3419
      %3481 = vmatprep.subr.bf16.mxu0 0
      %3482 = vmatpush1.bf16.msra.mxu0 %v3420
      %3483 = vmatprep.subr.bf16.mxu0 0
      %3484 = vmatpush1.bf16.msra.mxu0 %v3421
      %3485 = vmatprep.subr.bf16.mxu0 0
      %3486 = vmatpush1.bf16.msra.mxu0 %v3422
      %3487 = vmatprep.mubr.bf16.mxu0 %v2675
      %3488 = vmatmul.mubr.bf16.gmra.mrb[0].mxu0 %v2671
      %v3489 = vpop.f32.mrb[0].mxu0
      %v3490 = vadd.f32 %v3271, %v3489
      %v3491 = vpop.f32.mrb[0].mxu0
      %v3492 = vpop.f32.mrb[0].mxu0
      %v3493 = vadd.f32 %v3274, %v3492
      %v3494 = vpop.f32.mrb[0].mxu0
      %3495 = vmatprep.mubr.bf16.mxu0 %v2683
      %3496 = vmatmul.mubr.bf16.gmra.mrb[0].mxu0 %v2679
      %v3497 = vpop.f32.mrb[0].mxu0
      %v3498 = vadd.f32 %v3279, %v3497
      %v3499 = vpop.f32.mrb[0].mxu0
      %v3500 = vpop.f32.mrb[0].mxu0
      %v3501 = vadd.f32 %v3282, %v3500
      %v3502 = vpop.f32.mrb[0].mxu0
      %3503 = vmatprep.mubr.bf16.mxu0 %v2691
      %3504 = vmatmul.mubr.bf16.gmra.mrb[0].mxu0 %v2687
      %v3505 = vpop.f32.mrb[0].mxu0
      %v3506 = vadd.f32 %v3287, %v3505
      %v3507 = vpop.f32.mrb[0].mxu0
      %v3508 = vpop.f32.mrb[0].mxu0
      %v3509 = vadd.f32 %v3290, %v3508
      %v3510 = vpop.f32.mrb[0].mxu0
      %3511 = vmatprep.mubr.bf16.mxu0 %v2699
      %3512 = vmatmul.mubr.bf16.gmra.mrb[0].mxu0 %v2695
      %v3513 = vpop.f32.mrb[0].mxu0
      %v3514 = vadd.f32 %v3295, %v3513
      %v3515 = vpop.f32.mrb[0].mxu0
      %v3516 = vpop.f32.mrb[0].mxu0
      %v3517 = vadd.f32 %v3298, %v3516
      %v3518 = vpop.f32.mrb[0].mxu0
      %3519 = vdwg.mxu0
      %3520 = vmatprep.subr.bf16.mxu0 0
      %3521 = vmatpush1.bf16.msra.mxu0 %v3423
      %3522 = vmatprep.subr.bf16.mxu0 0
      %3523 = vmatpush1.bf16.msra.mxu0 %v3424
      %3524 = vmatprep.subr.bf16.mxu0 0
      %3525 = vmatpush1.bf16.msra.mxu0 %v3425
      %3526 = vmatprep.subr.bf16.mxu0 0
      %3527 = vmatpush1.bf16.msra.mxu0 %v3426
      %3528 = vmatprep.subr.bf16.mxu0 0
      %3529 = vmatpush1.bf16.msra.mxu0 %v3427
      %3530 = vmatprep.subr.bf16.mxu0 0
      %3531 = vmatpush1.bf16.msra.mxu0 %v3428
      %3532 = vmatprep.subr.bf16.mxu0 0
      %3533 = vmatpush1.bf16.msra.mxu0 %v3429
      %3534 = vmatprep.subr.bf16.mxu0 0
      %3535 = vmatpush1.bf16.msra.mxu0 %v3430
      %3536 = vmatprep.subr.bf16.mxu0 0
      %3537 = vmatpush1.bf16.msra.mxu0 0
      %3538 = vmatprep.subr.bf16.mxu0 0
      %3539 = vmatpush1.bf16.msra.mxu0 0
      %3540 = vmatprep.subr.bf16.mxu0 0
      %3541 = vmatpush1.bf16.msra.mxu0 0
      %3542 = vmatprep.subr.bf16.mxu0 0
      %3543 = vmatpush1.bf16.msra.mxu0 0
      %3544 = vmatprep.subr.bf16.mxu0 0
      %3545 = vmatpush1.bf16.msra.mxu0 0
      %3546 = vmatprep.subr.bf16.mxu0 0
      %3547 = vmatpush1.bf16.msra.mxu0 0
      %3548 = vmatprep.subr.bf16.mxu0 0
      %3549 = vmatpush1.bf16.msra.mxu0 0
      %3550 = vmatprep.subr.bf16.mxu0 0
      %3551 = vmatpush1.bf16.msra.mxu0 0
      %3552 = vmatprep.mubr.bf16.mxu0 0
      %3553 = vmatmul.mubr.bf16.gmra.mrb[0].mxu0 %v2679
      %v3554 = vpop.f32.mrb[0].mxu0
      %v3555 = vadd.f32 %v3490, %v3554
      %v3556 = vpop.f32.mrb[0].mxu0
      %v3557 = vpop.f32.mrb[0].mxu0
      %v3558 = vadd.f32 %v3493, %v3557
      %v3559 = vpop.f32.mrb[0].mxu0
      %3560 = vmatprep.mubr.bf16.mxu0 0
      %3561 = vmatmul.mubr.bf16.gmra.mrb[0].mxu0 %v2687
      %v3562 = vpop.f32.mrb[0].mxu0
      %v3563 = vadd.f32 %v3498, %v3562
      %v3564 = vpop.f32.mrb[0].mxu0
      %v3565 = vpop.f32.mrb[0].mxu0
      %v3566 = vadd.f32 %v3501, %v3565
      %v3567 = vpop.f32.mrb[0].mxu0
      %3568 = vmatprep.mubr.bf16.mxu0 0
      %3569 = vmatmul.mubr.bf16.gmra.mrb[0].mxu0 %v2695
      %v3570 = vpop.f32.mrb[0].mxu0
      %v3571 = vadd.f32 %v3506, %v3570
      %v3572 = vpop.f32.mrb[0].mxu0
      %v3573 = vpop.f32.mrb[0].mxu0
      %v3574 = vadd.f32 %v3509, %v3573
      %v3575 = vpop.f32.mrb[0].mxu0
      %3576 = vmatprep.mubr.bf16.mxu0 0
      %3577 = vmatmul.mubr.bf16.gmra.mrb[0].mxu0 %v3301
      %v3578 = vpop.f32.mrb[0].mxu0
      %v3579 = vadd.f32 %v3514, %v3578
      %v3580 = vpop.f32.mrb[0].mxu0
      %v3581 = vpop.f32.mrb[0].mxu0
      %v3582 = vadd.f32 %v3517, %v3581
      %v3583 = vpop.f32.mrb[0].mxu0
      %3584 = vdwg.mxu0
      %vm3585 = vcmask 1042432
      %vm3586 = vcmask 1046532
      %vm3587 = vmor %vm3585, %vm3586
      %v3588 = vrot.slane %v2671, 5
      %v3589 = vrot.slane %v3588, 4
      %v3590 = vrot.slane %v2673, 5
      %v3591 = vsel %vm3587, %v3589, %v3590
      %v3592 = vrot.slane %v2672, 5
      %v3593 = vrot.slane %v3592, 4
      %v3594 = vrot.slane %v2674, 5
      %v3595 = vsel %vm3587, %v3593, %v3594
      %v3596 = vrot.slane %v2675, 5
      %v3597 = vrot.slane %v3596, 4
      %v3598 = vrot.slane %v2677, 5
      %v3599 = vsel %vm3587, %v3597, %v3598
      %v3600 = vrot.slane %v2676, 5
      %v3601 = vrot.slane %v3600, 4
      %v3602 = vrot.slane %v2678, 5
      %v3603 = vsel %vm3587, %v3601, %v3602
      %v3604 = vrot.slane %v2679, 5
      %v3605 = vrot.slane %v3604, 4
      %v3606 = vrot.slane %v2681, 5
      %v3607 = vsel %vm3587, %v3605, %v3606
      %v3608 = vrot.slane %v2680, 5
      %v3609 = vrot.slane %v3608, 4
      %v3610 = vrot.slane %v2682, 5
      %v3611 = vsel %vm3587, %v3609, %v3610
      %v3612 = vrot.slane %v2683, 5
      %v3613 = vrot.slane %v3612, 4
      %v3614 = vrot.slane %v2685, 5
      %v3615 = vsel %vm3587, %v3613, %v3614
      %v3616 = vrot.slane %v2684, 5
      %v3617 = vrot.slane %v3616, 4
      %v3618 = vrot.slane %v2686, 5
      %v3619 = vsel %vm3587, %v3617, %v3618
      %v3620 = vrot.slane %v2687, 5
      %v3621 = vrot.slane %v3620, 4
      %v3622 = vrot.slane %v2689, 5
      %v3623 = vsel %vm3587, %v3621, %v3622
      %v3624 = vrot.slane %v2688, 5
      %v3625 = vrot.slane %v3624, 4
      %v3626 = vrot.slane %v2690, 5
      %v3627 = vsel %vm3587, %v3625, %v3626
      %v3628 = vrot.slane %v2691, 5
      %v3629 = vrot.slane %v3628, 4
      %v3630 = vrot.slane %v2693, 5
      %v3631 = vsel %vm3587, %v3629, %v3630
      %v3632 = vrot.slane %v2692, 5
      %v3633 = vrot.slane %v3632, 4
      %v3634 = vrot.slane %v2694, 5
      %v3635 = vsel %vm3587, %v3633, %v3634
      %v3636 = vrot.slane %v2695, 5
      %v3637 = vrot.slane %v3636, 4
      %v3638 = vrot.slane %v2697, 5
      %v3639 = vsel %vm3587, %v3637, %v3638
      %v3640 = vrot.slane %v2696, 5
      %v3641 = vrot.slane %v3640, 4
      %v3642 = vrot.slane %v2698, 5
      %v3643 = vsel %vm3587, %v3641, %v3642
      %v3644 = vrot.slane %v2699, 5
      %v3645 = vrot.slane %v3644, 4
      %v3646 = vrot.slane %v2701, 5
      %v3647 = vsel %vm3587, %v3645, %v3646
      %v3648 = vrot.slane %v2700, 5
      %v3649 = vrot.slane %v3648, 4
      %v3650 = vrot.slane %v2702, 5
      %v3651 = vsel %vm3587, %v3649, %v3650
      %s3652 = scalar_lea.vmem %s4, 384
      %v3653 = vld [vmem:[%s3652] sm:$0xf]
      %v3654 = vld [vmem:[%s3652 + $0x4] sm:$0xf]
      %v3655 = vld [vmem:[%s3652 + $0x8] sm:$0xf]
      %v3656 = vld [vmem:[%s3652 + $0xc] sm:$0xf]
      %v3657 = vld [vmem:[%s3652 + $0x10] sm:$0xf]
      %v3658 = vld [vmem:[%s3652 + $0x14] sm:$0xf]
      %v3659 = vld [vmem:[%s3652 + $0x18] sm:$0xf]
      %v3660 = vld [vmem:[%s3652 + $0x1c] sm:$0xf]
      %v3661 = vld [vmem:[%s3652 + $0x20] sm:$0xf]
      %v3662 = vld [vmem:[%s3652 + $0x24] sm:$0xf]
      %v3663 = vld [vmem:[%s3652 + $0x28] sm:$0xf]
      %v3664 = vld [vmem:[%s3652 + $0x2c] sm:$0xf]
      %v3665 = vld [vmem:[%s3652 + $0x30] sm:$0xf]
      %v3666 = vld [vmem:[%s3652 + $0x34] sm:$0xf]
      %v3667 = vld [vmem:[%s3652 + $0x38] sm:$0xf]
      %v3668 = vld [vmem:[%s3652 + $0x3c] sm:$0xf]
      %v3669 = vld [vmem:[%s3652 + $0x40] sm:$0xf]
      %v3670 = vld [vmem:[%s3652 + $0x44] sm:$0xf]
      %v3671 = vld [vmem:[%s3652 + $0x48] sm:$0xf]
      %v3672 = vld [vmem:[%s3652 + $0x4c] sm:$0xf]
      %v3673 = vld [vmem:[%s3652 + $0x50] sm:$0xf]
      %v3674 = vld [vmem:[%s3652 + $0x54] sm:$0xf]
      %v3675 = vld [vmem:[%s3652 + $0x58] sm:$0xf]
      %v3676 = vld [vmem:[%s3652 + $0x5c] sm:$0xf]
      %v3677 = vld [vmem:[%s3652 + $0x60] sm:$0xf]
      %v3678 = vld [vmem:[%s3652 + $0x64] sm:$0xf]
      %v3679 = vld [vmem:[%s3652 + $0x68] sm:$0xf]
      %v3680 = vld [vmem:[%s3652 + $0x6c] sm:$0xf]
      %v3681 = vld [vmem:[%s3652 + $0x70] sm:$0xf]
      %v3682 = vld [vmem:[%s3652 + $0x74] sm:$0xf]
      %v3683 = vld [vmem:[%s3652 + $0x78] sm:$0xf]
      %v3684 = vld [vmem:[%s3652 + $0x7c] sm:$0xf]
      %v3685 = vld [vmem:[%s3652 + $0x80] sm:$0xf]
      %v3686 = vld [vmem:[%s3652 + $0x84] sm:$0xf]
      %v3687 = vld [vmem:[%s3652 + $0x88] sm:$0xf]
      %v3688 = vld [vmem:[%s3652 + $0x8c] sm:$0xf]
      %v3689 = vld [vmem:[%s3652 + $0x90] sm:$0xf]
      %v3690 = vld [vmem:[%s3652 + $0x94] sm:$0xf]
      %v3691 = vld [vmem:[%s3652 + $0x98] sm:$0xf]
      %v3692 = vld [vmem:[%s3652 + $0x9c] sm:$0xf]
      %v3693 = vld [vmem:[%s3652 + $0xa0] sm:$0xf]
      %v3694 = vld [vmem:[%s3652 + $0xa4] sm:$0xf]
      %v3695 = vld [vmem:[%s3652 + $0xa8] sm:$0xf]
      %v3696 = vld [vmem:[%s3652 + $0xac] sm:$0xf]
      %v3697 = vld [vmem:[%s3652 + $0xb0] sm:$0xf]
      %v3698 = vld [vmem:[%s3652 + $0xb4] sm:$0xf]
      %v3699 = vld [vmem:[%s3652 + $0xb8] sm:$0xf]
      %v3700 = vld [vmem:[%s3652 + $0xbc] sm:$0xf]
      %v3701 = vunpack.c.l.b16 %v3591
      %v3702 = vunpack.c.h.b16 %v3591
      %v3703 = vunpack.c.l.b16 %v3595
      %v3704 = vunpack.c.l.b16 %v3599
      %v3705 = vunpack.c.h.b16 %v3599
      %v3706 = vunpack.c.l.b16 %v3603
      %v3707 = vunpack.c.l.b16 %v3607
      %v3708 = vunpack.c.h.b16 %v3607
      %v3709 = vunpack.c.l.b16 %v3611
      %v3710 = vunpack.c.l.b16 %v3615
      %v3711 = vunpack.c.h.b16 %v3615
      %v3712 = vunpack.c.l.b16 %v3619
      %v3713 = vunpack.c.l.b16 %v3623
      %v3714 = vunpack.c.h.b16 %v3623
      %v3715 = vunpack.c.l.b16 %v3627
      %v3716 = vunpack.c.l.b16 %v3631
      %v3717 = vunpack.c.h.b16 %v3631
      %v3718 = vunpack.c.l.b16 %v3635
      %v3719 = vunpack.c.l.b16 %v3639
      %v3720 = vunpack.c.h.b16 %v3639
      %v3721 = vunpack.c.l.b16 %v3643
      %v3722 = vunpack.c.l.b16 %v3647
      %v3723 = vunpack.c.h.b16 %v3647
      %v3724 = vunpack.c.l.b16 %v3651
      %v3725 = vpack.c.b16 %v3704, %v3701
      %v3726 = vpack.c.b16 %v3705, %v3702
      %v3727 = vpack.c.b16 %v3706, %v3703
      %v3728 = vpack.c.b16 %v3710, %v3707
      %v3729 = vpack.c.b16 %v3711, %v3708
      %v3730 = vpack.c.b16 %v3712, %v3709
      %v3731 = vpack.c.b16 %v3716, %v3713
      %v3732 = vpack.c.b16 %v3717, %v3714
      %v3733 = vpack.c.b16 %v3718, %v3715
      %v3734 = vpack.c.b16 %v3722, %v3719
      %v3735 = vpack.c.b16 %v3723, %v3720
      %v3736 = vpack.c.b16 %v3724, %v3721
      %v3797 = vunpack.c.l.b16 %v3653
      %v3798 = vunpack.c.l.b16 %v3654
      %v3799 = vunpack.c.l.b16 %v3655
      %v3800 = vunpack.c.l.b16 %v3656
      %v3801 = vunpack.c.l.b16 %v3657
      %v3802 = vunpack.c.l.b16 %v3658
      %v3803 = vunpack.c.l.b16 %v3659
      %v3804 = vunpack.c.l.b16 %v3660
      %v3805 = vunpack.c.l.b16 %v3661
      %v3806 = vunpack.c.l.b16 %v3662
      %v3807 = vunpack.c.l.b16 %v3663
      %v3808 = vunpack.c.l.b16 %v3664
      %v3809 = vunpack.c.l.b16 %v3665
      %v3810 = vunpack.c.l.b16 %v3666
      %v3811 = vunpack.c.l.b16 %v3667
      %v3812 = vunpack.c.l.b16 %v3668
      %v3813 = vunpack.c.l.b16 %v3669
      %v3814 = vunpack.c.l.b16 %v3670
      %v3815 = vunpack.c.l.b16 %v3671
      %v3816 = vunpack.c.l.b16 %v3672
      %v3817 = vunpack.c.l.b16 %v3673
      %v3818 = vunpack.c.l.b16 %v3674
      %v3819 = vunpack.c.l.b16 %v3675
      %v3820 = vunpack.c.l.b16 %v3676
      %v3821 = vunpack.c.l.b16 %v3677
      %v3822 = vunpack.c.l.b16 %v3678
      %v3823 = vunpack.c.l.b16 %v3679
      %v3824 = vunpack.c.l.b16 %v3680
      %v3825 = vunpack.c.l.b16 %v3681
      %v3826 = vunpack.c.l.b16 %v3682
      %v3827 = vunpack.c.l.b16 %v3683
      %v3828 = vunpack.c.l.b16 %v3684
      %v3829 = vunpack.c.l.b16 %v3685
      %v3830 = vunpack.c.l.b16 %v3686
      %v3831 = vunpack.c.l.b16 %v3687
      %v3832 = vunpack.c.l.b16 %v3688
      %v3833 = vunpack.c.l.b16 %v3689
      %v3834 = vunpack.c.l.b16 %v3690
      %v3835 = vunpack.c.l.b16 %v3691
      %v3836 = vunpack.c.l.b16 %v3692
      %v3837 = vunpack.c.l.b16 %v3693
      %v3838 = vunpack.c.l.b16 %v3694
      %v3839 = vunpack.c.l.b16 %v3695
      %v3840 = vunpack.c.l.b16 %v3696
      %v3841 = vunpack.c.l.b16 %v3697
      %v3842 = vunpack.c.l.b16 %v3698
      %v3843 = vunpack.c.l.b16 %v3699
      %v3844 = vunpack.c.l.b16 %v3700
      %v3845 = vpack.c.b16 %v3798, %v3797
      %v3846 = vpack.c.b16 %v3800, %v3799
      %v3847 = vpack.c.b16 %v3802, %v3801
      %v3848 = vpack.c.b16 %v3804, %v3803
      %v3849 = vpack.c.b16 %v3806, %v3805
      %v3850 = vpack.c.b16 %v3808, %v3807
      %v3851 = vpack.c.b16 %v3810, %v3809
      %v3852 = vpack.c.b16 %v3812, %v3811
      %v3853 = vpack.c.b16 %v3814, %v3813
      %v3854 = vpack.c.b16 %v3816, %v3815
      %v3855 = vpack.c.b16 %v3818, %v3817
      %v3856 = vpack.c.b16 %v3820, %v3819
      %v3857 = vpack.c.b16 %v3822, %v3821
      %v3858 = vpack.c.b16 %v3824, %v3823
      %v3859 = vpack.c.b16 %v3826, %v3825
      %v3860 = vpack.c.b16 %v3828, %v3827
      %v3861 = vpack.c.b16 %v3830, %v3829
      %v3862 = vpack.c.b16 %v3832, %v3831
      %v3863 = vpack.c.b16 %v3834, %v3833
      %v3864 = vpack.c.b16 %v3836, %v3835
      %v3865 = vpack.c.b16 %v3838, %v3837
      %v3866 = vpack.c.b16 %v3840, %v3839
      %v3867 = vpack.c.b16 %v3842, %v3841
      %v3868 = vpack.c.b16 %v3844, %v3843
      %3893 = vmatprep.subr.bf16.mxu0 0
      %3894 = vmatpush1.bf16.msra.mxu0 %v3845
      %3895 = vmatprep.subr.bf16.mxu0 0
      %3896 = vmatpush1.bf16.msra.mxu0 %v3846
      %3897 = vmatprep.subr.bf16.mxu0 0
      %3898 = vmatpush1.bf16.msra.mxu0 %v3847
      %3899 = vmatprep.subr.bf16.mxu0 0
      %3900 = vmatpush1.bf16.msra.mxu0 %v3848
      %3901 = vmatprep.subr.bf16.mxu0 0
      %3902 = vmatpush1.bf16.msra.mxu0 %v3849
      %3903 = vmatprep.subr.bf16.mxu0 0
      %3904 = vmatpush1.bf16.msra.mxu0 %v3850
      %3905 = vmatprep.subr.bf16.mxu0 0
      %3906 = vmatpush1.bf16.msra.mxu0 %v3851
      %3907 = vmatprep.subr.bf16.mxu0 0
      %3908 = vmatpush1.bf16.msra.mxu0 %v3852
      %3909 = vmatprep.subr.bf16.mxu0 0
      %3910 = vmatpush1.bf16.msra.mxu0 %v3853
      %3911 = vmatprep.subr.bf16.mxu0 0
      %3912 = vmatpush1.bf16.msra.mxu0 %v3854
      %3913 = vmatprep.subr.bf16.mxu0 0
      %3914 = vmatpush1.bf16.msra.mxu0 %v3855
      %3915 = vmatprep.subr.bf16.mxu0 0
      %3916 = vmatpush1.bf16.msra.mxu0 %v3856
      %3917 = vmatprep.subr.bf16.mxu0 0
      %3918 = vmatpush1.bf16.msra.mxu0 %v3857
      %3919 = vmatprep.subr.bf16.mxu0 0
      %3920 = vmatpush1.bf16.msra.mxu0 %v3858
      %3921 = vmatprep.subr.bf16.mxu0 0
      %3922 = vmatpush1.bf16.msra.mxu0 %v3859
      %3923 = vmatprep.subr.bf16.mxu0 0
      %3924 = vmatpush1.bf16.msra.mxu0 %v3860
      %3925 = vmatprep.mubr.bf16.mxu0 %v3726
      %3926 = vmatmul.mubr.bf16.gmra.mrb[0].mxu0 %v3725
      %v3927 = vpop.f32.mrb[0].mxu0
      %v3928 = vadd.f32 0.0, %v3927
      %v3929 = vpop.f32.mrb[0].mxu0
      %v3930 = vpop.f32.mrb[0].mxu0
      %v3931 = vadd.f32 0.0, %v3930
      %v3932 = vpop.f32.mrb[0].mxu0
      %3933 = vmatprep.mubr.bf16.mxu0 %v3729
      %3934 = vmatmul.mubr.bf16.gmra.mrb[0].mxu0 %v3728
      %v3935 = vpop.f32.mrb[0].mxu0
      %v3936 = vadd.f32 0.0, %v3935
      %v3937 = vpop.f32.mrb[0].mxu0
      %v3938 = vpop.f32.mrb[0].mxu0
      %v3939 = vadd.f32 0.0, %v3938
      %v3940 = vpop.f32.mrb[0].mxu0
      %3941 = vmatprep.mubr.bf16.mxu0 %v3732
      %3942 = vmatmul.mubr.bf16.gmra.mrb[0].mxu0 %v3731
      %v3943 = vpop.f32.mrb[0].mxu0
      %v3944 = vadd.f32 0.0, %v3943
      %v3945 = vpop.f32.mrb[0].mxu0
      %v3946 = vpop.f32.mrb[0].mxu0
      %v3947 = vadd.f32 0.0, %v3946
      %v3948 = vpop.f32.mrb[0].mxu0
      %3949 = vmatprep.mubr.bf16.mxu0 %v3735
      %3950 = vmatmul.mubr.bf16.gmra.mrb[0].mxu0 %v3734
      %v3951 = vpop.f32.mrb[0].mxu0
      %v3952 = vadd.f32 0.0, %v3951
      %v3953 = vpop.f32.mrb[0].mxu0
      %v3954 = vpop.f32.mrb[0].mxu0
      %v3955 = vadd.f32 0.0, %v3954
      %v3956 = vpop.f32.mrb[0].mxu0
      %3957 = vdwg.mxu0
      %3958 = vmatprep.subr.bf16.mxu0 0
      %3959 = vmatpush1.bf16.msra.mxu0 %v3861
      %3960 = vmatprep.subr.bf16.mxu0 0
      %3961 = vmatpush1.bf16.msra.mxu0 %v3862
      %3962 = vmatprep.subr.bf16.mxu0 0
      %3963 = vmatpush1.bf16.msra.mxu0 %v3863
      %3964 = vmatprep.subr.bf16.mxu0 0
      %3965 = vmatpush1.bf16.msra.mxu0 %v3864
      %3966 = vmatprep.subr.bf16.mxu0 0
      %3967 = vmatpush1.bf16.msra.mxu0 %v3865
      %3968 = vmatprep.subr.bf16.mxu0 0
      %3969 = vmatpush1.bf16.msra.mxu0 %v3866
      %3970 = vmatprep.subr.bf16.mxu0 0
      %3971 = vmatpush1.bf16.msra.mxu0 %v3867
      %3972 = vmatprep.subr.bf16.mxu0 0
      %3973 = vmatpush1.bf16.msra.mxu0 %v3868
      %3974 = vmatprep.subr.bf16.mxu0 0
      %3975 = vmatpush1.bf16.msra.mxu0 0
      %3976 = vmatprep.subr.bf16.mxu0 0
      %3977 = vmatpush1.bf16.msra.mxu0 0
      %3978 = vmatprep.subr.bf16.mxu0 0
      %3979 = vmatpush1.bf16.msra.mxu0 0
      %3980 = vmatprep.subr.bf16.mxu0 0
      %3981 = vmatpush1.bf16.msra.mxu0 0
      %3982 = vmatprep.subr.bf16.mxu0 0
      %3983 = vmatpush1.bf16.msra.mxu0 0
      %3984 = vmatprep.subr.bf16.mxu0 0
      %3985 = vmatpush1.bf16.msra.mxu0 0
      %3986 = vmatprep.subr.bf16.mxu0 0
      %3987 = vmatpush1.bf16.msra.mxu0 0
      %3988 = vmatprep.subr.bf16.mxu0 0
      %3989 = vmatpush1.bf16.msra.mxu0 0
      %3990 = vmatprep.mubr.bf16.mxu0 0
      %3991 = vmatmul.mubr.bf16.gmra.mrb[0].mxu0 %v3727
      %v3992 = vpop.f32.mrb[0].mxu0
      %v3993 = vadd.f32 %v3928, %v3992
      %v3994 = vpop.f32.mrb[0].mxu0
      %v3995 = vpop.f32.mrb[0].mxu0
      %v3996 = vadd.f32 %v3931, %v3995
      %v3997 = vpop.f32.mrb[0].mxu0
      %3998 = vmatprep.mubr.bf16.mxu0 0
      %3999 = vmatmul.mubr.bf16.gmra.mrb[0].mxu0 %v3730
      %v4000 = vpop.f32.mrb[0].mxu0
      %v4001 = vadd.f32 %v3936, %v4000
      %v4002 = vpop.f32.mrb[0].mxu0
      %v4003 = vpop.f32.mrb[0].mxu0
      %v4004 = vadd.f32 %v3939, %v4003
      %v4005 = vpop.f32.mrb[0].mxu0
      %4006 = vmatprep.mubr.bf16.mxu0 0
      %4007 = vmatmul.mubr.bf16.gmra.mrb[0].mxu0 %v3733
      %v4008 = vpop.f32.mrb[0].mxu0
      %v4009 = vadd.f32 %v3944, %v4008
      %v4010 = vpop.f32.mrb[0].mxu0
      %v4011 = vpop.f32.mrb[0].mxu0
      %v4012 = vadd.f32 %v3947, %v4011
      %v4013 = vpop.f32.mrb[0].mxu0
      %4014 = vmatprep.mubr.bf16.mxu0 0
      %4015 = vmatmul.mubr.bf16.gmra.mrb[0].mxu0 %v3736
      %v4016 = vpop.f32.mrb[0].mxu0
      %v4017 = vadd.f32 %v3952, %v4016
      %v4018 = vpop.f32.mrb[0].mxu0
      %v4019 = vpop.f32.mrb[0].mxu0
      %v4020 = vadd.f32 %v3955, %v4019
      %v4021 = vpop.f32.mrb[0].mxu0
      %4022 = vdwg.mxu0
      %v4023 = vadd.f32 %v3555, %v3993
      %v4024 = vadd.f32 %v3558, %v3996
      %v4025 = vadd.f32 %v3563, %v4001
      %v4026 = vadd.f32 %v3566, %v4004
      %v4027 = vadd.f32 %v3571, %v4009
      %v4028 = vadd.f32 %v3574, %v4012
      %v4029 = vadd.f32 %v3579, %v4017
      %v4030 = vadd.f32 %v3582, %v4020
      %v4031 = vld [vmem:[%s5] sm:$0x1]
      %v4033 = vlaneseq
      %v4034 = vshrl.u32 %v4033, 7
      %v4035 = vsub.s32 0, %v4034
      %v4036 = vrot.slane %v4031, %v4035
      %v4038 = vadd.f32 %v4023, %v4036
      %v4039 = vadd.f32 %v4024, %v4036
      %v4040 = vadd.f32 %v4025, %v4036
      %v4041 = vadd.f32 %v4026, %v4036
      %v4042 = vadd.f32 %v4027, %v4036
      %v4043 = vadd.f32 %v4028, %v4036
      %v4044 = vadd.f32 %v4029, %v4036
      %v4045 = vadd.f32 %v4030, %v4036
      %v4046 = vpack.c.bf16 %v4038, %v4038
      %v4047 = vpack.c.bf16 %v4039, %v4039
      %v4048 = vpack.c.bf16 %v4040, %v4040
      %v4049 = vpack.c.bf16 %v4041, %v4041
      %v4050 = vpack.c.bf16 %v4042, %v4042
      %v4051 = vpack.c.bf16 %v4043, %v4043
      %v4052 = vpack.c.bf16 %v4044, %v4044
      %v4053 = vpack.c.bf16 %v4045, %v4045
      %4054 = vst [vmem:[%s321] sm:$0xf] %v4046
      %4055 = vst [vmem:[%s321 + $0x4] sm:$0xf] %v4047
      %4056 = vst [vmem:[%s321 + $0x8] sm:$0xf] %v4048
      %4057 = vst [vmem:[%s321 + $0xc] sm:$0xf] %v4049
      %4058 = vst [vmem:[%s321 + $0x10] sm:$0xf] %v4050
      %4059 = vst [vmem:[%s321 + $0x14] sm:$0xf] %v4051
      %4060 = vst [vmem:[%s321 + $0x18] sm:$0xf] %v4052
      %4061 = vst [vmem:[%s321 + $0x1c] sm:$0xf] %v4053
      %p4062 = scmp.lt.s32.totalorder %s21, 3
      %s4063 = scalar_select %p4062, %s21, 3
      %p4064 = scmp.lt.s32.totalorder %s22, 0
      %s4065 = scalar_select %p4064, %s22, 0
      %s4066 = smul.addr %s4065, 8
      %s4067 = smul.addr %s4063, 8
      %s4068 = sadd.s32 %s4066, %s4067
      %s4069 = smul.addr %s4068, 4
      %s4070 = scalar_lea.vmem %s6, %s4069
      // Predicated region
      $region45: #{camera_features_forward.6} parent=43 // pred_check
        %p4071 = pneg %p189
      $region46: #{camera_features_forward.6} parent=43 // pred_check_branch
        %4073 = sbr.rel (%p4071) target = $region48
      $region47: #{camera_features_forward.6} parent=43 // pred_region
        _
      $region48: #{camera_features_forward.6} parent=43 // pred_fallthru
        _
    $region44: #{camera_features_forward.6} parent=5 // pred_fallthru
      _
    %p4074 = scmp.le.s32.totalorder 2, %s12
    // Predicated region
    $region49: #{camera_features_forward.6} parent=5 // pred_check
      %p4075 = pneg %p4074
    $region50: #{camera_features_forward.6} parent=5 // pred_check_branch
      %4077 = sbr.rel (%p4075) target = $region52
    $region51: #{camera_features_forward.6} parent=5 // pred_region
      %s4078 = ssub.s32 %s12, 2
      // Predicated region
      $region53: #{camera_features_forward.6} parent=51 // pred_check
        %p4079 = pneg %p195
      $region54: #{camera_features_forward.6} parent=51 // pred_check_branch
        %4081 = sbr.rel (%p4079) target = $region56
      $region55: #{camera_features_forward.6} parent=51 // pred_region
        %p4082 = scmp.lt.s32.totalorder %s23, 3
        %s4083 = scalar_select %p4082, %s23, 3
        %p4084 = scmp.lt.s32.totalorder %s24, 0
        %s4085 = scalar_select %p4084, %s24, 0
        %s4086 = smul.addr %s4085, 8
        %s4087 = smul.addr %s4083, 8
        %s4088 = sadd.s32 %s4086, %s4087
        %s4089 = smul.addr %s4088, 4
        %s4090 = scalar_lea.vmem %s6, %s4089
      $region56: #{camera_features_forward.6} parent=51 // pred_fallthru
        _
    $region52: #{camera_features_forward.6} parent=5 // pred_fallthru
      _
  $region6: #{camera_features_forward.6} parent=0 // loop_footer
    %s16 = sadd.s32 1, %s12
  $region7: #{camera_features_forward.6} parent=0 // loop_footer_branch
    %11 = sbr.rel target = $region3
  $region8: #{camera_features_forward.6} parent=0 // loop_exit
    _

</llo_original>
